<compile_context>
chip_gen: v7x
topology: tpu7x:2x2x1
jax: 0.10.0
libtpu: 0.0.40
codegen_flags: <defaults>
</compile_context>

<pallas_src>
import functools

import jax
import jax.numpy as jnp
from jax.experimental import pallas as pl
from jax.experimental.pallas import tpu as pltpu

COMPUTE_DTYPE = jnp.bfloat16       # MXU operand / intermediate activation dtype
VMEM_LIMIT = 32 * 1024 * 1024      # safe scoped limit on v5e/v6e (128 MiB) and v7x (64 MiB)


# ---------------------------------------------------------------------------
# Tile-size helpers
# ---------------------------------------------------------------------------

def _pick_tile(n, per_item_bytes, budget=8 * 1024 * 1024, cap=128):
    """Largest divisor of n (<= cap) whose rough VMEM footprint stays under budget."""
    best = 1
    for t in range(1, min(n, cap) + 1):
        if n % t == 0 and t * per_item_bytes <= budget:
            best = t
    return best


def _pick_stat_tile(S, C, budget=4 * 1024 * 1024):
    best = None
    for ts in range(8, S + 1, 8):
        if S % ts == 0 and ts * C * 4 <= budget:
            best = ts
    return best if best is not None else S


# ---------------------------------------------------------------------------
# Standalone GroupNorm statistics (only needed for the block input)
# ---------------------------------------------------------------------------

def _gn_stats_kernel(x_ref, o_ref):
    @pl.when(pl.program_id(1) == 0)
    def _():
        o_ref[...] = jnp.zeros_like(o_ref)

    x = x_ref[0].astype(jnp.float32)                      # (ts, C)
    s1 = jnp.sum(x, axis=0, keepdims=True)                # (1, C)
    s2 = jnp.sum(x * x, axis=0, keepdims=True)            # (1, C)
    o_ref[...] += jnp.concatenate([s1, s2], axis=0)[None]  # (1, 2, C)


def channel_sums(x2d):
    """x2d: (Bn, S, C) -> per-channel [sum, sum_sq] of shape (Bn, 2, C), fp32."""
    Bn, S, C = x2d.shape
    ts = _pick_stat_tile(S, C)
    return pl.pallas_call(
        _gn_stats_kernel,
        grid=(Bn, S // ts),
        in_specs=[pl.BlockSpec((1, ts, C), lambda b, s: (b, s, 0))],
        out_specs=pl.BlockSpec((1, 2, C), lambda b, s: (b, 0, 0)),
        out_shape=jax.ShapeDtypeStruct((Bn, 2, C), jnp.float32),
        compiler_params=pltpu.CompilerParams(
            dimension_semantics=("parallel", "arbitrary"),
            vmem_limit_bytes=VMEM_LIMIT),
    )(x2d)


def _gn_affine_from_sums(s1, s2, count, gamma, beta, groups, eps):
    """Per-channel (scale, shift) so that gn(x) = x*scale + shift."""
    B, C = s1.shape
    gs = C // groups
    g1 = s1.reshape(B, groups, gs).sum(-1)
    g2 = s2.reshape(B, groups, gs).sum(-1)
    cnt = float(count * gs)
    mean = g1 / cnt
    var = jnp.maximum(g2 / cnt - mean * mean, 0.0)        # clamp: E[x^2]-E[x]^2 cancellation
    inv = jax.lax.rsqrt(var + eps)
    mean_c = jnp.repeat(mean, gs, axis=1)                 # (B, C)
    inv_c = jnp.repeat(inv, gs, axis=1)
    scale = gamma[None, :] * inv_c
    shift = beta[None, :] - mean_c * scale
    return scale, shift


# ---------------------------------------------------------------------------
# Fused GN-affine + SiLU + 3x3 conv + bias (+ residual / shortcut / stats / 2x rows)
# ---------------------------------------------------------------------------

def _conv3x3_kernel(xm_ref, xt_ref, xb_ref, scale_ref, shift_ref, w_ref, b_ref, *rest,
                    tr, src_tr, W, Cin, Cout, act, has_res, has_sc, has_stats,
                    upsample, out_scale):
    i = 0
    if has_sc:
        scw_ref = rest[i]
        scb_ref = rest[i + 1]
        i += 2
    if has_res:
        res_ref = rest[i]
        i += 1
    o_ref = rest[i]
    i += 1
    if has_stats:
        st_ref = rest[i]
        i += 1
    if has_sc:
        sco_ref = rest[i]
        i += 1

    r = pl.program_id(1)
    n_r = pl.num_programs(1)

    xm = xm_ref[0]                                        # (src_tr, W, Cin)
    xt = xt_ref[0]                                        # (1, W, Cin) clamped halo row
    xb = xb_ref[0]                                        # (1, W, Cin) clamped halo row

    if upsample:  # nearest 2x in rows, fused (leading-dim broadcast + reshape only)
        xmain = jnp.broadcast_to(xm[:, None], (src_tr, 2, W, Cin)).reshape(tr, W, Cin)
    else:
        xmain = xm
    win = jnp.concatenate([xt, xmain, xb], axis=0).astype(jnp.float32)   # (tr+2, W, Cin)

    if act:
        y = win * scale_ref[...].astype(jnp.float32) + shift_ref[...].astype(jnp.float32)
        y = y * jax.nn.sigmoid(y)                         # SiLU
    else:
        y = win
    # conv zero padding applies AFTER GN+SiLU / after upsampling -> zero boundary halos
    row = jax.lax.broadcasted_iota(jnp.int32, (tr + 2, 1, 1), 0)
    row_lo = jnp.where(r == 0, 1, 0)
    row_hi = jnp.where(r == n_r - 1, tr, tr + 1)
    y = jnp.where((row >= row_lo) & (row <= row_hi), y, 0.0)
    y = y.astype(w_ref.dtype)                             # bf16 MXU operand

    # zero-pad width by one column each side, fold kx into channels
    zcol = jnp.zeros((tr + 2, 1, Cin), y.dtype)
    yp = jnp.concatenate([zcol, y, zcol], axis=1)         # (tr+2, W+2, Cin)
    yc = jnp.concatenate([yp[:, 0:W], yp[:, 1:W + 1], yp[:, 2:W + 2]],
                         axis=-1)                         # (tr+2, W, 3*Cin)

    acc = jnp.zeros((tr * W, Cout), jnp.float32)
    for ky in range(3):
        acc = acc + jnp.dot(yc[ky:ky + tr].reshape(tr * W, 3 * Cin), w_ref[ky],
                            preferred_element_type=jnp.float32)
    out = acc + b_ref[...].reshape(1, Cout).astype(jnp.float32)
    if has_res:
        out = out + res_ref[...].astype(jnp.float32).reshape(tr * W, Cout)
    if out_scale != 1.0:
        out = out * out_scale
    o_ref[...] = out.reshape(1, tr, W, Cout).astype(o_ref.dtype)

    if has_stats:  # per-channel [sum, sum^2] of this layer's output (next GroupNorm)
        @pl.when(r == 0)
        def _():
            st_ref[...] = jnp.zeros_like(st_ref)
        s1 = jnp.sum(out, axis=0, keepdims=True)
        s2 = jnp.sum(out * out, axis=0, keepdims=True)
        st_ref[...] += jnp.concatenate([s1, s2], axis=0)[None]

    if has_sc:     # fused 1x1 shortcut conv on the raw (unnormalized) input tile
        scm = xm.astype(scw_ref.dtype).reshape(tr * W, Cin)
        sc = jnp.dot(scm, scw_ref[...], preferred_element_type=jnp.float32)
        sc = sc + scb_ref[...].astype(jnp.float32)
        sco_ref[...] = sc.reshape(1, tr, W, Cout).astype(sco_ref.dtype)


def conv3x3(x, scale, shift, w_taps, bias, *, act=True, residual=None,
            shortcut_w=None, shortcut_b=None, want_stats=False,
            upsample_rows=False, out_scale=1.0, out_dtype=None):
    """x: (BN, H_src, W, Cin). w_taps: (3, 3*Cin, Cout) (ky, kx*Cin, Cout).
    Computes conv3x3(silu(x*scale+shift)) + bias (+ residual), optionally on the
    row-doubled (nearest 2x) image, with optional fused GN stats and 1x1 shortcut."""
    BN, H_src, W, Cin = x.shape
    Cout = w_taps.shape[-1]
    if out_dtype is None:
        out_dtype = COMPUTE_DTYPE
    has_res = residual is not None
    has_sc = shortcut_w is not None
    assert not (has_sc and upsample_rows)

    if scale is None:
        scale = jnp.ones((BN, Cin), jnp.float32)
        shift = jnp.zeros((BN, Cin), jnp.float32)

    mult = 2 if upsample_rows else 1
    per_src_row = W * (Cin * 14 + Cout * 14) * mult
    src_tr = _pick_tile(H_src, per_src_row)
    tr = mult * src_tr
    n_r = H_src // src_tr
    H_out = mult * H_src

    kern = functools.partial(
        _conv3x3_kernel, tr=tr, src_tr=src_tr, W=W, Cin=Cin, Cout=Cout,
        act=act, has_res=has_res, has_sc=has_sc, has_stats=want_stats,
        upsample=upsample_rows, out_scale=float(out_scale))

    in_specs = [
        pl.BlockSpec((1, src_tr, W, Cin), lambda b, r: (b, r, 0, 0)),
        pl.BlockSpec((1, 1, W, Cin),
                     lambda b, r: (b, jnp.maximum(r * src_tr - 1, 0), 0, 0)),
        pl.BlockSpec((1, 1, W, Cin),
                     lambda b, r: (b, jnp.minimum((r + 1) * src_tr, H_src - 1), 0, 0)),
        pl.BlockSpec((1, 1, Cin), lambda b, r: (b, 0, 0)),
        pl.BlockSpec((1, 1, Cin), lambda b, r: (b, 0, 0)),
        pl.BlockSpec((3, 3 * Cin, Cout), lambda b, r: (0, 0, 0)),
        pl.BlockSpec((1, 1, Cout), lambda b, r: (0, 0, 0)),
    ]
    args = [x, x, x,
            scale.reshape(BN, 1, Cin).astype(jnp.float32),
            shift.reshape(BN, 1, Cin).astype(jnp.float32),
            w_taps.astype(COMPUTE_DTYPE),
            bias.reshape(1, 1, Cout).astype(jnp.float32)]
    if has_sc:
        in_specs += [pl.BlockSpec((Cin, Cout), lambda b, r: (0, 0)),
                     pl.BlockSpec((1, Cout), lambda b, r: (0, 0))]
        args += [shortcut_w.astype(COMPUTE_DTYPE),
                 shortcut_b.reshape(1, Cout).astype(jnp.float32)]
    if has_res:
        in_specs.append(pl.BlockSpec((1, tr, W, Cout), lambda b, r: (b, r, 0, 0)))
        args.append(residual)

    out_shapes = [jax.ShapeDtypeStruct((BN, H_out, W, Cout), out_dtype)]
    out_specs = [pl.BlockSpec((1, tr, W, Cout), lambda b, r: (b, r, 0, 0))]
    if want_stats:
        out_shapes.append(jax.ShapeDtypeStruct((BN, 2, Cout), jnp.float32))
        out_specs.append(pl.BlockSpec((1, 2, Cout), lambda b, r: (b, 0, 0)))
    if has_sc:
        out_shapes.append(jax.ShapeDtypeStruct((BN, H_src, W, Cout), COMPUTE_DTYPE))
        out_specs.append(pl.BlockSpec((1, tr, W, Cout), lambda b, r: (b, r, 0, 0)))

    dims = ("parallel", "arbitrary") if want_stats else ("parallel", "parallel")
    res = pl.pallas_call(
        kern,
        grid=(BN, n_r),
        in_specs=in_specs,
        out_specs=tuple(out_specs),
        out_shape=tuple(out_shapes),
        compiler_params=pltpu.CompilerParams(
            dimension_semantics=dims, vmem_limit_bytes=VMEM_LIMIT),
    )(*args)
    if not isinstance(res, (list, tuple)):
        res = (res,)
    return res[0] if len(res) == 1 else tuple(res)


# ---------------------------------------------------------------------------
# Fused GN-affine + SiLU + temporal (3,1,1) conv + bias (+ residual / stats)
# Ring of activated frame tiles: frame n activated once, output frame n-1 emitted.
# ---------------------------------------------------------------------------

def _tconv_kernel(x_ref, scale_ref, shift_ref, w_ref, b_ref, *rest,
                  tr, W, C, Cout, N, has_res, has_stats):
    i = 0
    if has_res:
        res_ref = rest[i]
        i += 1
    o_ref = rest[i]
    i += 1
    if has_stats:
        st_ref = rest[i]
        i += 1
    ring = rest[i]                                        # (3, tr, W, C) bf16 scratch

    n = pl.program_id(2)                                  # 0 .. N (inclusive)

    @pl.when(n < N)
    def _activate():
        xv = x_ref[0, 0].astype(jnp.float32)              # (tr, W, C), frame n
        y = xv * scale_ref[...].astype(jnp.float32) + shift_ref[...].astype(jnp.float32)
        y = y * jax.nn.sigmoid(y)                         # SiLU
        ring[n % 3] = y.astype(w_ref.dtype)

    @pl.when(n > 0)
    def _compute():
        m = n - 1                                         # output frame
        p = jnp.maximum(m - 1, 0) % 3                     # replicate temporal padding
        c = m % 3
        q = jnp.minimum(m + 1, N - 1) % 3
        acc = jnp.dot(ring[p].reshape(tr * W, C), w_ref[0],
                      preferred_element_type=jnp.float32)
        acc = acc + jnp.dot(ring[c].reshape(tr * W, C), w_ref[1],
                            preferred_element_type=jnp.float32)
        acc = acc + jnp.dot(ring[q].reshape(tr * W, C), w_ref[2],
                            preferred_element_type=jnp.float32)
        out = acc + b_ref[...].reshape(1, Cout).astype(jnp.float32)
        if has_res:
            out = out + res_ref[...].astype(jnp.float32).reshape(tr * W, Cout)
        o_ref[...] = out.reshape(1, 1, tr, W, Cout).astype(o_ref.dtype)
        if has_stats:
            s1 = jnp.sum(out, axis=0, keepdims=True)
            s2 = jnp.sum(out * out, axis=0, keepdims=True)
            st_ref[...] = jnp.concatenate([s1, s2], axis=0).reshape(1, 1, 1, 2, Cout)


def temporal_conv_fused(x, scale, shift, w_taps, bias, residual=None, want_stats=True):
    """x: (B, N, H, W, C); w_taps: (3, C, Cout).  Replicate temporal padding is handled
    by clamped tap indices; GN-affine+SiLU applied once per frame via a VMEM ring."""
    B, N, H, W, C = x.shape
    Cout = w_taps.shape[-1]
    per_row = W * (C * 14 + Cout * 12)
    tr = _pick_tile(H, per_row)
    n_r = H // tr
    has_res = residual is not None

    kern = functools.partial(_tconv_kernel, tr=tr, W=W, C=C, Cout=Cout, N=N,
                             has_res=has_res, has_stats=want_stats)
    in_specs = [
        pl.BlockSpec((1, 1, tr, W, C),
                     lambda b, r, n: (b, jnp.minimum(n, N - 1), r, 0, 0)),
        pl.BlockSpec((1, 1, C), lambda b, r, n: (b, 0, 0)),
        pl.BlockSpec((1, 1, C), lambda b, r, n: (b, 0, 0)),
        pl.BlockSpec((3, C, Cout), lambda b, r, n: (0, 0, 0)),
        pl.BlockSpec((1, 1, Cout), lambda b, r, n: (0, 0, 0)),
    ]
    args = [x,
            scale.reshape(B, 1, C).astype(jnp.float32),
            shift.reshape(B, 1, C).astype(jnp.float32),
            w_taps.astype(COMPUTE_DTYPE),
            bias.reshape(1, 1, Cout).astype(jnp.float32)]
    if has_res:
        in_specs.append(pl.BlockSpec((1, 1, tr, W, Cout),
                                     lambda b, r, n: (b, jnp.maximum(n - 1, 0), r, 0, 0)))
        args.append(residual)

    out_shapes = [jax.ShapeDtypeStruct((B, N, H, W, Cout), COMPUTE_DTYPE)]
    out_specs = [pl.BlockSpec((1, 1, tr, W, Cout),
                              lambda b, r, n: (b, jnp.maximum(n - 1, 0), r, 0, 0))]
    if want_stats:
        out_shapes.append(jax.ShapeDtypeStruct((B, N, n_r, 2, Cout), jnp.float32))
        out_specs.append(pl.BlockSpec((1, 1, 1, 2, Cout),
                                      lambda b, r, n: (b, jnp.maximum(n - 1, 0), r, 0, 0)))

    res = pl.pallas_call(
        kern,
        grid=(B, n_r, N + 1),
        in_specs=in_specs,
        out_specs=tuple(out_specs),
        out_shape=tuple(out_shapes),
        scratch_shapes=[pltpu.VMEM((3, tr, W, C), COMPUTE_DTYPE)],
        compiler_params=pltpu.CompilerParams(
            dimension_semantics=("parallel", "parallel", "arbitrary"),
            vmem_limit_bytes=VMEM_LIMIT),
    )(*args)
    if not isinstance(res, (list, tuple)):
        res = (res,)
    if want_stats:
        return res[0], res[1]
    return res[0]


# ---------------------------------------------------------------------------
# Weight layout helpers (torch layout -> kernel tap layout)
# ---------------------------------------------------------------------------

def _w3x3_taps(w):                                   # (Cout, Cin, 3, 3) -> (3, 3*Cin, Cout)
    cout, cin = w.shape[0], w.shape[1]
    return jnp.transpose(w, (2, 3, 1, 0)).reshape(3, 3 * cin, cout)


def _wtemp_taps(w):                                  # (Cout, Cin, 3, 1, 1) -> (3, Cin, Cout)
    return jnp.transpose(w[:, :, :, 0, 0], (2, 1, 0))


# ---------------------------------------------------------------------------
# Module forward passes
# ---------------------------------------------------------------------------

def resnet_block_2d(x, p, eps=1e-6, output_scale_factor=1.0):
    """ResnetBlock2D(pre_norm, temb=None). x: (BN, H, W, Cin).
    Returns (out, per-instance channel sums of out) for the downstream GroupNorm."""
    BN, H, W, Cin = x.shape
    Cout = p['w1'].shape[0]
    has_sc = 'ws' in p

    sums1 = channel_sums(x.reshape(BN, H * W, Cin))          # only standalone stats pass
    sc1, sh1 = _gn_affine_from_sums(sums1[:, 0], sums1[:, 1], H * W,
                                    p['g1'], p['be1'], 32, eps)
    if has_sc:
        h, st, shortcut = conv3x3(
            x, sc1, sh1, _w3x3_taps(p['w1']), p['b1'], act=True, want_stats=True,
            shortcut_w=p['ws'].reshape(Cout, Cin).T, shortcut_b=p['bs'])
    else:
        h, st = conv3x3(x, sc1, sh1, _w3x3_taps(p['w1']), p['b1'],
                        act=True, want_stats=True)
        shortcut = x
    sc2, sh2 = _gn_affine_from_sums(st[:, 0], st[:, 1], H * W,
                                    p['g2'], p['be2'], 32, eps)
    # dropout: inference-mode identity
    out, frame_sums = conv3x3(h, sc2, sh2, _w3x3_taps(p['w2']), p['b2'],
                              act=True, want_stats=True, residual=shortcut,
                              out_scale=1.0 / output_scale_factor)
    return out, frame_sums


def temporal_conv_block(h, frame_sums, p, eps=1e-5):
    """TemporalConvBlock (no up/down sample, spa_stride=1). h: (B, N, H, W, C).
    frame_sums: per-frame channel [sum, sum^2] of h, shape (B, N, 2, C)."""
    B, N, H, W, C = h.shape
    identity = h
    cur = h
    cur_sums = frame_sums
    for idx in (1, 2, 3, 4):
        # GN stats over the replicate-padded (N+2) frames: edge frames counted twice.
        tot = cur_sums.sum(axis=1) + cur_sums[:, 0] + cur_sums[:, -1]   # (B, 2, C)
        scale, shift = _gn_affine_from_sums(tot[:, 0], tot[:, 1], (N + 2) * H * W,
                                            p[f'g{idx}'], p[f'be{idx}'], 32, eps)
        # dropout in conv2/conv3: inference-mode identity
        res = identity if idx == 4 else None
        want_stats = idx != 4
        out = temporal_conv_fused(cur, scale, shift, _wtemp_taps(p[f'w{idx}']),
                                  p[f'b{idx}'], residual=res, want_stats=want_stats)
        if want_stats:
            cur, st = out
            cur_sums = st.sum(axis=2)                                   # (B, N, 2, C)
        else:
            cur = out
    return cur


def upsample2d(x, w, b, out_dtype):
    """Upsample2D(use_conv=True): nearest 2x + Conv2d 3x3. x: (BN, H, W, C)."""
    # Row doubling is fused into the conv kernel; column doubling is one XLA repeat.
    # TODO(synk): fold the column doubling into the kernel too (lane-dim replication).
    xw = jnp.repeat(x, 2, axis=2)                              # (BN, H, 2W, C)
    return conv3x3(xw, None, None, _w3x3_taps(w), b, act=False, want_stats=False,
                   upsample_rows=True, out_dtype=out_dtype)


def up_decoder_block_3d(hidden_states, params):
    """hidden_states: (B, C, N, H, W) -> (B, Cout, N, 2H, 2W)."""
    B, Cin, N, H, W = hidden_states.shape
    out_dtype = hidden_states.dtype
    h = jnp.transpose(hidden_states, (0, 2, 3, 4, 1))          # (B, N, H, W, C)

    # --- layer 0: ResnetBlock2D on (b n) c h w, then TemporalConvBlock ---
    h2 = h.reshape(B * N, H, W, Cin)
    h2, frame_sums = resnet_block_2d(h2, params['resnet0'])
    Cout = h2.shape[-1]
    h5 = h2.reshape(B, N, H, W, Cout)
    frame_sums = frame_sums.reshape(B, N, 2, Cout)
    h5 = temporal_conv_block(h5, frame_sums, params['temp0'])

    # --- Upsample2D on (b n) c h w ---
    h2 = h5.reshape(B * N, H, W, Cout)
    h2 = upsample2d(h2, params['up_w'], params['up_b'], out_dtype)
    h5 = h2.reshape(B, N, 2 * H, 2 * W, Cout)

    return jnp.transpose(h5, (0, 4, 1, 2, 3))                  # back to (B, C, N, H, W)


# ---------------------------------------------------------------------------
# Deterministic parameter construction (shapes from module __init__, torch layout)
# ---------------------------------------------------------------------------

def init_params(key, c_in, c_out):
    keys = iter(jax.random.split(key, 40))

    def conv_w(shape):
        return 0.05 * jax.random.normal(next(keys), shape, jnp.float32)

    def conv_b(n):
        return 0.05 * jax.random.normal(next(keys), (n,), jnp.float32)

    params = {}
    # ResnetBlock2D(in=c_in, out=c_out, groups=32, eps=1e-6)
    rn = {
        'g1': jnp.ones((c_in,), jnp.float32), 'be1': jnp.zeros((c_in,), jnp.float32),
        'w1': conv_w((c_out, c_in, 3, 3)), 'b1': conv_b(c_out),
        'g2': jnp.ones((c_out,), jnp.float32), 'be2': jnp.zeros((c_out,), jnp.float32),
        'w2': conv_w((c_out, c_out, 3, 3)), 'b2': conv_b(c_out),
    }
    if c_in != c_out:
        rn['ws'] = conv_w((c_out, c_in, 1, 1))
        rn['bs'] = conv_b(c_out)
    params['resnet0'] = rn

    # TemporalConvBlock(c_out, c_out, dropout=0.1): 4 x (GN, SiLU, Conv3d(3,1,1))
    tc = {}
    for idx in (1, 2, 3, 4):
        tc[f'g{idx}'] = jnp.ones((c_out,), jnp.float32)
        tc[f'be{idx}'] = jnp.zeros((c_out,), jnp.float32)
        if idx == 4:   # conv4 is zero-initialized in the module
            tc[f'w{idx}'] = jnp.zeros((c_out, c_out, 3, 1, 1), jnp.float32)
            tc[f'b{idx}'] = jnp.zeros((c_out,), jnp.float32)
        else:
            tc[f'w{idx}'] = conv_w((c_out, c_out, 3, 1, 1))
            tc[f'b{idx}'] = conv_b(c_out)
    params['temp0'] = tc

    # Upsample2D(c_out, use_conv=True)
    params['up_w'] = conv_w((c_out, c_out, 3, 3))
    params['up_b'] = conv_b(c_out)
    return params


# ---------------------------------------------------------------------------

if __name__ == "__main__":
    B, C_IN, C_OUT, N, H, W = 1, 64, 32, 4, 8, 8   # channels multiples of 32 (GroupNorm)
    key = jax.random.PRNGKey(0)
    kx_, kp = jax.random.split(key)
    x = jax.random.normal(kx_, (B, C_IN, N, H, W), jnp.float32)  # PyTorch layout
    params = init_params(kp, C_IN, C_OUT)

    fwd = jax.jit(up_decoder_block_3d)
    out = fwd(x, params)
    jax.block_until_ready(out)
    assert out.shape == (B, C_OUT, N, 2 * H, 2 * W), out.shape
    assert bool(jnp.all(jnp.isfinite(out)))
    print("KERNEL_OK")
</pallas_src>

<mosaic_0001>
module attributes {stable_mosaic.version = 11 : i64} {
  func.func @_gn_stats_kernel(%arg0: i32, %arg1: i32, %arg2: memref<1x64x64xf32, #tpu.memory_space<vmem>>, %arg3: memref<1x2x64xf32, #tpu.memory_space<vmem>>) attributes {dimension_semantics = [#tpu.dimension_semantics<parallel>, #tpu.dimension_semantics<arbitrary>], iteration_bounds = array<i64: 4, 1>, scalar_prefetch = 0 : i64, scratch_operands = 0 : i64, tpu.core_type = #tpu.core_type<tc>, window_params = [{transform_indices = @transform_0, window_bounds = array<i64: 1, 64, 64>}, {transform_indices = @transform_1, window_bounds = array<i64: 1, 2, 64>}]} {
    %c0_i32 = arith.constant 0 : i32
    %0 = arith.cmpi eq, %arg1, %c0_i32 : i32
    %1 = arith.extui %0 : i1 to i32
    %c0_i32_0 = arith.constant 0 : i32
    %2 = arith.cmpi ne, %1, %c0_i32_0 : i32
    scf.if %2 {
      %cst_10 = arith.constant 0.000000e+00 : f32
      %15 = vector.broadcast %cst_10 : f32 to vector<1x2x64xf32>
      %c0_11 = arith.constant 0 : index
      %c0_12 = arith.constant 0 : index
      %c0_13 = arith.constant 0 : index
      %16 = vector.load %arg3[%c0_11, %c0_12, %c0_13] : memref<1x2x64xf32, #tpu.memory_space<vmem>>, vector<1x2x64xf32>
      tpu.vector_store %arg3[%c0_11, %c0_12, %c0_13], %15 {strides = array<i32>} : memref<1x2x64xf32, #tpu.memory_space<vmem>>, vector<1x2x64xf32>,
    } else {
    }
    %c0 = arith.constant 0 : index
    %c0_1 = arith.constant 0 : index
    %c0_2 = arith.constant 0 : index
    %3 = vector.load %arg2[%c0, %c0_1, %c0_2] : memref<1x64x64xf32, #tpu.memory_space<vmem>>, vector<1x64x64xf32>
    %4 = vector.shape_cast %3 : vector<1x64x64xf32> to vector<64x64xf32>
    %cst = arith.constant dense<0.000000e+00> : vector<64xf32>
    %5 = vector.multi_reduction <add>, %4, %cst [0] : vector<64x64xf32> to vector<64xf32>
    %6 = vector.shape_cast %5 : vector<64xf32> to vector<1x64xf32>
    %7 = arith.mulf %4, %4 : vector<64x64xf32>
    %cst_3 = arith.constant dense<0.000000e+00> : vector<64xf32>
    %8 = vector.multi_reduction <add>, %7, %cst_3 [0] : vector<64x64xf32> to vector<64xf32>
    %9 = vector.shape_cast %8 : vector<64xf32> to vector<1x64xf32>
    %c0_4 = arith.constant 0 : index
    %c0_5 = arith.constant 0 : index
    %c0_6 = arith.constant 0 : index
    %10 = vector.load %arg3[%c0_4, %c0_5, %c0_6] : memref<1x2x64xf32, #tpu.memory_space<vmem>>, vector<1x2x64xf32>
    %11 = tpu.concatenate %6, %9 in 0 : vector<1x64xf32>, vector<1x64xf32> -> vector<2x64xf32>
    %12 = vector.shape_cast %11 : vector<2x64xf32> to vector<1x2x64xf32>
    %13 = arith.addf %10, %12 : vector<1x2x64xf32>
    %c0_7 = arith.constant 0 : index
    %c0_8 = arith.constant 0 : index
    %c0_9 = arith.constant 0 : index
    %14 = vector.load %arg3[%c0_7, %c0_8, %c0_9] : memref<1x2x64xf32, #tpu.memory_space<vmem>>, vector<1x2x64xf32>
    tpu.vector_store %arg3[%c0_7, %c0_8, %c0_9], %13 {strides = array<i32>} : memref<1x2x64xf32, #tpu.memory_space<vmem>>, vector<1x2x64xf32>,
    return
  }
  func.func @transform_0(%arg0: i32, %arg1: i32) -> (i32, i32, i32) {
    %c0_i32 = arith.constant 0 : i32
    %c0_i32_0 = arith.constant 0 : i32
    return %arg0, %arg1, %c0_i32 : i32, i32, i32
  }
  func.func @transform_1(%arg0: i32, %arg1: i32) -> (i32, i32, i32) {
    %c0_i32 = arith.constant 0 : i32
    %c0_i32_0 = arith.constant 0 : i32
    %c0_i32_1 = arith.constant 0 : i32
    return %arg0, %c0_i32, %c0_i32_0 : i32, i32, i32
  }
}

module attributes {stable_mosaic.version = 11 : i64} {
  func.func @_conv3x3_kernel(%arg0: i32, %arg1: i32, %arg2: memref<1x8x8x64xf32, #tpu.memory_space<vmem>>, %arg3: memref<1x1x8x64xf32, #tpu.memory_space<vmem>>, %arg4: memref<1x1x8x64xf32, #tpu.memory_space<vmem>>, %arg5: memref<1x1x64xf32, #tpu.memory_space<vmem>>, %arg6: memref<1x1x64xf32, #tpu.memory_space<vmem>>, %arg7: memref<3x192x32xbf16, #tpu.memory_space<vmem>>, %arg8: memref<1x1x32xf32, #tpu.memory_space<vmem>>, %arg9: memref<64x32xbf16, #tpu.memory_space<vmem>>, %arg10: memref<1x32xf32, #tpu.memory_space<vmem>>, %arg11: memref<1x8x8x32xbf16, #tpu.memory_space<vmem>>, %arg12: memref<1x2x32xf32, #tpu.memory_space<vmem>>, %arg13: memref<1x8x8x32xbf16, #tpu.memory_space<vmem>>) attributes {dimension_semantics = [#tpu.dimension_semantics<parallel>, #tpu.dimension_semantics<arbitrary>], iteration_bounds = array<i64: 4, 1>, scalar_prefetch = 0 : i64, scratch_operands = 0 : i64, tpu.core_type = #tpu.core_type<tc>, window_params = [{transform_indices = @transform_0, window_bounds = array<i64: 1, 8, 8, 64>}, {transform_indices = @transform_1, window_bounds = array<i64: 1, 1, 8, 64>}, {transform_indices = @transform_2, window_bounds = array<i64: 1, 1, 8, 64>}, {transform_indices = @transform_3, window_bounds = array<i64: 1, 1, 64>}, {transform_indices = @transform_4, window_bounds = array<i64: 1, 1, 64>}, {pipeline_mode = #tpu.pipeline_mode<synchronous>, transform_indices = @transform_5, window_bounds = array<i64: 3, 192, 32>}, {pipeline_mode = #tpu.pipeline_mode<synchronous>, transform_indices = @transform_6, window_bounds = array<i64: 1, 1, 32>}, {pipeline_mode = #tpu.pipeline_mode<synchronous>, transform_indices = @transform_7, window_bounds = array<i64: 64, 32>}, {pipeline_mode = #tpu.pipeline_mode<synchronous>, transform_indices = @transform_8, window_bounds = array<i64: 1, 32>}, {transform_indices = @transform_9, window_bounds = array<i64: 1, 8, 8, 32>}, {transform_indices = @transform_10, window_bounds = array<i64: 1, 2, 32>}, {transform_indices = @transform_11, window_bounds = array<i64: 1, 8, 8, 32>}]} {
    %c0 = arith.constant 0 : index
    %c0_0 = arith.constant 0 : index
    %c0_1 = arith.constant 0 : index
    %c0_2 = arith.constant 0 : index
    %0 = vector.load %arg2[%c0, %c0_0, %c0_1, %c0_2] : memref<1x8x8x64xf32, #tpu.memory_space<vmem>>, vector<1x8x8x64xf32>
    %1 = vector.shape_cast %0 : vector<1x8x8x64xf32> to vector<8x8x64xf32>
    %c0_3 = arith.constant 0 : index
    %c0_4 = arith.constant 0 : index
    %c0_5 = arith.constant 0 : index
    %c0_6 = arith.constant 0 : index
    %2 = vector.load %arg3[%c0_3, %c0_4, %c0_5, %c0_6] : memref<1x1x8x64xf32, #tpu.memory_space<vmem>>, vector<1x1x8x64xf32>
    %3 = vector.shape_cast %2 : vector<1x1x8x64xf32> to vector<1x8x64xf32>
    %c0_7 = arith.constant 0 : index
    %c0_8 = arith.constant 0 : index
    %c0_9 = arith.constant 0 : index
    %c0_10 = arith.constant 0 : index
    %4 = vector.load %arg4[%c0_7, %c0_8, %c0_9, %c0_10] : memref<1x1x8x64xf32, #tpu.memory_space<vmem>>, vector<1x1x8x64xf32>
    %5 = vector.shape_cast %4 : vector<1x1x8x64xf32> to vector<1x8x64xf32>
    %6 = tpu.concatenate %3, %1, %5 in 0 : vector<1x8x64xf32>, vector<8x8x64xf32>, vector<1x8x64xf32> -> vector<10x8x64xf32>
    %c0_11 = arith.constant 0 : index
    %c0_12 = arith.constant 0 : index
    %c0_13 = arith.constant 0 : index
    %7 = vector.load %arg5[%c0_11, %c0_12, %c0_13] : memref<1x1x64xf32, #tpu.memory_space<vmem>>, vector<1x1x64xf32>
    %8 = vector.broadcast %7 : vector<1x1x64xf32> to vector<10x8x64xf32>
    %9 = arith.mulf %6, %8 : vector<10x8x64xf32>
    %c0_14 = arith.constant 0 : index
    %c0_15 = arith.constant 0 : index
    %c0_16 = arith.constant 0 : index
    %10 = vector.load %arg6[%c0_14, %c0_15, %c0_16] : memref<1x1x64xf32, #tpu.memory_space<vmem>>, vector<1x1x64xf32>
    %11 = vector.broadcast %10 : vector<1x1x64xf32> to vector<10x8x64xf32>
    %12 = arith.addf %9, %11 : vector<10x8x64xf32>
    %13 = arith.negf %12 : vector<10x8x64xf32>
    %14 = math.exp %13 : vector<10x8x64xf32>
    %cst = arith.constant 1.000000e+00 : f32
    %15 = vector.broadcast %cst : f32 to vector<10x8x64xf32>
    %16 = arith.addf %15, %14 : vector<10x8x64xf32>
    %17 = arith.divf %15, %16 : vector<10x8x64xf32>
    %18 = arith.mulf %12, %17 : vector<10x8x64xf32>
    %19 = tpu.iota {dimensions = array<i32: 0>} : vector<10x1x1xi32>
    %c0_i32 = arith.constant 0 : i32
    %20 = arith.cmpi eq, %arg1, %c0_i32 : i32
    %c1_i32 = arith.constant 1 : i32
    %c0_i32_17 = arith.constant 0 : i32
    %21 = arith.select %20, %c1_i32, %c0_i32_17 : i32
    %c0_i32_18 = arith.constant 0 : i32
    %22 = arith.cmpi eq, %arg1, %c0_i32_18 : i32
    %c8_i32 = arith.constant 8 : i32
    %c9_i32 = arith.constant 9 : i32
    %23 = arith.select %22, %c8_i32, %c9_i32 : i32
    %24 = vector.broadcast %21 : i32 to vector<10x1x1xi32>
    %25 = arith.cmpi sge, %19, %24 : vector<10x1x1xi32>
    %26 = vector.broadcast %23 : i32 to vector<10x1x1xi32>
    %27 = arith.cmpi sle, %19, %26 : vector<10x1x1xi32>
    %28 = arith.andi %25, %27 : vector<10x1x1xi1>
    %cst_19 = arith.constant 0.000000e+00 : f32
    %29 = vector.shape_cast %28 : vector<10x1x1xi1> to vector<10x1x1xi1>
    %30 = vector.broadcast %29 : vector<10x1x1xi1> to vector<10x8x64xi1>
    %31 = vector.broadcast %cst_19 : f32 to vector<10x8x64xf32>
    %32 = arith.select %30, %18, %31 : vector<10x8x64xi1>, vector<10x8x64xf32>
    %33 = arith.truncf %32 : vector<10x8x64xf32> to vector<10x8x64xbf16>
    %cst_20 = arith.constant 0.000000e+00 : bf16
    %34 = vector.broadcast %cst_20 : bf16 to vector<10x1x64xbf16>
    %35 = tpu.concatenate %34, %33, %34 in 1 : vector<10x1x64xbf16>, vector<10x8x64xbf16>, vector<10x1x64xbf16> -> vector<10x10x64xbf16>
    %36 = vector.extract_strided_slice %35 {offsets = [0, 0, 0], sizes = [10, 8, 64], strides = [1, 1, 1]} : vector<10x10x64xbf16> to vector<10x8x64xbf16>
    %37 = vector.extract_strided_slice %35 {offsets = [0, 1, 0], sizes = [10, 8, 64], strides = [1, 1, 1]} : vector<10x10x64xbf16> to vector<10x8x64xbf16>
    %38 = vector.extract_strided_slice %35 {offsets = [0, 2, 0], sizes = [10, 8, 64], strides = [1, 1, 1]} : vector<10x10x64xbf16> to vector<10x8x64xbf16>
    %39 = tpu.concatenate %36, %37, %38 in 2 : vector<10x8x64xbf16>, vector<10x8x64xbf16>, vector<10x8x64xbf16> -> vector<10x8x192xbf16>
    %cst_21 = arith.constant 0.000000e+00 : f32
    %40 = vector.broadcast %cst_21 : f32 to vector<64x32xf32>
    %41 = vector.extract_strided_slice %39 {offsets = [0, 0, 0], sizes = [8, 8, 192], strides = [1, 1, 1]} : vector<10x8x192xbf16> to vector<8x8x192xbf16>
    %42 = vector.shape_cast %41 : vector<8x8x192xbf16> to vector<64x192xbf16>
    %c0_22 = arith.constant 0 : index
    %c0_23 = arith.constant 0 : index
    %c0_24 = arith.constant 0 : index
    %43 = vector.load %arg7[%c0_22, %c0_23, %c0_24] : memref<3x192x32xbf16, #tpu.memory_space<vmem>>, vector<1x192x32xbf16>
    %44 = vector.shape_cast %43 : vector<1x192x32xbf16> to vector<192x32xbf16>
    %cst_25 = arith.constant dense<0.000000e+00> : vector<64x32xf32>
    %45 = tpu.matmul %42, %44, %cst_25 {dimension_numbers = #tpu.dot_dimension_numbers<[1], [0], [0], [1], [0, 0, 1, 1], [], []>} : vector<64x192xbf16>, vector<192x32xbf16>, vector<64x32xf32> -> vector<64x32xf32>
    %46 = arith.addf %40, %45 : vector<64x32xf32>
    %47 = vector.extract_strided_slice %39 {offsets = [1, 0, 0], sizes = [8, 8, 192], strides = [1, 1, 1]} : vector<10x8x192xbf16> to vector<8x8x192xbf16>
    %48 = vector.shape_cast %47 : vector<8x8x192xbf16> to vector<64x192xbf16>
    %c1 = arith.constant 1 : index
    %c0_26 = arith.constant 0 : index
    %c0_27 = arith.constant 0 : index
    %49 = vector.load %arg7[%c1, %c0_26, %c0_27] : memref<3x192x32xbf16, #tpu.memory_space<vmem>>, vector<1x192x32xbf16>
    %50 = vector.shape_cast %49 : vector<1x192x32xbf16> to vector<192x32xbf16>
    %cst_28 = arith.constant dense<0.000000e+00> : vector<64x32xf32>
    %51 = tpu.matmul %48, %50, %cst_28 {dimension_numbers = #tpu.dot_dimension_numbers<[1], [0], [0], [1], [0, 0, 1, 1], [], []>} : vector<64x192xbf16>, vector<192x32xbf16>, vector<64x32xf32> -> vector<64x32xf32>
    %52 = arith.addf %46, %51 : vector<64x32xf32>
    %53 = vector.extract_strided_slice %39 {offsets = [2, 0, 0], sizes = [8, 8, 192], strides = [1, 1, 1]} : vector<10x8x192xbf16> to vector<8x8x192xbf16>
    %54 = vector.shape_cast %53 : vector<8x8x192xbf16> to vector<64x192xbf16>
    %c2 = arith.constant 2 : index
    %c0_29 = arith.constant 0 : index
    %c0_30 = arith.constant 0 : index
    %55 = vector.load %arg7[%c2, %c0_29, %c0_30] : memref<3x192x32xbf16, #tpu.memory_space<vmem>>, vector<1x192x32xbf16>
    %56 = vector.shape_cast %55 : vector<1x192x32xbf16> to vector<192x32xbf16>
    %cst_31 = arith.constant dense<0.000000e+00> : vector<64x32xf32>
    %57 = tpu.matmul %54, %56, %cst_31 {dimension_numbers = #tpu.dot_dimension_numbers<[1], [0], [0], [1], [0, 0, 1, 1], [], []>} : vector<64x192xbf16>, vector<192x32xbf16>, vector<64x32xf32> -> vector<64x32xf32>
    %58 = arith.addf %52, %57 : vector<64x32xf32>
    %c0_32 = arith.constant 0 : index
    %c0_33 = arith.constant 0 : index
    %c0_34 = arith.constant 0 : index
    %59 = vector.load %arg8[%c0_32, %c0_33, %c0_34] : memref<1x1x32xf32, #tpu.memory_space<vmem>>, vector<1x1x32xf32>
    %60 = vector.shape_cast %59 : vector<1x1x32xf32> to vector<1x32xf32>
    %61 = vector.broadcast %60 : vector<1x32xf32> to vector<64x32xf32>
    %62 = arith.addf %58, %61 : vector<64x32xf32>
    %63 = vector.shape_cast %62 : vector<64x32xf32> to vector<1x8x8x32xf32>
    %64 = arith.truncf %63 : vector<1x8x8x32xf32> to vector<1x8x8x32xbf16>
    %c0_35 = arith.constant 0 : index
    %c0_36 = arith.constant 0 : index
    %c0_37 = arith.constant 0 : index
    %c0_38 = arith.constant 0 : index
    %65 = vector.load %arg11[%c0_35, %c0_36, %c0_37, %c0_38] : memref<1x8x8x32xbf16, #tpu.memory_space<vmem>>, vector<1x8x8x32xbf16>
    tpu.vector_store %arg11[%c0_35, %c0_36, %c0_37, %c0_38], %64 {strides = array<i32>} : memref<1x8x8x32xbf16, #tpu.memory_space<vmem>>, vector<1x8x8x32xbf16>,
    %c0_i32_39 = arith.constant 0 : i32
    %66 = arith.cmpi eq, %arg1, %c0_i32_39 : i32
    %67 = arith.extui %66 : i1 to i32
    %c0_i32_40 = arith.constant 0 : i32
    %68 = arith.cmpi ne, %67, %c0_i32_40 : i32
    scf.if %68 {
      %cst_58 = arith.constant 0.000000e+00 : f32
      %89 = vector.broadcast %cst_58 : f32 to vector<1x2x32xf32>
      %c0_59 = arith.constant 0 : index
      %c0_60 = arith.constant 0 : index
      %c0_61 = arith.constant 0 : index
      %90 = vector.load %arg12[%c0_59, %c0_60, %c0_61] : memref<1x2x32xf32, #tpu.memory_space<vmem>>, vector<1x2x32xf32>
      tpu.vector_store %arg12[%c0_59, %c0_60, %c0_61], %89 {strides = array<i32>} : memref<1x2x32xf32, #tpu.memory_space<vmem>>, vector<1x2x32xf32>,
    } else {
    }
    %cst_41 = arith.constant dense<0.000000e+00> : vector<32xf32>
    %69 = vector.multi_reduction <add>, %62, %cst_41 [0] : vector<64x32xf32> to vector<32xf32>
    %70 = vector.shape_cast %69 : vector<32xf32> to vector<1x32xf32>
    %71 = arith.mulf %62, %62 : vector<64x32xf32>
    %cst_42 = arith.constant dense<0.000000e+00> : vector<32xf32>
    %72 = vector.multi_reduction <add>, %71, %cst_42 [0] : vector<64x32xf32> to vector<32xf32>
    %73 = vector.shape_cast %72 : vector<32xf32> to vector<1x32xf32>
    %c0_43 = arith.constant 0 : index
    %c0_44 = arith.constant 0 : index
    %c0_45 = arith.constant 0 : index
    %74 = vector.load %arg12[%c0_43, %c0_44, %c0_45] : memref<1x2x32xf32, #tpu.memory_space<vmem>>, vector<1x2x32xf32>
    %75 = tpu.concatenate %70, %73 in 0 : vector<1x32xf32>, vector<1x32xf32> -> vector<2x32xf32>
    %76 = vector.shape_cast %75 : vector<2x32xf32> to vector<1x2x32xf32>
    %77 = arith.addf %74, %76 : vector<1x2x32xf32>
    %c0_46 = arith.constant 0 : index
    %c0_47 = arith.constant 0 : index
    %c0_48 = arith.constant 0 : index
    %78 = vector.load %arg12[%c0_46, %c0_47, %c0_48] : memref<1x2x32xf32, #tpu.memory_space<vmem>>, vector<1x2x32xf32>
    tpu.vector_store %arg12[%c0_46, %c0_47, %c0_48], %77 {strides = array<i32>} : memref<1x2x32xf32, #tpu.memory_space<vmem>>, vector<1x2x32xf32>,
    %79 = arith.truncf %1 : vector<8x8x64xf32> to vector<8x8x64xbf16>
    %80 = vector.shape_cast %79 : vector<8x8x64xbf16> to vector<64x64xbf16>
    %c0_49 = arith.constant 0 : index
    %c0_50 = arith.constant 0 : index
    %81 = vector.load %arg9[%c0_49, %c0_50] : memref<64x32xbf16, #tpu.memory_space<vmem>>, vector<64x32xbf16>
    %cst_51 = arith.constant dense<0.000000e+00> : vector<64x32xf32>
    %82 = tpu.matmul %80, %81, %cst_51 {dimension_numbers = #tpu.dot_dimension_numbers<[1], [0], [0], [1], [0, 0, 1, 1], [], []>} : vector<64x64xbf16>, vector<64x32xbf16>, vector<64x32xf32> -> vector<64x32xf32>
    %c0_52 = arith.constant 0 : index
    %c0_53 = arith.constant 0 : index
    %83 = vector.load %arg10[%c0_52, %c0_53] : memref<1x32xf32, #tpu.memory_space<vmem>>, vector<1x32xf32>
    %84 = vector.broadcast %83 : vector<1x32xf32> to vector<64x32xf32>
    %85 = arith.addf %82, %84 : vector<64x32xf32>
    %86 = vector.shape_cast %85 : vector<64x32xf32> to vector<1x8x8x32xf32>
    %87 = arith.truncf %86 : vector<1x8x8x32xf32> to vector<1x8x8x32xbf16>
    %c0_54 = arith.constant 0 : index
    %c0_55 = arith.constant 0 : index
    %c0_56 = arith.constant 0 : index
    %c0_57 = arith.constant 0 : index
    %88 = vector.load %arg13[%c0_54, %c0_55, %c0_56, %c0_57] : memref<1x8x8x32xbf16, #tpu.memory_space<vmem>>, vector<1x8x8x32xbf16>
    tpu.vector_store %arg13[%c0_54, %c0_55, %c0_56, %c0_57], %87 {strides = array<i32>} : memref<1x8x8x32xbf16, #tpu.memory_space<vmem>>, vector<1x8x8x32xbf16>,
    return
  }
  func.func @transform_0(%arg0: i32, %arg1: i32) -> (i32, i32, i32, i32) {
    %c0_i32 = arith.constant 0 : i32
    %c0_i32_0 = arith.constant 0 : i32
    %c0_i32_1 = arith.constant 0 : i32
    return %arg0, %arg1, %c0_i32, %c0_i32_0 : i32, i32, i32, i32
  }
  func.func @transform_1(%arg0: i32, %arg1: i32) -> (i32, i32, i32, i32) {
    %c8_i32 = arith.constant 8 : i32
    %0 = arith.muli %arg1, %c8_i32 : i32
    %c1_i32 = arith.constant 1 : i32
    %1 = arith.subi %0, %c1_i32 : i32
    %c0_i32 = arith.constant 0 : i32
    %2 = arith.maxsi %1, %c0_i32 : i32
    %c0_i32_0 = arith.constant 0 : i32
    %c0_i32_1 = arith.constant 0 : i32
    %c0_i32_2 = arith.constant 0 : i32
    return %arg0, %2, %c0_i32_0, %c0_i32_1 : i32, i32, i32, i32
  }
  func.func @transform_2(%arg0: i32, %arg1: i32) -> (i32, i32, i32, i32) {
    %c1_i32 = arith.constant 1 : i32
    %0 = arith.addi %arg1, %c1_i32 : i32
    %c8_i32 = arith.constant 8 : i32
    %1 = arith.muli %0, %c8_i32 : i32
    %c7_i32 = arith.constant 7 : i32
    %2 = arith.minsi %1, %c7_i32 : i32
    %c0_i32 = arith.constant 0 : i32
    %c0_i32_0 = arith.constant 0 : i32
    %c0_i32_1 = arith.constant 0 : i32
    return %arg0, %2, %c0_i32, %c0_i32_0 : i32, i32, i32, i32
  }
  func.func @transform_3(%arg0: i32, %arg1: i32) -> (i32, i32, i32) {
    %c0_i32 = arith.constant 0 : i32
    %c0_i32_0 = arith.constant 0 : i32
    %c0_i32_1 = arith.constant 0 : i32
    return %arg0, %c0_i32, %c0_i32_0 : i32, i32, i32
  }
  func.func @transform_4(%arg0: i32, %arg1: i32) -> (i32, i32, i32) {
    %c0_i32 = arith.constant 0 : i32
    %c0_i32_0 = arith.constant 0 : i32
    %c0_i32_1 = arith.constant 0 : i32
    return %arg0, %c0_i32, %c0_i32_0 : i32, i32, i32
  }
  func.func @transform_5(%arg0: i32, %arg1: i32) -> (i32, i32, i32) {
    %c0_i32 = arith.constant 0 : i32
    %c0_i32_0 = arith.constant 0 : i32
    %c0_i32_1 = arith.constant 0 : i32
    %c0_i32_2 = arith.constant 0 : i32
    return %c0_i32, %c0_i32_0, %c0_i32_1 : i32, i32, i32
  }
  func.func @transform_6(%arg0: i32, %arg1: i32) -> (i32, i32, i32) {
    %c0_i32 = arith.constant 0 : i32
    %c0_i32_0 = arith.constant 0 : i32
    %c0_i32_1 = arith.constant 0 : i32
    %c0_i32_2 = arith.constant 0 : i32
    return %c0_i32, %c0_i32_0, %c0_i32_1 : i32, i32, i32
  }
  func.func @transform_7(%arg0: i32, %arg1: i32) -> (i32, i32) {
    %c0_i32 = arith.constant 0 : i32
    %c0_i32_0 = arith.constant 0 : i32
    %c0_i32_1 = arith.constant 0 : i32
    return %c0_i32, %c0_i32_0 : i32, i32
  }
  func.func @transform_8(%arg0: i32, %arg1: i32) -> (i32, i32) {
    %c0_i32 = arith.constant 0 : i32
    %c0_i32_0 = arith.constant 0 : i32
    %c0_i32_1 = arith.constant 0 : i32
    return %c0_i32, %c0_i32_0 : i32, i32
  }
  func.func @transform_9(%arg0: i32, %arg1: i32) -> (i32, i32, i32, i32) {
    %c0_i32 = arith.constant 0 : i32
    %c0_i32_0 = arith.constant 0 : i32
    %c0_i32_1 = arith.constant 0 : i32
    return %arg0, %arg1, %c0_i32, %c0_i32_0 : i32, i32, i32, i32
  }
  func.func @transform_10(%arg0: i32, %arg1: i32) -> (i32, i32, i32) {
    %c0_i32 = arith.constant 0 : i32
    %c0_i32_0 = arith.constant 0 : i32
    %c0_i32_1 = arith.constant 0 : i32
    return %arg0, %c0_i32, %c0_i32_0 : i32, i32, i32
  }
  func.func @transform_11(%arg0: i32, %arg1: i32) -> (i32, i32, i32, i32) {
    %c0_i32 = arith.constant 0 : i32
    %c0_i32_0 = arith.constant 0 : i32
    %c0_i32_1 = arith.constant 0 : i32
    return %arg0, %arg1, %c0_i32, %c0_i32_0 : i32, i32, i32, i32
  }
}

module attributes {stable_mosaic.version = 11 : i64} {
  func.func @_conv3x3_kernel(%arg0: i32, %arg1: i32, %arg2: memref<1x8x8x32xbf16, #tpu.memory_space<vmem>>, %arg3: memref<1x1x8x32xbf16, #tpu.memory_space<vmem>>, %arg4: memref<1x1x8x32xbf16, #tpu.memory_space<vmem>>, %arg5: memref<1x1x32xf32, #tpu.memory_space<vmem>>, %arg6: memref<1x1x32xf32, #tpu.memory_space<vmem>>, %arg7: memref<3x96x32xbf16, #tpu.memory_space<vmem>>, %arg8: memref<1x1x32xf32, #tpu.memory_space<vmem>>, %arg9: memref<1x8x8x32xbf16, #tpu.memory_space<vmem>>, %arg10: memref<1x8x8x32xbf16, #tpu.memory_space<vmem>>, %arg11: memref<1x2x32xf32, #tpu.memory_space<vmem>>) attributes {dimension_semantics = [#tpu.dimension_semantics<parallel>, #tpu.dimension_semantics<arbitrary>], iteration_bounds = array<i64: 4, 1>, scalar_prefetch = 0 : i64, scratch_operands = 0 : i64, tpu.core_type = #tpu.core_type<tc>, window_params = [{transform_indices = @transform_0, window_bounds = array<i64: 1, 8, 8, 32>}, {transform_indices = @transform_1, window_bounds = array<i64: 1, 1, 8, 32>}, {transform_indices = @transform_2, window_bounds = array<i64: 1, 1, 8, 32>}, {transform_indices = @transform_3, window_bounds = array<i64: 1, 1, 32>}, {transform_indices = @transform_4, window_bounds = array<i64: 1, 1, 32>}, {pipeline_mode = #tpu.pipeline_mode<synchronous>, transform_indices = @transform_5, window_bounds = array<i64: 3, 96, 32>}, {pipeline_mode = #tpu.pipeline_mode<synchronous>, transform_indices = @transform_6, window_bounds = array<i64: 1, 1, 32>}, {transform_indices = @transform_7, window_bounds = array<i64: 1, 8, 8, 32>}, {transform_indices = @transform_8, window_bounds = array<i64: 1, 8, 8, 32>}, {transform_indices = @transform_9, window_bounds = array<i64: 1, 2, 32>}]} {
    %c0 = arith.constant 0 : index
    %c0_0 = arith.constant 0 : index
    %c0_1 = arith.constant 0 : index
    %c0_2 = arith.constant 0 : index
    %0 = vector.load %arg2[%c0, %c0_0, %c0_1, %c0_2] : memref<1x8x8x32xbf16, #tpu.memory_space<vmem>>, vector<1x8x8x32xbf16>
    %1 = vector.shape_cast %0 : vector<1x8x8x32xbf16> to vector<8x8x32xbf16>
    %c0_3 = arith.constant 0 : index
    %c0_4 = arith.constant 0 : index
    %c0_5 = arith.constant 0 : index
    %c0_6 = arith.constant 0 : index
    %2 = vector.load %arg3[%c0_3, %c0_4, %c0_5, %c0_6] : memref<1x1x8x32xbf16, #tpu.memory_space<vmem>>, vector<1x1x8x32xbf16>
    %3 = vector.shape_cast %2 : vector<1x1x8x32xbf16> to vector<1x8x32xbf16>
    %c0_7 = arith.constant 0 : index
    %c0_8 = arith.constant 0 : index
    %c0_9 = arith.constant 0 : index
    %c0_10 = arith.constant 0 : index
    %4 = vector.load %arg4[%c0_7, %c0_8, %c0_9, %c0_10] : memref<1x1x8x32xbf16, #tpu.memory_space<vmem>>, vector<1x1x8x32xbf16>
    %5 = vector.shape_cast %4 : vector<1x1x8x32xbf16> to vector<1x8x32xbf16>
    %6 = tpu.concatenate %3, %1, %5 in 0 : vector<1x8x32xbf16>, vector<8x8x32xbf16>, vector<1x8x32xbf16> -> vector<10x8x32xbf16>
    %7 = arith.extf %6 : vector<10x8x32xbf16> to vector<10x8x32xf32>
    %c0_11 = arith.constant 0 : index
    %c0_12 = arith.constant 0 : index
    %c0_13 = arith.constant 0 : index
    %8 = vector.load %arg5[%c0_11, %c0_12, %c0_13] : memref<1x1x32xf32, #tpu.memory_space<vmem>>, vector<1x1x32xf32>
    %9 = vector.broadcast %8 : vector<1x1x32xf32> to vector<10x8x32xf32>
    %10 = arith.mulf %7, %9 : vector<10x8x32xf32>
    %c0_14 = arith.constant 0 : index
    %c0_15 = arith.constant 0 : index
    %c0_16 = arith.constant 0 : index
    %11 = vector.load %arg6[%c0_14, %c0_15, %c0_16] : memref<1x1x32xf32, #tpu.memory_space<vmem>>, vector<1x1x32xf32>
    %12 = vector.broadcast %11 : vector<1x1x32xf32> to vector<10x8x32xf32>
    %13 = arith.addf %10, %12 : vector<10x8x32xf32>
    %14 = arith.negf %13 : vector<10x8x32xf32>
    %15 = math.exp %14 : vector<10x8x32xf32>
    %cst = arith.constant 1.000000e+00 : f32
    %16 = vector.broadcast %cst : f32 to vector<10x8x32xf32>
    %17 = arith.addf %16, %15 : vector<10x8x32xf32>
    %18 = arith.divf %16, %17 : vector<10x8x32xf32>
    %19 = arith.mulf %13, %18 : vector<10x8x32xf32>
    %20 = tpu.iota {dimensions = array<i32: 0>} : vector<10x1x1xi32>
    %c0_i32 = arith.constant 0 : i32
    %21 = arith.cmpi eq, %arg1, %c0_i32 : i32
    %c1_i32 = arith.constant 1 : i32
    %c0_i32_17 = arith.constant 0 : i32
    %22 = arith.select %21, %c1_i32, %c0_i32_17 : i32
    %c0_i32_18 = arith.constant 0 : i32
    %23 = arith.cmpi eq, %arg1, %c0_i32_18 : i32
    %c8_i32 = arith.constant 8 : i32
    %c9_i32 = arith.constant 9 : i32
    %24 = arith.select %23, %c8_i32, %c9_i32 : i32
    %25 = vector.broadcast %22 : i32 to vector<10x1x1xi32>
    %26 = arith.cmpi sge, %20, %25 : vector<10x1x1xi32>
    %27 = vector.broadcast %24 : i32 to vector<10x1x1xi32>
    %28 = arith.cmpi sle, %20, %27 : vector<10x1x1xi32>
    %29 = arith.andi %26, %28 : vector<10x1x1xi1>
    %cst_19 = arith.constant 0.000000e+00 : f32
    %30 = vector.shape_cast %29 : vector<10x1x1xi1> to vector<10x1x1xi1>
    %31 = vector.broadcast %30 : vector<10x1x1xi1> to vector<10x8x32xi1>
    %32 = vector.broadcast %cst_19 : f32 to vector<10x8x32xf32>
    %33 = arith.select %31, %19, %32 : vector<10x8x32xi1>, vector<10x8x32xf32>
    %34 = arith.truncf %33 : vector<10x8x32xf32> to vector<10x8x32xbf16>
    %cst_20 = arith.constant 0.000000e+00 : bf16
    %35 = vector.broadcast %cst_20 : bf16 to vector<10x1x32xbf16>
    %36 = tpu.concatenate %35, %34, %35 in 1 : vector<10x1x32xbf16>, vector<10x8x32xbf16>, vector<10x1x32xbf16> -> vector<10x10x32xbf16>
    %37 = vector.extract_strided_slice %36 {offsets = [0, 0, 0], sizes = [10, 8, 32], strides = [1, 1, 1]} : vector<10x10x32xbf16> to vector<10x8x32xbf16>
    %38 = vector.extract_strided_slice %36 {offsets = [0, 1, 0], sizes = [10, 8, 32], strides = [1, 1, 1]} : vector<10x10x32xbf16> to vector<10x8x32xbf16>
    %39 = vector.extract_strided_slice %36 {offsets = [0, 2, 0], sizes = [10, 8, 32], strides = [1, 1, 1]} : vector<10x10x32xbf16> to vector<10x8x32xbf16>
    %40 = tpu.concatenate %37, %38, %39 in 2 : vector<10x8x32xbf16>, vector<10x8x32xbf16>, vector<10x8x32xbf16> -> vector<10x8x96xbf16>
    %cst_21 = arith.constant 0.000000e+00 : f32
    %41 = vector.broadcast %cst_21 : f32 to vector<64x32xf32>
    %42 = vector.extract_strided_slice %40 {offsets = [0, 0, 0], sizes = [8, 8, 96], strides = [1, 1, 1]} : vector<10x8x96xbf16> to vector<8x8x96xbf16>
    %43 = vector.shape_cast %42 : vector<8x8x96xbf16> to vector<64x96xbf16>
    %c0_22 = arith.constant 0 : index
    %c0_23 = arith.constant 0 : index
    %c0_24 = arith.constant 0 : index
    %44 = vector.load %arg7[%c0_22, %c0_23, %c0_24] : memref<3x96x32xbf16, #tpu.memory_space<vmem>>, vector<1x96x32xbf16>
    %45 = vector.shape_cast %44 : vector<1x96x32xbf16> to vector<96x32xbf16>
    %cst_25 = arith.constant dense<0.000000e+00> : vector<64x32xf32>
    %46 = tpu.matmul %43, %45, %cst_25 {dimension_numbers = #tpu.dot_dimension_numbers<[1], [0], [0], [1], [0, 0, 1, 1], [], []>} : vector<64x96xbf16>, vector<96x32xbf16>, vector<64x32xf32> -> vector<64x32xf32>
    %47 = arith.addf %41, %46 : vector<64x32xf32>
    %48 = vector.extract_strided_slice %40 {offsets = [1, 0, 0], sizes = [8, 8, 96], strides = [1, 1, 1]} : vector<10x8x96xbf16> to vector<8x8x96xbf16>
    %49 = vector.shape_cast %48 : vector<8x8x96xbf16> to vector<64x96xbf16>
    %c1 = arith.constant 1 : index
    %c0_26 = arith.constant 0 : index
    %c0_27 = arith.constant 0 : index
    %50 = vector.load %arg7[%c1, %c0_26, %c0_27] : memref<3x96x32xbf16, #tpu.memory_space<vmem>>, vector<1x96x32xbf16>
    %51 = vector.shape_cast %50 : vector<1x96x32xbf16> to vector<96x32xbf16>
    %cst_28 = arith.constant dense<0.000000e+00> : vector<64x32xf32>
    %52 = tpu.matmul %49, %51, %cst_28 {dimension_numbers = #tpu.dot_dimension_numbers<[1], [0], [0], [1], [0, 0, 1, 1], [], []>} : vector<64x96xbf16>, vector<96x32xbf16>, vector<64x32xf32> -> vector<64x32xf32>
    %53 = arith.addf %47, %52 : vector<64x32xf32>
    %54 = vector.extract_strided_slice %40 {offsets = [2, 0, 0], sizes = [8, 8, 96], strides = [1, 1, 1]} : vector<10x8x96xbf16> to vector<8x8x96xbf16>
    %55 = vector.shape_cast %54 : vector<8x8x96xbf16> to vector<64x96xbf16>
    %c2 = arith.constant 2 : index
    %c0_29 = arith.constant 0 : index
    %c0_30 = arith.constant 0 : index
    %56 = vector.load %arg7[%c2, %c0_29, %c0_30] : memref<3x96x32xbf16, #tpu.memory_space<vmem>>, vector<1x96x32xbf16>
    %57 = vector.shape_cast %56 : vector<1x96x32xbf16> to vector<96x32xbf16>
    %cst_31 = arith.constant dense<0.000000e+00> : vector<64x32xf32>
    %58 = tpu.matmul %55, %57, %cst_31 {dimension_numbers = #tpu.dot_dimension_numbers<[1], [0], [0], [1], [0, 0, 1, 1], [], []>} : vector<64x96xbf16>, vector<96x32xbf16>, vector<64x32xf32> -> vector<64x32xf32>
    %59 = arith.addf %53, %58 : vector<64x32xf32>
    %c0_32 = arith.constant 0 : index
    %c0_33 = arith.constant 0 : index
    %c0_34 = arith.constant 0 : index
    %60 = vector.load %arg8[%c0_32, %c0_33, %c0_34] : memref<1x1x32xf32, #tpu.memory_space<vmem>>, vector<1x1x32xf32>
    %61 = vector.shape_cast %60 : vector<1x1x32xf32> to vector<1x32xf32>
    %62 = vector.broadcast %61 : vector<1x32xf32> to vector<64x32xf32>
    %63 = arith.addf %59, %62 : vector<64x32xf32>
    %c0_35 = arith.constant 0 : index
    %c0_36 = arith.constant 0 : index
    %c0_37 = arith.constant 0 : index
    %c0_38 = arith.constant 0 : index
    %64 = vector.load %arg9[%c0_35, %c0_36, %c0_37, %c0_38] : memref<1x8x8x32xbf16, #tpu.memory_space<vmem>>, vector<1x8x8x32xbf16>
    %65 = arith.extf %64 : vector<1x8x8x32xbf16> to vector<1x8x8x32xf32>
    %66 = vector.shape_cast %65 : vector<1x8x8x32xf32> to vector<64x32xf32>
    %67 = arith.addf %63, %66 : vector<64x32xf32>
    %68 = vector.shape_cast %67 : vector<64x32xf32> to vector<1x8x8x32xf32>
    %69 = arith.truncf %68 : vector<1x8x8x32xf32> to vector<1x8x8x32xbf16>
    %c0_39 = arith.constant 0 : index
    %c0_40 = arith.constant 0 : index
    %c0_41 = arith.constant 0 : index
    %c0_42 = arith.constant 0 : index
    %70 = vector.load %arg10[%c0_39, %c0_40, %c0_41, %c0_42] : memref<1x8x8x32xbf16, #tpu.memory_space<vmem>>, vector<1x8x8x32xbf16>
    tpu.vector_store %arg10[%c0_39, %c0_40, %c0_41, %c0_42], %69 {strides = array<i32>} : memref<1x8x8x32xbf16, #tpu.memory_space<vmem>>, vector<1x8x8x32xbf16>,
    %c0_i32_43 = arith.constant 0 : i32
    %71 = arith.cmpi eq, %arg1, %c0_i32_43 : i32
    %72 = arith.extui %71 : i1 to i32
    %c0_i32_44 = arith.constant 0 : i32
    %73 = arith.cmpi ne, %72, %c0_i32_44 : i32
    scf.if %73 {
      %cst_53 = arith.constant 0.000000e+00 : f32
      %84 = vector.broadcast %cst_53 : f32 to vector<1x2x32xf32>
      %c0_54 = arith.constant 0 : index
      %c0_55 = arith.constant 0 : index
      %c0_56 = arith.constant 0 : index
      %85 = vector.load %arg11[%c0_54, %c0_55, %c0_56] : memref<1x2x32xf32, #tpu.memory_space<vmem>>, vector<1x2x32xf32>
      tpu.vector_store %arg11[%c0_54, %c0_55, %c0_56], %84 {strides = array<i32>} : memref<1x2x32xf32, #tpu.memory_space<vmem>>, vector<1x2x32xf32>,
    } else {
    }
    %cst_45 = arith.constant dense<0.000000e+00> : vector<32xf32>
    %74 = vector.multi_reduction <add>, %67, %cst_45 [0] : vector<64x32xf32> to vector<32xf32>
    %75 = vector.shape_cast %74 : vector<32xf32> to vector<1x32xf32>
    %76 = arith.mulf %67, %67 : vector<64x32xf32>
    %cst_46 = arith.constant dense<0.000000e+00> : vector<32xf32>
    %77 = vector.multi_reduction <add>, %76, %cst_46 [0] : vector<64x32xf32> to vector<32xf32>
    %78 = vector.shape_cast %77 : vector<32xf32> to vector<1x32xf32>
    %c0_47 = arith.constant 0 : index
    %c0_48 = arith.constant 0 : index
    %c0_49 = arith.constant 0 : index
    %79 = vector.load %arg11[%c0_47, %c0_48, %c0_49] : memref<1x2x32xf32, #tpu.memory_space<vmem>>, vector<1x2x32xf32>
    %80 = tpu.concatenate %75, %78 in 0 : vector<1x32xf32>, vector<1x32xf32> -> vector<2x32xf32>
    %81 = vector.shape_cast %80 : vector<2x32xf32> to vector<1x2x32xf32>
    %82 = arith.addf %79, %81 : vector<1x2x32xf32>
    %c0_50 = arith.constant 0 : index
    %c0_51 = arith.constant 0 : index
    %c0_52 = arith.constant 0 : index
    %83 = vector.load %arg11[%c0_50, %c0_51, %c0_52] : memref<1x2x32xf32, #tpu.memory_space<vmem>>, vector<1x2x32xf32>
    tpu.vector_store %arg11[%c0_50, %c0_51, %c0_52], %82 {strides = array<i32>} : memref<1x2x32xf32, #tpu.memory_space<vmem>>, vector<1x2x32xf32>,
    return
  }
  func.func @transform_0(%arg0: i32, %arg1: i32) -> (i32, i32, i32, i32) {
    %c0_i32 = arith.constant 0 : i32
    %c0_i32_0 = arith.constant 0 : i32
    %c0_i32_1 = arith.constant 0 : i32
    return %arg0, %arg1, %c0_i32, %c0_i32_0 : i32, i32, i32, i32
  }
  func.func @transform_1(%arg0: i32, %arg1: i32) -> (i32, i32, i32, i32) {
    %c8_i32 = arith.constant 8 : i32
    %0 = arith.muli %arg1, %c8_i32 : i32
    %c1_i32 = arith.constant 1 : i32
    %1 = arith.subi %0, %c1_i32 : i32
    %c0_i32 = arith.constant 0 : i32
    %2 = arith.maxsi %1, %c0_i32 : i32
    %c0_i32_0 = arith.constant 0 : i32
    %c0_i32_1 = arith.constant 0 : i32
    %c0_i32_2 = arith.constant 0 : i32
    return %arg0, %2, %c0_i32_0, %c0_i32_1 : i32, i32, i32, i32
  }
  func.func @transform_2(%arg0: i32, %arg1: i32) -> (i32, i32, i32, i32) {
    %c1_i32 = arith.constant 1 : i32
    %0 = arith.addi %arg1, %c1_i32 : i32
    %c8_i32 = arith.constant 8 : i32
    %1 = arith.muli %0, %c8_i32 : i32
    %c7_i32 = arith.constant 7 : i32
    %2 = arith.minsi %1, %c7_i32 : i32
    %c0_i32 = arith.constant 0 : i32
    %c0_i32_0 = arith.constant 0 : i32
    %c0_i32_1 = arith.constant 0 : i32
    return %arg0, %2, %c0_i32, %c0_i32_0 : i32, i32, i32, i32
  }
  func.func @transform_3(%arg0: i32, %arg1: i32) -> (i32, i32, i32) {
    %c0_i32 = arith.constant 0 : i32
    %c0_i32_0 = arith.constant 0 : i32
    %c0_i32_1 = arith.constant 0 : i32
    return %arg0, %c0_i32, %c0_i32_0 : i32, i32, i32
  }
  func.func @transform_4(%arg0: i32, %arg1: i32) -> (i32, i32, i32) {
    %c0_i32 = arith.constant 0 : i32
    %c0_i32_0 = arith.constant 0 : i32
    %c0_i32_1 = arith.constant 0 : i32
    return %arg0, %c0_i32, %c0_i32_0 : i32, i32, i32
  }
  func.func @transform_5(%arg0: i32, %arg1: i32) -> (i32, i32, i32) {
    %c0_i32 = arith.constant 0 : i32
    %c0_i32_0 = arith.constant 0 : i32
    %c0_i32_1 = arith.constant 0 : i32
    %c0_i32_2 = arith.constant 0 : i32
    return %c0_i32, %c0_i32_0, %c0_i32_1 : i32, i32, i32
  }
  func.func @transform_6(%arg0: i32, %arg1: i32) -> (i32, i32, i32) {
    %c0_i32 = arith.constant 0 : i32
    %c0_i32_0 = arith.constant 0 : i32
    %c0_i32_1 = arith.constant 0 : i32
    %c0_i32_2 = arith.constant 0 : i32
    return %c0_i32, %c0_i32_0, %c0_i32_1 : i32, i32, i32
  }
  func.func @transform_7(%arg0: i32, %arg1: i32) -> (i32, i32, i32, i32) {
    %c0_i32 = arith.constant 0 : i32
    %c0_i32_0 = arith.constant 0 : i32
    %c0_i32_1 = arith.constant 0 : i32
    return %arg0, %arg1, %c0_i32, %c0_i32_0 : i32, i32, i32, i32
  }
  func.func @transform_8(%arg0: i32, %arg1: i32) -> (i32, i32, i32, i32) {
    %c0_i32 = arith.constant 0 : i32
    %c0_i32_0 = arith.constant 0 : i32
    %c0_i32_1 = arith.constant 0 : i32
    return %arg0, %arg1, %c0_i32, %c0_i32_0 : i32, i32, i32, i32
  }
  func.func @transform_9(%arg0: i32, %arg1: i32) -> (i32, i32, i32) {
    %c0_i32 = arith.constant 0 : i32
    %c0_i32_0 = arith.constant 0 : i32
    %c0_i32_1 = arith.constant 0 : i32
    return %arg0, %c0_i32, %c0_i32_0 : i32, i32, i32
  }
}

module attributes {stable_mosaic.version = 11 : i64} {
  func.func @_tconv_kernel(%arg0: i32, %arg1: i32, %arg2: i32, %arg3: memref<1x1x8x8x32xbf16, #tpu.memory_space<vmem>>, %arg4: memref<1x1x32xf32, #tpu.memory_space<vmem>>, %arg5: memref<1x1x32xf32, #tpu.memory_space<vmem>>, %arg6: memref<3x32x32xbf16, #tpu.memory_space<vmem>>, %arg7: memref<1x1x32xf32, #tpu.memory_space<vmem>>, %arg8: memref<1x1x8x8x32xbf16, #tpu.memory_space<vmem>>, %arg9: memref<1x1x1x2x32xf32, #tpu.memory_space<vmem>>, %arg10: memref<3x8x8x32xbf16, #tpu.memory_space<vmem>>) attributes {dimension_semantics = [#tpu.dimension_semantics<parallel>, #tpu.dimension_semantics<parallel>, #tpu.dimension_semantics<arbitrary>], iteration_bounds = array<i64: 1, 1, 5>, scalar_prefetch = 0 : i64, scratch_operands = 1 : i64, tpu.core_type = #tpu.core_type<tc>, window_params = [{transform_indices = @transform_0, window_bounds = array<i64: 1, 1, 8, 8, 32>}, {transform_indices = @transform_1, window_bounds = array<i64: 1, 1, 32>}, {transform_indices = @transform_2, window_bounds = array<i64: 1, 1, 32>}, {pipeline_mode = #tpu.pipeline_mode<synchronous>, transform_indices = @transform_3, window_bounds = array<i64: 3, 32, 32>}, {pipeline_mode = #tpu.pipeline_mode<synchronous>, transform_indices = @transform_4, window_bounds = array<i64: 1, 1, 32>}, {transform_indices = @transform_5, window_bounds = array<i64: 1, 1, 8, 8, 32>}, {transform_indices = @transform_6, window_bounds = array<i64: 1, 1, 1, 2, 32>}]} {
    %c4_i32 = arith.constant 4 : i32
    %0 = arith.cmpi slt, %arg2, %c4_i32 : i32
    %1 = arith.extui %0 : i1 to i32
    %c0_i32 = arith.constant 0 : i32
    %2 = arith.cmpi ne, %1, %c0_i32 : i32
    scf.if %2 {
      %c0 = arith.constant 0 : index
      %c0_2 = arith.constant 0 : index
      %c0_3 = arith.constant 0 : index
      %c0_4 = arith.constant 0 : index
      %c0_5 = arith.constant 0 : index
      %6 = vector.load %arg3[%c0, %c0_2, %c0_3, %c0_4, %c0_5] : memref<1x1x8x8x32xbf16, #tpu.memory_space<vmem>>, vector<1x1x8x8x32xbf16>
      %7 = vector.shape_cast %6 : vector<1x1x8x8x32xbf16> to vector<8x8x32xbf16>
      %8 = arith.extf %7 : vector<8x8x32xbf16> to vector<8x8x32xf32>
      %c0_6 = arith.constant 0 : index
      %c0_7 = arith.constant 0 : index
      %c0_8 = arith.constant 0 : index
      %9 = vector.load %arg4[%c0_6, %c0_7, %c0_8] : memref<1x1x32xf32, #tpu.memory_space<vmem>>, vector<1x1x32xf32>
      %10 = vector.broadcast %9 : vector<1x1x32xf32> to vector<8x8x32xf32>
      %11 = arith.mulf %8, %10 : vector<8x8x32xf32>
      %c0_9 = arith.constant 0 : index
      %c0_10 = arith.constant 0 : index
      %c0_11 = arith.constant 0 : index
      %12 = vector.load %arg5[%c0_9, %c0_10, %c0_11] : memref<1x1x32xf32, #tpu.memory_space<vmem>>, vector<1x1x32xf32>
      %13 = vector.broadcast %12 : vector<1x1x32xf32> to vector<8x8x32xf32>
      %14 = arith.addf %11, %13 : vector<8x8x32xf32>
      %15 = arith.negf %14 : vector<8x8x32xf32>
      %16 = math.exp %15 : vector<8x8x32xf32>
      %cst = arith.constant 1.000000e+00 : f32
      %17 = vector.broadcast %cst : f32 to vector<8x8x32xf32>
      %18 = arith.addf %17, %16 : vector<8x8x32xf32>
      %19 = arith.divf %17, %18 : vector<8x8x32xf32>
      %20 = arith.mulf %14, %19 : vector<8x8x32xf32>
      %21 = arith.truncf %20 : vector<8x8x32xf32> to vector<8x8x32xbf16>
      %c3_i32 = arith.constant 3 : i32
      %c0_i32_12 = arith.constant 0 : i32
      %22 = arith.cmpi eq, %c3_i32, %c0_i32_12 : i32
      %c1_i32 = arith.constant 1 : i32
      %23 = arith.select %22, %c1_i32, %c3_i32 : i32
      %24 = arith.remsi %arg2, %23 : i32
      %c0_i32_13 = arith.constant 0 : i32
      %25 = arith.cmpi ne, %24, %c0_i32_13 : i32
      %c0_i32_14 = arith.constant 0 : i32
      %26 = arith.cmpi slt, %24, %c0_i32_14 : i32
      %c0_i32_15 = arith.constant 0 : i32
      %27 = arith.cmpi slt, %23, %c0_i32_15 : i32
      %28 = arith.xori %26, %27 : i1
      %29 = arith.andi %28, %25 : i1
      %30 = arith.addi %24, %23 : i32
      %31 = arith.select %29, %30, %24 : i32
      %32 = arith.index_cast %31 : i32 to index
      %c0_16 = arith.constant 0 : index
      %c0_17 = arith.constant 0 : index
      %c0_18 = arith.constant 0 : index
      %33 = vector.load %arg10[%32, %c0_16, %c0_17, %c0_18] : memref<3x8x8x32xbf16, #tpu.memory_space<vmem>>, vector<1x8x8x32xbf16>
      %34 = vector.shape_cast %33 : vector<1x8x8x32xbf16> to vector<8x8x32xbf16>
      %35 = vector.shape_cast %21 : vector<8x8x32xbf16> to vector<1x8x8x32xbf16>
      tpu.vector_store %arg10[%32, %c0_16, %c0_17, %c0_18], %35 {strides = array<i32>} : memref<3x8x8x32xbf16, #tpu.memory_space<vmem>>, vector<1x8x8x32xbf16>,
    } else {
    }
    %c0_i32_0 = arith.constant 0 : i32
    %3 = arith.cmpi sgt, %arg2, %c0_i32_0 : i32
    %4 = arith.extui %3 : i1 to i32
    %c0_i32_1 = arith.constant 0 : i32
    %5 = arith.cmpi ne, %4, %c0_i32_1 : i32
    scf.if %5 {
      %c1_i32 = arith.constant 1 : i32
      %6 = arith.subi %arg2, %c1_i32 : i32
      %c1_i32_2 = arith.constant 1 : i32
      %7 = arith.subi %6, %c1_i32_2 : i32
      %c0_i32_3 = arith.constant 0 : i32
      %8 = arith.maxsi %7, %c0_i32_3 : i32
      %c3_i32 = arith.constant 3 : i32
      %c0_i32_4 = arith.constant 0 : i32
      %9 = arith.cmpi eq, %c3_i32, %c0_i32_4 : i32
      %c1_i32_5 = arith.constant 1 : i32
      %10 = arith.select %9, %c1_i32_5, %c3_i32 : i32
      %11 = arith.remsi %8, %10 : i32
      %c0_i32_6 = arith.constant 0 : i32
      %12 = arith.cmpi ne, %11, %c0_i32_6 : i32
      %c0_i32_7 = arith.constant 0 : i32
      %13 = arith.cmpi slt, %11, %c0_i32_7 : i32
      %c0_i32_8 = arith.constant 0 : i32
      %14 = arith.cmpi slt, %10, %c0_i32_8 : i32
      %15 = arith.xori %13, %14 : i1
      %16 = arith.andi %15, %12 : i1
      %17 = arith.addi %11, %10 : i32
      %18 = arith.select %16, %17, %11 : i32
      %c3_i32_9 = arith.constant 3 : i32
      %c0_i32_10 = arith.constant 0 : i32
      %19 = arith.cmpi eq, %c3_i32_9, %c0_i32_10 : i32
      %c1_i32_11 = arith.constant 1 : i32
      %20 = arith.select %19, %c1_i32_11, %c3_i32_9 : i32
      %21 = arith.remsi %6, %20 : i32
      %c0_i32_12 = arith.constant 0 : i32
      %22 = arith.cmpi ne, %21, %c0_i32_12 : i32
      %c0_i32_13 = arith.constant 0 : i32
      %23 = arith.cmpi slt, %21, %c0_i32_13 : i32
      %c0_i32_14 = arith.constant 0 : i32
      %24 = arith.cmpi slt, %20, %c0_i32_14 : i32
      %25 = arith.xori %23, %24 : i1
      %26 = arith.andi %25, %22 : i1
      %27 = arith.addi %21, %20 : i32
      %28 = arith.select %26, %27, %21 : i32
      %c1_i32_15 = arith.constant 1 : i32
      %29 = arith.addi %6, %c1_i32_15 : i32
      %c3_i32_16 = arith.constant 3 : i32
      %30 = arith.minsi %29, %c3_i32_16 : i32
      %c3_i32_17 = arith.constant 3 : i32
      %c0_i32_18 = arith.constant 0 : i32
      %31 = arith.cmpi eq, %c3_i32_17, %c0_i32_18 : i32
      %c1_i32_19 = arith.constant 1 : i32
      %32 = arith.select %31, %c1_i32_19, %c3_i32_17 : i32
      %33 = arith.remsi %30, %32 : i32
      %c0_i32_20 = arith.constant 0 : i32
      %34 = arith.cmpi ne, %33, %c0_i32_20 : i32
      %c0_i32_21 = arith.constant 0 : i32
      %35 = arith.cmpi slt, %33, %c0_i32_21 : i32
      %c0_i32_22 = arith.constant 0 : i32
      %36 = arith.cmpi slt, %32, %c0_i32_22 : i32
      %37 = arith.xori %35, %36 : i1
      %38 = arith.andi %37, %34 : i1
      %39 = arith.addi %33, %32 : i32
      %40 = arith.select %38, %39, %33 : i32
      %41 = arith.index_cast %18 : i32 to index
      %c0 = arith.constant 0 : index
      %c0_23 = arith.constant 0 : index
      %c0_24 = arith.constant 0 : index
      %42 = vector.load %arg10[%41, %c0, %c0_23, %c0_24] : memref<3x8x8x32xbf16, #tpu.memory_space<vmem>>, vector<1x8x8x32xbf16>
      %43 = vector.shape_cast %42 : vector<1x8x8x32xbf16> to vector<8x8x32xbf16>
      %44 = vector.shape_cast %43 : vector<8x8x32xbf16> to vector<64x32xbf16>
      %c0_25 = arith.constant 0 : index
      %c0_26 = arith.constant 0 : index
      %c0_27 = arith.constant 0 : index
      %45 = vector.load %arg6[%c0_25, %c0_26, %c0_27] : memref<3x32x32xbf16, #tpu.memory_space<vmem>>, vector<1x32x32xbf16>
      %46 = vector.shape_cast %45 : vector<1x32x32xbf16> to vector<32x32xbf16>
      %cst = arith.constant dense<0.000000e+00> : vector<64x32xf32>
      %47 = tpu.matmul %44, %46, %cst {dimension_numbers = #tpu.dot_dimension_numbers<[1], [0], [0], [1], [0, 0, 1, 1], [], []>} : vector<64x32xbf16>, vector<32x32xbf16>, vector<64x32xf32> -> vector<64x32xf32>
      %48 = arith.index_cast %28 : i32 to index
      %c0_28 = arith.constant 0 : index
      %c0_29 = arith.constant 0 : index
      %c0_30 = arith.constant 0 : index
      %49 = vector.load %arg10[%48, %c0_28, %c0_29, %c0_30] : memref<3x8x8x32xbf16, #tpu.memory_space<vmem>>, vector<1x8x8x32xbf16>
      %50 = vector.shape_cast %49 : vector<1x8x8x32xbf16> to vector<8x8x32xbf16>
      %51 = vector.shape_cast %50 : vector<8x8x32xbf16> to vector<64x32xbf16>
      %c1 = arith.constant 1 : index
      %c0_31 = arith.constant 0 : index
      %c0_32 = arith.constant 0 : index
      %52 = vector.load %arg6[%c1, %c0_31, %c0_32] : memref<3x32x32xbf16, #tpu.memory_space<vmem>>, vector<1x32x32xbf16>
      %53 = vector.shape_cast %52 : vector<1x32x32xbf16> to vector<32x32xbf16>
      %cst_33 = arith.constant dense<0.000000e+00> : vector<64x32xf32>
      %54 = tpu.matmul %51, %53, %cst_33 {dimension_numbers = #tpu.dot_dimension_numbers<[1], [0], [0], [1], [0, 0, 1, 1], [], []>} : vector<64x32xbf16>, vector<32x32xbf16>, vector<64x32xf32> -> vector<64x32xf32>
      %55 = arith.addf %47, %54 : vector<64x32xf32>
      %56 = arith.index_cast %40 : i32 to index
      %c0_34 = arith.constant 0 : index
      %c0_35 = arith.constant 0 : index
      %c0_36 = arith.constant 0 : index
      %57 = vector.load %arg10[%56, %c0_34, %c0_35, %c0_36] : memref<3x8x8x32xbf16, #tpu.memory_space<vmem>>, vector<1x8x8x32xbf16>
      %58 = vector.shape_cast %57 : vector<1x8x8x32xbf16> to vector<8x8x32xbf16>
      %59 = vector.shape_cast %58 : vector<8x8x32xbf16> to vector<64x32xbf16>
      %c2 = arith.constant 2 : index
      %c0_37 = arith.constant 0 : index
      %c0_38 = arith.constant 0 : index
      %60 = vector.load %arg6[%c2, %c0_37, %c0_38] : memref<3x32x32xbf16, #tpu.memory_space<vmem>>, vector<1x32x32xbf16>
      %61 = vector.shape_cast %60 : vector<1x32x32xbf16> to vector<32x32xbf16>
      %cst_39 = arith.constant dense<0.000000e+00> : vector<64x32xf32>
      %62 = tpu.matmul %59, %61, %cst_39 {dimension_numbers = #tpu.dot_dimension_numbers<[1], [0], [0], [1], [0, 0, 1, 1], [], []>} : vector<64x32xbf16>, vector<32x32xbf16>, vector<64x32xf32> -> vector<64x32xf32>
      %63 = arith.addf %55, %62 : vector<64x32xf32>
      %c0_40 = arith.constant 0 : index
      %c0_41 = arith.constant 0 : index
      %c0_42 = arith.constant 0 : index
      %64 = vector.load %arg7[%c0_40, %c0_41, %c0_42] : memref<1x1x32xf32, #tpu.memory_space<vmem>>, vector<1x1x32xf32>
      %65 = vector.shape_cast %64 : vector<1x1x32xf32> to vector<1x32xf32>
      %66 = vector.broadcast %65 : vector<1x32xf32> to vector<64x32xf32>
      %67 = arith.addf %63, %66 : vector<64x32xf32>
      %68 = vector.shape_cast %67 : vector<64x32xf32> to vector<1x1x8x8x32xf32>
      %69 = arith.truncf %68 : vector<1x1x8x8x32xf32> to vector<1x1x8x8x32xbf16>
      %c0_43 = arith.constant 0 : index
      %c0_44 = arith.constant 0 : index
      %c0_45 = arith.constant 0 : index
      %c0_46 = arith.constant 0 : index
      %c0_47 = arith.constant 0 : index
      %70 = vector.load %arg8[%c0_43, %c0_44, %c0_45, %c0_46, %c0_47] : memref<1x1x8x8x32xbf16, #tpu.memory_space<vmem>>, vector<1x1x8x8x32xbf16>
      tpu.vector_store %arg8[%c0_43, %c0_44, %c0_45, %c0_46, %c0_47], %69 {strides = array<i32>} : memref<1x1x8x8x32xbf16, #tpu.memory_space<vmem>>, vector<1x1x8x8x32xbf16>,
      %cst_48 = arith.constant dense<0.000000e+00> : vector<32xf32>
      %71 = vector.multi_reduction <add>, %67, %cst_48 [0] : vector<64x32xf32> to vector<32xf32>
      %72 = vector.shape_cast %71 : vector<32xf32> to vector<1x32xf32>
      %73 = arith.mulf %67, %67 : vector<64x32xf32>
      %cst_49 = arith.constant dense<0.000000e+00> : vector<32xf32>
      %74 = vector.multi_reduction <add>, %73, %cst_49 [0] : vector<64x32xf32> to vector<32xf32>
      %75 = vector.shape_cast %74 : vector<32xf32> to vector<1x32xf32>
      %76 = tpu.concatenate %72, %75 in 0 : vector<1x32xf32>, vector<1x32xf32> -> vector<2x32xf32>
      %77 = vector.shape_cast %76 : vector<2x32xf32> to vector<1x1x1x2x32xf32>
      %c0_50 = arith.constant 0 : index
      %c0_51 = arith.constant 0 : index
      %c0_52 = arith.constant 0 : index
      %c0_53 = arith.constant 0 : index
      %c0_54 = arith.constant 0 : index
      %78 = vector.load %arg9[%c0_50, %c0_51, %c0_52, %c0_53, %c0_54] : memref<1x1x1x2x32xf32, #tpu.memory_space<vmem>>, vector<1x1x1x2x32xf32>
      tpu.vector_store %arg9[%c0_50, %c0_51, %c0_52, %c0_53, %c0_54], %77 {strides = array<i32>} : memref<1x1x1x2x32xf32, #tpu.memory_space<vmem>>, vector<1x1x1x2x32xf32>,
    } else {
    }
    return
  }
  func.func @transform_0(%arg0: i32, %arg1: i32, %arg2: i32) -> (i32, i32, i32, i32, i32) {
    %c3_i32 = arith.constant 3 : i32
    %0 = arith.minsi %arg2, %c3_i32 : i32
    %c0_i32 = arith.constant 0 : i32
    %c0_i32_0 = arith.constant 0 : i32
    %c0_i32_1 = arith.constant 0 : i32
    return %arg0, %0, %arg1, %c0_i32, %c0_i32_0 : i32, i32, i32, i32, i32
  }
  func.func @transform_1(%arg0: i32, %arg1: i32, %arg2: i32) -> (i32, i32, i32) {
    %c0_i32 = arith.constant 0 : i32
    %c0_i32_0 = arith.constant 0 : i32
    %c0_i32_1 = arith.constant 0 : i32
    return %arg0, %c0_i32, %c0_i32_0 : i32, i32, i32
  }
  func.func @transform_2(%arg0: i32, %arg1: i32, %arg2: i32) -> (i32, i32, i32) {
    %c0_i32 = arith.constant 0 : i32
    %c0_i32_0 = arith.constant 0 : i32
    %c0_i32_1 = arith.constant 0 : i32
    return %arg0, %c0_i32, %c0_i32_0 : i32, i32, i32
  }
  func.func @transform_3(%arg0: i32, %arg1: i32, %arg2: i32) -> (i32, i32, i32) {
    %c0_i32 = arith.constant 0 : i32
    %c0_i32_0 = arith.constant 0 : i32
    %c0_i32_1 = arith.constant 0 : i32
    %c0_i32_2 = arith.constant 0 : i32
    return %c0_i32, %c0_i32_0, %c0_i32_1 : i32, i32, i32
  }
  func.func @transform_4(%arg0: i32, %arg1: i32, %arg2: i32) -> (i32, i32, i32) {
    %c0_i32 = arith.constant 0 : i32
    %c0_i32_0 = arith.constant 0 : i32
    %c0_i32_1 = arith.constant 0 : i32
    %c0_i32_2 = arith.constant 0 : i32
    return %c0_i32, %c0_i32_0, %c0_i32_1 : i32, i32, i32
  }
  func.func @transform_5(%arg0: i32, %arg1: i32, %arg2: i32) -> (i32, i32, i32, i32, i32) {
    %c1_i32 = arith.constant 1 : i32
    %0 = arith.subi %arg2, %c1_i32 : i32
    %c0_i32 = arith.constant 0 : i32
    %1 = arith.maxsi %0, %c0_i32 : i32
    %c0_i32_0 = arith.constant 0 : i32
    %c0_i32_1 = arith.constant 0 : i32
    %c0_i32_2 = arith.constant 0 : i32
    return %arg0, %1, %arg1, %c0_i32_0, %c0_i32_1 : i32, i32, i32, i32, i32
  }
  func.func @transform_6(%arg0: i32, %arg1: i32, %arg2: i32) -> (i32, i32, i32, i32, i32) {
    %c1_i32 = arith.constant 1 : i32
    %0 = arith.subi %arg2, %c1_i32 : i32
    %c0_i32 = arith.constant 0 : i32
    %1 = arith.maxsi %0, %c0_i32 : i32
    %c0_i32_0 = arith.constant 0 : i32
    %c0_i32_1 = arith.constant 0 : i32
    %c0_i32_2 = arith.constant 0 : i32
    return %arg0, %1, %arg1, %c0_i32_0, %c0_i32_1 : i32, i32, i32, i32, i32
  }
}

module attributes {stable_mosaic.version = 11 : i64} {
  func.func @_tconv_kernel(%arg0: i32, %arg1: i32, %arg2: i32, %arg3: memref<1x1x8x8x32xbf16, #tpu.memory_space<vmem>>, %arg4: memref<1x1x32xf32, #tpu.memory_space<vmem>>, %arg5: memref<1x1x32xf32, #tpu.memory_space<vmem>>, %arg6: memref<3x32x32xbf16, #tpu.memory_space<vmem>>, %arg7: memref<1x1x32xf32, #tpu.memory_space<vmem>>, %arg8: memref<1x1x8x8x32xbf16, #tpu.memory_space<vmem>>, %arg9: memref<1x1x8x8x32xbf16, #tpu.memory_space<vmem>>, %arg10: memref<3x8x8x32xbf16, #tpu.memory_space<vmem>>) attributes {dimension_semantics = [#tpu.dimension_semantics<parallel>, #tpu.dimension_semantics<parallel>, #tpu.dimension_semantics<arbitrary>], iteration_bounds = array<i64: 1, 1, 5>, scalar_prefetch = 0 : i64, scratch_operands = 1 : i64, tpu.core_type = #tpu.core_type<tc>, window_params = [{transform_indices = @transform_0, window_bounds = array<i64: 1, 1, 8, 8, 32>}, {transform_indices = @transform_1, window_bounds = array<i64: 1, 1, 32>}, {transform_indices = @transform_2, window_bounds = array<i64: 1, 1, 32>}, {pipeline_mode = #tpu.pipeline_mode<synchronous>, transform_indices = @transform_3, window_bounds = array<i64: 3, 32, 32>}, {pipeline_mode = #tpu.pipeline_mode<synchronous>, transform_indices = @transform_4, window_bounds = array<i64: 1, 1, 32>}, {transform_indices = @transform_5, window_bounds = array<i64: 1, 1, 8, 8, 32>}, {transform_indices = @transform_6, window_bounds = array<i64: 1, 1, 8, 8, 32>}]} {
    %c4_i32 = arith.constant 4 : i32
    %0 = arith.cmpi slt, %arg2, %c4_i32 : i32
    %1 = arith.extui %0 : i1 to i32
    %c0_i32 = arith.constant 0 : i32
    %2 = arith.cmpi ne, %1, %c0_i32 : i32
    scf.if %2 {
      %c0 = arith.constant 0 : index
      %c0_2 = arith.constant 0 : index
      %c0_3 = arith.constant 0 : index
      %c0_4 = arith.constant 0 : index
      %c0_5 = arith.constant 0 : index
      %6 = vector.load %arg3[%c0, %c0_2, %c0_3, %c0_4, %c0_5] : memref<1x1x8x8x32xbf16, #tpu.memory_space<vmem>>, vector<1x1x8x8x32xbf16>
      %7 = vector.shape_cast %6 : vector<1x1x8x8x32xbf16> to vector<8x8x32xbf16>
      %8 = arith.extf %7 : vector<8x8x32xbf16> to vector<8x8x32xf32>
      %c0_6 = arith.constant 0 : index
      %c0_7 = arith.constant 0 : index
      %c0_8 = arith.constant 0 : index
      %9 = vector.load %arg4[%c0_6, %c0_7, %c0_8] : memref<1x1x32xf32, #tpu.memory_space<vmem>>, vector<1x1x32xf32>
      %10 = vector.broadcast %9 : vector<1x1x32xf32> to vector<8x8x32xf32>
      %11 = arith.mulf %8, %10 : vector<8x8x32xf32>
      %c0_9 = arith.constant 0 : index
      %c0_10 = arith.constant 0 : index
      %c0_11 = arith.constant 0 : index
      %12 = vector.load %arg5[%c0_9, %c0_10, %c0_11] : memref<1x1x32xf32, #tpu.memory_space<vmem>>, vector<1x1x32xf32>
      %13 = vector.broadcast %12 : vector<1x1x32xf32> to vector<8x8x32xf32>
      %14 = arith.addf %11, %13 : vector<8x8x32xf32>
      %15 = arith.negf %14 : vector<8x8x32xf32>
      %16 = math.exp %15 : vector<8x8x32xf32>
      %cst = arith.constant 1.000000e+00 : f32
      %17 = vector.broadcast %cst : f32 to vector<8x8x32xf32>
      %18 = arith.addf %17, %16 : vector<8x8x32xf32>
      %19 = arith.divf %17, %18 : vector<8x8x32xf32>
      %20 = arith.mulf %14, %19 : vector<8x8x32xf32>
      %21 = arith.truncf %20 : vector<8x8x32xf32> to vector<8x8x32xbf16>
      %c3_i32 = arith.constant 3 : i32
      %c0_i32_12 = arith.constant 0 : i32
      %22 = arith.cmpi eq, %c3_i32, %c0_i32_12 : i32
      %c1_i32 = arith.constant 1 : i32
      %23 = arith.select %22, %c1_i32, %c3_i32 : i32
      %24 = arith.remsi %arg2, %23 : i32
      %c0_i32_13 = arith.constant 0 : i32
      %25 = arith.cmpi ne, %24, %c0_i32_13 : i32
      %c0_i32_14 = arith.constant 0 : i32
      %26 = arith.cmpi slt, %24, %c0_i32_14 : i32
      %c0_i32_15 = arith.constant 0 : i32
      %27 = arith.cmpi slt, %23, %c0_i32_15 : i32
      %28 = arith.xori %26, %27 : i1
      %29 = arith.andi %28, %25 : i1
      %30 = arith.addi %24, %23 : i32
      %31 = arith.select %29, %30, %24 : i32
      %32 = arith.index_cast %31 : i32 to index
      %c0_16 = arith.constant 0 : index
      %c0_17 = arith.constant 0 : index
      %c0_18 = arith.constant 0 : index
      %33 = vector.load %arg10[%32, %c0_16, %c0_17, %c0_18] : memref<3x8x8x32xbf16, #tpu.memory_space<vmem>>, vector<1x8x8x32xbf16>
      %34 = vector.shape_cast %33 : vector<1x8x8x32xbf16> to vector<8x8x32xbf16>
      %35 = vector.shape_cast %21 : vector<8x8x32xbf16> to vector<1x8x8x32xbf16>
      tpu.vector_store %arg10[%32, %c0_16, %c0_17, %c0_18], %35 {strides = array<i32>} : memref<3x8x8x32xbf16, #tpu.memory_space<vmem>>, vector<1x8x8x32xbf16>,
    } else {
    }
    %c0_i32_0 = arith.constant 0 : i32
    %3 = arith.cmpi sgt, %arg2, %c0_i32_0 : i32
    %4 = arith.extui %3 : i1 to i32
    %c0_i32_1 = arith.constant 0 : i32
    %5 = arith.cmpi ne, %4, %c0_i32_1 : i32
    scf.if %5 {
      %c1_i32 = arith.constant 1 : i32
      %6 = arith.subi %arg2, %c1_i32 : i32
      %c1_i32_2 = arith.constant 1 : i32
      %7 = arith.subi %6, %c1_i32_2 : i32
      %c0_i32_3 = arith.constant 0 : i32
      %8 = arith.maxsi %7, %c0_i32_3 : i32
      %c3_i32 = arith.constant 3 : i32
      %c0_i32_4 = arith.constant 0 : i32
      %9 = arith.cmpi eq, %c3_i32, %c0_i32_4 : i32
      %c1_i32_5 = arith.constant 1 : i32
      %10 = arith.select %9, %c1_i32_5, %c3_i32 : i32
      %11 = arith.remsi %8, %10 : i32
      %c0_i32_6 = arith.constant 0 : i32
      %12 = arith.cmpi ne, %11, %c0_i32_6 : i32
      %c0_i32_7 = arith.constant 0 : i32
      %13 = arith.cmpi slt, %11, %c0_i32_7 : i32
      %c0_i32_8 = arith.constant 0 : i32
      %14 = arith.cmpi slt, %10, %c0_i32_8 : i32
      %15 = arith.xori %13, %14 : i1
      %16 = arith.andi %15, %12 : i1
      %17 = arith.addi %11, %10 : i32
      %18 = arith.select %16, %17, %11 : i32
      %c3_i32_9 = arith.constant 3 : i32
      %c0_i32_10 = arith.constant 0 : i32
      %19 = arith.cmpi eq, %c3_i32_9, %c0_i32_10 : i32
      %c1_i32_11 = arith.constant 1 : i32
      %20 = arith.select %19, %c1_i32_11, %c3_i32_9 : i32
      %21 = arith.remsi %6, %20 : i32
      %c0_i32_12 = arith.constant 0 : i32
      %22 = arith.cmpi ne, %21, %c0_i32_12 : i32
      %c0_i32_13 = arith.constant 0 : i32
      %23 = arith.cmpi slt, %21, %c0_i32_13 : i32
      %c0_i32_14 = arith.constant 0 : i32
      %24 = arith.cmpi slt, %20, %c0_i32_14 : i32
      %25 = arith.xori %23, %24 : i1
      %26 = arith.andi %25, %22 : i1
      %27 = arith.addi %21, %20 : i32
      %28 = arith.select %26, %27, %21 : i32
      %c1_i32_15 = arith.constant 1 : i32
      %29 = arith.addi %6, %c1_i32_15 : i32
      %c3_i32_16 = arith.constant 3 : i32
      %30 = arith.minsi %29, %c3_i32_16 : i32
      %c3_i32_17 = arith.constant 3 : i32
      %c0_i32_18 = arith.constant 0 : i32
      %31 = arith.cmpi eq, %c3_i32_17, %c0_i32_18 : i32
      %c1_i32_19 = arith.constant 1 : i32
      %32 = arith.select %31, %c1_i32_19, %c3_i32_17 : i32
      %33 = arith.remsi %30, %32 : i32
      %c0_i32_20 = arith.constant 0 : i32
      %34 = arith.cmpi ne, %33, %c0_i32_20 : i32
      %c0_i32_21 = arith.constant 0 : i32
      %35 = arith.cmpi slt, %33, %c0_i32_21 : i32
      %c0_i32_22 = arith.constant 0 : i32
      %36 = arith.cmpi slt, %32, %c0_i32_22 : i32
      %37 = arith.xori %35, %36 : i1
      %38 = arith.andi %37, %34 : i1
      %39 = arith.addi %33, %32 : i32
      %40 = arith.select %38, %39, %33 : i32
      %41 = arith.index_cast %18 : i32 to index
      %c0 = arith.constant 0 : index
      %c0_23 = arith.constant 0 : index
      %c0_24 = arith.constant 0 : index
      %42 = vector.load %arg10[%41, %c0, %c0_23, %c0_24] : memref<3x8x8x32xbf16, #tpu.memory_space<vmem>>, vector<1x8x8x32xbf16>
      %43 = vector.shape_cast %42 : vector<1x8x8x32xbf16> to vector<8x8x32xbf16>
      %44 = vector.shape_cast %43 : vector<8x8x32xbf16> to vector<64x32xbf16>
      %c0_25 = arith.constant 0 : index
      %c0_26 = arith.constant 0 : index
      %c0_27 = arith.constant 0 : index
      %45 = vector.load %arg6[%c0_25, %c0_26, %c0_27] : memref<3x32x32xbf16, #tpu.memory_space<vmem>>, vector<1x32x32xbf16>
      %46 = vector.shape_cast %45 : vector<1x32x32xbf16> to vector<32x32xbf16>
      %cst = arith.constant dense<0.000000e+00> : vector<64x32xf32>
      %47 = tpu.matmul %44, %46, %cst {dimension_numbers = #tpu.dot_dimension_numbers<[1], [0], [0], [1], [0, 0, 1, 1], [], []>} : vector<64x32xbf16>, vector<32x32xbf16>, vector<64x32xf32> -> vector<64x32xf32>
      %48 = arith.index_cast %28 : i32 to index
      %c0_28 = arith.constant 0 : index
      %c0_29 = arith.constant 0 : index
      %c0_30 = arith.constant 0 : index
      %49 = vector.load %arg10[%48, %c0_28, %c0_29, %c0_30] : memref<3x8x8x32xbf16, #tpu.memory_space<vmem>>, vector<1x8x8x32xbf16>
      %50 = vector.shape_cast %49 : vector<1x8x8x32xbf16> to vector<8x8x32xbf16>
      %51 = vector.shape_cast %50 : vector<8x8x32xbf16> to vector<64x32xbf16>
      %c1 = arith.constant 1 : index
      %c0_31 = arith.constant 0 : index
      %c0_32 = arith.constant 0 : index
      %52 = vector.load %arg6[%c1, %c0_31, %c0_32] : memref<3x32x32xbf16, #tpu.memory_space<vmem>>, vector<1x32x32xbf16>
      %53 = vector.shape_cast %52 : vector<1x32x32xbf16> to vector<32x32xbf16>
      %cst_33 = arith.constant dense<0.000000e+00> : vector<64x32xf32>
      %54 = tpu.matmul %51, %53, %cst_33 {dimension_numbers = #tpu.dot_dimension_numbers<[1], [0], [0], [1], [0, 0, 1, 1], [], []>} : vector<64x32xbf16>, vector<32x32xbf16>, vector<64x32xf32> -> vector<64x32xf32>
      %55 = arith.addf %47, %54 : vector<64x32xf32>
      %56 = arith.index_cast %40 : i32 to index
      %c0_34 = arith.constant 0 : index
      %c0_35 = arith.constant 0 : index
      %c0_36 = arith.constant 0 : index
      %57 = vector.load %arg10[%56, %c0_34, %c0_35, %c0_36] : memref<3x8x8x32xbf16, #tpu.memory_space<vmem>>, vector<1x8x8x32xbf16>
      %58 = vector.shape_cast %57 : vector<1x8x8x32xbf16> to vector<8x8x32xbf16>
      %59 = vector.shape_cast %58 : vector<8x8x32xbf16> to vector<64x32xbf16>
      %c2 = arith.constant 2 : index
      %c0_37 = arith.constant 0 : index
      %c0_38 = arith.constant 0 : index
      %60 = vector.load %arg6[%c2, %c0_37, %c0_38] : memref<3x32x32xbf16, #tpu.memory_space<vmem>>, vector<1x32x32xbf16>
      %61 = vector.shape_cast %60 : vector<1x32x32xbf16> to vector<32x32xbf16>
      %cst_39 = arith.constant dense<0.000000e+00> : vector<64x32xf32>
      %62 = tpu.matmul %59, %61, %cst_39 {dimension_numbers = #tpu.dot_dimension_numbers<[1], [0], [0], [1], [0, 0, 1, 1], [], []>} : vector<64x32xbf16>, vector<32x32xbf16>, vector<64x32xf32> -> vector<64x32xf32>
      %63 = arith.addf %55, %62 : vector<64x32xf32>
      %c0_40 = arith.constant 0 : index
      %c0_41 = arith.constant 0 : index
      %c0_42 = arith.constant 0 : index
      %64 = vector.load %arg7[%c0_40, %c0_41, %c0_42] : memref<1x1x32xf32, #tpu.memory_space<vmem>>, vector<1x1x32xf32>
      %65 = vector.shape_cast %64 : vector<1x1x32xf32> to vector<1x32xf32>
      %66 = vector.broadcast %65 : vector<1x32xf32> to vector<64x32xf32>
      %67 = arith.addf %63, %66 : vector<64x32xf32>
      %c0_43 = arith.constant 0 : index
      %c0_44 = arith.constant 0 : index
      %c0_45 = arith.constant 0 : index
      %c0_46 = arith.constant 0 : index
      %c0_47 = arith.constant 0 : index
      %68 = vector.load %arg8[%c0_43, %c0_44, %c0_45, %c0_46, %c0_47] : memref<1x1x8x8x32xbf16, #tpu.memory_space<vmem>>, vector<1x1x8x8x32xbf16>
      %69 = arith.extf %68 : vector<1x1x8x8x32xbf16> to vector<1x1x8x8x32xf32>
      %70 = vector.shape_cast %69 : vector<1x1x8x8x32xf32> to vector<64x32xf32>
      %71 = arith.addf %67, %70 : vector<64x32xf32>
      %72 = vector.shape_cast %71 : vector<64x32xf32> to vector<1x1x8x8x32xf32>
      %73 = arith.truncf %72 : vector<1x1x8x8x32xf32> to vector<1x1x8x8x32xbf16>
      %c0_48 = arith.constant 0 : index
      %c0_49 = arith.constant 0 : index
      %c0_50 = arith.constant 0 : index
      %c0_51 = arith.constant 0 : index
      %c0_52 = arith.constant 0 : index
      %74 = vector.load %arg9[%c0_48, %c0_49, %c0_50, %c0_51, %c0_52] : memref<1x1x8x8x32xbf16, #tpu.memory_space<vmem>>, vector<1x1x8x8x32xbf16>
      tpu.vector_store %arg9[%c0_48, %c0_49, %c0_50, %c0_51, %c0_52], %73 {strides = array<i32>} : memref<1x1x8x8x32xbf16, #tpu.memory_space<vmem>>, vector<1x1x8x8x32xbf16>,
    } else {
    }
    return
  }
  func.func @transform_0(%arg0: i32, %arg1: i32, %arg2: i32) -> (i32, i32, i32, i32, i32) {
    %c3_i32 = arith.constant 3 : i32
    %0 = arith.minsi %arg2, %c3_i32 : i32
    %c0_i32 = arith.constant 0 : i32
    %c0_i32_0 = arith.constant 0 : i32
    %c0_i32_1 = arith.constant 0 : i32
    return %arg0, %0, %arg1, %c0_i32, %c0_i32_0 : i32, i32, i32, i32, i32
  }
  func.func @transform_1(%arg0: i32, %arg1: i32, %arg2: i32) -> (i32, i32, i32) {
    %c0_i32 = arith.constant 0 : i32
    %c0_i32_0 = arith.constant 0 : i32
    %c0_i32_1 = arith.constant 0 : i32
    return %arg0, %c0_i32, %c0_i32_0 : i32, i32, i32
  }
  func.func @transform_2(%arg0: i32, %arg1: i32, %arg2: i32) -> (i32, i32, i32) {
    %c0_i32 = arith.constant 0 : i32
    %c0_i32_0 = arith.constant 0 : i32
    %c0_i32_1 = arith.constant 0 : i32
    return %arg0, %c0_i32, %c0_i32_0 : i32, i32, i32
  }
  func.func @transform_3(%arg0: i32, %arg1: i32, %arg2: i32) -> (i32, i32, i32) {
    %c0_i32 = arith.constant 0 : i32
    %c0_i32_0 = arith.constant 0 : i32
    %c0_i32_1 = arith.constant 0 : i32
    %c0_i32_2 = arith.constant 0 : i32
    return %c0_i32, %c0_i32_0, %c0_i32_1 : i32, i32, i32
  }
  func.func @transform_4(%arg0: i32, %arg1: i32, %arg2: i32) -> (i32, i32, i32) {
    %c0_i32 = arith.constant 0 : i32
    %c0_i32_0 = arith.constant 0 : i32
    %c0_i32_1 = arith.constant 0 : i32
    %c0_i32_2 = arith.constant 0 : i32
    return %c0_i32, %c0_i32_0, %c0_i32_1 : i32, i32, i32
  }
  func.func @transform_5(%arg0: i32, %arg1: i32, %arg2: i32) -> (i32, i32, i32, i32, i32) {
    %c1_i32 = arith.constant 1 : i32
    %0 = arith.subi %arg2, %c1_i32 : i32
    %c0_i32 = arith.constant 0 : i32
    %1 = arith.maxsi %0, %c0_i32 : i32
    %c0_i32_0 = arith.constant 0 : i32
    %c0_i32_1 = arith.constant 0 : i32
    %c0_i32_2 = arith.constant 0 : i32
    return %arg0, %1, %arg1, %c0_i32_0, %c0_i32_1 : i32, i32, i32, i32, i32
  }
  func.func @transform_6(%arg0: i32, %arg1: i32, %arg2: i32) -> (i32, i32, i32, i32, i32) {
    %c1_i32 = arith.constant 1 : i32
    %0 = arith.subi %arg2, %c1_i32 : i32
    %c0_i32 = arith.constant 0 : i32
    %1 = arith.maxsi %0, %c0_i32 : i32
    %c0_i32_0 = arith.constant 0 : i32
    %c0_i32_1 = arith.constant 0 : i32
    %c0_i32_2 = arith.constant 0 : i32
    return %arg0, %1, %arg1, %c0_i32_0, %c0_i32_1 : i32, i32, i32, i32, i32
  }
}

module attributes {stable_mosaic.version = 11 : i64} {
  func.func @_conv3x3_kernel(%arg0: i32, %arg1: i32, %arg2: memref<1x8x16x32xbf16, #tpu.memory_space<vmem>>, %arg3: memref<1x1x16x32xbf16, #tpu.memory_space<vmem>>, %arg4: memref<1x1x16x32xbf16, #tpu.memory_space<vmem>>, %arg5: memref<1x1x32xf32, #tpu.memory_space<vmem>>, %arg6: memref<1x1x32xf32, #tpu.memory_space<vmem>>, %arg7: memref<3x96x32xbf16, #tpu.memory_space<vmem>>, %arg8: memref<1x1x32xf32, #tpu.memory_space<vmem>>, %arg9: memref<1x16x16x32xf32, #tpu.memory_space<vmem>>) attributes {dimension_semantics = [#tpu.dimension_semantics<parallel>, #tpu.dimension_semantics<parallel>], iteration_bounds = array<i64: 4, 1>, scalar_prefetch = 0 : i64, scratch_operands = 0 : i64, tpu.core_type = #tpu.core_type<tc>, window_params = [{transform_indices = @transform_0, window_bounds = array<i64: 1, 8, 16, 32>}, {transform_indices = @transform_1, window_bounds = array<i64: 1, 1, 16, 32>}, {transform_indices = @transform_2, window_bounds = array<i64: 1, 1, 16, 32>}, {transform_indices = @transform_3, window_bounds = array<i64: 1, 1, 32>}, {transform_indices = @transform_4, window_bounds = array<i64: 1, 1, 32>}, {pipeline_mode = #tpu.pipeline_mode<synchronous>, transform_indices = @transform_5, window_bounds = array<i64: 3, 96, 32>}, {pipeline_mode = #tpu.pipeline_mode<synchronous>, transform_indices = @transform_6, window_bounds = array<i64: 1, 1, 32>}, {transform_indices = @transform_7, window_bounds = array<i64: 1, 16, 16, 32>}]} {
    %c0 = arith.constant 0 : index
    %c0_0 = arith.constant 0 : index
    %c0_1 = arith.constant 0 : index
    %c0_2 = arith.constant 0 : index
    %0 = vector.load %arg2[%c0, %c0_0, %c0_1, %c0_2] : memref<1x8x16x32xbf16, #tpu.memory_space<vmem>>, vector<1x8x16x32xbf16>
    %1 = vector.shape_cast %0 : vector<1x8x16x32xbf16> to vector<8x16x32xbf16>
    %c0_3 = arith.constant 0 : index
    %c0_4 = arith.constant 0 : index
    %c0_5 = arith.constant 0 : index
    %c0_6 = arith.constant 0 : index
    %2 = vector.load %arg3[%c0_3, %c0_4, %c0_5, %c0_6] : memref<1x1x16x32xbf16, #tpu.memory_space<vmem>>, vector<1x1x16x32xbf16>
    %3 = vector.shape_cast %2 : vector<1x1x16x32xbf16> to vector<1x16x32xbf16>
    %c0_7 = arith.constant 0 : index
    %c0_8 = arith.constant 0 : index
    %c0_9 = arith.constant 0 : index
    %c0_10 = arith.constant 0 : index
    %4 = vector.load %arg4[%c0_7, %c0_8, %c0_9, %c0_10] : memref<1x1x16x32xbf16, #tpu.memory_space<vmem>>, vector<1x1x16x32xbf16>
    %5 = vector.shape_cast %4 : vector<1x1x16x32xbf16> to vector<1x16x32xbf16>
    %6 = vector.shape_cast %1 : vector<8x16x32xbf16> to vector<8x1x16x32xbf16>
    %7 = vector.shape_cast %6 : vector<8x1x16x32xbf16> to vector<8x1x16x32xbf16>
    %8 = vector.broadcast %7 : vector<8x1x16x32xbf16> to vector<8x2x16x32xbf16>
    %9 = vector.shape_cast %8 : vector<8x2x16x32xbf16> to vector<16x16x32xbf16>
    %10 = tpu.concatenate %3, %9, %5 in 0 : vector<1x16x32xbf16>, vector<16x16x32xbf16>, vector<1x16x32xbf16> -> vector<18x16x32xbf16>
    %11 = arith.extf %10 : vector<18x16x32xbf16> to vector<18x16x32xf32>
    %12 = tpu.iota {dimensions = array<i32: 0>} : vector<18x1x1xi32>
    %c0_i32 = arith.constant 0 : i32
    %13 = arith.cmpi eq, %arg1, %c0_i32 : i32
    %c1_i32 = arith.constant 1 : i32
    %c0_i32_11 = arith.constant 0 : i32
    %14 = arith.select %13, %c1_i32, %c0_i32_11 : i32
    %c0_i32_12 = arith.constant 0 : i32
    %15 = arith.cmpi eq, %arg1, %c0_i32_12 : i32
    %c16_i32 = arith.constant 16 : i32
    %c17_i32 = arith.constant 17 : i32
    %16 = arith.select %15, %c16_i32, %c17_i32 : i32
    %17 = vector.broadcast %14 : i32 to vector<18x1x1xi32>
    %18 = arith.cmpi sge, %12, %17 : vector<18x1x1xi32>
    %19 = vector.broadcast %16 : i32 to vector<18x1x1xi32>
    %20 = arith.cmpi sle, %12, %19 : vector<18x1x1xi32>
    %21 = arith.andi %18, %20 : vector<18x1x1xi1>
    %cst = arith.constant 0.000000e+00 : f32
    %22 = vector.shape_cast %21 : vector<18x1x1xi1> to vector<18x1x1xi1>
    %23 = vector.broadcast %22 : vector<18x1x1xi1> to vector<18x16x32xi1>
    %24 = vector.broadcast %cst : f32 to vector<18x16x32xf32>
    %25 = arith.select %23, %11, %24 : vector<18x16x32xi1>, vector<18x16x32xf32>
    %26 = arith.truncf %25 : vector<18x16x32xf32> to vector<18x16x32xbf16>
    %cst_13 = arith.constant 0.000000e+00 : bf16
    %27 = vector.broadcast %cst_13 : bf16 to vector<18x1x32xbf16>
    %28 = tpu.concatenate %27, %26, %27 in 1 : vector<18x1x32xbf16>, vector<18x16x32xbf16>, vector<18x1x32xbf16> -> vector<18x18x32xbf16>
    %29 = vector.extract_strided_slice %28 {offsets = [0, 0, 0], sizes = [18, 16, 32], strides = [1, 1, 1]} : vector<18x18x32xbf16> to vector<18x16x32xbf16>
    %30 = vector.extract_strided_slice %28 {offsets = [0, 1, 0], sizes = [18, 16, 32], strides = [1, 1, 1]} : vector<18x18x32xbf16> to vector<18x16x32xbf16>
    %31 = vector.extract_strided_slice %28 {offsets = [0, 2, 0], sizes = [18, 16, 32], strides = [1, 1, 1]} : vector<18x18x32xbf16> to vector<18x16x32xbf16>
    %32 = tpu.concatenate %29, %30, %31 in 2 : vector<18x16x32xbf16>, vector<18x16x32xbf16>, vector<18x16x32xbf16> -> vector<18x16x96xbf16>
    %cst_14 = arith.constant 0.000000e+00 : f32
    %33 = vector.broadcast %cst_14 : f32 to vector<256x32xf32>
    %34 = vector.extract_strided_slice %32 {offsets = [0, 0, 0], sizes = [16, 16, 96], strides = [1, 1, 1]} : vector<18x16x96xbf16> to vector<16x16x96xbf16>
    %35 = vector.shape_cast %34 : vector<16x16x96xbf16> to vector<256x96xbf16>
    %c0_15 = arith.constant 0 : index
    %c0_16 = arith.constant 0 : index
    %c0_17 = arith.constant 0 : index
    %36 = vector.load %arg7[%c0_15, %c0_16, %c0_17] : memref<3x96x32xbf16, #tpu.memory_space<vmem>>, vector<1x96x32xbf16>
    %37 = vector.shape_cast %36 : vector<1x96x32xbf16> to vector<96x32xbf16>
    %cst_18 = arith.constant dense<0.000000e+00> : vector<256x32xf32>
    %38 = tpu.matmul %35, %37, %cst_18 {dimension_numbers = #tpu.dot_dimension_numbers<[1], [0], [0], [1], [0, 0, 1, 1], [], []>} : vector<256x96xbf16>, vector<96x32xbf16>, vector<256x32xf32> -> vector<256x32xf32>
    %39 = arith.addf %33, %38 : vector<256x32xf32>
    %40 = vector.extract_strided_slice %32 {offsets = [1, 0, 0], sizes = [16, 16, 96], strides = [1, 1, 1]} : vector<18x16x96xbf16> to vector<16x16x96xbf16>
    %41 = vector.shape_cast %40 : vector<16x16x96xbf16> to vector<256x96xbf16>
    %c1 = arith.constant 1 : index
    %c0_19 = arith.constant 0 : index
    %c0_20 = arith.constant 0 : index
    %42 = vector.load %arg7[%c1, %c0_19, %c0_20] : memref<3x96x32xbf16, #tpu.memory_space<vmem>>, vector<1x96x32xbf16>
    %43 = vector.shape_cast %42 : vector<1x96x32xbf16> to vector<96x32xbf16>
    %cst_21 = arith.constant dense<0.000000e+00> : vector<256x32xf32>
    %44 = tpu.matmul %41, %43, %cst_21 {dimension_numbers = #tpu.dot_dimension_numbers<[1], [0], [0], [1], [0, 0, 1, 1], [], []>} : vector<256x96xbf16>, vector<96x32xbf16>, vector<256x32xf32> -> vector<256x32xf32>
    %45 = arith.addf %39, %44 : vector<256x32xf32>
    %46 = vector.extract_strided_slice %32 {offsets = [2, 0, 0], sizes = [16, 16, 96], strides = [1, 1, 1]} : vector<18x16x96xbf16> to vector<16x16x96xbf16>
    %47 = vector.shape_cast %46 : vector<16x16x96xbf16> to vector<256x96xbf16>
    %c2 = arith.constant 2 : index
    %c0_22 = arith.constant 0 : index
    %c0_23 = arith.constant 0 : index
    %48 = vector.load %arg7[%c2, %c0_22, %c0_23] : memref<3x96x32xbf16, #tpu.memory_space<vmem>>, vector<1x96x32xbf16>
    %49 = vector.shape_cast %48 : vector<1x96x32xbf16> to vector<96x32xbf16>
    %cst_24 = arith.constant dense<0.000000e+00> : vector<256x32xf32>
    %50 = tpu.matmul %47, %49, %cst_24 {dimension_numbers = #tpu.dot_dimension_numbers<[1], [0], [0], [1], [0, 0, 1, 1], [], []>} : vector<256x96xbf16>, vector<96x32xbf16>, vector<256x32xf32> -> vector<256x32xf32>
    %51 = arith.addf %45, %50 : vector<256x32xf32>
    %c0_25 = arith.constant 0 : index
    %c0_26 = arith.constant 0 : index
    %c0_27 = arith.constant 0 : index
    %52 = vector.load %arg8[%c0_25, %c0_26, %c0_27] : memref<1x1x32xf32, #tpu.memory_space<vmem>>, vector<1x1x32xf32>
    %53 = vector.shape_cast %52 : vector<1x1x32xf32> to vector<1x32xf32>
    %54 = vector.broadcast %53 : vector<1x32xf32> to vector<256x32xf32>
    %55 = arith.addf %51, %54 : vector<256x32xf32>
    %56 = vector.shape_cast %55 : vector<256x32xf32> to vector<1x16x16x32xf32>
    %c0_28 = arith.constant 0 : index
    %c0_29 = arith.constant 0 : index
    %c0_30 = arith.constant 0 : index
    %c0_31 = arith.constant 0 : index
    %57 = vector.load %arg9[%c0_28, %c0_29, %c0_30, %c0_31] : memref<1x16x16x32xf32, #tpu.memory_space<vmem>>, vector<1x16x16x32xf32>
    tpu.vector_store %arg9[%c0_28, %c0_29, %c0_30, %c0_31], %56 {strides = array<i32>} : memref<1x16x16x32xf32, #tpu.memory_space<vmem>>, vector<1x16x16x32xf32>,
    return
  }
  func.func @transform_0(%arg0: i32, %arg1: i32) -> (i32, i32, i32, i32) {
    %c0_i32 = arith.constant 0 : i32
    %c0_i32_0 = arith.constant 0 : i32
    %c0_i32_1 = arith.constant 0 : i32
    return %arg0, %arg1, %c0_i32, %c0_i32_0 : i32, i32, i32, i32
  }
  func.func @transform_1(%arg0: i32, %arg1: i32) -> (i32, i32, i32, i32) {
    %c8_i32 = arith.constant 8 : i32
    %0 = arith.muli %arg1, %c8_i32 : i32
    %c1_i32 = arith.constant 1 : i32
    %1 = arith.subi %0, %c1_i32 : i32
    %c0_i32 = arith.constant 0 : i32
    %2 = arith.maxsi %1, %c0_i32 : i32
    %c0_i32_0 = arith.constant 0 : i32
    %c0_i32_1 = arith.constant 0 : i32
    %c0_i32_2 = arith.constant 0 : i32
    return %arg0, %2, %c0_i32_0, %c0_i32_1 : i32, i32, i32, i32
  }
  func.func @transform_2(%arg0: i32, %arg1: i32) -> (i32, i32, i32, i32) {
    %c1_i32 = arith.constant 1 : i32
    %0 = arith.addi %arg1, %c1_i32 : i32
    %c8_i32 = arith.constant 8 : i32
    %1 = arith.muli %0, %c8_i32 : i32
    %c7_i32 = arith.constant 7 : i32
    %2 = arith.minsi %1, %c7_i32 : i32
    %c0_i32 = arith.constant 0 : i32
    %c0_i32_0 = arith.constant 0 : i32
    %c0_i32_1 = arith.constant 0 : i32
    return %arg0, %2, %c0_i32, %c0_i32_0 : i32, i32, i32, i32
  }
  func.func @transform_3(%arg0: i32, %arg1: i32) -> (i32, i32, i32) {
    %c0_i32 = arith.constant 0 : i32
    %c0_i32_0 = arith.constant 0 : i32
    %c0_i32_1 = arith.constant 0 : i32
    return %arg0, %c0_i32, %c0_i32_0 : i32, i32, i32
  }
  func.func @transform_4(%arg0: i32, %arg1: i32) -> (i32, i32, i32) {
    %c0_i32 = arith.constant 0 : i32
    %c0_i32_0 = arith.constant 0 : i32
    %c0_i32_1 = arith.constant 0 : i32
    return %arg0, %c0_i32, %c0_i32_0 : i32, i32, i32
  }
  func.func @transform_5(%arg0: i32, %arg1: i32) -> (i32, i32, i32) {
    %c0_i32 = arith.constant 0 : i32
    %c0_i32_0 = arith.constant 0 : i32
    %c0_i32_1 = arith.constant 0 : i32
    %c0_i32_2 = arith.constant 0 : i32
    return %c0_i32, %c0_i32_0, %c0_i32_1 : i32, i32, i32
  }
  func.func @transform_6(%arg0: i32, %arg1: i32) -> (i32, i32, i32) {
    %c0_i32 = arith.constant 0 : i32
    %c0_i32_0 = arith.constant 0 : i32
    %c0_i32_1 = arith.constant 0 : i32
    %c0_i32_2 = arith.constant 0 : i32
    return %c0_i32, %c0_i32_0, %c0_i32_1 : i32, i32, i32
  }
  func.func @transform_7(%arg0: i32, %arg1: i32) -> (i32, i32, i32, i32) {
    %c0_i32 = arith.constant 0 : i32
    %c0_i32_0 = arith.constant 0 : i32
    %c0_i32_1 = arith.constant 0 : i32
    return %arg0, %arg1, %c0_i32, %c0_i32_0 : i32, i32, i32, i32
  }
}

</mosaic_0001>

<llo_original>
// kernel: up_decoder_block_3d.8
$region0: #{up_decoder_block_3d.8}
  #allocation0 [shape = 'u32[]', space=smem, size = 0x4, offset = 0x4, fixed_abs, tag = 'smem constant byte address 0x4 - core index']
  #allocation1 [shape = 'u32[144,128]{1,0:T(1,128)}', space=vmem, size = 0x12000, scoped, tag = 'internal scratch']
  %s0 = inlined_call_operand.hbm [shape: f32[4,64,64], index: 0, kind: input, shape index: {}]
  %s1 = inlined_call_operand.vmem [shape: f32[4,2,64], index: 1, kind: output, shape index: {}]
  %s2 = sld [smem:[#allocation0]]
  $region45: #{up_decoder_block_3d.8} parent=0
    _
  %s4 = ssub.s32 1, %s2
  %s5 = scalar_select 0, %s4, %s2
  $region1: #{up_decoder_block_3d.8} parent=0
    #allocation2 [shape = 'u8[65536]{0}', space=vmem, size = 0x10000, scoped, tag = 'input window, operand 0']
    #allocation3 [shape = 's32[2]{0}', space=sflag, size = 0x8, scoped, tag = 'scoped memory for up_decoder_block_3d.8']
    %6 = vsyncpa [#allocation3], 0
    %s7 = scalar_lea.sflag [#allocation3], 1
    %8 = vsyncpa %s7, 0
    loop: start=0, step=1, limit=6
    $region2: #{up_decoder_block_3d.8} parent=1 // loop_pre_header
      _
    $region3: #{up_decoder_block_3d.8} parent=1 // loop_header
      %s10 = sphi 0, %s14
      %p11 = scmp.ge.s32.totalorder %s10, 6
      %s17 = sphi 0, %s29
      %s18 = sphi 0, %s25
      %s19 = sphi 0, %s17
      %s20 = sphi 0, %s18
      %s21 = sphi 0, %s19
      %s22 = sphi 0, %s20
      %s34 = sphi 0, %s36
      %s37 = sphi 0, %s34
      %s38 = sphi 0, %s37
      %s54 = sphi 0, %s38
      %s60 = sphi 0, %s62
      %s63 = sphi 0, %s60
      %s64 = sphi 0, %s63
      %s80 = sphi 0, %s64
    $region4: #{up_decoder_block_3d.8} parent=1 // loop_header_branch
      %13 = sbr.rel (%p11) target = $region8
    $region5: #{up_decoder_block_3d.8} parent=1 // loop_body
      %s15 = ssub.s32 %s10, 1
      %s16 = ssub.s32 %s10, 2
      %s23 = sadd.s32 1, %s18
      %p24 = scmp.ge.s32.totalorder %s23, 1
      %s25 = scalar_select %p24, 0, %s23
      %s26 = sadd.s32 1, %s17
      %s27 = scalar_select %p24, %s26, %s17
      %p28 = scmp.ge.s32.totalorder %s27, 4
      %s29 = scalar_select %p28, 0, %s27
      %s30 = ssub.s32 %s17, %s29
      %s31 = ssub.s32 %s18, %s25
      %s32 = sor.u32 %s30, %s31
      %p33 = scmp.eq.s32.totalorder %s32, 0
      %s35 = sadd.s32 %s34, 1
      %s36 = scalar_select %p33, %s34, %s35
      %p39 = pneg %p33
      %p40 = scmp.eq.s32.totalorder %s10, 3
      %p41 = por %p39, %p40
      %p42 = scmp.ne.s32.totalorder %s34, %s37
      %p43 = scmp.eq.s32.totalorder %s10, 0
      %p44 = por %p42, %p43
      %p45 = scmp.ne.s32.totalorder %s34, %s37
      %p46 = scmp.eq.s32.totalorder %s15, 3
      %p47 = por %p45, %p46
      %p48 = scmp.ne.s32.totalorder %s37, %s38
      %p49 = scmp.eq.s32.totalorder %s15, 0
      %p50 = por %p48, %p49
      %p51 = scmp.ne.s32.totalorder %s37, %s38
      %p52 = scmp.eq.s32.totalorder %s16, 3
      %p53 = por %p51, %p52
      %p55 = scmp.ne.s32.totalorder %s38, %s54
      %p56 = scmp.eq.s32.totalorder %s16, 0
      %p57 = por %p55, %p56
      %s58 = ssub.s32 %s17, %s29
      %p59 = scmp.eq.s32.totalorder %s58, 0
      %s61 = sadd.s32 %s60, 1
      %s62 = scalar_select %p59, %s60, %s61
      %p65 = pneg %p59
      %p66 = scmp.eq.s32.totalorder %s10, 3
      %p67 = por %p65, %p66
      %p68 = scmp.ne.s32.totalorder %s60, %s63
      %p69 = scmp.eq.s32.totalorder %s10, 0
      %p70 = por %p68, %p69
      %p71 = scmp.ne.s32.totalorder %s60, %s63
      %p72 = scmp.eq.s32.totalorder %s15, 3
      %p73 = por %p71, %p72
      %p74 = scmp.ne.s32.totalorder %s63, %s64
      %p75 = scmp.eq.s32.totalorder %s15, 0
      %p76 = por %p74, %p75
      %p77 = scmp.ne.s32.totalorder %s63, %s64
      %p78 = scmp.eq.s32.totalorder %s16, 3
      %p79 = por %p77, %p78
      %p81 = scmp.ne.s32.totalorder %s64, %s80
      %p82 = scmp.eq.s32.totalorder %s16, 0
      %p83 = por %p81, %p82
      %p84 = scmp.le.s32.totalorder 1, %s10
      %p85 = scmp.lt.s32.totalorder %s10, 5
      %p86 = pnand %p84, %p85
      %p87 = pneg %p86
      // Predicated region
      $region9: #{up_decoder_block_3d.8} parent=5 // pred_check
        _
      $region10: #{up_decoder_block_3d.8} parent=5 // pred_check_branch
        %89 = sbr.rel (%p86) target = $region12
      $region11: #{up_decoder_block_3d.8} parent=5 // pred_region
        %s90 = ssub.s32 %s10, 1
      $region12: #{up_decoder_block_3d.8} parent=5 // pred_fallthru
        _
      %p91 = scmp.lt.s32.totalorder %s10, 4
      // Predicated region
      $region13: #{up_decoder_block_3d.8} parent=5 // pred_check
        %p92 = pneg %p91
      $region14: #{up_decoder_block_3d.8} parent=5 // pred_check_branch
        %94 = sbr.rel (%p92) target = $region16
      $region15: #{up_decoder_block_3d.8} parent=5 // pred_region
        // Predicated region
        $region17: #{up_decoder_block_3d.8} parent=15 // pred_check
          %p95 = pneg %p44
        $region18: #{up_decoder_block_3d.8} parent=15 // pred_check_branch
          %97 = sbr.rel (%p95) target = $region20
        $region19: #{up_decoder_block_3d.8} parent=15 // pred_region
          %s98 = sand.u32 %s34, 1
          %s99 = scalar_lea.sflag [#allocation3], %s98
          %s100 = sand.u32 %s34, 1
          %s101 = smul.addr %s100, 64
          %s102 = scalar_lea.vmem [#allocation2], %s101
          %s103 = smul.u32 8, %s18
          %s105 = ssub.s32 1024, 1024
          %106 = vsyncadd %s99, %s105
          %s107 = smul.addr %s17, 8
          %s108 = sadd.s32 %s103, %s107
          %s109 = smul.addr %s108, 128
          %s110 = scalar_lea.hbm %s0, %s109
          %s111 = sshll.u32 %s102, 4
          %s112 = int_to_ptr.vmem [resolvable:$true] %s111
          %117 = dma.hbm_to_vmem [thread:$0]  %s110, 1024, %s112, %s99, 128, 128, 8
        $region20: #{up_decoder_block_3d.8} parent=15 // pred_fallthru
          _
      $region16: #{up_decoder_block_3d.8} parent=5 // pred_fallthru
        _
      %p118 = scmp.le.s32.totalorder 1, %s10
      %p119 = scmp.lt.s32.totalorder %s10, 5
      %p120 = pnand %p118, %p119
      %p121 = pneg %p120
      // Predicated region
      $region21: #{up_decoder_block_3d.8} parent=5 // pred_check
        _
      $region22: #{up_decoder_block_3d.8} parent=5 // pred_check_branch
        %123 = sbr.rel (%p120) target = $region24
      $region23: #{up_decoder_block_3d.8} parent=5 // pred_region
        %s124 = ssub.s32 %s10, 1
        %s125 = sand.u32 %s37, 1
        %s126 = scalar_lea.sflag [#allocation3], %s125
        %s127 = sand.u32 %s37, 1
        %s128 = smul.addr %s127, 64
        %s129 = scalar_lea.vmem [#allocation2], %s128
        // Predicated region
        $region25: #{up_decoder_block_3d.8} parent=23 // pred_check
          %p130 = pneg %p50
        $region26: #{up_decoder_block_3d.8} parent=23 // pred_check_branch
          %132 = sbr.rel (%p130) target = $region28
        $region27: #{up_decoder_block_3d.8} parent=23 // pred_region
          %133 = dma.done %s126, 1024
        $region28: #{up_decoder_block_3d.8} parent=23 // pred_fallthru
          _
        %s134 = sand.u32 %s37, 1
        %s135 = scalar_lea.sflag [#allocation3], %s134
        %s136 = sand.u32 %s37, 1
        %s137 = smul.addr %s136, 64
        %s138 = scalar_lea.vmem [#allocation2], %s137
        %p139 = pneg %p50
        %p140 = pneg %p47
        %p141 = pneg %p76
        %p142 = pneg %p73
        %p143 = scmp.lt.s32.totalorder %s19, 3
        %s144 = scalar_select %p143, %s19, 3
        %s145 = smul.addr %s144, 2
        %s146 = scalar_lea.vmem %s1, %s145
        %s147 = smul.u32 8, %s20
        %p148 = scmp.lt.s32.totalorder %s19, 3
        %s149 = scalar_select %p148, %s19, 3
        %s150 = smul.addr %s149, 2
        %s151 = scalar_lea.vmem %s1, %s150
        %p152 = scmp.eq.s32.totalorder %s20, 0
        // Predicated region
        $region29: #{up_decoder_block_3d.8} parent=23 // pred_check
          %p153 = pneg %p152
        $region30: #{up_decoder_block_3d.8} parent=23 // pred_check_branch
          %155 = sbr.rel (%p153) target = $region32
        $region31: #{up_decoder_block_3d.8} parent=23 // pred_region
          %vm156 = vcmask 517120
          %157 = vst.msk [vmem:[%s151] sm:$0x3] %vm156, 0.0
        $region32: #{up_decoder_block_3d.8} parent=23 // pred_fallthru
          _
        %v158 = vld [vmem:[%s129] sm:$0xff]
        %v159 = vld [vmem:[%s129 + $0x8] sm:$0xff]
        %v160 = vld [vmem:[%s129 + $0x10] sm:$0xff]
        %v161 = vld [vmem:[%s129 + $0x18] sm:$0xff]
        %v162 = vld [vmem:[%s129 + $0x20] sm:$0xff]
        %v163 = vld [vmem:[%s129 + $0x28] sm:$0xff]
        %v164 = vld [vmem:[%s129 + $0x30] sm:$0xff]
        %v165 = vld [vmem:[%s129 + $0x38] sm:$0xff]
        %vm166 = vcmask 523264
        %v167 = vsel %vm166, %v158, 0.0
        %v168 = vsel %vm166, %v159, 0.0
        %v169 = vadd.f32 %v167, %v168
        %v170 = vsel %vm166, %v160, 0.0
        %v171 = vadd.f32 %v169, %v170
        %v172 = vsel %vm166, %v161, 0.0
        %v173 = vadd.f32 %v171, %v172
        %v174 = vsel %vm166, %v162, 0.0
        %v175 = vadd.f32 %v173, %v174
        %v176 = vsel %vm166, %v163, 0.0
        %v177 = vadd.f32 %v175, %v176
        %v178 = vsel %vm166, %v164, 0.0
        %v179 = vadd.f32 %v177, %v178
        %v180 = vsel %vm166, %v165, 0.0
        %v181 = vadd.f32 %v179, %v180
        %v182 = vrot.slane %v181, 4
        %v183 = vadd.f32 %v181, %v182
        %v184 = vrot.slane %v183, 2
        %v185 = vadd.f32 %v183, %v184
        %v186 = vrot.slane %v185, 1
        %v187 = vadd.f32 %v185, %v186
        %v188 = vmul.f32 %v158, %v158
        %v189 = vmul.f32 %v159, %v159
        %v190 = vmul.f32 %v160, %v160
        %v191 = vmul.f32 %v161, %v161
        %v192 = vmul.f32 %v162, %v162
        %v193 = vmul.f32 %v163, %v163
        %v194 = vmul.f32 %v164, %v164
        %v195 = vmul.f32 %v165, %v165
        %v196 = vsel %vm166, %v188, 0.0
        %v197 = vsel %vm166, %v189, 0.0
        %v198 = vadd.f32 %v196, %v197
        %v199 = vsel %vm166, %v190, 0.0
        %v200 = vadd.f32 %v198, %v199
        %v201 = vsel %vm166, %v191, 0.0
        %v202 = vadd.f32 %v200, %v201
        %v203 = vsel %vm166, %v192, 0.0
        %v204 = vadd.f32 %v202, %v203
        %v205 = vsel %vm166, %v193, 0.0
        %v206 = vadd.f32 %v204, %v205
        %v207 = vsel %vm166, %v194, 0.0
        %v208 = vadd.f32 %v206, %v207
        %v209 = vsel %vm166, %v195, 0.0
        %v210 = vadd.f32 %v208, %v209
        %v211 = vrot.slane %v210, 4
        %v212 = vadd.f32 %v210, %v211
        %v213 = vrot.slane %v212, 2
        %v214 = vadd.f32 %v212, %v213
        %v215 = vrot.slane %v214, 1
        %v216 = vadd.f32 %v214, %v215
        %v217 = vld [vmem:[%s151] sm:$0x3]
        %vm218 = vcmask 1040384
        %v219 = vsel %vm218, %v187, %v216
        %v220 = vadd.f32 %v217, %v219
        %vm221 = vcmask 517120
        %222 = vst.msk [vmem:[%s151] sm:$0x3] %vm221, %v220
        %p223 = scmp.lt.s32.totalorder %s19, 3
        %s224 = scalar_select %p223, %s19, 3
        %s225 = smul.addr %s224, 2
        %s226 = scalar_lea.vmem %s1, %s225
        // Predicated region
        $region33: #{up_decoder_block_3d.8} parent=23 // pred_check
          %p227 = pneg %p73
        $region34: #{up_decoder_block_3d.8} parent=23 // pred_check_branch
          %229 = sbr.rel (%p227) target = $region36
        $region35: #{up_decoder_block_3d.8} parent=23 // pred_region
          _
        $region36: #{up_decoder_block_3d.8} parent=23 // pred_fallthru
          _
      $region24: #{up_decoder_block_3d.8} parent=5 // pred_fallthru
        _
      %p230 = scmp.le.s32.totalorder 2, %s10
      // Predicated region
      $region37: #{up_decoder_block_3d.8} parent=5 // pred_check
        %p231 = pneg %p230
      $region38: #{up_decoder_block_3d.8} parent=5 // pred_check_branch
        %233 = sbr.rel (%p231) target = $region40
      $region39: #{up_decoder_block_3d.8} parent=5 // pred_region
        %s234 = ssub.s32 %s10, 2
        // Predicated region
        $region41: #{up_decoder_block_3d.8} parent=39 // pred_check
          %p235 = pneg %p79
        $region42: #{up_decoder_block_3d.8} parent=39 // pred_check_branch
          %237 = sbr.rel (%p235) target = $region44
        $region43: #{up_decoder_block_3d.8} parent=39 // pred_region
          %p238 = scmp.lt.s32.totalorder %s21, 3
          %s239 = scalar_select %p238, %s21, 3
          %s240 = smul.addr %s239, 2
          %s241 = scalar_lea.vmem %s1, %s240
        $region44: #{up_decoder_block_3d.8} parent=39 // pred_fallthru
          _
      $region40: #{up_decoder_block_3d.8} parent=5 // pred_fallthru
        _
    $region6: #{up_decoder_block_3d.8} parent=1 // loop_footer
      %s14 = sadd.s32 1, %s10
    $region7: #{up_decoder_block_3d.8} parent=1 // loop_footer_branch
      %9 = sbr.rel target = $region3
    $region8: #{up_decoder_block_3d.8} parent=1 // loop_exit
      _
    %242 = vsyncpa [#allocation3], 1
    %s243 = scalar_lea.sflag [#allocation3], 1
    %244 = vsyncpa %s243, 1

// kernel: up_decoder_block_3d.10
$region0: #{up_decoder_block_3d.10}
  #allocation0 [shape = 'u32[]', space=smem, size = 0x4, offset = 0x4, fixed_abs, tag = 'smem constant byte address 0x4 - core index']
  #allocation1 [shape = 'u32[144,128]{1,0:T(1,128)}', space=vmem, size = 0x12000, scoped, tag = 'internal scratch']
  %s0 = inlined_call_operand.vmem [shape: bf16[4,8,8,32], index: 0, kind: input, shape index: {}, may-alias: {0,1,2}]
  %s1 = inlined_call_operand.vmem [shape: bf16[4,8,8,32], index: 1, kind: input, shape index: {}, may-alias: {0,1,2}]
  %s2 = inlined_call_operand.vmem [shape: bf16[4,8,8,32], index: 2, kind: input, shape index: {}, may-alias: {0,1,2}]
  %s3 = inlined_call_operand.vmem [shape: f32[4,1,32], index: 3, kind: input, shape index: {}]
  %s4 = inlined_call_operand.vmem [shape: f32[4,1,32], index: 4, kind: input, shape index: {}]
  %s5 = inlined_call_operand.vmem [shape: bf16[3,96,32], index: 5, kind: input, shape index: {}]
  %s6 = inlined_call_operand.vmem [shape: f32[1,1,32], index: 6, kind: input, shape index: {}]
  %s7 = inlined_call_operand.vmem [shape: bf16[4,8,8,32], index: 7, kind: input, shape index: {}]
  %s8 = inlined_call_operand.vmem [shape: bf16[4,8,8,32], index: 8, kind: output, shape index: {0}]
  %s9 = inlined_call_operand.vmem [shape: f32[4,2,32], index: 9, kind: output, shape index: {1}]
  %10 = xla_tuple %s8, %s9
  %s11 = sld [smem:[#allocation0]]
  $region77: #{up_decoder_block_3d.10} parent=0
    _
  %s13 = ssub.s32 1, %s11
  %s14 = scalar_select 0, %s13, %s11
  loop: start=0, step=1, limit=6
  $region2: #{up_decoder_block_3d.10} parent=0 // loop_pre_header
    _
  $region3: #{up_decoder_block_3d.10} parent=0 // loop_header
    %s16 = sphi 0, %s20
    %p17 = scmp.ge.s32.totalorder %s16, 6
    %s23 = sphi 0, %s35
    %s24 = sphi 0, %s31
    %s25 = sphi 0, %s23
    %s26 = sphi 0, %s24
    %s27 = sphi 0, %s25
    %s28 = sphi 0, %s26
    %s40 = sphi 0, %s42
    %s43 = sphi 0, %s40
    %s44 = sphi 0, %s43
    %s60 = sphi 0, %s44
    %s76 = sphi 0, %s78
    %s79 = sphi 0, %s76
    %s80 = sphi 0, %s79
    %s96 = sphi 0, %s80
    %s112 = sphi 0, %s114
    %s115 = sphi 0, %s112
    %s116 = sphi 0, %s115
    %s132 = sphi 0, %s116
    %s138 = sphi 0, %s140
    %s141 = sphi 0, %s138
    %s142 = sphi 0, %s141
    %s158 = sphi 0, %s142
    %s164 = sphi 0, %s166
    %s167 = sphi 0, %s164
    %s168 = sphi 0, %s167
    %s184 = sphi 0, %s168
    %s188 = sphi 0, %s188
    %s190 = sphi 0, %s188
    %s191 = sphi 0, %s190
    %s205 = sphi 0, %s191
    %s209 = sphi 0, %s209
    %s211 = sphi 0, %s209
    %s212 = sphi 0, %s211
    %s226 = sphi 0, %s212
    %s234 = sphi 0, %s236
    %s237 = sphi 0, %s234
    %s238 = sphi 0, %s237
    %s254 = sphi 0, %s238
    %s262 = sphi 0, %s264
    %s265 = sphi 0, %s262
    %s266 = sphi 0, %s265
    %s282 = sphi 0, %s266
    %s288 = sphi 0, %s290
    %s291 = sphi 0, %s288
    %s292 = sphi 0, %s291
    %s308 = sphi 0, %s292
  $region4: #{up_decoder_block_3d.10} parent=0 // loop_header_branch
    %19 = sbr.rel (%p17) target = $region8
  $region5: #{up_decoder_block_3d.10} parent=0 // loop_body
    %s21 = ssub.s32 %s16, 1
    %s22 = ssub.s32 %s16, 2
    %s29 = sadd.s32 1, %s24
    %p30 = scmp.ge.s32.totalorder %s29, 1
    %s31 = scalar_select %p30, 0, %s29
    %s32 = sadd.s32 1, %s23
    %s33 = scalar_select %p30, %s32, %s23
    %p34 = scmp.ge.s32.totalorder %s33, 4
    %s35 = scalar_select %p34, 0, %s33
    %s36 = ssub.s32 %s23, %s35
    %s37 = ssub.s32 %s24, %s31
    %s38 = sor.u32 %s36, %s37
    %p39 = scmp.eq.s32.totalorder %s38, 0
    %s41 = sadd.s32 %s40, 1
    %s42 = scalar_select %p39, %s40, %s41
    %p45 = pneg %p39
    %p46 = scmp.eq.s32.totalorder %s16, 3
    %p47 = por %p45, %p46
    %p48 = scmp.ne.s32.totalorder %s40, %s43
    %p49 = scmp.eq.s32.totalorder %s16, 0
    %p50 = por %p48, %p49
    %p51 = scmp.ne.s32.totalorder %s40, %s43
    %p52 = scmp.eq.s32.totalorder %s21, 3
    %p53 = por %p51, %p52
    %p54 = scmp.ne.s32.totalorder %s43, %s44
    %p55 = scmp.eq.s32.totalorder %s21, 0
    %p56 = por %p54, %p55
    %p57 = scmp.ne.s32.totalorder %s43, %s44
    %p58 = scmp.eq.s32.totalorder %s22, 3
    %p59 = por %p57, %p58
    %p61 = scmp.ne.s32.totalorder %s44, %s60
    %p62 = scmp.eq.s32.totalorder %s22, 0
    %p63 = por %p61, %p62
    %s64 = smul.u32 %s24, 8
    %s65 = ssub.s32 %s64, 1
    %p66 = scmp.gt.s32.totalorder %s65, 0
    %s67 = scalar_select %p66, %s65, 0
    %s68 = smul.u32 %s31, 8
    %s69 = ssub.s32 %s68, 1
    %p70 = scmp.gt.s32.totalorder %s69, 0
    %s71 = scalar_select %p70, %s69, 0
    %s72 = ssub.s32 %s23, %s35
    %s73 = ssub.s32 %s67, %s71
    %s74 = sor.u32 %s72, %s73
    %p75 = scmp.eq.s32.totalorder %s74, 0
    %s77 = sadd.s32 %s76, 1
    %s78 = scalar_select %p75, %s76, %s77
    %p81 = pneg %p75
    %p82 = scmp.eq.s32.totalorder %s16, 3
    %p83 = por %p81, %p82
    %p84 = scmp.ne.s32.totalorder %s76, %s79
    %p85 = scmp.eq.s32.totalorder %s16, 0
    %p86 = por %p84, %p85
    %p87 = scmp.ne.s32.totalorder %s76, %s79
    %p88 = scmp.eq.s32.totalorder %s21, 3
    %p89 = por %p87, %p88
    %p90 = scmp.ne.s32.totalorder %s79, %s80
    %p91 = scmp.eq.s32.totalorder %s21, 0
    %p92 = por %p90, %p91
    %p93 = scmp.ne.s32.totalorder %s79, %s80
    %p94 = scmp.eq.s32.totalorder %s22, 3
    %p95 = por %p93, %p94
    %p97 = scmp.ne.s32.totalorder %s80, %s96
    %p98 = scmp.eq.s32.totalorder %s22, 0
    %p99 = por %p97, %p98
    %s100 = sadd.s32 %s24, 1
    %s101 = smul.u32 %s100, 8
    %p102 = scmp.lt.s32.totalorder %s101, 7
    %s103 = scalar_select %p102, %s101, 7
    %s104 = sadd.s32 %s31, 1
    %s105 = smul.u32 %s104, 8
    %p106 = scmp.lt.s32.totalorder %s105, 7
    %s107 = scalar_select %p106, %s105, 7
    %s108 = ssub.s32 %s23, %s35
    %s109 = ssub.s32 %s103, %s107
    %s110 = sor.u32 %s108, %s109
    %p111 = scmp.eq.s32.totalorder %s110, 0
    %s113 = sadd.s32 %s112, 1
    %s114 = scalar_select %p111, %s112, %s113
    %p117 = pneg %p111
    %p118 = scmp.eq.s32.totalorder %s16, 3
    %p119 = por %p117, %p118
    %p120 = scmp.ne.s32.totalorder %s112, %s115
    %p121 = scmp.eq.s32.totalorder %s16, 0
    %p122 = por %p120, %p121
    %p123 = scmp.ne.s32.totalorder %s112, %s115
    %p124 = scmp.eq.s32.totalorder %s21, 3
    %p125 = por %p123, %p124
    %p126 = scmp.ne.s32.totalorder %s115, %s116
    %p127 = scmp.eq.s32.totalorder %s21, 0
    %p128 = por %p126, %p127
    %p129 = scmp.ne.s32.totalorder %s115, %s116
    %p130 = scmp.eq.s32.totalorder %s22, 3
    %p131 = por %p129, %p130
    %p133 = scmp.ne.s32.totalorder %s116, %s132
    %p134 = scmp.eq.s32.totalorder %s22, 0
    %p135 = por %p133, %p134
    %s136 = ssub.s32 %s23, %s35
    %p137 = scmp.eq.s32.totalorder %s136, 0
    %s139 = sadd.s32 %s138, 1
    %s140 = scalar_select %p137, %s138, %s139
    %p143 = pneg %p137
    %p144 = scmp.eq.s32.totalorder %s16, 3
    %p145 = por %p143, %p144
    %p146 = scmp.ne.s32.totalorder %s138, %s141
    %p147 = scmp.eq.s32.totalorder %s16, 0
    %p148 = por %p146, %p147
    %p149 = scmp.ne.s32.totalorder %s138, %s141
    %p150 = scmp.eq.s32.totalorder %s21, 3
    %p151 = por %p149, %p150
    %p152 = scmp.ne.s32.totalorder %s141, %s142
    %p153 = scmp.eq.s32.totalorder %s21, 0
    %p154 = por %p152, %p153
    %p155 = scmp.ne.s32.totalorder %s141, %s142
    %p156 = scmp.eq.s32.totalorder %s22, 3
    %p157 = por %p155, %p156
    %p159 = scmp.ne.s32.totalorder %s142, %s158
    %p160 = scmp.eq.s32.totalorder %s22, 0
    %p161 = por %p159, %p160
    %s162 = ssub.s32 %s23, %s35
    %p163 = scmp.eq.s32.totalorder %s162, 0
    %s165 = sadd.s32 %s164, 1
    %s166 = scalar_select %p163, %s164, %s165
    %p169 = pneg %p163
    %p170 = scmp.eq.s32.totalorder %s16, 3
    %p171 = por %p169, %p170
    %p172 = scmp.ne.s32.totalorder %s164, %s167
    %p173 = scmp.eq.s32.totalorder %s16, 0
    %p174 = por %p172, %p173
    %p175 = scmp.ne.s32.totalorder %s164, %s167
    %p176 = scmp.eq.s32.totalorder %s21, 3
    %p177 = por %p175, %p176
    %p178 = scmp.ne.s32.totalorder %s167, %s168
    %p179 = scmp.eq.s32.totalorder %s21, 0
    %p180 = por %p178, %p179
    %p181 = scmp.ne.s32.totalorder %s167, %s168
    %p182 = scmp.eq.s32.totalorder %s22, 3
    %p183 = por %p181, %p182
    %p185 = scmp.ne.s32.totalorder %s168, %s184
    %p186 = scmp.eq.s32.totalorder %s22, 0
    %p187 = por %p185, %p186
    %s189 = sadd.s32 %s188, 1
    %p192 = scmp.eq.s32.totalorder %s16, 3
    %p193 = scmp.ne.s32.totalorder %s188, %s190
    %p194 = scmp.eq.s32.totalorder %s16, 0
    %p195 = por %p193, %p194
    %p196 = scmp.ne.s32.totalorder %s188, %s190
    %p197 = scmp.eq.s32.totalorder %s21, 3
    %p198 = por %p196, %p197
    %p199 = scmp.ne.s32.totalorder %s190, %s191
    %p200 = scmp.eq.s32.totalorder %s21, 0
    %p201 = por %p199, %p200
    %p202 = scmp.ne.s32.totalorder %s190, %s191
    %p203 = scmp.eq.s32.totalorder %s22, 3
    %p204 = por %p202, %p203
    %p206 = scmp.ne.s32.totalorder %s191, %s205
    %p207 = scmp.eq.s32.totalorder %s22, 0
    %p208 = por %p206, %p207
    %s210 = sadd.s32 %s209, 1
    %p213 = scmp.eq.s32.totalorder %s16, 3
    %p214 = scmp.ne.s32.totalorder %s209, %s211
    %p215 = scmp.eq.s32.totalorder %s16, 0
    %p216 = por %p214, %p215
    %p217 = scmp.ne.s32.totalorder %s209, %s211
    %p218 = scmp.eq.s32.totalorder %s21, 3
    %p219 = por %p217, %p218
    %p220 = scmp.ne.s32.totalorder %s211, %s212
    %p221 = scmp.eq.s32.totalorder %s21, 0
    %p222 = por %p220, %p221
    %p223 = scmp.ne.s32.totalorder %s211, %s212
    %p224 = scmp.eq.s32.totalorder %s22, 3
    %p225 = por %p223, %p224
    %p227 = scmp.ne.s32.totalorder %s212, %s226
    %p228 = scmp.eq.s32.totalorder %s22, 0
    %p229 = por %p227, %p228
    %s230 = ssub.s32 %s23, %s35
    %s231 = ssub.s32 %s24, %s31
    %s232 = sor.u32 %s230, %s231
    %p233 = scmp.eq.s32.totalorder %s232, 0
    %s235 = sadd.s32 %s234, 1
    %s236 = scalar_select %p233, %s234, %s235
    %p239 = pneg %p233
    %p240 = scmp.eq.s32.totalorder %s16, 3
    %p241 = por %p239, %p240
    %p242 = scmp.ne.s32.totalorder %s234, %s237
    %p243 = scmp.eq.s32.totalorder %s16, 0
    %p244 = por %p242, %p243
    %p245 = scmp.ne.s32.totalorder %s234, %s237
    %p246 = scmp.eq.s32.totalorder %s21, 3
    %p247 = por %p245, %p246
    %p248 = scmp.ne.s32.totalorder %s237, %s238
    %p249 = scmp.eq.s32.totalorder %s21, 0
    %p250 = por %p248, %p249
    %p251 = scmp.ne.s32.totalorder %s237, %s238
    %p252 = scmp.eq.s32.totalorder %s22, 3
    %p253 = por %p251, %p252
    %p255 = scmp.ne.s32.totalorder %s238, %s254
    %p256 = scmp.eq.s32.totalorder %s22, 0
    %p257 = por %p255, %p256
    %s258 = ssub.s32 %s23, %s35
    %s259 = ssub.s32 %s24, %s31
    %s260 = sor.u32 %s258, %s259
    %p261 = scmp.eq.s32.totalorder %s260, 0
    %s263 = sadd.s32 %s262, 1
    %s264 = scalar_select %p261, %s262, %s263
    %p267 = pneg %p261
    %p268 = scmp.eq.s32.totalorder %s16, 3
    %p269 = por %p267, %p268
    %p270 = scmp.ne.s32.totalorder %s262, %s265
    %p271 = scmp.eq.s32.totalorder %s16, 0
    %p272 = por %p270, %p271
    %p273 = scmp.ne.s32.totalorder %s262, %s265
    %p274 = scmp.eq.s32.totalorder %s21, 3
    %p275 = por %p273, %p274
    %p276 = scmp.ne.s32.totalorder %s265, %s266
    %p277 = scmp.eq.s32.totalorder %s21, 0
    %p278 = por %p276, %p277
    %p279 = scmp.ne.s32.totalorder %s265, %s266
    %p280 = scmp.eq.s32.totalorder %s22, 3
    %p281 = por %p279, %p280
    %p283 = scmp.ne.s32.totalorder %s266, %s282
    %p284 = scmp.eq.s32.totalorder %s22, 0
    %p285 = por %p283, %p284
    %s286 = ssub.s32 %s23, %s35
    %p287 = scmp.eq.s32.totalorder %s286, 0
    %s289 = sadd.s32 %s288, 1
    %s290 = scalar_select %p287, %s288, %s289
    %p293 = pneg %p287
    %p294 = scmp.eq.s32.totalorder %s16, 3
    %p295 = por %p293, %p294
    %p296 = scmp.ne.s32.totalorder %s288, %s291
    %p297 = scmp.eq.s32.totalorder %s16, 0
    %p298 = por %p296, %p297
    %p299 = scmp.ne.s32.totalorder %s288, %s291
    %p300 = scmp.eq.s32.totalorder %s21, 3
    %p301 = por %p299, %p300
    %p302 = scmp.ne.s32.totalorder %s291, %s292
    %p303 = scmp.eq.s32.totalorder %s21, 0
    %p304 = por %p302, %p303
    %p305 = scmp.ne.s32.totalorder %s291, %s292
    %p306 = scmp.eq.s32.totalorder %s22, 3
    %p307 = por %p305, %p306
    %p309 = scmp.ne.s32.totalorder %s292, %s308
    %p310 = scmp.eq.s32.totalorder %s22, 0
    %p311 = por %p309, %p310
    %p312 = scmp.le.s32.totalorder 1, %s16
    %p313 = scmp.lt.s32.totalorder %s16, 5
    %p314 = pnand %p312, %p313
    %p315 = pneg %p314
    // Predicated region
    $region9: #{up_decoder_block_3d.10} parent=5 // pred_check
      _
    $region10: #{up_decoder_block_3d.10} parent=5 // pred_check_branch
      %317 = sbr.rel (%p314) target = $region12
    $region11: #{up_decoder_block_3d.10} parent=5 // pred_region
      %s318 = ssub.s32 %s16, 1
      // Predicated region
      $region13: #{up_decoder_block_3d.10} parent=11 // pred_check
        %p319 = pneg %p201
      $region14: #{up_decoder_block_3d.10} parent=11 // pred_check_branch
        %321 = sbr.rel (%p319) target = $region16
      $region15: #{up_decoder_block_3d.10} parent=11 // pred_region
        _
      $region16: #{up_decoder_block_3d.10} parent=11 // pred_fallthru
        _
      // Predicated region
      $region17: #{up_decoder_block_3d.10} parent=11 // pred_check
        %p322 = pneg %p222
      $region18: #{up_decoder_block_3d.10} parent=11 // pred_check_branch
        %324 = sbr.rel (%p322) target = $region20
      $region19: #{up_decoder_block_3d.10} parent=11 // pred_region
        _
      $region20: #{up_decoder_block_3d.10} parent=11 // pred_fallthru
        _
    $region12: #{up_decoder_block_3d.10} parent=5 // pred_fallthru
      _
    %p325 = scmp.lt.s32.totalorder %s16, 4
    // Predicated region
    $region21: #{up_decoder_block_3d.10} parent=5 // pred_check
      %p326 = pneg %p325
    $region22: #{up_decoder_block_3d.10} parent=5 // pred_check_branch
      %328 = sbr.rel (%p326) target = $region24
    $region23: #{up_decoder_block_3d.10} parent=5 // pred_region
      // Predicated region
      $region25: #{up_decoder_block_3d.10} parent=23 // pred_check
        %p329 = pneg %p50
      $region26: #{up_decoder_block_3d.10} parent=23 // pred_check_branch
        %331 = sbr.rel (%p329) target = $region28
      $region27: #{up_decoder_block_3d.10} parent=23 // pred_region
        %s332 = smul.u32 8, %s24
        %p333 = scmp.lt.s32.totalorder %s23, 3
        %s334 = scalar_select %p333, %s23, 3
        %p335 = scmp.lt.s32.totalorder %s332, 7
        %s336 = scalar_select %p335, %s332, 7
        %s337 = smul.addr %s334, 8
        %s338 = sadd.s32 %s336, %s337
        %s339 = smul.addr %s338, 4
        %s340 = scalar_lea.vmem %s0, %s339
        %s341 = smul.u32 8, %s24
      $region28: #{up_decoder_block_3d.10} parent=23 // pred_fallthru
        _
      // Predicated region
      $region29: #{up_decoder_block_3d.10} parent=23 // pred_check
        %p342 = pneg %p86
      $region30: #{up_decoder_block_3d.10} parent=23 // pred_check_branch
        %344 = sbr.rel (%p342) target = $region32
      $region31: #{up_decoder_block_3d.10} parent=23 // pred_region
        %s345 = smul.u32 %s24, 8
        %s346 = ssub.s32 %s345, 1
        %p347 = scmp.gt.s32.totalorder %s346, 0
        %s348 = scalar_select %p347, %s346, 0
        %p349 = scmp.lt.s32.totalorder %s23, 3
        %s350 = scalar_select %p349, %s23, 3
        %p351 = scmp.lt.s32.totalorder %s348, 7
        %s352 = scalar_select %p351, %s348, 7
        %s353 = smul.addr %s350, 8
        %s354 = sadd.s32 %s352, %s353
        %s355 = smul.addr %s354, 4
        %s356 = scalar_lea.vmem %s1, %s355
        %s357 = smul.u32 %s24, 8
        %s358 = ssub.s32 %s357, 1
        %p359 = scmp.gt.s32.totalorder %s358, 0
        %s360 = scalar_select %p359, %s358, 0
      $region32: #{up_decoder_block_3d.10} parent=23 // pred_fallthru
        _
      // Predicated region
      $region33: #{up_decoder_block_3d.10} parent=23 // pred_check
        %p361 = pneg %p122
      $region34: #{up_decoder_block_3d.10} parent=23 // pred_check_branch
        %363 = sbr.rel (%p361) target = $region36
      $region35: #{up_decoder_block_3d.10} parent=23 // pred_region
        %s364 = sadd.s32 %s24, 1
        %s365 = smul.u32 %s364, 8
        %p366 = scmp.lt.s32.totalorder %s365, 7
        %s367 = scalar_select %p366, %s365, 7
        %p368 = scmp.lt.s32.totalorder %s23, 3
        %s369 = scalar_select %p368, %s23, 3
        %p370 = scmp.lt.s32.totalorder %s367, 7
        %s371 = scalar_select %p370, %s367, 7
        %s372 = smul.addr %s369, 8
        %s373 = sadd.s32 %s371, %s372
        %s374 = smul.addr %s373, 4
        %s375 = scalar_lea.vmem %s2, %s374
        %s376 = sadd.s32 %s24, 1
        %s377 = smul.u32 %s376, 8
        %p378 = scmp.lt.s32.totalorder %s377, 7
        %s379 = scalar_select %p378, %s377, 7
      $region36: #{up_decoder_block_3d.10} parent=23 // pred_fallthru
        _
      // Predicated region
      $region37: #{up_decoder_block_3d.10} parent=23 // pred_check
        %p380 = pneg %p148
      $region38: #{up_decoder_block_3d.10} parent=23 // pred_check_branch
        %382 = sbr.rel (%p380) target = $region40
      $region39: #{up_decoder_block_3d.10} parent=23 // pred_region
        %p383 = scmp.lt.s32.totalorder %s23, 3
        %s384 = scalar_select %p383, %s23, 3
        %s385 = scalar_lea.vmem %s3, %s384
      $region40: #{up_decoder_block_3d.10} parent=23 // pred_fallthru
        _
      // Predicated region
      $region41: #{up_decoder_block_3d.10} parent=23 // pred_check
        %p386 = pneg %p174
      $region42: #{up_decoder_block_3d.10} parent=23 // pred_check_branch
        %388 = sbr.rel (%p386) target = $region44
      $region43: #{up_decoder_block_3d.10} parent=23 // pred_region
        %p389 = scmp.lt.s32.totalorder %s23, 3
        %s390 = scalar_select %p389, %s23, 3
        %s391 = scalar_lea.vmem %s4, %s390
      $region44: #{up_decoder_block_3d.10} parent=23 // pred_fallthru
        _
      // Predicated region
      $region45: #{up_decoder_block_3d.10} parent=23 // pred_check
        %p392 = pneg %p244
      $region46: #{up_decoder_block_3d.10} parent=23 // pred_check_branch
        %394 = sbr.rel (%p392) target = $region48
      $region47: #{up_decoder_block_3d.10} parent=23 // pred_region
        %s395 = smul.u32 8, %s24
        %p396 = scmp.lt.s32.totalorder %s23, 3
        %s397 = scalar_select %p396, %s23, 3
        %p398 = scmp.lt.s32.totalorder %s395, 7
        %s399 = scalar_select %p398, %s395, 7
        %s400 = smul.addr %s397, 8
        %s401 = sadd.s32 %s399, %s400
        %s402 = smul.addr %s401, 4
        %s403 = scalar_lea.vmem %s7, %s402
        %s404 = smul.u32 8, %s24
      $region48: #{up_decoder_block_3d.10} parent=23 // pred_fallthru
        _
    $region24: #{up_decoder_block_3d.10} parent=5 // pred_fallthru
      _
    %p405 = scmp.le.s32.totalorder 1, %s16
    %p406 = scmp.lt.s32.totalorder %s16, 5
    %p407 = pnand %p405, %p406
    %p408 = pneg %p407
    // Predicated region
    $region49: #{up_decoder_block_3d.10} parent=5 // pred_check
      _
    $region50: #{up_decoder_block_3d.10} parent=5 // pred_check_branch
      %410 = sbr.rel (%p407) target = $region52
    $region51: #{up_decoder_block_3d.10} parent=5 // pred_region
      %s411 = ssub.s32 %s16, 1
      %s412 = smul.u32 8, %s26
      %p413 = scmp.lt.s32.totalorder %s25, 3
      %s414 = scalar_select %p413, %s25, 3
      %p415 = scmp.lt.s32.totalorder %s412, 7
      %s416 = scalar_select %p415, %s412, 7
      %s417 = smul.addr %s414, 8
      %s418 = sadd.s32 %s416, %s417
      %s419 = smul.addr %s418, 4
      %s420 = scalar_lea.vmem %s0, %s419
      %p421 = pneg %p56
      %p422 = pneg %p53
      %s423 = smul.u32 %s26, 8
      %s424 = ssub.s32 %s423, 1
      %p425 = scmp.gt.s32.totalorder %s424, 0
      %s426 = scalar_select %p425, %s424, 0
      %p427 = scmp.lt.s32.totalorder %s25, 3
      %s428 = scalar_select %p427, %s25, 3
      %p429 = scmp.lt.s32.totalorder %s426, 7
      %s430 = scalar_select %p429, %s426, 7
      %s431 = smul.addr %s428, 8
      %s432 = sadd.s32 %s430, %s431
      %s433 = smul.addr %s432, 4
      %s434 = scalar_lea.vmem %s1, %s433
      %p435 = pneg %p92
      %p436 = pneg %p89
      %s437 = sadd.s32 %s26, 1
      %s438 = smul.u32 %s437, 8
      %p439 = scmp.lt.s32.totalorder %s438, 7
      %s440 = scalar_select %p439, %s438, 7
      %p441 = scmp.lt.s32.totalorder %s25, 3
      %s442 = scalar_select %p441, %s25, 3
      %p443 = scmp.lt.s32.totalorder %s440, 7
      %s444 = scalar_select %p443, %s440, 7
      %s445 = smul.addr %s442, 8
      %s446 = sadd.s32 %s444, %s445
      %s447 = smul.addr %s446, 4
      %s448 = scalar_lea.vmem %s2, %s447
      %p449 = pneg %p128
      %p450 = pneg %p125
      %p451 = scmp.lt.s32.totalorder %s25, 3
      %s452 = scalar_select %p451, %s25, 3
      %s453 = scalar_lea.vmem %s3, %s452
      %p454 = pneg %p154
      %p455 = pneg %p151
      %p456 = scmp.lt.s32.totalorder %s25, 3
      %s457 = scalar_select %p456, %s25, 3
      %s458 = scalar_lea.vmem %s4, %s457
      %p459 = pneg %p180
      %p460 = pneg %p177
      %p461 = pneg %p201
      %p462 = pneg %p198
      %p463 = pneg %p222
      %p464 = pneg %p219
      %s465 = smul.u32 8, %s26
      %p466 = scmp.lt.s32.totalorder %s25, 3
      %s467 = scalar_select %p466, %s25, 3
      %p468 = scmp.lt.s32.totalorder %s465, 7
      %s469 = scalar_select %p468, %s465, 7
      %s470 = smul.addr %s467, 8
      %s471 = sadd.s32 %s469, %s470
      %s472 = smul.addr %s471, 4
      %s473 = scalar_lea.vmem %s7, %s472
      %p474 = pneg %p250
      %p475 = pneg %p247
      %p476 = pneg %p278
      %p477 = pneg %p275
      %s478 = smul.u32 8, %s26
      %p479 = scmp.lt.s32.totalorder %s25, 3
      %s480 = scalar_select %p479, %s25, 3
      %p481 = scmp.lt.s32.totalorder %s478, 7
      %s482 = scalar_select %p481, %s478, 7
      %s483 = smul.addr %s480, 8
      %s484 = sadd.s32 %s482, %s483
      %s485 = smul.addr %s484, 4
      %s486 = scalar_lea.vmem %s8, %s485
      %p487 = pneg %p304
      %p488 = pneg %p301
      %p489 = scmp.lt.s32.totalorder %s25, 3
      %s490 = scalar_select %p489, %s25, 3
      %s491 = smul.addr %s490, 2
      %s492 = scalar_lea.vmem %s9, %s491
      %s493 = smul.u32 8, %s26
      %p494 = scmp.lt.s32.totalorder %s25, 3
      %s495 = scalar_select %p494, %s25, 3
      %p496 = scmp.lt.s32.totalorder %s493, 7
      %s497 = scalar_select %p496, %s493, 7
      %s498 = smul.addr %s495, 8
      %s499 = sadd.s32 %s497, %s498
      %s500 = smul.addr %s499, 4
      %s501 = scalar_lea.vmem %s0, %s500
      %s502 = smul.u32 8, %s26
      %s503 = smul.u32 %s26, 8
      %s504 = ssub.s32 %s503, 1
      %p505 = scmp.gt.s32.totalorder %s504, 0
      %s506 = scalar_select %p505, %s504, 0
      %p507 = scmp.lt.s32.totalorder %s25, 3
      %s508 = scalar_select %p507, %s25, 3
      %p509 = scmp.lt.s32.totalorder %s506, 7
      %s510 = scalar_select %p509, %s506, 7
      %s511 = smul.addr %s508, 8
      %s512 = sadd.s32 %s510, %s511
      %s513 = smul.addr %s512, 4
      %s514 = scalar_lea.vmem %s1, %s513
      %s515 = smul.u32 %s26, 8
      %s516 = ssub.s32 %s515, 1
      %p517 = scmp.gt.s32.totalorder %s516, 0
      %s518 = scalar_select %p517, %s516, 0
      %s519 = sadd.s32 %s26, 1
      %s520 = smul.u32 %s519, 8
      %p521 = scmp.lt.s32.totalorder %s520, 7
      %s522 = scalar_select %p521, %s520, 7
      %p523 = scmp.lt.s32.totalorder %s25, 3
      %s524 = scalar_select %p523, %s25, 3
      %p525 = scmp.lt.s32.totalorder %s522, 7
      %s526 = scalar_select %p525, %s522, 7
      %s527 = smul.addr %s524, 8
      %s528 = sadd.s32 %s526, %s527
      %s529 = smul.addr %s528, 4
      %s530 = scalar_lea.vmem %s2, %s529
      %s531 = sadd.s32 %s26, 1
      %s532 = smul.u32 %s531, 8
      %p533 = scmp.lt.s32.totalorder %s532, 7
      %s534 = scalar_select %p533, %s532, 7
      %p535 = scmp.lt.s32.totalorder %s25, 3
      %s536 = scalar_select %p535, %s25, 3
      %s537 = scalar_lea.vmem %s3, %s536
      %p538 = scmp.lt.s32.totalorder %s25, 3
      %s539 = scalar_select %p538, %s25, 3
      %s540 = scalar_lea.vmem %s4, %s539
      %s541 = smul.u32 8, %s26
      %p542 = scmp.lt.s32.totalorder %s25, 3
      %s543 = scalar_select %p542, %s25, 3
      %p544 = scmp.lt.s32.totalorder %s541, 7
      %s545 = scalar_select %p544, %s541, 7
      %s546 = smul.addr %s543, 8
      %s547 = sadd.s32 %s545, %s546
      %s548 = smul.addr %s547, 4
      %s549 = scalar_lea.vmem %s7, %s548
      %s550 = smul.u32 8, %s26
      %s551 = smul.u32 8, %s26
      %p552 = scmp.lt.s32.totalorder %s25, 3
      %s553 = scalar_select %p552, %s25, 3
      %p554 = scmp.lt.s32.totalorder %s551, 7
      %s555 = scalar_select %p554, %s551, 7
      %s556 = smul.addr %s553, 8
      %s557 = sadd.s32 %s555, %s556
      %s558 = smul.addr %s557, 4
      %s559 = scalar_lea.vmem %s8, %s558
      %s560 = smul.u32 8, %s26
      %p561 = scmp.lt.s32.totalorder %s25, 3
      %s562 = scalar_select %p561, %s25, 3
      %s563 = smul.addr %s562, 2
      %s564 = scalar_lea.vmem %s9, %s563
      %v566 = vld [vmem:[%s501] sm:$0xf]
      %v567 = vld [vmem:[%s501 + $0x4] sm:$0xf]
      %v568 = vld [vmem:[%s501 + $0x8] sm:$0xf]
      %v569 = vld [vmem:[%s501 + $0xc] sm:$0xf]
      %v570 = vld [vmem:[%s501 + $0x10] sm:$0xf]
      %v571 = vld [vmem:[%s501 + $0x14] sm:$0xf]
      %v572 = vld [vmem:[%s501 + $0x18] sm:$0xf]
      %v573 = vld [vmem:[%s501 + $0x1c] sm:$0xf]
      %v574 = vld [vmem:[%s514] sm:$0xf]
      %v575 = vld [vmem:[%s530] sm:$0xf]
      %v576 = vunpack.c.l.bf16 %v574
      %v577 = vunpack.c.l.bf16 %v566
      %v578 = vunpack.c.l.bf16 %v567
      %v579 = vunpack.c.l.bf16 %v568
      %v580 = vunpack.c.l.bf16 %v569
      %v581 = vunpack.c.l.bf16 %v570
      %v582 = vunpack.c.l.bf16 %v571
      %v583 = vunpack.c.l.bf16 %v572
      %v584 = vunpack.c.l.bf16 %v573
      %v585 = vunpack.c.l.bf16 %v575
      %v586 = vld [vmem:[%s537] sm:$0x1]
      %v588 = vlaneseq
      %v589 = vshrl.u32 %v588, 7
      %v590 = vsub.s32 0, %v589
      %v591 = vrot.slane %v586, %v590
      %v593 = vmul.f32 %v576, %v591
      %v594 = vmul.f32 %v577, %v591
      %v595 = vmul.f32 %v578, %v591
      %v596 = vmul.f32 %v579, %v591
      %v597 = vmul.f32 %v580, %v591
      %v598 = vmul.f32 %v581, %v591
      %v599 = vmul.f32 %v582, %v591
      %v600 = vmul.f32 %v583, %v591
      %v601 = vmul.f32 %v584, %v591
      %v602 = vmul.f32 %v585, %v591
      %v603 = vld [vmem:[%s540] sm:$0x1]
      %v605 = vlaneseq
      %v606 = vshrl.u32 %v605, 7
      %v607 = vsub.s32 0, %v606
      %v608 = vrot.slane %v603, %v607
      %v610 = vadd.f32 %v593, %v608
      %v611 = vadd.f32 %v594, %v608
      %v612 = vadd.f32 %v595, %v608
      %v613 = vadd.f32 %v596, %v608
      %v614 = vadd.f32 %v597, %v608
      %v615 = vadd.f32 %v598, %v608
      %v616 = vadd.f32 %v599, %v608
      %v617 = vadd.f32 %v600, %v608
      %v618 = vadd.f32 %v601, %v608
      %v619 = vadd.f32 %v602, %v608
      %v620 = vxor.u32 %v610, 2147483648
      %v621 = vxor.u32 %v611, 2147483648
      %v622 = vxor.u32 %v612, 2147483648
      %v623 = vxor.u32 %v613, 2147483648
      %v624 = vxor.u32 %v614, 2147483648
      %v625 = vxor.u32 %v615, 2147483648
      %v626 = vxor.u32 %v616, 2147483648
      %v627 = vxor.u32 %v617, 2147483648
      %v628 = vxor.u32 %v618, 2147483648
      %v629 = vxor.u32 %v619, 2147483648
      %v630 = vmul.f32 %v620, 1.442695
      %v631 = vpow.pop %v630
      %v632 = vmul.f32 %v621, 1.442695
      %v633 = vpow.pop %v632
      %v634 = vmul.f32 %v622, 1.442695
      %v635 = vpow.pop %v634
      %v636 = vmul.f32 %v623, 1.442695
      %v637 = vpow.pop %v636
      %v638 = vmul.f32 %v624, 1.442695
      %v639 = vpow.pop %v638
      %v640 = vmul.f32 %v625, 1.442695
      %v641 = vpow.pop %v640
      %v642 = vmul.f32 %v626, 1.442695
      %v643 = vpow.pop %v642
      %v644 = vmul.f32 %v627, 1.442695
      %v645 = vpow.pop %v644
      %v646 = vmul.f32 %v628, 1.442695
      %v647 = vpow.pop %v646
      %v648 = vmul.f32 %v629, 1.442695
      %v649 = vpow.pop %v648
      %v650 = vadd.f32 %v631, 1.0
      %v651 = vadd.f32 %v633, 1.0
      %v652 = vadd.f32 %v635, 1.0
      %v653 = vadd.f32 %v637, 1.0
      %v654 = vadd.f32 %v639, 1.0
      %v655 = vadd.f32 %v641, 1.0
      %v656 = vadd.f32 %v643, 1.0
      %v657 = vadd.f32 %v645, 1.0
      %v658 = vadd.f32 %v647, 1.0
      %v659 = vadd.f32 %v649, 1.0
      %v660 = vrcp.pop %v650
      %v661 = vmul.f32 1.0, %v660
      %v662 = vrcp.pop %v651
      %v663 = vmul.f32 1.0, %v662
      %v664 = vrcp.pop %v652
      %v665 = vmul.f32 1.0, %v664
      %v666 = vrcp.pop %v653
      %v667 = vmul.f32 1.0, %v666
      %v668 = vrcp.pop %v654
      %v669 = vmul.f32 1.0, %v668
      %v670 = vrcp.pop %v655
      %v671 = vmul.f32 1.0, %v670
      %v672 = vrcp.pop %v656
      %v673 = vmul.f32 1.0, %v672
      %v674 = vrcp.pop %v657
      %v675 = vmul.f32 1.0, %v674
      %v676 = vrcp.pop %v658
      %v677 = vmul.f32 1.0, %v676
      %v678 = vrcp.pop %v659
      %v679 = vmul.f32 1.0, %v678
      %v680 = vmul.f32 %v610, %v661
      %v681 = vmul.f32 %v611, %v663
      %v682 = vmul.f32 %v612, %v665
      %v683 = vmul.f32 %v613, %v667
      %v684 = vmul.f32 %v614, %v669
      %v685 = vmul.f32 %v615, %v671
      %v686 = vmul.f32 %v616, %v673
      %v687 = vmul.f32 %v617, %v675
      %v688 = vmul.f32 %v618, %v677
      %v689 = vmul.f32 %v619, %v679
      %p690 = scmp.eq.s32.totalorder %s26, 0
      %s691 = scalar_select %p690, 1, 0
      %s692 = scalar_select %p690, 8, 9
      %v693 = vstv %s691
      %vm694 = vcmp.le.s32.totalorder %v693, 0
      %vm695 = vcmp.le.s32.totalorder %v693, 1
      %vm696 = vcmp.le.s32.totalorder %v693, 2
      %vm697 = vcmp.le.s32.totalorder %v693, 3
      %vm698 = vcmp.le.s32.totalorder %v693, 4
      %vm699 = vcmp.le.s32.totalorder %v693, 5
      %vm700 = vcmp.le.s32.totalorder %v693, 6
      %vm701 = vcmp.le.s32.totalorder %v693, 7
      %vm702 = vcmp.le.s32.totalorder %v693, 8
      %vm703 = vcmp.le.s32.totalorder %v693, 9
      %v704 = vstv %s692
      %vm705 = vcmp.ge.s32.totalorder %v704, 0
      %vm706 = vcmp.ge.s32.totalorder %v704, 1
      %vm707 = vcmp.ge.s32.totalorder %v704, 2
      %vm708 = vcmp.ge.s32.totalorder %v704, 3
      %vm709 = vcmp.ge.s32.totalorder %v704, 4
      %vm710 = vcmp.ge.s32.totalorder %v704, 5
      %vm711 = vcmp.ge.s32.totalorder %v704, 6
      %vm712 = vcmp.ge.s32.totalorder %v704, 7
      %vm713 = vcmp.ge.s32.totalorder %v704, 8
      %vm714 = vcmp.ge.s32.totalorder %v704, 9
      %vm715 = vmand %vm694, %vm705
      %vm716 = vmand %vm695, %vm706
      %vm717 = vmand %vm696, %vm707
      %vm718 = vmand %vm697, %vm708
      %vm719 = vmand %vm698, %vm709
      %vm720 = vmand %vm699, %vm710
      %vm721 = vmand %vm700, %vm711
      %vm722 = vmand %vm701, %vm712
      %vm723 = vmand %vm702, %vm713
      %vm724 = vmand %vm703, %vm714
      %v725 = vsel %vm715, 1, 0
      %v726 = vsel %vm716, 1, 0
      %v727 = vsel %vm717, 1, 0
      %v728 = vsel %vm718, 1, 0
      %v729 = vsel %vm719, 1, 0
      %v730 = vsel %vm720, 1, 0
      %v731 = vsel %vm721, 1, 0
      %v732 = vsel %vm722, 1, 0
      %v733 = vsel %vm723, 1, 0
      %v734 = vsel %vm724, 1, 0
      %vm735 = vcmp.eq.s32.totalorder %v725, 1
      %vm736 = vcmp.eq.s32.totalorder %v726, 1
      %vm737 = vcmp.eq.s32.totalorder %v727, 1
      %vm738 = vcmp.eq.s32.totalorder %v728, 1
      %vm739 = vcmp.eq.s32.totalorder %v729, 1
      %vm740 = vcmp.eq.s32.totalorder %v730, 1
      %vm741 = vcmp.eq.s32.totalorder %v731, 1
      %vm742 = vcmp.eq.s32.totalorder %v732, 1
      %vm743 = vcmp.eq.s32.totalorder %v733, 1
      %vm744 = vcmp.eq.s32.totalorder %v734, 1
      %v745 = vsel %vm735, %v680, 0.0
      %v746 = vsel %vm736, %v681, 0.0
      %v747 = vsel %vm737, %v682, 0.0
      %v748 = vsel %vm738, %v683, 0.0
      %v749 = vsel %vm739, %v684, 0.0
      %v750 = vsel %vm740, %v685, 0.0
      %v751 = vsel %vm741, %v686, 0.0
      %v752 = vsel %vm742, %v687, 0.0
      %v753 = vsel %vm743, %v688, 0.0
      %v754 = vsel %vm744, %v689, 0.0
      %v755 = vpack.c.bf16 %v745, %v745
      %v756 = vpack.c.bf16 %v746, %v746
      %v757 = vpack.c.bf16 %v747, %v747
      %v758 = vpack.c.bf16 %v748, %v748
      %v759 = vpack.c.bf16 %v749, %v749
      %v760 = vpack.c.bf16 %v750, %v750
      %v761 = vpack.c.bf16 %v751, %v751
      %v762 = vpack.c.bf16 %v752, %v752
      %v763 = vpack.c.bf16 %v753, %v753
      %v764 = vpack.c.bf16 %v754, %v754
      %v766 = vshrl.u32 %v755, 16
      %v768 = vrot.slane %v766, 7
      %v769 = vshll.u32 %v755, 16
      %v771 = vor.u32 %v768, %v769
      %v773 = vshrl.u32 %v756, 16
      %v775 = vrot.slane %v773, 7
      %v776 = vshll.u32 %v756, 16
      %v778 = vor.u32 %v775, %v776
      %v780 = vshrl.u32 %v757, 16
      %v782 = vrot.slane %v780, 7
      %v783 = vshll.u32 %v757, 16
      %v785 = vor.u32 %v782, %v783
      %v787 = vshrl.u32 %v758, 16
      %v789 = vrot.slane %v787, 7
      %v790 = vshll.u32 %v758, 16
      %v792 = vor.u32 %v789, %v790
      %v794 = vshrl.u32 %v759, 16
      %v796 = vrot.slane %v794, 7
      %v797 = vshll.u32 %v759, 16
      %v799 = vor.u32 %v796, %v797
      %v801 = vshrl.u32 %v760, 16
      %v803 = vrot.slane %v801, 7
      %v804 = vshll.u32 %v760, 16
      %v806 = vor.u32 %v803, %v804
      %v808 = vshrl.u32 %v761, 16
      %v810 = vrot.slane %v808, 7
      %v811 = vshll.u32 %v761, 16
      %v813 = vor.u32 %v810, %v811
      %v815 = vshrl.u32 %v762, 16
      %v817 = vrot.slane %v815, 7
      %v818 = vshll.u32 %v762, 16
      %v820 = vor.u32 %v817, %v818
      %v822 = vshrl.u32 %v763, 16
      %v824 = vrot.slane %v822, 7
      %v825 = vshll.u32 %v763, 16
      %v827 = vor.u32 %v824, %v825
      %v829 = vshrl.u32 %v764, 16
      %v831 = vrot.slane %v829, 7
      %v832 = vshll.u32 %v764, 16
      %v834 = vor.u32 %v831, %v832
      %vm845 = vcmask 1040384
      %vm846 = vsmask.f32 256
      %vm847 = vmand %vm845, %vm846
      %v848 = vsel %vm847, 0, %v771
      %v849 = vsel %vm847, 0, %v778
      %v850 = vsel %vm847, 0, %v785
      %v851 = vsel %vm847, 0, %v792
      %v852 = vsel %vm847, 0, %v799
      %v853 = vsel %vm847, 0, %v806
      %v854 = vsel %vm847, 0, %v813
      %v855 = vsel %vm847, 0, %v820
      %v856 = vsel %vm847, 0, %v827
      %v857 = vsel %vm847, 0, %v834
      %vm858 = vcmask 1044480
      %vm859 = vsmask.f32 4352
      %vm860 = vmand %vm858, %vm859
      %v861 = vsel %vm860, %v848, 0
      %v862 = vsel %vm860, %v849, 0
      %v863 = vsel %vm860, %v850, 0
      %v864 = vsel %vm860, %v851, 0
      %v865 = vsel %vm860, %v852, 0
      %v866 = vsel %vm860, %v853, 0
      %v867 = vsel %vm860, %v854, 0
      %v868 = vsel %vm860, %v855, 0
      %v869 = vsel %vm860, %v856, 0
      %v870 = vsel %vm860, %v857, 0
      %v872 = vshrl.u32 %v861, 16
      %v874 = vshll.u32 %v861, 16
      %v876 = vrot.slane %v874, 1
      %v877 = vor.u32 %v872, %v876
      %v879 = vshrl.u32 %v862, 16
      %v881 = vshll.u32 %v862, 16
      %v883 = vrot.slane %v881, 1
      %v884 = vor.u32 %v879, %v883
      %v886 = vshrl.u32 %v863, 16
      %v888 = vshll.u32 %v863, 16
      %v890 = vrot.slane %v888, 1
      %v891 = vor.u32 %v886, %v890
      %v893 = vshrl.u32 %v864, 16
      %v895 = vshll.u32 %v864, 16
      %v897 = vrot.slane %v895, 1
      %v898 = vor.u32 %v893, %v897
      %v900 = vshrl.u32 %v865, 16
      %v902 = vshll.u32 %v865, 16
      %v904 = vrot.slane %v902, 1
      %v905 = vor.u32 %v900, %v904
      %v907 = vshrl.u32 %v866, 16
      %v909 = vshll.u32 %v866, 16
      %v911 = vrot.slane %v909, 1
      %v912 = vor.u32 %v907, %v911
      %v914 = vshrl.u32 %v867, 16
      %v916 = vshll.u32 %v867, 16
      %v918 = vrot.slane %v916, 1
      %v919 = vor.u32 %v914, %v918
      %v921 = vshrl.u32 %v868, 16
      %v923 = vshll.u32 %v868, 16
      %v925 = vrot.slane %v923, 1
      %v926 = vor.u32 %v921, %v925
      %v928 = vshrl.u32 %v869, 16
      %v930 = vshll.u32 %v869, 16
      %v932 = vrot.slane %v930, 1
      %v933 = vor.u32 %v928, %v932
      %v935 = vshrl.u32 %v870, 16
      %v937 = vshll.u32 %v870, 16
      %v939 = vrot.slane %v937, 1
      %v940 = vor.u32 %v935, %v939
      %941 = vrot.lane.b32.xlu0 %v877, 32
      %v942 = vpop.permute.xlu0 %941
      %943 = vrot.lane.b32.xlu0 %v884, 32
      %v944 = vpop.permute.xlu0 %943
      %945 = vrot.lane.b32.xlu0 %v891, 32
      %v946 = vpop.permute.xlu0 %945
      %947 = vrot.lane.b32.xlu0 %v898, 32
      %v948 = vpop.permute.xlu0 %947
      %949 = vrot.lane.b32.xlu0 %v905, 32
      %v950 = vpop.permute.xlu0 %949
      %951 = vrot.lane.b32.xlu0 %v912, 32
      %v952 = vpop.permute.xlu0 %951
      %953 = vrot.lane.b32.xlu0 %v919, 32
      %v954 = vpop.permute.xlu0 %953
      %955 = vrot.lane.b32.xlu0 %v926, 32
      %v956 = vpop.permute.xlu0 %955
      %957 = vrot.lane.b32.xlu0 %v933, 32
      %v958 = vpop.permute.xlu0 %957
      %959 = vrot.lane.b32.xlu0 %v940, 32
      %v960 = vpop.permute.xlu0 %959
      %v971 = vrot.slane %v861, 1
      %v972 = vrot.slane %v862, 1
      %v973 = vrot.slane %v863, 1
      %v974 = vrot.slane %v864, 1
      %v975 = vrot.slane %v865, 1
      %v976 = vrot.slane %v866, 1
      %v977 = vrot.slane %v867, 1
      %v978 = vrot.slane %v868, 1
      %v979 = vrot.slane %v869, 1
      %v980 = vrot.slane %v870, 1
      %981 = vrot.lane.b32.xlu0 %v971, 64
      %v982 = vpop.permute.xlu0 %981
      %983 = vrot.lane.b32.xlu0 %v972, 64
      %v984 = vpop.permute.xlu0 %983
      %985 = vrot.lane.b32.xlu0 %v973, 64
      %v986 = vpop.permute.xlu0 %985
      %987 = vrot.lane.b32.xlu0 %v974, 64
      %v988 = vpop.permute.xlu0 %987
      %989 = vrot.lane.b32.xlu0 %v975, 64
      %v990 = vpop.permute.xlu0 %989
      %991 = vrot.lane.b32.xlu0 %v976, 64
      %v992 = vpop.permute.xlu0 %991
      %993 = vrot.lane.b32.xlu0 %v977, 64
      %v994 = vpop.permute.xlu0 %993
      %995 = vrot.lane.b32.xlu0 %v978, 64
      %v996 = vpop.permute.xlu0 %995
      %997 = vrot.lane.b32.xlu0 %v979, 64
      %v998 = vpop.permute.xlu0 %997
      %999 = vrot.lane.b32.xlu0 %v980, 64
      %v1000 = vpop.permute.xlu0 %999
      %vm1001 = vcmask 261120
      %v1003 = vsel %vm1001, %v861, %v942
      %v1005 = vsel %vm1001, %v862, %v944
      %v1007 = vsel %vm1001, %v863, %v946
      %v1009 = vsel %vm1001, %v864, %v948
      %v1011 = vsel %vm1001, %v865, %v950
      %v1013 = vsel %vm1001, %v866, %v952
      %v1015 = vsel %vm1001, %v867, %v954
      %v1017 = vsel %vm1001, %v868, %v956
      %v1019 = vsel %vm1001, %v869, %v958
      %v1021 = vsel %vm1001, %v870, %v960
      %vm1022 = vcmask 523264
      %v1024 = vsel %vm1022, %v1003, %v982
      %v1026 = vsel %vm1022, %v1005, %v984
      %v1028 = vsel %vm1022, %v1007, %v986
      %v1030 = vsel %vm1022, %v1009, %v988
      %v1032 = vsel %vm1022, %v1011, %v990
      %v1034 = vsel %vm1022, %v1013, %v992
      %v1036 = vsel %vm1022, %v1015, %v994
      %v1038 = vsel %vm1022, %v1017, %v996
      %v1040 = vsel %vm1022, %v1019, %v998
      %v1042 = vsel %vm1022, %v1021, %v1000
      %v1043 = vld [vmem:[%s5] sm:$0xf]
      %v1044 = vld [vmem:[%s5 + $0x4] sm:$0xf]
      %v1045 = vld [vmem:[%s5 + $0x8] sm:$0xf]
      %v1046 = vld [vmem:[%s5 + $0xc] sm:$0xf]
      %v1047 = vld [vmem:[%s5 + $0x10] sm:$0xf]
      %v1048 = vld [vmem:[%s5 + $0x14] sm:$0xf]
      %v1049 = vld [vmem:[%s5 + $0x18] sm:$0xf]
      %v1050 = vld [vmem:[%s5 + $0x1c] sm:$0xf]
      %v1051 = vld [vmem:[%s5 + $0x20] sm:$0xf]
      %v1052 = vld [vmem:[%s5 + $0x24] sm:$0xf]
      %v1053 = vld [vmem:[%s5 + $0x28] sm:$0xf]
      %v1054 = vld [vmem:[%s5 + $0x2c] sm:$0xf]
      %s1055 = scalar_lea.vmem %s5, 48
      %v1056 = vld [vmem:[%s1055] sm:$0xf]
      %v1057 = vld [vmem:[%s1055 + $0x4] sm:$0xf]
      %v1058 = vld [vmem:[%s1055 + $0x8] sm:$0xf]
      %v1059 = vld [vmem:[%s1055 + $0xc] sm:$0xf]
      %v1060 = vld [vmem:[%s1055 + $0x10] sm:$0xf]
      %v1061 = vld [vmem:[%s1055 + $0x14] sm:$0xf]
      %v1062 = vld [vmem:[%s1055 + $0x18] sm:$0xf]
      %v1063 = vld [vmem:[%s1055 + $0x1c] sm:$0xf]
      %v1064 = vld [vmem:[%s1055 + $0x20] sm:$0xf]
      %v1065 = vld [vmem:[%s1055 + $0x24] sm:$0xf]
      %v1066 = vld [vmem:[%s1055 + $0x28] sm:$0xf]
      %v1067 = vld [vmem:[%s1055 + $0x2c] sm:$0xf]
      %v1076 = vunpack.c.l.b16 %v1026
      %v1077 = vunpack.c.l.b16 %v1028
      %v1078 = vunpack.c.l.b16 %v1030
      %v1079 = vunpack.c.l.b16 %v1032
      %v1080 = vunpack.c.l.b16 %v1034
      %v1081 = vunpack.c.l.b16 %v1036
      %v1082 = vunpack.c.l.b16 %v1038
      %v1083 = vunpack.c.l.b16 %v1040
      %v1084 = vpack.c.b16 %v1077, %v1076
      %v1085 = vpack.c.b16 %v1079, %v1078
      %v1086 = vpack.c.b16 %v1081, %v1080
      %v1087 = vpack.c.b16 %v1083, %v1082
      %v1100 = vunpack.c.l.b16 %v1056
      %v1101 = vunpack.c.l.b16 %v1057
      %v1102 = vunpack.c.l.b16 %v1058
      %v1103 = vunpack.c.l.b16 %v1059
      %v1104 = vunpack.c.l.b16 %v1060
      %v1105 = vunpack.c.l.b16 %v1061
      %v1106 = vunpack.c.l.b16 %v1062
      %v1107 = vunpack.c.l.b16 %v1063
      %v1108 = vunpack.c.l.b16 %v1064
      %v1109 = vunpack.c.l.b16 %v1065
      %v1110 = vunpack.c.l.b16 %v1066
      %v1111 = vunpack.c.l.b16 %v1067
      %v1112 = vpack.c.b16 %v1101, %v1100
      %v1113 = vpack.c.b16 %v1103, %v1102
      %v1114 = vpack.c.b16 %v1105, %v1104
      %v1115 = vpack.c.b16 %v1107, %v1106
      %v1116 = vpack.c.b16 %v1109, %v1108
      %v1117 = vpack.c.b16 %v1111, %v1110
      %vm1124 = vcmask 785408
      %v1126 = vsel %vm1124, %v1084, 0
      %v1129 = vsel %vm1124, %v1085, 0
      %v1132 = vsel %vm1124, %v1086, 0
      %v1135 = vsel %vm1124, %v1087, 0
      %1137 = vmatprep.subr.bf16.mxu0 0
      %1138 = vmatpush1.bf16.msra.mxu0 %v1112
      %1139 = vmatprep.subr.bf16.mxu0 0
      %1140 = vmatpush1.bf16.msra.mxu0 %v1113
      %1141 = vmatprep.subr.bf16.mxu0 0
      %1142 = vmatpush1.bf16.msra.mxu0 %v1114
      %1143 = vmatprep.subr.bf16.mxu0 0
      %1144 = vmatpush1.bf16.msra.mxu0 %v1115
      %1145 = vmatprep.subr.bf16.mxu0 0
      %1146 = vmatpush1.bf16.msra.mxu0 %v1116
      %1147 = vmatprep.subr.bf16.mxu0 0
      %1148 = vmatpush1.bf16.msra.mxu0 %v1117
      %1149 = vmatprep.subr.bf16.mxu0 0
      %1150 = vmatpush1.bf16.msra.mxu0 0
      %1151 = vmatprep.subr.bf16.mxu0 0
      %1152 = vmatpush1.bf16.msra.mxu0 0
      %1153 = vmatprep.subr.bf16.mxu0 0
      %1154 = vmatpush1.bf16.msra.mxu0 0
      %1155 = vmatprep.subr.bf16.mxu0 0
      %1156 = vmatpush1.bf16.msra.mxu0 0
      %1157 = vmatprep.subr.bf16.mxu0 0
      %1158 = vmatpush1.bf16.msra.mxu0 0
      %1159 = vmatprep.subr.bf16.mxu0 0
      %1160 = vmatpush1.bf16.msra.mxu0 0
      %1161 = vmatprep.subr.bf16.mxu0 0
      %1162 = vmatpush1.bf16.msra.mxu0 0
      %1163 = vmatprep.subr.bf16.mxu0 0
      %1164 = vmatpush1.bf16.msra.mxu0 0
      %1165 = vmatprep.subr.bf16.mxu0 0
      %1166 = vmatpush1.bf16.msra.mxu0 0
      %1167 = vmatprep.subr.bf16.mxu0 0
      %1168 = vmatpush1.bf16.msra.mxu0 0
      %1169 = vmatprep.mubr.bf16.mxu0 0
      %1170 = vmatmul.mubr.bf16.gmra.mrb[0].mxu0 %v1126
      %v1171 = vpop.f32.mrb[0].mxu0
      %v1172 = vadd.f32 0.0, %v1171
      %v1173 = vpop.f32.mrb[0].mxu0
      %v1174 = vpop.f32.mrb[0].mxu0
      %v1175 = vadd.f32 0.0, %v1174
      %v1176 = vpop.f32.mrb[0].mxu0
      %1177 = vmatprep.mubr.bf16.mxu0 0
      %1178 = vmatmul.mubr.bf16.gmra.mrb[0].mxu0 %v1129
      %v1179 = vpop.f32.mrb[0].mxu0
      %v1180 = vadd.f32 0.0, %v1179
      %v1181 = vpop.f32.mrb[0].mxu0
      %v1182 = vpop.f32.mrb[0].mxu0
      %v1183 = vadd.f32 0.0, %v1182
      %v1184 = vpop.f32.mrb[0].mxu0
      %1185 = vmatprep.mubr.bf16.mxu0 0
      %1186 = vmatmul.mubr.bf16.gmra.mrb[0].mxu0 %v1132
      %v1187 = vpop.f32.mrb[0].mxu0
      %v1188 = vadd.f32 0.0, %v1187
      %v1189 = vpop.f32.mrb[0].mxu0
      %v1190 = vpop.f32.mrb[0].mxu0
      %v1191 = vadd.f32 0.0, %v1190
      %v1192 = vpop.f32.mrb[0].mxu0
      %1193 = vmatprep.mubr.bf16.mxu0 0
      %1194 = vmatmul.mubr.bf16.gmra.mrb[0].mxu0 %v1135
      %v1195 = vpop.f32.mrb[0].mxu0
      %v1196 = vadd.f32 0.0, %v1195
      %v1197 = vpop.f32.mrb[0].mxu0
      %v1198 = vpop.f32.mrb[0].mxu0
      %v1199 = vadd.f32 0.0, %v1198
      %v1200 = vpop.f32.mrb[0].mxu0
      %1201 = vdwg.mxu0
      %v1203 = vunpack.c.l.b16 %v1024
      %v1204 = vpack.c.b16 %v1076, %v1203
      %v1205 = vpack.c.b16 %v1078, %v1077
      %v1206 = vpack.c.b16 %v1080, %v1079
      %v1207 = vpack.c.b16 %v1082, %v1081
      %v1220 = vunpack.c.l.b16 %v1043
      %v1221 = vunpack.c.l.b16 %v1044
      %v1222 = vunpack.c.l.b16 %v1045
      %v1223 = vunpack.c.l.b16 %v1046
      %v1224 = vunpack.c.l.b16 %v1047
      %v1225 = vunpack.c.l.b16 %v1048
      %v1226 = vunpack.c.l.b16 %v1049
      %v1227 = vunpack.c.l.b16 %v1050
      %v1228 = vunpack.c.l.b16 %v1051
      %v1229 = vunpack.c.l.b16 %v1052
      %v1230 = vunpack.c.l.b16 %v1053
      %v1231 = vunpack.c.l.b16 %v1054
      %v1232 = vpack.c.b16 %v1221, %v1220
      %v1233 = vpack.c.b16 %v1223, %v1222
      %v1234 = vpack.c.b16 %v1225, %v1224
      %v1235 = vpack.c.b16 %v1227, %v1226
      %v1236 = vpack.c.b16 %v1229, %v1228
      %v1237 = vpack.c.b16 %v1231, %v1230
      %v1245 = vsel %vm1124, %v1204, 0
      %v1248 = vsel %vm1124, %v1205, 0
      %v1251 = vsel %vm1124, %v1206, 0
      %v1254 = vsel %vm1124, %v1207, 0
      %1256 = vmatprep.subr.bf16.mxu0 0
      %1257 = vmatpush1.bf16.msra.mxu0 %v1232
      %1258 = vmatprep.subr.bf16.mxu0 0
      %1259 = vmatpush1.bf16.msra.mxu0 %v1233
      %1260 = vmatprep.subr.bf16.mxu0 0
      %1261 = vmatpush1.bf16.msra.mxu0 %v1234
      %1262 = vmatprep.subr.bf16.mxu0 0
      %1263 = vmatpush1.bf16.msra.mxu0 %v1235
      %1264 = vmatprep.subr.bf16.mxu0 0
      %1265 = vmatpush1.bf16.msra.mxu0 %v1236
      %1266 = vmatprep.subr.bf16.mxu0 0
      %1267 = vmatpush1.bf16.msra.mxu0 %v1237
      %1268 = vmatprep.subr.bf16.mxu0 0
      %1269 = vmatpush1.bf16.msra.mxu0 0
      %1270 = vmatprep.subr.bf16.mxu0 0
      %1271 = vmatpush1.bf16.msra.mxu0 0
      %1272 = vmatprep.subr.bf16.mxu0 0
      %1273 = vmatpush1.bf16.msra.mxu0 0
      %1274 = vmatprep.subr.bf16.mxu0 0
      %1275 = vmatpush1.bf16.msra.mxu0 0
      %1276 = vmatprep.subr.bf16.mxu0 0
      %1277 = vmatpush1.bf16.msra.mxu0 0
      %1278 = vmatprep.subr.bf16.mxu0 0
      %1279 = vmatpush1.bf16.msra.mxu0 0
      %1280 = vmatprep.subr.bf16.mxu0 0
      %1281 = vmatpush1.bf16.msra.mxu0 0
      %1282 = vmatprep.subr.bf16.mxu0 0
      %1283 = vmatpush1.bf16.msra.mxu0 0
      %1284 = vmatprep.subr.bf16.mxu0 0
      %1285 = vmatpush1.bf16.msra.mxu0 0
      %1286 = vmatprep.subr.bf16.mxu0 0
      %1287 = vmatpush1.bf16.msra.mxu0 0
      %1288 = vmatprep.mubr.bf16.mxu0 0
      %1289 = vmatmul.mubr.bf16.gmra.mrb[0].mxu0 %v1245
      %v1290 = vpop.f32.mrb[0].mxu0
      %v1291 = vadd.f32 %v1172, %v1290
      %v1292 = vpop.f32.mrb[0].mxu0
      %v1293 = vpop.f32.mrb[0].mxu0
      %v1294 = vadd.f32 %v1175, %v1293
      %v1295 = vpop.f32.mrb[0].mxu0
      %1296 = vmatprep.mubr.bf16.mxu0 0
      %1297 = vmatmul.mubr.bf16.gmra.mrb[0].mxu0 %v1248
      %v1298 = vpop.f32.mrb[0].mxu0
      %v1299 = vadd.f32 %v1180, %v1298
      %v1300 = vpop.f32.mrb[0].mxu0
      %v1301 = vpop.f32.mrb[0].mxu0
      %v1302 = vadd.f32 %v1183, %v1301
      %v1303 = vpop.f32.mrb[0].mxu0
      %1304 = vmatprep.mubr.bf16.mxu0 0
      %1305 = vmatmul.mubr.bf16.gmra.mrb[0].mxu0 %v1251
      %v1306 = vpop.f32.mrb[0].mxu0
      %v1307 = vadd.f32 %v1188, %v1306
      %v1308 = vpop.f32.mrb[0].mxu0
      %v1309 = vpop.f32.mrb[0].mxu0
      %v1310 = vadd.f32 %v1191, %v1309
      %v1311 = vpop.f32.mrb[0].mxu0
      %1312 = vmatprep.mubr.bf16.mxu0 0
      %1313 = vmatmul.mubr.bf16.gmra.mrb[0].mxu0 %v1254
      %v1314 = vpop.f32.mrb[0].mxu0
      %v1315 = vadd.f32 %v1196, %v1314
      %v1316 = vpop.f32.mrb[0].mxu0
      %v1317 = vpop.f32.mrb[0].mxu0
      %v1318 = vadd.f32 %v1199, %v1317
      %v1319 = vpop.f32.mrb[0].mxu0
      %1320 = vdwg.mxu0
      %s1321 = scalar_lea.vmem %s5, 96
      %v1322 = vld [vmem:[%s1321] sm:$0xf]
      %v1323 = vld [vmem:[%s1321 + $0x4] sm:$0xf]
      %v1324 = vld [vmem:[%s1321 + $0x8] sm:$0xf]
      %v1325 = vld [vmem:[%s1321 + $0xc] sm:$0xf]
      %v1326 = vld [vmem:[%s1321 + $0x10] sm:$0xf]
      %v1327 = vld [vmem:[%s1321 + $0x14] sm:$0xf]
      %v1328 = vld [vmem:[%s1321 + $0x18] sm:$0xf]
      %v1329 = vld [vmem:[%s1321 + $0x1c] sm:$0xf]
      %v1330 = vld [vmem:[%s1321 + $0x20] sm:$0xf]
      %v1331 = vld [vmem:[%s1321 + $0x24] sm:$0xf]
      %v1332 = vld [vmem:[%s1321 + $0x28] sm:$0xf]
      %v1333 = vld [vmem:[%s1321 + $0x2c] sm:$0xf]
      %v1335 = vunpack.c.l.b16 %v1042
      %v1336 = vpack.c.b16 %v1335, %v1083
      %v1349 = vunpack.c.l.b16 %v1322
      %v1350 = vunpack.c.l.b16 %v1323
      %v1351 = vunpack.c.l.b16 %v1324
      %v1352 = vunpack.c.l.b16 %v1325
      %v1353 = vunpack.c.l.b16 %v1326
      %v1354 = vunpack.c.l.b16 %v1327
      %v1355 = vunpack.c.l.b16 %v1328
      %v1356 = vunpack.c.l.b16 %v1329
      %v1357 = vunpack.c.l.b16 %v1330
      %v1358 = vunpack.c.l.b16 %v1331
      %v1359 = vunpack.c.l.b16 %v1332
      %v1360 = vunpack.c.l.b16 %v1333
      %v1361 = vpack.c.b16 %v1350, %v1349
      %v1362 = vpack.c.b16 %v1352, %v1351
      %v1363 = vpack.c.b16 %v1354, %v1353
      %v1364 = vpack.c.b16 %v1356, %v1355
      %v1365 = vpack.c.b16 %v1358, %v1357
      %v1366 = vpack.c.b16 %v1360, %v1359
      %v1374 = vsel %vm1124, %v1336, 0
      %1376 = vmatprep.subr.bf16.mxu0 0
      %1377 = vmatpush1.bf16.msra.mxu0 %v1361
      %1378 = vmatprep.subr.bf16.mxu0 0
      %1379 = vmatpush1.bf16.msra.mxu0 %v1362
      %1380 = vmatprep.subr.bf16.mxu0 0
      %1381 = vmatpush1.bf16.msra.mxu0 %v1363
      %1382 = vmatprep.subr.bf16.mxu0 0
      %1383 = vmatpush1.bf16.msra.mxu0 %v1364
      %1384 = vmatprep.subr.bf16.mxu0 0
      %1385 = vmatpush1.bf16.msra.mxu0 %v1365
      %1386 = vmatprep.subr.bf16.mxu0 0
      %1387 = vmatpush1.bf16.msra.mxu0 %v1366
      %1388 = vmatprep.subr.bf16.mxu0 0
      %1389 = vmatpush1.bf16.msra.mxu0 0
      %1390 = vmatprep.subr.bf16.mxu0 0
      %1391 = vmatpush1.bf16.msra.mxu0 0
      %1392 = vmatprep.subr.bf16.mxu0 0
      %1393 = vmatpush1.bf16.msra.mxu0 0
      %1394 = vmatprep.subr.bf16.mxu0 0
      %1395 = vmatpush1.bf16.msra.mxu0 0
      %1396 = vmatprep.subr.bf16.mxu0 0
      %1397 = vmatpush1.bf16.msra.mxu0 0
      %1398 = vmatprep.subr.bf16.mxu0 0
      %1399 = vmatpush1.bf16.msra.mxu0 0
      %1400 = vmatprep.subr.bf16.mxu0 0
      %1401 = vmatpush1.bf16.msra.mxu0 0
      %1402 = vmatprep.subr.bf16.mxu0 0
      %1403 = vmatpush1.bf16.msra.mxu0 0
      %1404 = vmatprep.subr.bf16.mxu0 0
      %1405 = vmatpush1.bf16.msra.mxu0 0
      %1406 = vmatprep.subr.bf16.mxu0 0
      %1407 = vmatpush1.bf16.msra.mxu0 0
      %1408 = vmatprep.mubr.bf16.mxu0 0
      %1409 = vmatmul.mubr.bf16.gmra.mrb[0].mxu0 %v1248
      %v1410 = vpop.f32.mrb[0].mxu0
      %v1411 = vadd.f32 0.0, %v1410
      %v1412 = vpop.f32.mrb[0].mxu0
      %v1413 = vpop.f32.mrb[0].mxu0
      %v1414 = vadd.f32 0.0, %v1413
      %v1415 = vpop.f32.mrb[0].mxu0
      %1416 = vmatprep.mubr.bf16.mxu0 0
      %1417 = vmatmul.mubr.bf16.gmra.mrb[0].mxu0 %v1251
      %v1418 = vpop.f32.mrb[0].mxu0
      %v1419 = vadd.f32 0.0, %v1418
      %v1420 = vpop.f32.mrb[0].mxu0
      %v1421 = vpop.f32.mrb[0].mxu0
      %v1422 = vadd.f32 0.0, %v1421
      %v1423 = vpop.f32.mrb[0].mxu0
      %1424 = vmatprep.mubr.bf16.mxu0 0
      %1425 = vmatmul.mubr.bf16.gmra.mrb[0].mxu0 %v1254
      %v1426 = vpop.f32.mrb[0].mxu0
      %v1427 = vadd.f32 0.0, %v1426
      %v1428 = vpop.f32.mrb[0].mxu0
      %v1429 = vpop.f32.mrb[0].mxu0
      %v1430 = vadd.f32 0.0, %v1429
      %v1431 = vpop.f32.mrb[0].mxu0
      %1432 = vmatprep.mubr.bf16.mxu0 0
      %1433 = vmatmul.mubr.bf16.gmra.mrb[0].mxu0 %v1374
      %v1434 = vpop.f32.mrb[0].mxu0
      %v1435 = vadd.f32 0.0, %v1434
      %v1436 = vpop.f32.mrb[0].mxu0
      %v1437 = vpop.f32.mrb[0].mxu0
      %v1438 = vadd.f32 0.0, %v1437
      %v1439 = vpop.f32.mrb[0].mxu0
      %1440 = vdwg.mxu0
      %v1441 = vadd.f32 %v1291, %v1411
      %v1442 = vadd.f32 %v1294, %v1414
      %v1443 = vadd.f32 %v1299, %v1419
      %v1444 = vadd.f32 %v1302, %v1422
      %v1445 = vadd.f32 %v1307, %v1427
      %v1446 = vadd.f32 %v1310, %v1430
      %v1447 = vadd.f32 %v1315, %v1435
      %v1448 = vadd.f32 %v1318, %v1438
      %v1449 = vld [vmem:[%s6] sm:$0x1]
      %v1451 = vlaneseq
      %v1452 = vshrl.u32 %v1451, 7
      %v1453 = vsub.s32 0, %v1452
      %v1454 = vrot.slane %v1449, %v1453
      %v1456 = vadd.f32 %v1441, %v1454
      %v1457 = vadd.f32 %v1442, %v1454
      %v1458 = vadd.f32 %v1443, %v1454
      %v1459 = vadd.f32 %v1444, %v1454
      %v1460 = vadd.f32 %v1445, %v1454
      %v1461 = vadd.f32 %v1446, %v1454
      %v1462 = vadd.f32 %v1447, %v1454
      %v1463 = vadd.f32 %v1448, %v1454
      %v1464 = vld [vmem:[%s549] sm:$0xf]
      %v1465 = vld [vmem:[%s549 + $0x4] sm:$0xf]
      %v1466 = vld [vmem:[%s549 + $0x8] sm:$0xf]
      %v1467 = vld [vmem:[%s549 + $0xc] sm:$0xf]
      %v1468 = vld [vmem:[%s549 + $0x10] sm:$0xf]
      %v1469 = vld [vmem:[%s549 + $0x14] sm:$0xf]
      %v1470 = vld [vmem:[%s549 + $0x18] sm:$0xf]
      %v1471 = vld [vmem:[%s549 + $0x1c] sm:$0xf]
      %v1472 = vunpack.c.l.bf16 %v1464
      %v1473 = vunpack.c.l.bf16 %v1465
      %v1474 = vunpack.c.l.bf16 %v1466
      %v1475 = vunpack.c.l.bf16 %v1467
      %v1476 = vunpack.c.l.bf16 %v1468
      %v1477 = vunpack.c.l.bf16 %v1469
      %v1478 = vunpack.c.l.bf16 %v1470
      %v1479 = vunpack.c.l.bf16 %v1471
      %v1480 = vadd.f32 %v1456, %v1472
      %v1481 = vadd.f32 %v1457, %v1473
      %v1482 = vadd.f32 %v1458, %v1474
      %v1483 = vadd.f32 %v1459, %v1475
      %v1484 = vadd.f32 %v1460, %v1476
      %v1485 = vadd.f32 %v1461, %v1477
      %v1486 = vadd.f32 %v1462, %v1478
      %v1487 = vadd.f32 %v1463, %v1479
      %v1488 = vpack.c.bf16 %v1480, %v1480
      %v1489 = vpack.c.bf16 %v1481, %v1481
      %v1490 = vpack.c.bf16 %v1482, %v1482
      %v1491 = vpack.c.bf16 %v1483, %v1483
      %v1492 = vpack.c.bf16 %v1484, %v1484
      %v1493 = vpack.c.bf16 %v1485, %v1485
      %v1494 = vpack.c.bf16 %v1486, %v1486
      %v1495 = vpack.c.bf16 %v1487, %v1487
      %vm1496 = vcmask 257024
      %1497 = vst.msk [vmem:[%s559] sm:$0xf] %vm1496, %v1488
      %1498 = vst.msk [vmem:[%s559 + $0x4] sm:$0xf] %vm1496, %v1489
      %1499 = vst.msk [vmem:[%s559 + $0x8] sm:$0xf] %vm1496, %v1490
      %1500 = vst.msk [vmem:[%s559 + $0xc] sm:$0xf] %vm1496, %v1491
      %1501 = vst.msk [vmem:[%s559 + $0x10] sm:$0xf] %vm1496, %v1492
      %1502 = vst.msk [vmem:[%s559 + $0x14] sm:$0xf] %vm1496, %v1493
      %1503 = vst.msk [vmem:[%s559 + $0x18] sm:$0xf] %vm1496, %v1494
      %1504 = vst.msk [vmem:[%s559 + $0x1c] sm:$0xf] %vm1496, %v1495
      // Predicated region
      $region53: #{up_decoder_block_3d.10} parent=51 // pred_check
        %p1505 = pneg %p690
      $region54: #{up_decoder_block_3d.10} parent=51 // pred_check_branch
        %1507 = sbr.rel (%p1505) target = $region56
      $region55: #{up_decoder_block_3d.10} parent=51 // pred_region
        %vm1508 = vcmask 254976
        %1509 = vst.msk [vmem:[%s564] sm:$0x3] %vm1508, 0.0
      $region56: #{up_decoder_block_3d.10} parent=51 // pred_fallthru
        _
      %v1510 = vsel %vm1001, %v1480, 0.0
      %v1511 = vsel %vm1001, %v1481, 0.0
      %v1512 = vadd.f32 %v1510, %v1511
      %v1513 = vsel %vm1001, %v1482, 0.0
      %v1514 = vadd.f32 %v1512, %v1513
      %v1515 = vsel %vm1001, %v1483, 0.0
      %v1516 = vadd.f32 %v1514, %v1515
      %v1517 = vsel %vm1001, %v1484, 0.0
      %v1518 = vadd.f32 %v1516, %v1517
      %v1519 = vsel %vm1001, %v1485, 0.0
      %v1520 = vadd.f32 %v1518, %v1519
      %v1521 = vsel %vm1001, %v1486, 0.0
      %v1522 = vadd.f32 %v1520, %v1521
      %v1523 = vsel %vm1001, %v1487, 0.0
      %v1524 = vadd.f32 %v1522, %v1523
      %v1525 = vrot.slane %v1524, 4
      %v1526 = vadd.f32 %v1524, %v1525
      %v1527 = vrot.slane %v1526, 2
      %v1528 = vadd.f32 %v1526, %v1527
      %v1529 = vrot.slane %v1528, 1
      %v1530 = vadd.f32 %v1528, %v1529
      %v1531 = vmul.f32 %v1480, %v1480
      %v1532 = vmul.f32 %v1481, %v1481
      %v1533 = vmul.f32 %v1482, %v1482
      %v1534 = vmul.f32 %v1483, %v1483
      %v1535 = vmul.f32 %v1484, %v1484
      %v1536 = vmul.f32 %v1485, %v1485
      %v1537 = vmul.f32 %v1486, %v1486
      %v1538 = vmul.f32 %v1487, %v1487
      %v1539 = vsel %vm1001, %v1531, 0.0
      %v1540 = vsel %vm1001, %v1532, 0.0
      %v1541 = vadd.f32 %v1539, %v1540
      %v1542 = vsel %vm1001, %v1533, 0.0
      %v1543 = vadd.f32 %v1541, %v1542
      %v1544 = vsel %vm1001, %v1534, 0.0
      %v1545 = vadd.f32 %v1543, %v1544
      %v1546 = vsel %vm1001, %v1535, 0.0
      %v1547 = vadd.f32 %v1545, %v1546
      %v1548 = vsel %vm1001, %v1536, 0.0
      %v1549 = vadd.f32 %v1547, %v1548
      %v1550 = vsel %vm1001, %v1537, 0.0
      %v1551 = vadd.f32 %v1549, %v1550
      %v1552 = vsel %vm1001, %v1538, 0.0
      %v1553 = vadd.f32 %v1551, %v1552
      %v1554 = vrot.slane %v1553, 4
      %v1555 = vadd.f32 %v1553, %v1554
      %v1556 = vrot.slane %v1555, 2
      %v1557 = vadd.f32 %v1555, %v1556
      %v1558 = vrot.slane %v1557, 1
      %v1559 = vadd.f32 %v1557, %v1558
      %v1560 = vld [vmem:[%s564] sm:$0x3]
      %vm1561 = vcmask 1040384
      %v1562 = vsel %vm1561, %v1530, %v1559
      %v1563 = vadd.f32 %v1560, %v1562
      %vm1564 = vcmask 254976
      %1565 = vst.msk [vmem:[%s564] sm:$0x3] %vm1564, %v1563
      %s1566 = smul.u32 8, %s26
      %p1567 = scmp.lt.s32.totalorder %s25, 3
      %s1568 = scalar_select %p1567, %s25, 3
      %p1569 = scmp.lt.s32.totalorder %s1566, 7
      %s1570 = scalar_select %p1569, %s1566, 7
      %s1571 = smul.addr %s1568, 8
      %s1572 = sadd.s32 %s1570, %s1571
      %s1573 = smul.addr %s1572, 4
      %s1574 = scalar_lea.vmem %s8, %s1573
      %p1575 = scmp.lt.s32.totalorder %s25, 3
      %s1576 = scalar_select %p1575, %s25, 3
      %s1577 = smul.addr %s1576, 2
      %s1578 = scalar_lea.vmem %s9, %s1577
      // Predicated region
      $region57: #{up_decoder_block_3d.10} parent=51 // pred_check
        %p1579 = pneg %p275
      $region58: #{up_decoder_block_3d.10} parent=51 // pred_check_branch
        %1581 = sbr.rel (%p1579) target = $region60
      $region59: #{up_decoder_block_3d.10} parent=51 // pred_region
        %s1582 = smul.u32 8, %s26
      $region60: #{up_decoder_block_3d.10} parent=51 // pred_fallthru
        _
      // Predicated region
      $region61: #{up_decoder_block_3d.10} parent=51 // pred_check
        %p1583 = pneg %p301
      $region62: #{up_decoder_block_3d.10} parent=51 // pred_check_branch
        %1585 = sbr.rel (%p1583) target = $region64
      $region63: #{up_decoder_block_3d.10} parent=51 // pred_region
        _
      $region64: #{up_decoder_block_3d.10} parent=51 // pred_fallthru
        _
    $region52: #{up_decoder_block_3d.10} parent=5 // pred_fallthru
      _
    %p1586 = scmp.le.s32.totalorder 2, %s16
    // Predicated region
    $region65: #{up_decoder_block_3d.10} parent=5 // pred_check
      %p1587 = pneg %p1586
    $region66: #{up_decoder_block_3d.10} parent=5 // pred_check_branch
      %1589 = sbr.rel (%p1587) target = $region68
    $region67: #{up_decoder_block_3d.10} parent=5 // pred_region
      %s1590 = ssub.s32 %s16, 2
      // Predicated region
      $region69: #{up_decoder_block_3d.10} parent=67 // pred_check
        %p1591 = pneg %p281
      $region70: #{up_decoder_block_3d.10} parent=67 // pred_check_branch
        %1593 = sbr.rel (%p1591) target = $region72
      $region71: #{up_decoder_block_3d.10} parent=67 // pred_region
        %s1594 = smul.u32 8, %s28
        %p1595 = scmp.lt.s32.totalorder %s27, 3
        %s1596 = scalar_select %p1595, %s27, 3
        %p1597 = scmp.lt.s32.totalorder %s1594, 7
        %s1598 = scalar_select %p1597, %s1594, 7
        %s1599 = smul.addr %s1596, 8
        %s1600 = sadd.s32 %s1598, %s1599
        %s1601 = smul.addr %s1600, 4
        %s1602 = scalar_lea.vmem %s8, %s1601
      $region72: #{up_decoder_block_3d.10} parent=67 // pred_fallthru
        _
      // Predicated region
      $region73: #{up_decoder_block_3d.10} parent=67 // pred_check
        %p1603 = pneg %p307
      $region74: #{up_decoder_block_3d.10} parent=67 // pred_check_branch
        %1605 = sbr.rel (%p1603) target = $region76
      $region75: #{up_decoder_block_3d.10} parent=67 // pred_region
        %p1606 = scmp.lt.s32.totalorder %s27, 3
        %s1607 = scalar_select %p1606, %s27, 3
        %s1608 = smul.addr %s1607, 2
        %s1609 = scalar_lea.vmem %s9, %s1608
      $region76: #{up_decoder_block_3d.10} parent=67 // pred_fallthru
        _
    $region68: #{up_decoder_block_3d.10} parent=5 // pred_fallthru
      _
  $region6: #{up_decoder_block_3d.10} parent=0 // loop_footer
    %s20 = sadd.s32 1, %s16
  $region7: #{up_decoder_block_3d.10} parent=0 // loop_footer_branch
    %15 = sbr.rel target = $region3
  $region8: #{up_decoder_block_3d.10} parent=0 // loop_exit
    _

// kernel: up_decoder_block_3d.9
$region0: #{up_decoder_block_3d.9}
  #allocation0 [shape = 'u32[]', space=smem, size = 0x4, offset = 0x4, fixed_abs, tag = 'smem constant byte address 0x4 - core index']
  #allocation1 [shape = 'u32[144,128]{1,0:T(1,128)}', space=vmem, size = 0x12000, scoped, tag = 'internal scratch']
  %s0 = inlined_call_operand.vmem [shape: f32[4,8,8,64], index: 0, kind: input, shape index: {}, may-alias: {0,1,2}]
  %s1 = inlined_call_operand.vmem [shape: f32[4,8,8,64], index: 1, kind: input, shape index: {}, may-alias: {0,1,2}]
  %s2 = inlined_call_operand.vmem [shape: f32[4,8,8,64], index: 2, kind: input, shape index: {}, may-alias: {0,1,2}]
  %s3 = inlined_call_operand.vmem [shape: f32[4,1,64], index: 3, kind: input, shape index: {}]
  %s4 = inlined_call_operand.vmem [shape: f32[4,1,64], index: 4, kind: input, shape index: {}]
  %s5 = inlined_call_operand.vmem [shape: bf16[3,192,32], index: 5, kind: input, shape index: {}]
  %s6 = inlined_call_operand.vmem [shape: f32[1,1,32], index: 6, kind: input, shape index: {}]
  %s7 = inlined_call_operand.vmem [shape: bf16[64,32], index: 7, kind: input, shape index: {}]
  %s8 = inlined_call_operand.vmem [shape: f32[1,32], index: 8, kind: input, shape index: {}]
  %s9 = inlined_call_operand.vmem [shape: bf16[4,8,8,32], index: 9, kind: output, shape index: {0}]
  %s10 = inlined_call_operand.vmem [shape: f32[4,2,32], index: 10, kind: output, shape index: {1}]
  %s11 = inlined_call_operand.vmem [shape: bf16[4,8,8,32], index: 11, kind: output, shape index: {2}]
  %12 = xla_tuple %s9, %s10, %s11
  %s13 = sld [smem:[#allocation0]]
  $region89: #{up_decoder_block_3d.9} parent=0
    _
  %s15 = ssub.s32 1, %s13
  %s16 = scalar_select 0, %s15, %s13
  loop: start=0, step=1, limit=6
  $region2: #{up_decoder_block_3d.9} parent=0 // loop_pre_header
    _
  $region3: #{up_decoder_block_3d.9} parent=0 // loop_header
    %s18 = sphi 0, %s22
    %p19 = scmp.ge.s32.totalorder %s18, 6
    %s25 = sphi 0, %s37
    %s26 = sphi 0, %s33
    %s27 = sphi 0, %s25
    %s28 = sphi 0, %s26
    %s29 = sphi 0, %s27
    %s30 = sphi 0, %s28
    %s42 = sphi 0, %s44
    %s45 = sphi 0, %s42
    %s46 = sphi 0, %s45
    %s62 = sphi 0, %s46
    %s78 = sphi 0, %s80
    %s81 = sphi 0, %s78
    %s82 = sphi 0, %s81
    %s98 = sphi 0, %s82
    %s114 = sphi 0, %s116
    %s117 = sphi 0, %s114
    %s118 = sphi 0, %s117
    %s134 = sphi 0, %s118
    %s140 = sphi 0, %s142
    %s143 = sphi 0, %s140
    %s144 = sphi 0, %s143
    %s160 = sphi 0, %s144
    %s166 = sphi 0, %s168
    %s169 = sphi 0, %s166
    %s170 = sphi 0, %s169
    %s186 = sphi 0, %s170
    %s190 = sphi 0, %s190
    %s192 = sphi 0, %s190
    %s193 = sphi 0, %s192
    %s207 = sphi 0, %s193
    %s211 = sphi 0, %s211
    %s213 = sphi 0, %s211
    %s214 = sphi 0, %s213
    %s228 = sphi 0, %s214
    %s232 = sphi 0, %s232
    %s234 = sphi 0, %s232
    %s235 = sphi 0, %s234
    %s249 = sphi 0, %s235
    %s253 = sphi 0, %s253
    %s255 = sphi 0, %s253
    %s256 = sphi 0, %s255
    %s270 = sphi 0, %s256
    %s278 = sphi 0, %s280
    %s281 = sphi 0, %s278
    %s282 = sphi 0, %s281
    %s298 = sphi 0, %s282
    %s304 = sphi 0, %s306
    %s307 = sphi 0, %s304
    %s308 = sphi 0, %s307
    %s324 = sphi 0, %s308
    %s332 = sphi 0, %s334
    %s335 = sphi 0, %s332
    %s336 = sphi 0, %s335
    %s352 = sphi 0, %s336
  $region4: #{up_decoder_block_3d.9} parent=0 // loop_header_branch
    %21 = sbr.rel (%p19) target = $region8
  $region5: #{up_decoder_block_3d.9} parent=0 // loop_body
    %s23 = ssub.s32 %s18, 1
    %s24 = ssub.s32 %s18, 2
    %s31 = sadd.s32 1, %s26
    %p32 = scmp.ge.s32.totalorder %s31, 1
    %s33 = scalar_select %p32, 0, %s31
    %s34 = sadd.s32 1, %s25
    %s35 = scalar_select %p32, %s34, %s25
    %p36 = scmp.ge.s32.totalorder %s35, 4
    %s37 = scalar_select %p36, 0, %s35
    %s38 = ssub.s32 %s25, %s37
    %s39 = ssub.s32 %s26, %s33
    %s40 = sor.u32 %s38, %s39
    %p41 = scmp.eq.s32.totalorder %s40, 0
    %s43 = sadd.s32 %s42, 1
    %s44 = scalar_select %p41, %s42, %s43
    %p47 = pneg %p41
    %p48 = scmp.eq.s32.totalorder %s18, 3
    %p49 = por %p47, %p48
    %p50 = scmp.ne.s32.totalorder %s42, %s45
    %p51 = scmp.eq.s32.totalorder %s18, 0
    %p52 = por %p50, %p51
    %p53 = scmp.ne.s32.totalorder %s42, %s45
    %p54 = scmp.eq.s32.totalorder %s23, 3
    %p55 = por %p53, %p54
    %p56 = scmp.ne.s32.totalorder %s45, %s46
    %p57 = scmp.eq.s32.totalorder %s23, 0
    %p58 = por %p56, %p57
    %p59 = scmp.ne.s32.totalorder %s45, %s46
    %p60 = scmp.eq.s32.totalorder %s24, 3
    %p61 = por %p59, %p60
    %p63 = scmp.ne.s32.totalorder %s46, %s62
    %p64 = scmp.eq.s32.totalorder %s24, 0
    %p65 = por %p63, %p64
    %s66 = smul.u32 %s26, 8
    %s67 = ssub.s32 %s66, 1
    %p68 = scmp.gt.s32.totalorder %s67, 0
    %s69 = scalar_select %p68, %s67, 0
    %s70 = smul.u32 %s33, 8
    %s71 = ssub.s32 %s70, 1
    %p72 = scmp.gt.s32.totalorder %s71, 0
    %s73 = scalar_select %p72, %s71, 0
    %s74 = ssub.s32 %s25, %s37
    %s75 = ssub.s32 %s69, %s73
    %s76 = sor.u32 %s74, %s75
    %p77 = scmp.eq.s32.totalorder %s76, 0
    %s79 = sadd.s32 %s78, 1
    %s80 = scalar_select %p77, %s78, %s79
    %p83 = pneg %p77
    %p84 = scmp.eq.s32.totalorder %s18, 3
    %p85 = por %p83, %p84
    %p86 = scmp.ne.s32.totalorder %s78, %s81
    %p87 = scmp.eq.s32.totalorder %s18, 0
    %p88 = por %p86, %p87
    %p89 = scmp.ne.s32.totalorder %s78, %s81
    %p90 = scmp.eq.s32.totalorder %s23, 3
    %p91 = por %p89, %p90
    %p92 = scmp.ne.s32.totalorder %s81, %s82
    %p93 = scmp.eq.s32.totalorder %s23, 0
    %p94 = por %p92, %p93
    %p95 = scmp.ne.s32.totalorder %s81, %s82
    %p96 = scmp.eq.s32.totalorder %s24, 3
    %p97 = por %p95, %p96
    %p99 = scmp.ne.s32.totalorder %s82, %s98
    %p100 = scmp.eq.s32.totalorder %s24, 0
    %p101 = por %p99, %p100
    %s102 = sadd.s32 %s26, 1
    %s103 = smul.u32 %s102, 8
    %p104 = scmp.lt.s32.totalorder %s103, 7
    %s105 = scalar_select %p104, %s103, 7
    %s106 = sadd.s32 %s33, 1
    %s107 = smul.u32 %s106, 8
    %p108 = scmp.lt.s32.totalorder %s107, 7
    %s109 = scalar_select %p108, %s107, 7
    %s110 = ssub.s32 %s25, %s37
    %s111 = ssub.s32 %s105, %s109
    %s112 = sor.u32 %s110, %s111
    %p113 = scmp.eq.s32.totalorder %s112, 0
    %s115 = sadd.s32 %s114, 1
    %s116 = scalar_select %p113, %s114, %s115
    %p119 = pneg %p113
    %p120 = scmp.eq.s32.totalorder %s18, 3
    %p121 = por %p119, %p120
    %p122 = scmp.ne.s32.totalorder %s114, %s117
    %p123 = scmp.eq.s32.totalorder %s18, 0
    %p124 = por %p122, %p123
    %p125 = scmp.ne.s32.totalorder %s114, %s117
    %p126 = scmp.eq.s32.totalorder %s23, 3
    %p127 = por %p125, %p126
    %p128 = scmp.ne.s32.totalorder %s117, %s118
    %p129 = scmp.eq.s32.totalorder %s23, 0
    %p130 = por %p128, %p129
    %p131 = scmp.ne.s32.totalorder %s117, %s118
    %p132 = scmp.eq.s32.totalorder %s24, 3
    %p133 = por %p131, %p132
    %p135 = scmp.ne.s32.totalorder %s118, %s134
    %p136 = scmp.eq.s32.totalorder %s24, 0
    %p137 = por %p135, %p136
    %s138 = ssub.s32 %s25, %s37
    %p139 = scmp.eq.s32.totalorder %s138, 0
    %s141 = sadd.s32 %s140, 1
    %s142 = scalar_select %p139, %s140, %s141
    %p145 = pneg %p139
    %p146 = scmp.eq.s32.totalorder %s18, 3
    %p147 = por %p145, %p146
    %p148 = scmp.ne.s32.totalorder %s140, %s143
    %p149 = scmp.eq.s32.totalorder %s18, 0
    %p150 = por %p148, %p149
    %p151 = scmp.ne.s32.totalorder %s140, %s143
    %p152 = scmp.eq.s32.totalorder %s23, 3
    %p153 = por %p151, %p152
    %p154 = scmp.ne.s32.totalorder %s143, %s144
    %p155 = scmp.eq.s32.totalorder %s23, 0
    %p156 = por %p154, %p155
    %p157 = scmp.ne.s32.totalorder %s143, %s144
    %p158 = scmp.eq.s32.totalorder %s24, 3
    %p159 = por %p157, %p158
    %p161 = scmp.ne.s32.totalorder %s144, %s160
    %p162 = scmp.eq.s32.totalorder %s24, 0
    %p163 = por %p161, %p162
    %s164 = ssub.s32 %s25, %s37
    %p165 = scmp.eq.s32.totalorder %s164, 0
    %s167 = sadd.s32 %s166, 1
    %s168 = scalar_select %p165, %s166, %s167
    %p171 = pneg %p165
    %p172 = scmp.eq.s32.totalorder %s18, 3
    %p173 = por %p171, %p172
    %p174 = scmp.ne.s32.totalorder %s166, %s169
    %p175 = scmp.eq.s32.totalorder %s18, 0
    %p176 = por %p174, %p175
    %p177 = scmp.ne.s32.totalorder %s166, %s169
    %p178 = scmp.eq.s32.totalorder %s23, 3
    %p179 = por %p177, %p178
    %p180 = scmp.ne.s32.totalorder %s169, %s170
    %p181 = scmp.eq.s32.totalorder %s23, 0
    %p182 = por %p180, %p181
    %p183 = scmp.ne.s32.totalorder %s169, %s170
    %p184 = scmp.eq.s32.totalorder %s24, 3
    %p185 = por %p183, %p184
    %p187 = scmp.ne.s32.totalorder %s170, %s186
    %p188 = scmp.eq.s32.totalorder %s24, 0
    %p189 = por %p187, %p188
    %s191 = sadd.s32 %s190, 1
    %p194 = scmp.eq.s32.totalorder %s18, 3
    %p195 = scmp.ne.s32.totalorder %s190, %s192
    %p196 = scmp.eq.s32.totalorder %s18, 0
    %p197 = por %p195, %p196
    %p198 = scmp.ne.s32.totalorder %s190, %s192
    %p199 = scmp.eq.s32.totalorder %s23, 3
    %p200 = por %p198, %p199
    %p201 = scmp.ne.s32.totalorder %s192, %s193
    %p202 = scmp.eq.s32.totalorder %s23, 0
    %p203 = por %p201, %p202
    %p204 = scmp.ne.s32.totalorder %s192, %s193
    %p205 = scmp.eq.s32.totalorder %s24, 3
    %p206 = por %p204, %p205
    %p208 = scmp.ne.s32.totalorder %s193, %s207
    %p209 = scmp.eq.s32.totalorder %s24, 0
    %p210 = por %p208, %p209
    %s212 = sadd.s32 %s211, 1
    %p215 = scmp.eq.s32.totalorder %s18, 3
    %p216 = scmp.ne.s32.totalorder %s211, %s213
    %p217 = scmp.eq.s32.totalorder %s18, 0
    %p218 = por %p216, %p217
    %p219 = scmp.ne.s32.totalorder %s211, %s213
    %p220 = scmp.eq.s32.totalorder %s23, 3
    %p221 = por %p219, %p220
    %p222 = scmp.ne.s32.totalorder %s213, %s214
    %p223 = scmp.eq.s32.totalorder %s23, 0
    %p224 = por %p222, %p223
    %p225 = scmp.ne.s32.totalorder %s213, %s214
    %p226 = scmp.eq.s32.totalorder %s24, 3
    %p227 = por %p225, %p226
    %p229 = scmp.ne.s32.totalorder %s214, %s228
    %p230 = scmp.eq.s32.totalorder %s24, 0
    %p231 = por %p229, %p230
    %s233 = sadd.s32 %s232, 1
    %p236 = scmp.eq.s32.totalorder %s18, 3
    %p237 = scmp.ne.s32.totalorder %s232, %s234
    %p238 = scmp.eq.s32.totalorder %s18, 0
    %p239 = por %p237, %p238
    %p240 = scmp.ne.s32.totalorder %s232, %s234
    %p241 = scmp.eq.s32.totalorder %s23, 3
    %p242 = por %p240, %p241
    %p243 = scmp.ne.s32.totalorder %s234, %s235
    %p244 = scmp.eq.s32.totalorder %s23, 0
    %p245 = por %p243, %p244
    %p246 = scmp.ne.s32.totalorder %s234, %s235
    %p247 = scmp.eq.s32.totalorder %s24, 3
    %p248 = por %p246, %p247
    %p250 = scmp.ne.s32.totalorder %s235, %s249
    %p251 = scmp.eq.s32.totalorder %s24, 0
    %p252 = por %p250, %p251
    %s254 = sadd.s32 %s253, 1
    %p257 = scmp.eq.s32.totalorder %s18, 3
    %p258 = scmp.ne.s32.totalorder %s253, %s255
    %p259 = scmp.eq.s32.totalorder %s18, 0
    %p260 = por %p258, %p259
    %p261 = scmp.ne.s32.totalorder %s253, %s255
    %p262 = scmp.eq.s32.totalorder %s23, 3
    %p263 = por %p261, %p262
    %p264 = scmp.ne.s32.totalorder %s255, %s256
    %p265 = scmp.eq.s32.totalorder %s23, 0
    %p266 = por %p264, %p265
    %p267 = scmp.ne.s32.totalorder %s255, %s256
    %p268 = scmp.eq.s32.totalorder %s24, 3
    %p269 = por %p267, %p268
    %p271 = scmp.ne.s32.totalorder %s256, %s270
    %p272 = scmp.eq.s32.totalorder %s24, 0
    %p273 = por %p271, %p272
    %s274 = ssub.s32 %s25, %s37
    %s275 = ssub.s32 %s26, %s33
    %s276 = sor.u32 %s274, %s275
    %p277 = scmp.eq.s32.totalorder %s276, 0
    %s279 = sadd.s32 %s278, 1
    %s280 = scalar_select %p277, %s278, %s279
    %p283 = pneg %p277
    %p284 = scmp.eq.s32.totalorder %s18, 3
    %p285 = por %p283, %p284
    %p286 = scmp.ne.s32.totalorder %s278, %s281
    %p287 = scmp.eq.s32.totalorder %s18, 0
    %p288 = por %p286, %p287
    %p289 = scmp.ne.s32.totalorder %s278, %s281
    %p290 = scmp.eq.s32.totalorder %s23, 3
    %p291 = por %p289, %p290
    %p292 = scmp.ne.s32.totalorder %s281, %s282
    %p293 = scmp.eq.s32.totalorder %s23, 0
    %p294 = por %p292, %p293
    %p295 = scmp.ne.s32.totalorder %s281, %s282
    %p296 = scmp.eq.s32.totalorder %s24, 3
    %p297 = por %p295, %p296
    %p299 = scmp.ne.s32.totalorder %s282, %s298
    %p300 = scmp.eq.s32.totalorder %s24, 0
    %p301 = por %p299, %p300
    %s302 = ssub.s32 %s25, %s37
    %p303 = scmp.eq.s32.totalorder %s302, 0
    %s305 = sadd.s32 %s304, 1
    %s306 = scalar_select %p303, %s304, %s305
    %p309 = pneg %p303
    %p310 = scmp.eq.s32.totalorder %s18, 3
    %p311 = por %p309, %p310
    %p312 = scmp.ne.s32.totalorder %s304, %s307
    %p313 = scmp.eq.s32.totalorder %s18, 0
    %p314 = por %p312, %p313
    %p315 = scmp.ne.s32.totalorder %s304, %s307
    %p316 = scmp.eq.s32.totalorder %s23, 3
    %p317 = por %p315, %p316
    %p318 = scmp.ne.s32.totalorder %s307, %s308
    %p319 = scmp.eq.s32.totalorder %s23, 0
    %p320 = por %p318, %p319
    %p321 = scmp.ne.s32.totalorder %s307, %s308
    %p322 = scmp.eq.s32.totalorder %s24, 3
    %p323 = por %p321, %p322
    %p325 = scmp.ne.s32.totalorder %s308, %s324
    %p326 = scmp.eq.s32.totalorder %s24, 0
    %p327 = por %p325, %p326
    %s328 = ssub.s32 %s25, %s37
    %s329 = ssub.s32 %s26, %s33
    %s330 = sor.u32 %s328, %s329
    %p331 = scmp.eq.s32.totalorder %s330, 0
    %s333 = sadd.s32 %s332, 1
    %s334 = scalar_select %p331, %s332, %s333
    %p337 = pneg %p331
    %p338 = scmp.eq.s32.totalorder %s18, 3
    %p339 = por %p337, %p338
    %p340 = scmp.ne.s32.totalorder %s332, %s335
    %p341 = scmp.eq.s32.totalorder %s18, 0
    %p342 = por %p340, %p341
    %p343 = scmp.ne.s32.totalorder %s332, %s335
    %p344 = scmp.eq.s32.totalorder %s23, 3
    %p345 = por %p343, %p344
    %p346 = scmp.ne.s32.totalorder %s335, %s336
    %p347 = scmp.eq.s32.totalorder %s23, 0
    %p348 = por %p346, %p347
    %p349 = scmp.ne.s32.totalorder %s335, %s336
    %p350 = scmp.eq.s32.totalorder %s24, 3
    %p351 = por %p349, %p350
    %p353 = scmp.ne.s32.totalorder %s336, %s352
    %p354 = scmp.eq.s32.totalorder %s24, 0
    %p355 = por %p353, %p354
    %p356 = scmp.le.s32.totalorder 1, %s18
    %p357 = scmp.lt.s32.totalorder %s18, 5
    %p358 = pnand %p356, %p357
    %p359 = pneg %p358
    // Predicated region
    $region9: #{up_decoder_block_3d.9} parent=5 // pred_check
      _
    $region10: #{up_decoder_block_3d.9} parent=5 // pred_check_branch
      %361 = sbr.rel (%p358) target = $region12
    $region11: #{up_decoder_block_3d.9} parent=5 // pred_region
      %s362 = ssub.s32 %s18, 1
      // Predicated region
      $region13: #{up_decoder_block_3d.9} parent=11 // pred_check
        %p363 = pneg %p203
      $region14: #{up_decoder_block_3d.9} parent=11 // pred_check_branch
        %365 = sbr.rel (%p363) target = $region16
      $region15: #{up_decoder_block_3d.9} parent=11 // pred_region
        _
      $region16: #{up_decoder_block_3d.9} parent=11 // pred_fallthru
        _
      // Predicated region
      $region17: #{up_decoder_block_3d.9} parent=11 // pred_check
        %p366 = pneg %p224
      $region18: #{up_decoder_block_3d.9} parent=11 // pred_check_branch
        %368 = sbr.rel (%p366) target = $region20
      $region19: #{up_decoder_block_3d.9} parent=11 // pred_region
        _
      $region20: #{up_decoder_block_3d.9} parent=11 // pred_fallthru
        _
      // Predicated region
      $region21: #{up_decoder_block_3d.9} parent=11 // pred_check
        %p369 = pneg %p245
      $region22: #{up_decoder_block_3d.9} parent=11 // pred_check_branch
        %371 = sbr.rel (%p369) target = $region24
      $region23: #{up_decoder_block_3d.9} parent=11 // pred_region
        _
      $region24: #{up_decoder_block_3d.9} parent=11 // pred_fallthru
        _
      // Predicated region
      $region25: #{up_decoder_block_3d.9} parent=11 // pred_check
        %p372 = pneg %p266
      $region26: #{up_decoder_block_3d.9} parent=11 // pred_check_branch
        %374 = sbr.rel (%p372) target = $region28
      $region27: #{up_decoder_block_3d.9} parent=11 // pred_region
        _
      $region28: #{up_decoder_block_3d.9} parent=11 // pred_fallthru
        _
    $region12: #{up_decoder_block_3d.9} parent=5 // pred_fallthru
      _
    %p375 = scmp.lt.s32.totalorder %s18, 4
    // Predicated region
    $region29: #{up_decoder_block_3d.9} parent=5 // pred_check
      %p376 = pneg %p375
    $region30: #{up_decoder_block_3d.9} parent=5 // pred_check_branch
      %378 = sbr.rel (%p376) target = $region32
    $region31: #{up_decoder_block_3d.9} parent=5 // pred_region
      // Predicated region
      $region33: #{up_decoder_block_3d.9} parent=31 // pred_check
        %p379 = pneg %p52
      $region34: #{up_decoder_block_3d.9} parent=31 // pred_check_branch
        %381 = sbr.rel (%p379) target = $region36
      $region35: #{up_decoder_block_3d.9} parent=31 // pred_region
        %s382 = smul.u32 8, %s26
        %p383 = scmp.lt.s32.totalorder %s25, 3
        %s384 = scalar_select %p383, %s25, 3
        %p385 = scmp.lt.s32.totalorder %s382, 7
        %s386 = scalar_select %p385, %s382, 7
        %s387 = smul.addr %s384, 8
        %s388 = sadd.s32 %s386, %s387
        %s389 = smul.addr %s388, 8
        %s390 = scalar_lea.vmem %s0, %s389
        %s391 = smul.u32 8, %s26
      $region36: #{up_decoder_block_3d.9} parent=31 // pred_fallthru
        _
      // Predicated region
      $region37: #{up_decoder_block_3d.9} parent=31 // pred_check
        %p392 = pneg %p88
      $region38: #{up_decoder_block_3d.9} parent=31 // pred_check_branch
        %394 = sbr.rel (%p392) target = $region40
      $region39: #{up_decoder_block_3d.9} parent=31 // pred_region
        %s395 = smul.u32 %s26, 8
        %s396 = ssub.s32 %s395, 1
        %p397 = scmp.gt.s32.totalorder %s396, 0
        %s398 = scalar_select %p397, %s396, 0
        %p399 = scmp.lt.s32.totalorder %s25, 3
        %s400 = scalar_select %p399, %s25, 3
        %p401 = scmp.lt.s32.totalorder %s398, 7
        %s402 = scalar_select %p401, %s398, 7
        %s403 = smul.addr %s400, 8
        %s404 = sadd.s32 %s402, %s403
        %s405 = smul.addr %s404, 8
        %s406 = scalar_lea.vmem %s1, %s405
        %s407 = smul.u32 %s26, 8
        %s408 = ssub.s32 %s407, 1
        %p409 = scmp.gt.s32.totalorder %s408, 0
        %s410 = scalar_select %p409, %s408, 0
      $region40: #{up_decoder_block_3d.9} parent=31 // pred_fallthru
        _
      // Predicated region
      $region41: #{up_decoder_block_3d.9} parent=31 // pred_check
        %p411 = pneg %p124
      $region42: #{up_decoder_block_3d.9} parent=31 // pred_check_branch
        %413 = sbr.rel (%p411) target = $region44
      $region43: #{up_decoder_block_3d.9} parent=31 // pred_region
        %s414 = sadd.s32 %s26, 1
        %s415 = smul.u32 %s414, 8
        %p416 = scmp.lt.s32.totalorder %s415, 7
        %s417 = scalar_select %p416, %s415, 7
        %p418 = scmp.lt.s32.totalorder %s25, 3
        %s419 = scalar_select %p418, %s25, 3
        %p420 = scmp.lt.s32.totalorder %s417, 7
        %s421 = scalar_select %p420, %s417, 7
        %s422 = smul.addr %s419, 8
        %s423 = sadd.s32 %s421, %s422
        %s424 = smul.addr %s423, 8
        %s425 = scalar_lea.vmem %s2, %s424
        %s426 = sadd.s32 %s26, 1
        %s427 = smul.u32 %s426, 8
        %p428 = scmp.lt.s32.totalorder %s427, 7
        %s429 = scalar_select %p428, %s427, 7
      $region44: #{up_decoder_block_3d.9} parent=31 // pred_fallthru
        _
      // Predicated region
      $region45: #{up_decoder_block_3d.9} parent=31 // pred_check
        %p430 = pneg %p150
      $region46: #{up_decoder_block_3d.9} parent=31 // pred_check_branch
        %432 = sbr.rel (%p430) target = $region48
      $region47: #{up_decoder_block_3d.9} parent=31 // pred_region
        %p433 = scmp.lt.s32.totalorder %s25, 3
        %s434 = scalar_select %p433, %s25, 3
        %s435 = scalar_lea.vmem %s3, %s434
      $region48: #{up_decoder_block_3d.9} parent=31 // pred_fallthru
        _
      // Predicated region
      $region49: #{up_decoder_block_3d.9} parent=31 // pred_check
        %p436 = pneg %p176
      $region50: #{up_decoder_block_3d.9} parent=31 // pred_check_branch
        %438 = sbr.rel (%p436) target = $region52
      $region51: #{up_decoder_block_3d.9} parent=31 // pred_region
        %p439 = scmp.lt.s32.totalorder %s25, 3
        %s440 = scalar_select %p439, %s25, 3
        %s441 = scalar_lea.vmem %s4, %s440
      $region52: #{up_decoder_block_3d.9} parent=31 // pred_fallthru
        _
    $region32: #{up_decoder_block_3d.9} parent=5 // pred_fallthru
      _
    %p442 = scmp.le.s32.totalorder 1, %s18
    %p443 = scmp.lt.s32.totalorder %s18, 5
    %p444 = pnand %p442, %p443
    %p445 = pneg %p444
    // Predicated region
    $region53: #{up_decoder_block_3d.9} parent=5 // pred_check
      _
    $region54: #{up_decoder_block_3d.9} parent=5 // pred_check_branch
      %447 = sbr.rel (%p444) target = $region56
    $region55: #{up_decoder_block_3d.9} parent=5 // pred_region
      %s448 = ssub.s32 %s18, 1
      %s449 = smul.u32 8, %s28
      %p450 = scmp.lt.s32.totalorder %s27, 3
      %s451 = scalar_select %p450, %s27, 3
      %p452 = scmp.lt.s32.totalorder %s449, 7
      %s453 = scalar_select %p452, %s449, 7
      %s454 = smul.addr %s451, 8
      %s455 = sadd.s32 %s453, %s454
      %s456 = smul.addr %s455, 8
      %s457 = scalar_lea.vmem %s0, %s456
      %p458 = pneg %p58
      %p459 = pneg %p55
      %s460 = smul.u32 %s28, 8
      %s461 = ssub.s32 %s460, 1
      %p462 = scmp.gt.s32.totalorder %s461, 0
      %s463 = scalar_select %p462, %s461, 0
      %p464 = scmp.lt.s32.totalorder %s27, 3
      %s465 = scalar_select %p464, %s27, 3
      %p466 = scmp.lt.s32.totalorder %s463, 7
      %s467 = scalar_select %p466, %s463, 7
      %s468 = smul.addr %s465, 8
      %s469 = sadd.s32 %s467, %s468
      %s470 = smul.addr %s469, 8
      %s471 = scalar_lea.vmem %s1, %s470
      %p472 = pneg %p94
      %p473 = pneg %p91
      %s474 = sadd.s32 %s28, 1
      %s475 = smul.u32 %s474, 8
      %p476 = scmp.lt.s32.totalorder %s475, 7
      %s477 = scalar_select %p476, %s475, 7
      %p478 = scmp.lt.s32.totalorder %s27, 3
      %s479 = scalar_select %p478, %s27, 3
      %p480 = scmp.lt.s32.totalorder %s477, 7
      %s481 = scalar_select %p480, %s477, 7
      %s482 = smul.addr %s479, 8
      %s483 = sadd.s32 %s481, %s482
      %s484 = smul.addr %s483, 8
      %s485 = scalar_lea.vmem %s2, %s484
      %p486 = pneg %p130
      %p487 = pneg %p127
      %p488 = scmp.lt.s32.totalorder %s27, 3
      %s489 = scalar_select %p488, %s27, 3
      %s490 = scalar_lea.vmem %s3, %s489
      %p491 = pneg %p156
      %p492 = pneg %p153
      %p493 = scmp.lt.s32.totalorder %s27, 3
      %s494 = scalar_select %p493, %s27, 3
      %s495 = scalar_lea.vmem %s4, %s494
      %p496 = pneg %p182
      %p497 = pneg %p179
      %p498 = pneg %p203
      %p499 = pneg %p200
      %p500 = pneg %p224
      %p501 = pneg %p221
      %p502 = pneg %p245
      %p503 = pneg %p242
      %p504 = pneg %p266
      %p505 = pneg %p263
      %p506 = pneg %p294
      %p507 = pneg %p291
      %s508 = smul.u32 8, %s28
      %p509 = scmp.lt.s32.totalorder %s27, 3
      %s510 = scalar_select %p509, %s27, 3
      %p511 = scmp.lt.s32.totalorder %s508, 7
      %s512 = scalar_select %p511, %s508, 7
      %s513 = smul.addr %s510, 8
      %s514 = sadd.s32 %s512, %s513
      %s515 = smul.addr %s514, 4
      %s516 = scalar_lea.vmem %s9, %s515
      %p517 = pneg %p320
      %p518 = pneg %p317
      %p519 = scmp.lt.s32.totalorder %s27, 3
      %s520 = scalar_select %p519, %s27, 3
      %s521 = smul.addr %s520, 2
      %s522 = scalar_lea.vmem %s10, %s521
      %p523 = pneg %p348
      %p524 = pneg %p345
      %s525 = smul.u32 8, %s28
      %p526 = scmp.lt.s32.totalorder %s27, 3
      %s527 = scalar_select %p526, %s27, 3
      %p528 = scmp.lt.s32.totalorder %s525, 7
      %s529 = scalar_select %p528, %s525, 7
      %s530 = smul.addr %s527, 8
      %s531 = sadd.s32 %s529, %s530
      %s532 = smul.addr %s531, 4
      %s533 = scalar_lea.vmem %s11, %s532
      %s534 = smul.u32 8, %s28
      %p535 = scmp.lt.s32.totalorder %s27, 3
      %s536 = scalar_select %p535, %s27, 3
      %p537 = scmp.lt.s32.totalorder %s534, 7
      %s538 = scalar_select %p537, %s534, 7
      %s539 = smul.addr %s536, 8
      %s540 = sadd.s32 %s538, %s539
      %s541 = smul.addr %s540, 8
      %s542 = scalar_lea.vmem %s0, %s541
      %s543 = smul.u32 8, %s28
      %s544 = smul.u32 %s28, 8
      %s545 = ssub.s32 %s544, 1
      %p546 = scmp.gt.s32.totalorder %s545, 0
      %s547 = scalar_select %p546, %s545, 0
      %p548 = scmp.lt.s32.totalorder %s27, 3
      %s549 = scalar_select %p548, %s27, 3
      %p550 = scmp.lt.s32.totalorder %s547, 7
      %s551 = scalar_select %p550, %s547, 7
      %s552 = smul.addr %s549, 8
      %s553 = sadd.s32 %s551, %s552
      %s554 = smul.addr %s553, 8
      %s555 = scalar_lea.vmem %s1, %s554
      %s556 = smul.u32 %s28, 8
      %s557 = ssub.s32 %s556, 1
      %p558 = scmp.gt.s32.totalorder %s557, 0
      %s559 = scalar_select %p558, %s557, 0
      %s560 = sadd.s32 %s28, 1
      %s561 = smul.u32 %s560, 8
      %p562 = scmp.lt.s32.totalorder %s561, 7
      %s563 = scalar_select %p562, %s561, 7
      %p564 = scmp.lt.s32.totalorder %s27, 3
      %s565 = scalar_select %p564, %s27, 3
      %p566 = scmp.lt.s32.totalorder %s563, 7
      %s567 = scalar_select %p566, %s563, 7
      %s568 = smul.addr %s565, 8
      %s569 = sadd.s32 %s567, %s568
      %s570 = smul.addr %s569, 8
      %s571 = scalar_lea.vmem %s2, %s570
      %s572 = sadd.s32 %s28, 1
      %s573 = smul.u32 %s572, 8
      %p574 = scmp.lt.s32.totalorder %s573, 7
      %s575 = scalar_select %p574, %s573, 7
      %p576 = scmp.lt.s32.totalorder %s27, 3
      %s577 = scalar_select %p576, %s27, 3
      %s578 = scalar_lea.vmem %s3, %s577
      %p579 = scmp.lt.s32.totalorder %s27, 3
      %s580 = scalar_select %p579, %s27, 3
      %s581 = scalar_lea.vmem %s4, %s580
      %s582 = smul.u32 8, %s28
      %p583 = scmp.lt.s32.totalorder %s27, 3
      %s584 = scalar_select %p583, %s27, 3
      %p585 = scmp.lt.s32.totalorder %s582, 7
      %s586 = scalar_select %p585, %s582, 7
      %s587 = smul.addr %s584, 8
      %s588 = sadd.s32 %s586, %s587
      %s589 = smul.addr %s588, 4
      %s590 = scalar_lea.vmem %s9, %s589
      %s591 = smul.u32 8, %s28
      %p592 = scmp.lt.s32.totalorder %s27, 3
      %s593 = scalar_select %p592, %s27, 3
      %s594 = smul.addr %s593, 2
      %s595 = scalar_lea.vmem %s10, %s594
      %s596 = smul.u32 8, %s28
      %p597 = scmp.lt.s32.totalorder %s27, 3
      %s598 = scalar_select %p597, %s27, 3
      %p599 = scmp.lt.s32.totalorder %s596, 7
      %s600 = scalar_select %p599, %s596, 7
      %s601 = smul.addr %s598, 8
      %s602 = sadd.s32 %s600, %s601
      %s603 = smul.addr %s602, 4
      %s604 = scalar_lea.vmem %s11, %s603
      %s605 = smul.u32 8, %s28
      %v607 = vld [vmem:[%s542] sm:$0xff]
      %v608 = vld [vmem:[%s542 + $0x8] sm:$0xff]
      %v609 = vld [vmem:[%s542 + $0x10] sm:$0xff]
      %v610 = vld [vmem:[%s542 + $0x18] sm:$0xff]
      %v611 = vld [vmem:[%s542 + $0x20] sm:$0xff]
      %v612 = vld [vmem:[%s542 + $0x28] sm:$0xff]
      %v613 = vld [vmem:[%s542 + $0x30] sm:$0xff]
      %v614 = vld [vmem:[%s542 + $0x38] sm:$0xff]
      %v615 = vld [vmem:[%s555] sm:$0xff]
      %v616 = vld [vmem:[%s571] sm:$0xff]
      %v617 = vld [vmem:[%s578] sm:$0x1]
      %v619 = vlaneseq
      %v620 = vshrl.u32 %v619, 7
      %v621 = vsub.s32 0, %v620
      %v622 = vrot.slane %v617, %v621
      %v624 = vmul.f32 %v615, %v622
      %v625 = vmul.f32 %v607, %v622
      %v626 = vmul.f32 %v608, %v622
      %v627 = vmul.f32 %v609, %v622
      %v628 = vmul.f32 %v610, %v622
      %v629 = vmul.f32 %v611, %v622
      %v630 = vmul.f32 %v612, %v622
      %v631 = vmul.f32 %v613, %v622
      %v632 = vmul.f32 %v614, %v622
      %v633 = vmul.f32 %v616, %v622
      %v634 = vld [vmem:[%s581] sm:$0x1]
      %v636 = vlaneseq
      %v637 = vshrl.u32 %v636, 7
      %v638 = vsub.s32 0, %v637
      %v639 = vrot.slane %v634, %v638
      %v641 = vadd.f32 %v624, %v639
      %v642 = vadd.f32 %v625, %v639
      %v643 = vadd.f32 %v626, %v639
      %v644 = vadd.f32 %v627, %v639
      %v645 = vadd.f32 %v628, %v639
      %v646 = vadd.f32 %v629, %v639
      %v647 = vadd.f32 %v630, %v639
      %v648 = vadd.f32 %v631, %v639
      %v649 = vadd.f32 %v632, %v639
      %v650 = vadd.f32 %v633, %v639
      %v651 = vxor.u32 %v641, 2147483648
      %v652 = vxor.u32 %v642, 2147483648
      %v653 = vxor.u32 %v643, 2147483648
      %v654 = vxor.u32 %v644, 2147483648
      %v655 = vxor.u32 %v645, 2147483648
      %v656 = vxor.u32 %v646, 2147483648
      %v657 = vxor.u32 %v647, 2147483648
      %v658 = vxor.u32 %v648, 2147483648
      %v659 = vxor.u32 %v649, 2147483648
      %v660 = vxor.u32 %v650, 2147483648
      %v661 = vmul.f32 %v651, 1.442695
      %v662 = vpow.pop %v661
      %v663 = vmul.f32 %v652, 1.442695
      %v664 = vpow.pop %v663
      %v665 = vmul.f32 %v653, 1.442695
      %v666 = vpow.pop %v665
      %v667 = vmul.f32 %v654, 1.442695
      %v668 = vpow.pop %v667
      %v669 = vmul.f32 %v655, 1.442695
      %v670 = vpow.pop %v669
      %v671 = vmul.f32 %v656, 1.442695
      %v672 = vpow.pop %v671
      %v673 = vmul.f32 %v657, 1.442695
      %v674 = vpow.pop %v673
      %v675 = vmul.f32 %v658, 1.442695
      %v676 = vpow.pop %v675
      %v677 = vmul.f32 %v659, 1.442695
      %v678 = vpow.pop %v677
      %v679 = vmul.f32 %v660, 1.442695
      %v680 = vpow.pop %v679
      %v681 = vadd.f32 %v662, 1.0
      %v682 = vadd.f32 %v664, 1.0
      %v683 = vadd.f32 %v666, 1.0
      %v684 = vadd.f32 %v668, 1.0
      %v685 = vadd.f32 %v670, 1.0
      %v686 = vadd.f32 %v672, 1.0
      %v687 = vadd.f32 %v674, 1.0
      %v688 = vadd.f32 %v676, 1.0
      %v689 = vadd.f32 %v678, 1.0
      %v690 = vadd.f32 %v680, 1.0
      %v691 = vrcp.pop %v681
      %v692 = vmul.f32 1.0, %v691
      %v693 = vrcp.pop %v682
      %v694 = vmul.f32 1.0, %v693
      %v695 = vrcp.pop %v683
      %v696 = vmul.f32 1.0, %v695
      %v697 = vrcp.pop %v684
      %v698 = vmul.f32 1.0, %v697
      %v699 = vrcp.pop %v685
      %v700 = vmul.f32 1.0, %v699
      %v701 = vrcp.pop %v686
      %v702 = vmul.f32 1.0, %v701
      %v703 = vrcp.pop %v687
      %v704 = vmul.f32 1.0, %v703
      %v705 = vrcp.pop %v688
      %v706 = vmul.f32 1.0, %v705
      %v707 = vrcp.pop %v689
      %v708 = vmul.f32 1.0, %v707
      %v709 = vrcp.pop %v690
      %v710 = vmul.f32 1.0, %v709
      %v711 = vmul.f32 %v641, %v692
      %v712 = vmul.f32 %v642, %v694
      %v713 = vmul.f32 %v643, %v696
      %v714 = vmul.f32 %v644, %v698
      %v715 = vmul.f32 %v645, %v700
      %v716 = vmul.f32 %v646, %v702
      %v717 = vmul.f32 %v647, %v704
      %v718 = vmul.f32 %v648, %v706
      %v719 = vmul.f32 %v649, %v708
      %v720 = vmul.f32 %v650, %v710
      %p721 = scmp.eq.s32.totalorder %s28, 0
      %s722 = scalar_select %p721, 1, 0
      %s723 = scalar_select %p721, 8, 9
      %v724 = vstv %s722
      %vm725 = vcmp.le.s32.totalorder %v724, 0
      %vm726 = vcmp.le.s32.totalorder %v724, 1
      %vm727 = vcmp.le.s32.totalorder %v724, 2
      %vm728 = vcmp.le.s32.totalorder %v724, 3
      %vm729 = vcmp.le.s32.totalorder %v724, 4
      %vm730 = vcmp.le.s32.totalorder %v724, 5
      %vm731 = vcmp.le.s32.totalorder %v724, 6
      %vm732 = vcmp.le.s32.totalorder %v724, 7
      %vm733 = vcmp.le.s32.totalorder %v724, 8
      %vm734 = vcmp.le.s32.totalorder %v724, 9
      %v735 = vstv %s723
      %vm736 = vcmp.ge.s32.totalorder %v735, 0
      %vm737 = vcmp.ge.s32.totalorder %v735, 1
      %vm738 = vcmp.ge.s32.totalorder %v735, 2
      %vm739 = vcmp.ge.s32.totalorder %v735, 3
      %vm740 = vcmp.ge.s32.totalorder %v735, 4
      %vm741 = vcmp.ge.s32.totalorder %v735, 5
      %vm742 = vcmp.ge.s32.totalorder %v735, 6
      %vm743 = vcmp.ge.s32.totalorder %v735, 7
      %vm744 = vcmp.ge.s32.totalorder %v735, 8
      %vm745 = vcmp.ge.s32.totalorder %v735, 9
      %vm746 = vmand %vm725, %vm736
      %vm747 = vmand %vm726, %vm737
      %vm748 = vmand %vm727, %vm738
      %vm749 = vmand %vm728, %vm739
      %vm750 = vmand %vm729, %vm740
      %vm751 = vmand %vm730, %vm741
      %vm752 = vmand %vm731, %vm742
      %vm753 = vmand %vm732, %vm743
      %vm754 = vmand %vm733, %vm744
      %vm755 = vmand %vm734, %vm745
      %v756 = vsel %vm746, 1, 0
      %v757 = vsel %vm747, 1, 0
      %v758 = vsel %vm748, 1, 0
      %v759 = vsel %vm749, 1, 0
      %v760 = vsel %vm750, 1, 0
      %v761 = vsel %vm751, 1, 0
      %v762 = vsel %vm752, 1, 0
      %v763 = vsel %vm753, 1, 0
      %v764 = vsel %vm754, 1, 0
      %v765 = vsel %vm755, 1, 0
      %vm766 = vcmp.eq.s32.totalorder %v756, 1
      %vm767 = vcmp.eq.s32.totalorder %v757, 1
      %vm768 = vcmp.eq.s32.totalorder %v758, 1
      %vm769 = vcmp.eq.s32.totalorder %v759, 1
      %vm770 = vcmp.eq.s32.totalorder %v760, 1
      %vm771 = vcmp.eq.s32.totalorder %v761, 1
      %vm772 = vcmp.eq.s32.totalorder %v762, 1
      %vm773 = vcmp.eq.s32.totalorder %v763, 1
      %vm774 = vcmp.eq.s32.totalorder %v764, 1
      %vm775 = vcmp.eq.s32.totalorder %v765, 1
      %v776 = vsel %vm766, %v711, 0.0
      %v777 = vsel %vm767, %v712, 0.0
      %v778 = vsel %vm768, %v713, 0.0
      %v779 = vsel %vm769, %v714, 0.0
      %v780 = vsel %vm770, %v715, 0.0
      %v781 = vsel %vm771, %v716, 0.0
      %v782 = vsel %vm772, %v717, 0.0
      %v783 = vsel %vm773, %v718, 0.0
      %v784 = vsel %vm774, %v719, 0.0
      %v785 = vsel %vm775, %v720, 0.0
      %v786 = vpack.c.bf16 %v776, %v776
      %v787 = vpack.c.bf16 %v777, %v777
      %v788 = vpack.c.bf16 %v778, %v778
      %v789 = vpack.c.bf16 %v779, %v779
      %v790 = vpack.c.bf16 %v780, %v780
      %v791 = vpack.c.bf16 %v781, %v781
      %v792 = vpack.c.bf16 %v782, %v782
      %v793 = vpack.c.bf16 %v783, %v783
      %v794 = vpack.c.bf16 %v784, %v784
      %v795 = vpack.c.bf16 %v785, %v785
      %v797 = vshrl.u32 %v786, 16
      %v799 = vrot.slane %v797, 7
      %v800 = vshll.u32 %v786, 16
      %v802 = vor.u32 %v799, %v800
      %v804 = vshrl.u32 %v787, 16
      %v806 = vrot.slane %v804, 7
      %v807 = vshll.u32 %v787, 16
      %v809 = vor.u32 %v806, %v807
      %v811 = vshrl.u32 %v788, 16
      %v813 = vrot.slane %v811, 7
      %v814 = vshll.u32 %v788, 16
      %v816 = vor.u32 %v813, %v814
      %v818 = vshrl.u32 %v789, 16
      %v820 = vrot.slane %v818, 7
      %v821 = vshll.u32 %v789, 16
      %v823 = vor.u32 %v820, %v821
      %v825 = vshrl.u32 %v790, 16
      %v827 = vrot.slane %v825, 7
      %v828 = vshll.u32 %v790, 16
      %v830 = vor.u32 %v827, %v828
      %v832 = vshrl.u32 %v791, 16
      %v834 = vrot.slane %v832, 7
      %v835 = vshll.u32 %v791, 16
      %v837 = vor.u32 %v834, %v835
      %v839 = vshrl.u32 %v792, 16
      %v841 = vrot.slane %v839, 7
      %v842 = vshll.u32 %v792, 16
      %v844 = vor.u32 %v841, %v842
      %v846 = vshrl.u32 %v793, 16
      %v848 = vrot.slane %v846, 7
      %v849 = vshll.u32 %v793, 16
      %v851 = vor.u32 %v848, %v849
      %v853 = vshrl.u32 %v794, 16
      %v855 = vrot.slane %v853, 7
      %v856 = vshll.u32 %v794, 16
      %v858 = vor.u32 %v855, %v856
      %v860 = vshrl.u32 %v795, 16
      %v862 = vrot.slane %v860, 7
      %v863 = vshll.u32 %v795, 16
      %v865 = vor.u32 %v862, %v863
      %vm876 = vcmask 1040384
      %vm877 = vsmask.f32 256
      %vm878 = vmand %vm876, %vm877
      %v879 = vsel %vm878, 0, %v802
      %v880 = vsel %vm878, 0, %v809
      %v881 = vsel %vm878, 0, %v816
      %v882 = vsel %vm878, 0, %v823
      %v883 = vsel %vm878, 0, %v830
      %v884 = vsel %vm878, 0, %v837
      %v885 = vsel %vm878, 0, %v844
      %v886 = vsel %vm878, 0, %v851
      %v887 = vsel %vm878, 0, %v858
      %v888 = vsel %vm878, 0, %v865
      %vm889 = vcmask 1044480
      %vm890 = vsmask.f32 4352
      %vm891 = vmand %vm889, %vm890
      %v892 = vsel %vm891, %v879, 0
      %v893 = vsel %vm891, %v880, 0
      %v894 = vsel %vm891, %v881, 0
      %v895 = vsel %vm891, %v882, 0
      %v896 = vsel %vm891, %v883, 0
      %v897 = vsel %vm891, %v884, 0
      %v898 = vsel %vm891, %v885, 0
      %v899 = vsel %vm891, %v886, 0
      %v900 = vsel %vm891, %v887, 0
      %v901 = vsel %vm891, %v888, 0
      %v903 = vshrl.u32 %v892, 16
      %v905 = vshll.u32 %v892, 16
      %v907 = vrot.slane %v905, 1
      %v908 = vor.u32 %v903, %v907
      %v910 = vshrl.u32 %v893, 16
      %v912 = vshll.u32 %v893, 16
      %v914 = vrot.slane %v912, 1
      %v915 = vor.u32 %v910, %v914
      %v917 = vshrl.u32 %v894, 16
      %v919 = vshll.u32 %v894, 16
      %v921 = vrot.slane %v919, 1
      %v922 = vor.u32 %v917, %v921
      %v924 = vshrl.u32 %v895, 16
      %v926 = vshll.u32 %v895, 16
      %v928 = vrot.slane %v926, 1
      %v929 = vor.u32 %v924, %v928
      %v931 = vshrl.u32 %v896, 16
      %v933 = vshll.u32 %v896, 16
      %v935 = vrot.slane %v933, 1
      %v936 = vor.u32 %v931, %v935
      %v938 = vshrl.u32 %v897, 16
      %v940 = vshll.u32 %v897, 16
      %v942 = vrot.slane %v940, 1
      %v943 = vor.u32 %v938, %v942
      %v945 = vshrl.u32 %v898, 16
      %v947 = vshll.u32 %v898, 16
      %v949 = vrot.slane %v947, 1
      %v950 = vor.u32 %v945, %v949
      %v952 = vshrl.u32 %v899, 16
      %v954 = vshll.u32 %v899, 16
      %v956 = vrot.slane %v954, 1
      %v957 = vor.u32 %v952, %v956
      %v959 = vshrl.u32 %v900, 16
      %v961 = vshll.u32 %v900, 16
      %v963 = vrot.slane %v961, 1
      %v964 = vor.u32 %v959, %v963
      %v966 = vshrl.u32 %v901, 16
      %v968 = vshll.u32 %v901, 16
      %v970 = vrot.slane %v968, 1
      %v971 = vor.u32 %v966, %v970
      %972 = vrot.lane.b32.xlu0 %v908, 64
      %v973 = vpop.permute.xlu0 %972
      %974 = vrot.lane.b32.xlu0 %v915, 64
      %v975 = vpop.permute.xlu0 %974
      %976 = vrot.lane.b32.xlu0 %v922, 64
      %v977 = vpop.permute.xlu0 %976
      %978 = vrot.lane.b32.xlu0 %v929, 64
      %v979 = vpop.permute.xlu0 %978
      %980 = vrot.lane.b32.xlu0 %v936, 64
      %v981 = vpop.permute.xlu0 %980
      %982 = vrot.lane.b32.xlu0 %v943, 64
      %v983 = vpop.permute.xlu0 %982
      %984 = vrot.lane.b32.xlu0 %v950, 64
      %v985 = vpop.permute.xlu0 %984
      %986 = vrot.lane.b32.xlu0 %v957, 64
      %v987 = vpop.permute.xlu0 %986
      %988 = vrot.lane.b32.xlu0 %v964, 64
      %v989 = vpop.permute.xlu0 %988
      %990 = vrot.lane.b32.xlu0 %v971, 64
      %v991 = vpop.permute.xlu0 %990
      %v1002 = vrot.slane %v892, 1
      %v1003 = vrot.slane %v893, 1
      %v1004 = vrot.slane %v894, 1
      %v1005 = vrot.slane %v895, 1
      %v1006 = vrot.slane %v896, 1
      %v1007 = vrot.slane %v897, 1
      %v1008 = vrot.slane %v898, 1
      %v1009 = vrot.slane %v899, 1
      %v1010 = vrot.slane %v900, 1
      %v1011 = vrot.slane %v901, 1
      %vm1012 = vcmask 523264
      %v1014 = vsel %vm1012, %v892, %v973
      %v1016 = vsel %vm1012, %v893, %v975
      %v1018 = vsel %vm1012, %v894, %v977
      %v1020 = vsel %vm1012, %v895, %v979
      %v1022 = vsel %vm1012, %v896, %v981
      %v1024 = vsel %vm1012, %v897, %v983
      %v1026 = vsel %vm1012, %v898, %v985
      %v1028 = vsel %vm1012, %v899, %v987
      %v1030 = vsel %vm1012, %v900, %v989
      %v1032 = vsel %vm1012, %v901, %v991
      %v1041 = vunpack.c.l.b16 %v1014
      %v1042 = vunpack.c.l.b16 %v1002
      %v1043 = vunpack.c.l.b16 %v1016
      %v1044 = vunpack.c.l.b16 %v1003
      %v1045 = vunpack.c.l.b16 %v1018
      %v1046 = vunpack.c.l.b16 %v1004
      %v1047 = vunpack.c.l.b16 %v1020
      %v1048 = vunpack.c.l.b16 %v1005
      %v1049 = vunpack.c.l.b16 %v1022
      %v1050 = vunpack.c.l.b16 %v1006
      %v1051 = vunpack.c.l.b16 %v1024
      %v1052 = vunpack.c.l.b16 %v1007
      %v1053 = vunpack.c.l.b16 %v1026
      %v1054 = vunpack.c.l.b16 %v1008
      %v1055 = vunpack.c.l.b16 %v1028
      %v1056 = vunpack.c.l.b16 %v1009
      %v1057 = vld [vmem:[%s5] sm:$0xf]
      %v1058 = vld [vmem:[%s5 + $0x4] sm:$0xf]
      %v1059 = vld [vmem:[%s5 + $0x8] sm:$0xf]
      %v1060 = vld [vmem:[%s5 + $0xc] sm:$0xf]
      %v1061 = vld [vmem:[%s5 + $0x10] sm:$0xf]
      %v1062 = vld [vmem:[%s5 + $0x14] sm:$0xf]
      %v1063 = vld [vmem:[%s5 + $0x18] sm:$0xf]
      %v1064 = vld [vmem:[%s5 + $0x1c] sm:$0xf]
      %v1065 = vld [vmem:[%s5 + $0x20] sm:$0xf]
      %v1066 = vld [vmem:[%s5 + $0x24] sm:$0xf]
      %v1067 = vld [vmem:[%s5 + $0x28] sm:$0xf]
      %v1068 = vld [vmem:[%s5 + $0x2c] sm:$0xf]
      %v1069 = vld [vmem:[%s5 + $0x30] sm:$0xf]
      %v1070 = vld [vmem:[%s5 + $0x34] sm:$0xf]
      %v1071 = vld [vmem:[%s5 + $0x38] sm:$0xf]
      %v1072 = vld [vmem:[%s5 + $0x3c] sm:$0xf]
      %v1073 = vld [vmem:[%s5 + $0x40] sm:$0xf]
      %v1074 = vld [vmem:[%s5 + $0x44] sm:$0xf]
      %v1075 = vld [vmem:[%s5 + $0x48] sm:$0xf]
      %v1076 = vld [vmem:[%s5 + $0x4c] sm:$0xf]
      %v1077 = vld [vmem:[%s5 + $0x50] sm:$0xf]
      %v1078 = vld [vmem:[%s5 + $0x54] sm:$0xf]
      %v1079 = vld [vmem:[%s5 + $0x58] sm:$0xf]
      %v1080 = vld [vmem:[%s5 + $0x5c] sm:$0xf]
      %v1082 = vunpack.c.l.b16 %v1030
      %v1083 = vunpack.c.l.b16 %v1010
      %s1084 = scalar_lea.vmem %s5, 96
      %v1085 = vld [vmem:[%s1084] sm:$0xf]
      %v1086 = vld [vmem:[%s1084 + $0x4] sm:$0xf]
      %v1087 = vld [vmem:[%s1084 + $0x8] sm:$0xf]
      %v1088 = vld [vmem:[%s1084 + $0xc] sm:$0xf]
      %v1089 = vld [vmem:[%s1084 + $0x10] sm:$0xf]
      %v1090 = vld [vmem:[%s1084 + $0x14] sm:$0xf]
      %v1091 = vld [vmem:[%s1084 + $0x18] sm:$0xf]
      %v1092 = vld [vmem:[%s1084 + $0x1c] sm:$0xf]
      %v1093 = vld [vmem:[%s1084 + $0x20] sm:$0xf]
      %v1094 = vld [vmem:[%s1084 + $0x24] sm:$0xf]
      %v1095 = vld [vmem:[%s1084 + $0x28] sm:$0xf]
      %v1096 = vld [vmem:[%s1084 + $0x2c] sm:$0xf]
      %v1097 = vld [vmem:[%s1084 + $0x30] sm:$0xf]
      %v1098 = vld [vmem:[%s1084 + $0x34] sm:$0xf]
      %v1099 = vld [vmem:[%s1084 + $0x38] sm:$0xf]
      %v1100 = vld [vmem:[%s1084 + $0x3c] sm:$0xf]
      %v1101 = vld [vmem:[%s1084 + $0x40] sm:$0xf]
      %v1102 = vld [vmem:[%s1084 + $0x44] sm:$0xf]
      %v1103 = vld [vmem:[%s1084 + $0x48] sm:$0xf]
      %v1104 = vld [vmem:[%s1084 + $0x4c] sm:$0xf]
      %v1105 = vld [vmem:[%s1084 + $0x50] sm:$0xf]
      %v1106 = vld [vmem:[%s1084 + $0x54] sm:$0xf]
      %v1107 = vld [vmem:[%s1084 + $0x58] sm:$0xf]
      %v1108 = vld [vmem:[%s1084 + $0x5c] sm:$0xf]
      %v1109 = vpack.c.b16 %v1045, %v1043
      %v1110 = vpack.c.b16 %v1046, %v1044
      %v1111 = vpack.c.b16 %v1049, %v1047
      %v1112 = vpack.c.b16 %v1050, %v1048
      %v1113 = vpack.c.b16 %v1053, %v1051
      %v1114 = vpack.c.b16 %v1054, %v1052
      %v1115 = vpack.c.b16 %v1082, %v1055
      %v1116 = vpack.c.b16 %v1083, %v1056
      %v1145 = vunpack.c.l.b16 %v1085
      %v1146 = vunpack.c.l.b16 %v1086
      %v1147 = vunpack.c.l.b16 %v1087
      %v1148 = vunpack.c.l.b16 %v1088
      %v1149 = vunpack.c.l.b16 %v1089
      %v1150 = vunpack.c.l.b16 %v1090
      %v1151 = vunpack.c.l.b16 %v1091
      %v1152 = vunpack.c.l.b16 %v1092
      %v1153 = vunpack.c.l.b16 %v1093
      %v1154 = vunpack.c.l.b16 %v1094
      %v1155 = vunpack.c.l.b16 %v1095
      %v1156 = vunpack.c.l.b16 %v1096
      %v1157 = vunpack.c.l.b16 %v1097
      %v1158 = vunpack.c.l.b16 %v1098
      %v1159 = vunpack.c.l.b16 %v1099
      %v1160 = vunpack.c.l.b16 %v1100
      %v1161 = vunpack.c.l.b16 %v1101
      %v1162 = vunpack.c.l.b16 %v1102
      %v1163 = vunpack.c.l.b16 %v1103
      %v1164 = vunpack.c.l.b16 %v1104
      %v1165 = vunpack.c.l.b16 %v1105
      %v1166 = vunpack.c.l.b16 %v1106
      %v1167 = vunpack.c.l.b16 %v1107
      %v1168 = vunpack.c.l.b16 %v1108
      %v1169 = vpack.c.b16 %v1146, %v1145
      %v1170 = vpack.c.b16 %v1148, %v1147
      %v1171 = vpack.c.b16 %v1150, %v1149
      %v1172 = vpack.c.b16 %v1152, %v1151
      %v1173 = vpack.c.b16 %v1154, %v1153
      %v1174 = vpack.c.b16 %v1156, %v1155
      %v1175 = vpack.c.b16 %v1158, %v1157
      %v1176 = vpack.c.b16 %v1160, %v1159
      %v1177 = vpack.c.b16 %v1162, %v1161
      %v1178 = vpack.c.b16 %v1164, %v1163
      %v1179 = vpack.c.b16 %v1166, %v1165
      %v1180 = vpack.c.b16 %v1168, %v1167
      %v1194 = vsel %vm1012, %v1110, 0
      %v1197 = vsel %vm1012, %v1112, 0
      %v1200 = vsel %vm1012, %v1114, 0
      %v1203 = vsel %vm1012, %v1116, 0
      %1205 = vmatprep.subr.bf16.mxu0 0
      %1206 = vmatpush1.bf16.msra.mxu0 %v1169
      %1207 = vmatprep.subr.bf16.mxu0 0
      %1208 = vmatpush1.bf16.msra.mxu0 %v1170
      %1209 = vmatprep.subr.bf16.mxu0 0
      %1210 = vmatpush1.bf16.msra.mxu0 %v1171
      %1211 = vmatprep.subr.bf16.mxu0 0
      %1212 = vmatpush1.bf16.msra.mxu0 %v1172
      %1213 = vmatprep.subr.bf16.mxu0 0
      %1214 = vmatpush1.bf16.msra.mxu0 %v1173
      %1215 = vmatprep.subr.bf16.mxu0 0
      %1216 = vmatpush1.bf16.msra.mxu0 %v1174
      %1217 = vmatprep.subr.bf16.mxu0 0
      %1218 = vmatpush1.bf16.msra.mxu0 %v1175
      %1219 = vmatprep.subr.bf16.mxu0 0
      %1220 = vmatpush1.bf16.msra.mxu0 %v1176
      %1221 = vmatprep.subr.bf16.mxu0 0
      %1222 = vmatpush1.bf16.msra.mxu0 %v1177
      %1223 = vmatprep.subr.bf16.mxu0 0
      %1224 = vmatpush1.bf16.msra.mxu0 %v1178
      %1225 = vmatprep.subr.bf16.mxu0 0
      %1226 = vmatpush1.bf16.msra.mxu0 %v1179
      %1227 = vmatprep.subr.bf16.mxu0 0
      %1228 = vmatpush1.bf16.msra.mxu0 %v1180
      %1229 = vmatprep.subr.bf16.mxu0 0
      %1230 = vmatpush1.bf16.msra.mxu0 0
      %1231 = vmatprep.subr.bf16.mxu0 0
      %1232 = vmatpush1.bf16.msra.mxu0 0
      %1233 = vmatprep.subr.bf16.mxu0 0
      %1234 = vmatpush1.bf16.msra.mxu0 0
      %1235 = vmatprep.subr.bf16.mxu0 0
      %1236 = vmatpush1.bf16.msra.mxu0 0
      %1237 = vmatprep.mubr.bf16.mxu0 %v1194
      %1238 = vmatmul.mubr.bf16.gmra.mrb[0].mxu0 %v1109
      %v1239 = vpop.f32.mrb[0].mxu0
      %v1240 = vadd.f32 0.0, %v1239
      %v1241 = vpop.f32.mrb[0].mxu0
      %v1242 = vpop.f32.mrb[0].mxu0
      %v1243 = vadd.f32 0.0, %v1242
      %v1244 = vpop.f32.mrb[0].mxu0
      %1245 = vmatprep.mubr.bf16.mxu0 %v1197
      %1246 = vmatmul.mubr.bf16.gmra.mrb[0].mxu0 %v1111
      %v1247 = vpop.f32.mrb[0].mxu0
      %v1248 = vadd.f32 0.0, %v1247
      %v1249 = vpop.f32.mrb[0].mxu0
      %v1250 = vpop.f32.mrb[0].mxu0
      %v1251 = vadd.f32 0.0, %v1250
      %v1252 = vpop.f32.mrb[0].mxu0
      %1253 = vmatprep.mubr.bf16.mxu0 %v1200
      %1254 = vmatmul.mubr.bf16.gmra.mrb[0].mxu0 %v1113
      %v1255 = vpop.f32.mrb[0].mxu0
      %v1256 = vadd.f32 0.0, %v1255
      %v1257 = vpop.f32.mrb[0].mxu0
      %v1258 = vpop.f32.mrb[0].mxu0
      %v1259 = vadd.f32 0.0, %v1258
      %v1260 = vpop.f32.mrb[0].mxu0
      %1261 = vmatprep.mubr.bf16.mxu0 %v1203
      %1262 = vmatmul.mubr.bf16.gmra.mrb[0].mxu0 %v1115
      %v1263 = vpop.f32.mrb[0].mxu0
      %v1264 = vadd.f32 0.0, %v1263
      %v1265 = vpop.f32.mrb[0].mxu0
      %v1266 = vpop.f32.mrb[0].mxu0
      %v1267 = vadd.f32 0.0, %v1266
      %v1268 = vpop.f32.mrb[0].mxu0
      %1269 = vdwg.mxu0
      %v1270 = vpack.c.b16 %v1043, %v1041
      %v1271 = vpack.c.b16 %v1044, %v1042
      %v1272 = vpack.c.b16 %v1047, %v1045
      %v1273 = vpack.c.b16 %v1048, %v1046
      %v1274 = vpack.c.b16 %v1051, %v1049
      %v1275 = vpack.c.b16 %v1052, %v1050
      %v1276 = vpack.c.b16 %v1055, %v1053
      %v1277 = vpack.c.b16 %v1056, %v1054
      %v1306 = vunpack.c.l.b16 %v1057
      %v1307 = vunpack.c.l.b16 %v1058
      %v1308 = vunpack.c.l.b16 %v1059
      %v1309 = vunpack.c.l.b16 %v1060
      %v1310 = vunpack.c.l.b16 %v1061
      %v1311 = vunpack.c.l.b16 %v1062
      %v1312 = vunpack.c.l.b16 %v1063
      %v1313 = vunpack.c.l.b16 %v1064
      %v1314 = vunpack.c.l.b16 %v1065
      %v1315 = vunpack.c.l.b16 %v1066
      %v1316 = vunpack.c.l.b16 %v1067
      %v1317 = vunpack.c.l.b16 %v1068
      %v1318 = vunpack.c.l.b16 %v1069
      %v1319 = vunpack.c.l.b16 %v1070
      %v1320 = vunpack.c.l.b16 %v1071
      %v1321 = vunpack.c.l.b16 %v1072
      %v1322 = vunpack.c.l.b16 %v1073
      %v1323 = vunpack.c.l.b16 %v1074
      %v1324 = vunpack.c.l.b16 %v1075
      %v1325 = vunpack.c.l.b16 %v1076
      %v1326 = vunpack.c.l.b16 %v1077
      %v1327 = vunpack.c.l.b16 %v1078
      %v1328 = vunpack.c.l.b16 %v1079
      %v1329 = vunpack.c.l.b16 %v1080
      %v1330 = vpack.c.b16 %v1307, %v1306
      %v1331 = vpack.c.b16 %v1309, %v1308
      %v1332 = vpack.c.b16 %v1311, %v1310
      %v1333 = vpack.c.b16 %v1313, %v1312
      %v1334 = vpack.c.b16 %v1315, %v1314
      %v1335 = vpack.c.b16 %v1317, %v1316
      %v1336 = vpack.c.b16 %v1319, %v1318
      %v1337 = vpack.c.b16 %v1321, %v1320
      %v1338 = vpack.c.b16 %v1323, %v1322
      %v1339 = vpack.c.b16 %v1325, %v1324
      %v1340 = vpack.c.b16 %v1327, %v1326
      %v1341 = vpack.c.b16 %v1329, %v1328
      %v1355 = vsel %vm1012, %v1271, 0
      %v1358 = vsel %vm1012, %v1273, 0
      %v1361 = vsel %vm1012, %v1275, 0
      %v1364 = vsel %vm1012, %v1277, 0
      %1366 = vmatprep.subr.bf16.mxu0 0
      %1367 = vmatpush1.bf16.msra.mxu0 %v1330
      %1368 = vmatprep.subr.bf16.mxu0 0
      %1369 = vmatpush1.bf16.msra.mxu0 %v1331
      %1370 = vmatprep.subr.bf16.mxu0 0
      %1371 = vmatpush1.bf16.msra.mxu0 %v1332
      %1372 = vmatprep.subr.bf16.mxu0 0
      %1373 = vmatpush1.bf16.msra.mxu0 %v1333
      %1374 = vmatprep.subr.bf16.mxu0 0
      %1375 = vmatpush1.bf16.msra.mxu0 %v1334
      %1376 = vmatprep.subr.bf16.mxu0 0
      %1377 = vmatpush1.bf16.msra.mxu0 %v1335
      %1378 = vmatprep.subr.bf16.mxu0 0
      %1379 = vmatpush1.bf16.msra.mxu0 %v1336
      %1380 = vmatprep.subr.bf16.mxu0 0
      %1381 = vmatpush1.bf16.msra.mxu0 %v1337
      %1382 = vmatprep.subr.bf16.mxu0 0
      %1383 = vmatpush1.bf16.msra.mxu0 %v1338
      %1384 = vmatprep.subr.bf16.mxu0 0
      %1385 = vmatpush1.bf16.msra.mxu0 %v1339
      %1386 = vmatprep.subr.bf16.mxu0 0
      %1387 = vmatpush1.bf16.msra.mxu0 %v1340
      %1388 = vmatprep.subr.bf16.mxu0 0
      %1389 = vmatpush1.bf16.msra.mxu0 %v1341
      %1390 = vmatprep.subr.bf16.mxu0 0
      %1391 = vmatpush1.bf16.msra.mxu0 0
      %1392 = vmatprep.subr.bf16.mxu0 0
      %1393 = vmatpush1.bf16.msra.mxu0 0
      %1394 = vmatprep.subr.bf16.mxu0 0
      %1395 = vmatpush1.bf16.msra.mxu0 0
      %1396 = vmatprep.subr.bf16.mxu0 0
      %1397 = vmatpush1.bf16.msra.mxu0 0
      %1398 = vmatprep.mubr.bf16.mxu0 %v1355
      %1399 = vmatmul.mubr.bf16.gmra.mrb[0].mxu0 %v1270
      %v1400 = vpop.f32.mrb[0].mxu0
      %v1401 = vadd.f32 %v1240, %v1400
      %v1402 = vpop.f32.mrb[0].mxu0
      %v1403 = vpop.f32.mrb[0].mxu0
      %v1404 = vadd.f32 %v1243, %v1403
      %v1405 = vpop.f32.mrb[0].mxu0
      %1406 = vmatprep.mubr.bf16.mxu0 %v1358
      %1407 = vmatmul.mubr.bf16.gmra.mrb[0].mxu0 %v1272
      %v1408 = vpop.f32.mrb[0].mxu0
      %v1409 = vadd.f32 %v1248, %v1408
      %v1410 = vpop.f32.mrb[0].mxu0
      %v1411 = vpop.f32.mrb[0].mxu0
      %v1412 = vadd.f32 %v1251, %v1411
      %v1413 = vpop.f32.mrb[0].mxu0
      %1414 = vmatprep.mubr.bf16.mxu0 %v1361
      %1415 = vmatmul.mubr.bf16.gmra.mrb[0].mxu0 %v1274
      %v1416 = vpop.f32.mrb[0].mxu0
      %v1417 = vadd.f32 %v1256, %v1416
      %v1418 = vpop.f32.mrb[0].mxu0
      %v1419 = vpop.f32.mrb[0].mxu0
      %v1420 = vadd.f32 %v1259, %v1419
      %v1421 = vpop.f32.mrb[0].mxu0
      %1422 = vmatprep.mubr.bf16.mxu0 %v1364
      %1423 = vmatmul.mubr.bf16.gmra.mrb[0].mxu0 %v1276
      %v1424 = vpop.f32.mrb[0].mxu0
      %v1425 = vadd.f32 %v1264, %v1424
      %v1426 = vpop.f32.mrb[0].mxu0
      %v1427 = vpop.f32.mrb[0].mxu0
      %v1428 = vadd.f32 %v1267, %v1427
      %v1429 = vpop.f32.mrb[0].mxu0
      %1430 = vdwg.mxu0
      %v1432 = vunpack.c.l.b16 %v1032
      %v1433 = vunpack.c.l.b16 %v1011
      %s1434 = scalar_lea.vmem %s5, 192
      %v1435 = vld [vmem:[%s1434] sm:$0xf]
      %v1436 = vld [vmem:[%s1434 + $0x4] sm:$0xf]
      %v1437 = vld [vmem:[%s1434 + $0x8] sm:$0xf]
      %v1438 = vld [vmem:[%s1434 + $0xc] sm:$0xf]
      %v1439 = vld [vmem:[%s1434 + $0x10] sm:$0xf]
      %v1440 = vld [vmem:[%s1434 + $0x14] sm:$0xf]
      %v1441 = vld [vmem:[%s1434 + $0x18] sm:$0xf]
      %v1442 = vld [vmem:[%s1434 + $0x1c] sm:$0xf]
      %v1443 = vld [vmem:[%s1434 + $0x20] sm:$0xf]
      %v1444 = vld [vmem:[%s1434 + $0x24] sm:$0xf]
      %v1445 = vld [vmem:[%s1434 + $0x28] sm:$0xf]
      %v1446 = vld [vmem:[%s1434 + $0x2c] sm:$0xf]
      %v1447 = vld [vmem:[%s1434 + $0x30] sm:$0xf]
      %v1448 = vld [vmem:[%s1434 + $0x34] sm:$0xf]
      %v1449 = vld [vmem:[%s1434 + $0x38] sm:$0xf]
      %v1450 = vld [vmem:[%s1434 + $0x3c] sm:$0xf]
      %v1451 = vld [vmem:[%s1434 + $0x40] sm:$0xf]
      %v1452 = vld [vmem:[%s1434 + $0x44] sm:$0xf]
      %v1453 = vld [vmem:[%s1434 + $0x48] sm:$0xf]
      %v1454 = vld [vmem:[%s1434 + $0x4c] sm:$0xf]
      %v1455 = vld [vmem:[%s1434 + $0x50] sm:$0xf]
      %v1456 = vld [vmem:[%s1434 + $0x54] sm:$0xf]
      %v1457 = vld [vmem:[%s1434 + $0x58] sm:$0xf]
      %v1458 = vld [vmem:[%s1434 + $0x5c] sm:$0xf]
      %v1459 = vpack.c.b16 %v1432, %v1082
      %v1460 = vpack.c.b16 %v1433, %v1083
      %v1486 = vunpack.c.l.b16 %v1435
      %v1487 = vunpack.c.l.b16 %v1436
      %v1488 = vunpack.c.l.b16 %v1437
      %v1489 = vunpack.c.l.b16 %v1438
      %v1490 = vunpack.c.l.b16 %v1439
      %v1491 = vunpack.c.l.b16 %v1440
      %v1492 = vunpack.c.l.b16 %v1441
      %v1493 = vunpack.c.l.b16 %v1442
      %v1494 = vunpack.c.l.b16 %v1443
      %v1495 = vunpack.c.l.b16 %v1444
      %v1496 = vunpack.c.l.b16 %v1445
      %v1497 = vunpack.c.l.b16 %v1446
      %v1498 = vunpack.c.l.b16 %v1447
      %v1499 = vunpack.c.l.b16 %v1448
      %v1500 = vunpack.c.l.b16 %v1449
      %v1501 = vunpack.c.l.b16 %v1450
      %v1502 = vunpack.c.l.b16 %v1451
      %v1503 = vunpack.c.l.b16 %v1452
      %v1504 = vunpack.c.l.b16 %v1453
      %v1505 = vunpack.c.l.b16 %v1454
      %v1506 = vunpack.c.l.b16 %v1455
      %v1507 = vunpack.c.l.b16 %v1456
      %v1508 = vunpack.c.l.b16 %v1457
      %v1509 = vunpack.c.l.b16 %v1458
      %v1510 = vpack.c.b16 %v1487, %v1486
      %v1511 = vpack.c.b16 %v1489, %v1488
      %v1512 = vpack.c.b16 %v1491, %v1490
      %v1513 = vpack.c.b16 %v1493, %v1492
      %v1514 = vpack.c.b16 %v1495, %v1494
      %v1515 = vpack.c.b16 %v1497, %v1496
      %v1516 = vpack.c.b16 %v1499, %v1498
      %v1517 = vpack.c.b16 %v1501, %v1500
      %v1518 = vpack.c.b16 %v1503, %v1502
      %v1519 = vpack.c.b16 %v1505, %v1504
      %v1520 = vpack.c.b16 %v1507, %v1506
      %v1521 = vpack.c.b16 %v1509, %v1508
      %v1535 = vsel %vm1012, %v1460, 0
      %1537 = vmatprep.subr.bf16.mxu0 0
      %1538 = vmatpush1.bf16.msra.mxu0 %v1510
      %1539 = vmatprep.subr.bf16.mxu0 0
      %1540 = vmatpush1.bf16.msra.mxu0 %v1511
      %1541 = vmatprep.subr.bf16.mxu0 0
      %1542 = vmatpush1.bf16.msra.mxu0 %v1512
      %1543 = vmatprep.subr.bf16.mxu0 0
      %1544 = vmatpush1.bf16.msra.mxu0 %v1513
      %1545 = vmatprep.subr.bf16.mxu0 0
      %1546 = vmatpush1.bf16.msra.mxu0 %v1514
      %1547 = vmatprep.subr.bf16.mxu0 0
      %1548 = vmatpush1.bf16.msra.mxu0 %v1515
      %1549 = vmatprep.subr.bf16.mxu0 0
      %1550 = vmatpush1.bf16.msra.mxu0 %v1516
      %1551 = vmatprep.subr.bf16.mxu0 0
      %1552 = vmatpush1.bf16.msra.mxu0 %v1517
      %1553 = vmatprep.subr.bf16.mxu0 0
      %1554 = vmatpush1.bf16.msra.mxu0 %v1518
      %1555 = vmatprep.subr.bf16.mxu0 0
      %1556 = vmatpush1.bf16.msra.mxu0 %v1519
      %1557 = vmatprep.subr.bf16.mxu0 0
      %1558 = vmatpush1.bf16.msra.mxu0 %v1520
      %1559 = vmatprep.subr.bf16.mxu0 0
      %1560 = vmatpush1.bf16.msra.mxu0 %v1521
      %1561 = vmatprep.subr.bf16.mxu0 0
      %1562 = vmatpush1.bf16.msra.mxu0 0
      %1563 = vmatprep.subr.bf16.mxu0 0
      %1564 = vmatpush1.bf16.msra.mxu0 0
      %1565 = vmatprep.subr.bf16.mxu0 0
      %1566 = vmatpush1.bf16.msra.mxu0 0
      %1567 = vmatprep.subr.bf16.mxu0 0
      %1568 = vmatpush1.bf16.msra.mxu0 0
      %1569 = vmatprep.mubr.bf16.mxu0 %v1358
      %1570 = vmatmul.mubr.bf16.gmra.mrb[0].mxu0 %v1272
      %v1571 = vpop.f32.mrb[0].mxu0
      %v1572 = vadd.f32 0.0, %v1571
      %v1573 = vpop.f32.mrb[0].mxu0
      %v1574 = vpop.f32.mrb[0].mxu0
      %v1575 = vadd.f32 0.0, %v1574
      %v1576 = vpop.f32.mrb[0].mxu0
      %1577 = vmatprep.mubr.bf16.mxu0 %v1361
      %1578 = vmatmul.mubr.bf16.gmra.mrb[0].mxu0 %v1274
      %v1579 = vpop.f32.mrb[0].mxu0
      %v1580 = vadd.f32 0.0, %v1579
      %v1581 = vpop.f32.mrb[0].mxu0
      %v1582 = vpop.f32.mrb[0].mxu0
      %v1583 = vadd.f32 0.0, %v1582
      %v1584 = vpop.f32.mrb[0].mxu0
      %1585 = vmatprep.mubr.bf16.mxu0 %v1364
      %1586 = vmatmul.mubr.bf16.gmra.mrb[0].mxu0 %v1276
      %v1587 = vpop.f32.mrb[0].mxu0
      %v1588 = vadd.f32 0.0, %v1587
      %v1589 = vpop.f32.mrb[0].mxu0
      %v1590 = vpop.f32.mrb[0].mxu0
      %v1591 = vadd.f32 0.0, %v1590
      %v1592 = vpop.f32.mrb[0].mxu0
      %1593 = vmatprep.mubr.bf16.mxu0 %v1535
      %1594 = vmatmul.mubr.bf16.gmra.mrb[0].mxu0 %v1459
      %v1595 = vpop.f32.mrb[0].mxu0
      %v1596 = vadd.f32 0.0, %v1595
      %v1597 = vpop.f32.mrb[0].mxu0
      %v1598 = vpop.f32.mrb[0].mxu0
      %v1599 = vadd.f32 0.0, %v1598
      %v1600 = vpop.f32.mrb[0].mxu0
      %1601 = vdwg.mxu0
      %v1602 = vadd.f32 %v1401, %v1572
      %v1603 = vadd.f32 %v1404, %v1575
      %v1604 = vadd.f32 %v1409, %v1580
      %v1605 = vadd.f32 %v1412, %v1583
      %v1606 = vadd.f32 %v1417, %v1588
      %v1607 = vadd.f32 %v1420, %v1591
      %v1608 = vadd.f32 %v1425, %v1596
      %v1609 = vadd.f32 %v1428, %v1599
      %v1610 = vld [vmem:[%s6] sm:$0x1]
      %v1612 = vlaneseq
      %v1613 = vshrl.u32 %v1612, 7
      %v1614 = vsub.s32 0, %v1613
      %v1615 = vrot.slane %v1610, %v1614
      %v1617 = vadd.f32 %v1602, %v1615
      %v1618 = vadd.f32 %v1603, %v1615
      %v1619 = vadd.f32 %v1604, %v1615
      %v1620 = vadd.f32 %v1605, %v1615
      %v1621 = vadd.f32 %v1606, %v1615
      %v1622 = vadd.f32 %v1607, %v1615
      %v1623 = vadd.f32 %v1608, %v1615
      %v1624 = vadd.f32 %v1609, %v1615
      %v1625 = vpack.c.bf16 %v1617, %v1617
      %v1626 = vpack.c.bf16 %v1618, %v1618
      %v1627 = vpack.c.bf16 %v1619, %v1619
      %v1628 = vpack.c.bf16 %v1620, %v1620
      %v1629 = vpack.c.bf16 %v1621, %v1621
      %v1630 = vpack.c.bf16 %v1622, %v1622
      %v1631 = vpack.c.bf16 %v1623, %v1623
      %v1632 = vpack.c.bf16 %v1624, %v1624
      %vm1633 = vcmask 257024
      %1634 = vst.msk [vmem:[%s590] sm:$0xf] %vm1633, %v1625
      %1635 = vst.msk [vmem:[%s590 + $0x4] sm:$0xf] %vm1633, %v1626
      %1636 = vst.msk [vmem:[%s590 + $0x8] sm:$0xf] %vm1633, %v1627
      %1637 = vst.msk [vmem:[%s590 + $0xc] sm:$0xf] %vm1633, %v1628
      %1638 = vst.msk [vmem:[%s590 + $0x10] sm:$0xf] %vm1633, %v1629
      %1639 = vst.msk [vmem:[%s590 + $0x14] sm:$0xf] %vm1633, %v1630
      %1640 = vst.msk [vmem:[%s590 + $0x18] sm:$0xf] %vm1633, %v1631
      %1641 = vst.msk [vmem:[%s590 + $0x1c] sm:$0xf] %vm1633, %v1632
      // Predicated region
      $region57: #{up_decoder_block_3d.9} parent=55 // pred_check
        %p1642 = pneg %p721
      $region58: #{up_decoder_block_3d.9} parent=55 // pred_check_branch
        %1644 = sbr.rel (%p1642) target = $region60
      $region59: #{up_decoder_block_3d.9} parent=55 // pred_region
        %vm1645 = vcmask 254976
        %1646 = vst.msk [vmem:[%s595] sm:$0x3] %vm1645, 0.0
      $region60: #{up_decoder_block_3d.9} parent=55 // pred_fallthru
        _
      %vm1647 = vcmask 261120
      %v1648 = vsel %vm1647, %v1617, 0.0
      %v1649 = vsel %vm1647, %v1618, 0.0
      %v1650 = vadd.f32 %v1648, %v1649
      %v1651 = vsel %vm1647, %v1619, 0.0
      %v1652 = vadd.f32 %v1650, %v1651
      %v1653 = vsel %vm1647, %v1620, 0.0
      %v1654 = vadd.f32 %v1652, %v1653
      %v1655 = vsel %vm1647, %v1621, 0.0
      %v1656 = vadd.f32 %v1654, %v1655
      %v1657 = vsel %vm1647, %v1622, 0.0
      %v1658 = vadd.f32 %v1656, %v1657
      %v1659 = vsel %vm1647, %v1623, 0.0
      %v1660 = vadd.f32 %v1658, %v1659
      %v1661 = vsel %vm1647, %v1624, 0.0
      %v1662 = vadd.f32 %v1660, %v1661
      %v1663 = vrot.slane %v1662, 4
      %v1664 = vadd.f32 %v1662, %v1663
      %v1665 = vrot.slane %v1664, 2
      %v1666 = vadd.f32 %v1664, %v1665
      %v1667 = vrot.slane %v1666, 1
      %v1668 = vadd.f32 %v1666, %v1667
      %v1669 = vmul.f32 %v1617, %v1617
      %v1670 = vmul.f32 %v1618, %v1618
      %v1671 = vmul.f32 %v1619, %v1619
      %v1672 = vmul.f32 %v1620, %v1620
      %v1673 = vmul.f32 %v1621, %v1621
      %v1674 = vmul.f32 %v1622, %v1622
      %v1675 = vmul.f32 %v1623, %v1623
      %v1676 = vmul.f32 %v1624, %v1624
      %v1677 = vsel %vm1647, %v1669, 0.0
      %v1678 = vsel %vm1647, %v1670, 0.0
      %v1679 = vadd.f32 %v1677, %v1678
      %v1680 = vsel %vm1647, %v1671, 0.0
      %v1681 = vadd.f32 %v1679, %v1680
      %v1682 = vsel %vm1647, %v1672, 0.0
      %v1683 = vadd.f32 %v1681, %v1682
      %v1684 = vsel %vm1647, %v1673, 0.0
      %v1685 = vadd.f32 %v1683, %v1684
      %v1686 = vsel %vm1647, %v1674, 0.0
      %v1687 = vadd.f32 %v1685, %v1686
      %v1688 = vsel %vm1647, %v1675, 0.0
      %v1689 = vadd.f32 %v1687, %v1688
      %v1690 = vsel %vm1647, %v1676, 0.0
      %v1691 = vadd.f32 %v1689, %v1690
      %v1692 = vrot.slane %v1691, 4
      %v1693 = vadd.f32 %v1691, %v1692
      %v1694 = vrot.slane %v1693, 2
      %v1695 = vadd.f32 %v1693, %v1694
      %v1696 = vrot.slane %v1695, 1
      %v1697 = vadd.f32 %v1695, %v1696
      %v1698 = vld [vmem:[%s595] sm:$0x3]
      %vm1699 = vcmask 1040384
      %v1700 = vsel %vm1699, %v1668, %v1697
      %v1701 = vadd.f32 %v1698, %v1700
      %vm1702 = vcmask 254976
      %1703 = vst.msk [vmem:[%s595] sm:$0x3] %vm1702, %v1701
      %v1704 = vpack.c.bf16 %v607, %v607
      %v1705 = vpack.c.bf16 %v608, %v608
      %v1706 = vpack.c.bf16 %v609, %v609
      %v1707 = vpack.c.bf16 %v610, %v610
      %v1708 = vpack.c.bf16 %v611, %v611
      %v1709 = vpack.c.bf16 %v612, %v612
      %v1710 = vpack.c.bf16 %v613, %v613
      %v1711 = vpack.c.bf16 %v614, %v614
      %v1712 = vld [vmem:[%s7] sm:$0xf]
      %v1713 = vld [vmem:[%s7 + $0x4] sm:$0xf]
      %v1714 = vld [vmem:[%s7 + $0x8] sm:$0xf]
      %v1715 = vld [vmem:[%s7 + $0xc] sm:$0xf]
      %v1716 = vld [vmem:[%s7 + $0x10] sm:$0xf]
      %v1717 = vld [vmem:[%s7 + $0x14] sm:$0xf]
      %v1718 = vld [vmem:[%s7 + $0x18] sm:$0xf]
      %v1719 = vld [vmem:[%s7 + $0x1c] sm:$0xf]
      %v1720 = vld [vmem:[%s8] sm:$0x1]
      %v1722 = vlaneseq
      %v1723 = vshrl.u32 %v1722, 7
      %v1724 = vsub.s32 0, %v1723
      %v1725 = vrot.slane %v1720, %v1724
      %v1735 = vunpack.c.l.b16 %v1704
      %v1736 = vunpack.c.l.b16 %v1705
      %v1737 = vunpack.c.l.b16 %v1706
      %v1738 = vunpack.c.l.b16 %v1707
      %v1739 = vunpack.c.l.b16 %v1708
      %v1740 = vunpack.c.l.b16 %v1709
      %v1741 = vunpack.c.l.b16 %v1710
      %v1742 = vunpack.c.l.b16 %v1711
      %v1743 = vpack.c.b16 %v1736, %v1735
      %v1744 = vpack.c.b16 %v1738, %v1737
      %v1745 = vpack.c.b16 %v1740, %v1739
      %v1746 = vpack.c.b16 %v1742, %v1741
      %v1755 = vunpack.c.l.b16 %v1712
      %v1756 = vunpack.c.l.b16 %v1713
      %v1757 = vunpack.c.l.b16 %v1714
      %v1758 = vunpack.c.l.b16 %v1715
      %v1759 = vunpack.c.l.b16 %v1716
      %v1760 = vunpack.c.l.b16 %v1717
      %v1761 = vunpack.c.l.b16 %v1718
      %v1762 = vunpack.c.l.b16 %v1719
      %v1763 = vpack.c.b16 %v1756, %v1755
      %v1764 = vpack.c.b16 %v1758, %v1757
      %v1765 = vpack.c.b16 %v1760, %v1759
      %v1766 = vpack.c.b16 %v1762, %v1761
      %v1772 = vsel %vm1012, %v1743, 0
      %v1775 = vsel %vm1012, %v1744, 0
      %v1778 = vsel %vm1012, %v1745, 0
      %v1781 = vsel %vm1012, %v1746, 0
      %1783 = vmatprep.subr.bf16.mxu0 0
      %1784 = vmatpush1.bf16.msra.mxu0 %v1763
      %1785 = vmatprep.subr.bf16.mxu0 0
      %1786 = vmatpush1.bf16.msra.mxu0 %v1764
      %1787 = vmatprep.subr.bf16.mxu0 0
      %1788 = vmatpush1.bf16.msra.mxu0 %v1765
      %1789 = vmatprep.subr.bf16.mxu0 0
      %1790 = vmatpush1.bf16.msra.mxu0 %v1766
      %1791 = vmatprep.subr.bf16.mxu0 0
      %1792 = vmatpush1.bf16.msra.mxu0 0
      %1793 = vmatprep.subr.bf16.mxu0 0
      %1794 = vmatpush1.bf16.msra.mxu0 0
      %1795 = vmatprep.subr.bf16.mxu0 0
      %1796 = vmatpush1.bf16.msra.mxu0 0
      %1797 = vmatprep.subr.bf16.mxu0 0
      %1798 = vmatpush1.bf16.msra.mxu0 0
      %1799 = vmatprep.subr.bf16.mxu0 0
      %1800 = vmatpush1.bf16.msra.mxu0 0
      %1801 = vmatprep.subr.bf16.mxu0 0
      %1802 = vmatpush1.bf16.msra.mxu0 0
      %1803 = vmatprep.subr.bf16.mxu0 0
      %1804 = vmatpush1.bf16.msra.mxu0 0
      %1805 = vmatprep.subr.bf16.mxu0 0
      %1806 = vmatpush1.bf16.msra.mxu0 0
      %1807 = vmatprep.subr.bf16.mxu0 0
      %1808 = vmatpush1.bf16.msra.mxu0 0
      %1809 = vmatprep.subr.bf16.mxu0 0
      %1810 = vmatpush1.bf16.msra.mxu0 0
      %1811 = vmatprep.subr.bf16.mxu0 0
      %1812 = vmatpush1.bf16.msra.mxu0 0
      %1813 = vmatprep.subr.bf16.mxu0 0
      %1814 = vmatpush1.bf16.msra.mxu0 0
      %1815 = vmatprep.mubr.bf16.mxu0 0
      %1816 = vmatmul.mubr.bf16.gmra.mrb[0].mxu0 %v1772
      %v1817 = vpop.f32.mrb[0].mxu0
      %v1818 = vadd.f32 %v1725, %v1817
      %v1819 = vpop.f32.mrb[0].mxu0
      %v1820 = vpop.f32.mrb[0].mxu0
      %v1821 = vadd.f32 %v1725, %v1820
      %v1822 = vpop.f32.mrb[0].mxu0
      %1823 = vmatprep.mubr.bf16.mxu0 0
      %1824 = vmatmul.mubr.bf16.gmra.mrb[0].mxu0 %v1775
      %v1825 = vpop.f32.mrb[0].mxu0
      %v1826 = vadd.f32 %v1725, %v1825
      %v1827 = vpop.f32.mrb[0].mxu0
      %v1828 = vpop.f32.mrb[0].mxu0
      %v1829 = vadd.f32 %v1725, %v1828
      %v1830 = vpop.f32.mrb[0].mxu0
      %1831 = vmatprep.mubr.bf16.mxu0 0
      %1832 = vmatmul.mubr.bf16.gmra.mrb[0].mxu0 %v1778
      %v1833 = vpop.f32.mrb[0].mxu0
      %v1834 = vadd.f32 %v1725, %v1833
      %v1835 = vpop.f32.mrb[0].mxu0
      %v1836 = vpop.f32.mrb[0].mxu0
      %v1837 = vadd.f32 %v1725, %v1836
      %v1838 = vpop.f32.mrb[0].mxu0
      %1839 = vmatprep.mubr.bf16.mxu0 0
      %1840 = vmatmul.mubr.bf16.gmra.mrb[0].mxu0 %v1781
      %v1841 = vpop.f32.mrb[0].mxu0
      %v1842 = vadd.f32 %v1725, %v1841
      %v1843 = vpop.f32.mrb[0].mxu0
      %v1844 = vpop.f32.mrb[0].mxu0
      %v1845 = vadd.f32 %v1725, %v1844
      %v1846 = vpop.f32.mrb[0].mxu0
      %1847 = vdwg.mxu0
      %v1848 = vpack.c.bf16 %v1818, %v1818
      %v1849 = vpack.c.bf16 %v1821, %v1821
      %v1850 = vpack.c.bf16 %v1826, %v1826
      %v1851 = vpack.c.bf16 %v1829, %v1829
      %v1852 = vpack.c.bf16 %v1834, %v1834
      %v1853 = vpack.c.bf16 %v1837, %v1837
      %v1854 = vpack.c.bf16 %v1842, %v1842
      %v1855 = vpack.c.bf16 %v1845, %v1845
      %1856 = vst.msk [vmem:[%s604] sm:$0xf] %vm1633, %v1848
      %1857 = vst.msk [vmem:[%s604 + $0x4] sm:$0xf] %vm1633, %v1849
      %1858 = vst.msk [vmem:[%s604 + $0x8] sm:$0xf] %vm1633, %v1850
      %1859 = vst.msk [vmem:[%s604 + $0xc] sm:$0xf] %vm1633, %v1851
      %1860 = vst.msk [vmem:[%s604 + $0x10] sm:$0xf] %vm1633, %v1852
      %1861 = vst.msk [vmem:[%s604 + $0x14] sm:$0xf] %vm1633, %v1853
      %1862 = vst.msk [vmem:[%s604 + $0x18] sm:$0xf] %vm1633, %v1854
      %1863 = vst.msk [vmem:[%s604 + $0x1c] sm:$0xf] %vm1633, %v1855
      %s1864 = smul.u32 8, %s28
      %p1865 = scmp.lt.s32.totalorder %s27, 3
      %s1866 = scalar_select %p1865, %s27, 3
      %p1867 = scmp.lt.s32.totalorder %s1864, 7
      %s1868 = scalar_select %p1867, %s1864, 7
      %s1869 = smul.addr %s1866, 8
      %s1870 = sadd.s32 %s1868, %s1869
      %s1871 = smul.addr %s1870, 4
      %s1872 = scalar_lea.vmem %s9, %s1871
      %p1873 = scmp.lt.s32.totalorder %s27, 3
      %s1874 = scalar_select %p1873, %s27, 3
      %s1875 = smul.addr %s1874, 2
      %s1876 = scalar_lea.vmem %s10, %s1875
      %s1877 = smul.u32 8, %s28
      %p1878 = scmp.lt.s32.totalorder %s27, 3
      %s1879 = scalar_select %p1878, %s27, 3
      %p1880 = scmp.lt.s32.totalorder %s1877, 7
      %s1881 = scalar_select %p1880, %s1877, 7
      %s1882 = smul.addr %s1879, 8
      %s1883 = sadd.s32 %s1881, %s1882
      %s1884 = smul.addr %s1883, 4
      %s1885 = scalar_lea.vmem %s11, %s1884
      // Predicated region
      $region61: #{up_decoder_block_3d.9} parent=55 // pred_check
        %p1886 = pneg %p291
      $region62: #{up_decoder_block_3d.9} parent=55 // pred_check_branch
        %1888 = sbr.rel (%p1886) target = $region64
      $region63: #{up_decoder_block_3d.9} parent=55 // pred_region
        %s1889 = smul.u32 8, %s28
      $region64: #{up_decoder_block_3d.9} parent=55 // pred_fallthru
        _
      // Predicated region
      $region65: #{up_decoder_block_3d.9} parent=55 // pred_check
        %p1890 = pneg %p317
      $region66: #{up_decoder_block_3d.9} parent=55 // pred_check_branch
        %1892 = sbr.rel (%p1890) target = $region68
      $region67: #{up_decoder_block_3d.9} parent=55 // pred_region
        _
      $region68: #{up_decoder_block_3d.9} parent=55 // pred_fallthru
        _
      // Predicated region
      $region69: #{up_decoder_block_3d.9} parent=55 // pred_check
        %p1893 = pneg %p345
      $region70: #{up_decoder_block_3d.9} parent=55 // pred_check_branch
        %1895 = sbr.rel (%p1893) target = $region72
      $region71: #{up_decoder_block_3d.9} parent=55 // pred_region
        %s1896 = smul.u32 8, %s28
      $region72: #{up_decoder_block_3d.9} parent=55 // pred_fallthru
        _
    $region56: #{up_decoder_block_3d.9} parent=5 // pred_fallthru
      _
    %p1897 = scmp.le.s32.totalorder 2, %s18
    // Predicated region
    $region73: #{up_decoder_block_3d.9} parent=5 // pred_check
      %p1898 = pneg %p1897
    $region74: #{up_decoder_block_3d.9} parent=5 // pred_check_branch
      %1900 = sbr.rel (%p1898) target = $region76
    $region75: #{up_decoder_block_3d.9} parent=5 // pred_region
      %s1901 = ssub.s32 %s18, 2
      // Predicated region
      $region77: #{up_decoder_block_3d.9} parent=75 // pred_check
        %p1902 = pneg %p297
      $region78: #{up_decoder_block_3d.9} parent=75 // pred_check_branch
        %1904 = sbr.rel (%p1902) target = $region80
      $region79: #{up_decoder_block_3d.9} parent=75 // pred_region
        %s1905 = smul.u32 8, %s30
        %p1906 = scmp.lt.s32.totalorder %s29, 3
        %s1907 = scalar_select %p1906, %s29, 3
        %p1908 = scmp.lt.s32.totalorder %s1905, 7
        %s1909 = scalar_select %p1908, %s1905, 7
        %s1910 = smul.addr %s1907, 8
        %s1911 = sadd.s32 %s1909, %s1910
        %s1912 = smul.addr %s1911, 4
        %s1913 = scalar_lea.vmem %s9, %s1912
      $region80: #{up_decoder_block_3d.9} parent=75 // pred_fallthru
        _
      // Predicated region
      $region81: #{up_decoder_block_3d.9} parent=75 // pred_check
        %p1914 = pneg %p323
      $region82: #{up_decoder_block_3d.9} parent=75 // pred_check_branch
        %1916 = sbr.rel (%p1914) target = $region84
      $region83: #{up_decoder_block_3d.9} parent=75 // pred_region
        %p1917 = scmp.lt.s32.totalorder %s29, 3
        %s1918 = scalar_select %p1917, %s29, 3
        %s1919 = smul.addr %s1918, 2
        %s1920 = scalar_lea.vmem %s10, %s1919
      $region84: #{up_decoder_block_3d.9} parent=75 // pred_fallthru
        _
      // Predicated region
      $region85: #{up_decoder_block_3d.9} parent=75 // pred_check
        %p1921 = pneg %p351
      $region86: #{up_decoder_block_3d.9} parent=75 // pred_check_branch
        %1923 = sbr.rel (%p1921) target = $region88
      $region87: #{up_decoder_block_3d.9} parent=75 // pred_region
        %s1924 = smul.u32 8, %s30
        %p1925 = scmp.lt.s32.totalorder %s29, 3
        %s1926 = scalar_select %p1925, %s29, 3
        %p1927 = scmp.lt.s32.totalorder %s1924, 7
        %s1928 = scalar_select %p1927, %s1924, 7
        %s1929 = smul.addr %s1926, 8
        %s1930 = sadd.s32 %s1928, %s1929
        %s1931 = smul.addr %s1930, 4
        %s1932 = scalar_lea.vmem %s11, %s1931
      $region88: #{up_decoder_block_3d.9} parent=75 // pred_fallthru
        _
    $region76: #{up_decoder_block_3d.9} parent=5 // pred_fallthru
      _
  $region6: #{up_decoder_block_3d.9} parent=0 // loop_footer
    %s22 = sadd.s32 1, %s18
  $region7: #{up_decoder_block_3d.9} parent=0 // loop_footer_branch
    %17 = sbr.rel target = $region3
  $region8: #{up_decoder_block_3d.9} parent=0 // loop_exit
    _

// kernel: up_decoder_block_3d.11
$region0: #{up_decoder_block_3d.11}
  #allocation0 [shape = 'u32[]', space=smem, size = 0x4, offset = 0x4, fixed_abs, tag = 'smem constant byte address 0x4 - core index']
  #allocation1 [shape = 'u32[144,128]{1,0:T(1,128)}', space=vmem, size = 0x12000, scoped, tag = 'internal scratch']
  #allocation2 [shape = 'bf16[3,8,8,32]{3,2,1,0:T(8,128)(2,1)}', space=vmem, size = 0xc000, scoped, tag = 'scratch operand']
  %s0 = inlined_call_operand.vmem [shape: bf16[1,4,8,8,32], index: 0, kind: input, shape index: {}]
  %s1 = inlined_call_operand.vmem [shape: f32[1,1,32], index: 1, kind: input, shape index: {}]
  %s2 = inlined_call_operand.vmem [shape: f32[1,1,32], index: 2, kind: input, shape index: {}]
  %s3 = inlined_call_operand.vmem [shape: bf16[3,32,32], index: 3, kind: input, shape index: {}]
  %s4 = inlined_call_operand.vmem [shape: f32[1,1,32], index: 4, kind: input, shape index: {}]
  %s5 = inlined_call_operand.vmem [shape: bf16[1,4,8,8,32], index: 5, kind: output, shape index: {0}]
  %s6 = inlined_call_operand.vmem [shape: f32[1,4,1,2,32], index: 6, kind: output, shape index: {1}]
  %7 = xla_tuple %s5, %s6
  %s8 = sld [smem:[#allocation0]]
  $region69: #{up_decoder_block_3d.11} parent=0
    _
  %s10 = ssub.s32 1, %s8
  %s11 = scalar_select 0, %s10, %s8
  loop: start=0, step=1, limit=7
  $region2: #{up_decoder_block_3d.11} parent=0 // loop_pre_header
    _
  $region3: #{up_decoder_block_3d.11} parent=0 // loop_header
    %s13 = sphi 0, %s17
    %p14 = scmp.ge.s32.totalorder %s13, 7
    %s20 = sphi 0, %s39
    %s21 = sphi 0, %s35
    %s22 = sphi 0, %s31
    %s23 = sphi 0, %s20
    %s24 = sphi 0, %s21
    %s25 = sphi 0, %s22
    %s26 = sphi 0, %s23
    %s27 = sphi 0, %s24
    %s28 = sphi 0, %s25
    %s50 = sphi 0, %s52
    %s53 = sphi 0, %s50
    %s54 = sphi 0, %s53
    %s70 = sphi 0, %s54
    %s76 = sphi 0, %s78
    %s79 = sphi 0, %s76
    %s80 = sphi 0, %s79
    %s96 = sphi 0, %s80
    %s102 = sphi 0, %s104
    %s105 = sphi 0, %s102
    %s106 = sphi 0, %s105
    %s122 = sphi 0, %s106
    %s126 = sphi 0, %s126
    %s128 = sphi 0, %s126
    %s129 = sphi 0, %s128
    %s143 = sphi 0, %s129
    %s147 = sphi 0, %s147
    %s149 = sphi 0, %s147
    %s150 = sphi 0, %s149
    %s164 = sphi 0, %s150
    %s180 = sphi 0, %s182
    %s183 = sphi 0, %s180
    %s184 = sphi 0, %s183
    %s200 = sphi 0, %s184
    %s216 = sphi 0, %s218
    %s219 = sphi 0, %s216
    %s220 = sphi 0, %s219
    %s236 = sphi 0, %s220
  $region4: #{up_decoder_block_3d.11} parent=0 // loop_header_branch
    %16 = sbr.rel (%p14) target = $region8
  $region5: #{up_decoder_block_3d.11} parent=0 // loop_body
    %s18 = ssub.s32 %s13, 1
    %s19 = ssub.s32 %s13, 2
    %s29 = sadd.s32 1, %s22
    %p30 = scmp.ge.s32.totalorder %s29, 5
    %s31 = scalar_select %p30, 0, %s29
    %s32 = sadd.s32 1, %s21
    %s33 = scalar_select %p30, %s32, %s21
    %p34 = scmp.ge.s32.totalorder %s33, 1
    %s35 = scalar_select %p34, 0, %s33
    %s36 = sadd.s32 1, %s20
    %s37 = scalar_select %p34, %s36, %s20
    %p38 = scmp.ge.s32.totalorder %s37, 1
    %s39 = scalar_select %p38, 0, %s37
    %p40 = scmp.lt.s32.totalorder %s22, 3
    %s41 = scalar_select %p40, %s22, 3
    %p42 = scmp.lt.s32.totalorder %s31, 3
    %s43 = scalar_select %p42, %s31, 3
    %s44 = ssub.s32 %s20, %s39
    %s45 = ssub.s32 %s41, %s43
    %s46 = sor.u32 %s44, %s45
    %s47 = ssub.s32 %s21, %s35
    %s48 = sor.u32 %s46, %s47
    %p49 = scmp.eq.s32.totalorder %s48, 0
    %s51 = sadd.s32 %s50, 1
    %s52 = scalar_select %p49, %s50, %s51
    %p55 = pneg %p49
    %p56 = scmp.eq.s32.totalorder %s13, 4
    %p57 = por %p55, %p56
    %p58 = scmp.ne.s32.totalorder %s50, %s53
    %p59 = scmp.eq.s32.totalorder %s13, 0
    %p60 = por %p58, %p59
    %p61 = scmp.ne.s32.totalorder %s50, %s53
    %p62 = scmp.eq.s32.totalorder %s18, 4
    %p63 = por %p61, %p62
    %p64 = scmp.ne.s32.totalorder %s53, %s54
    %p65 = scmp.eq.s32.totalorder %s18, 0
    %p66 = por %p64, %p65
    %p67 = scmp.ne.s32.totalorder %s53, %s54
    %p68 = scmp.eq.s32.totalorder %s19, 4
    %p69 = por %p67, %p68
    %p71 = scmp.ne.s32.totalorder %s54, %s70
    %p72 = scmp.eq.s32.totalorder %s19, 0
    %p73 = por %p71, %p72
    %s74 = ssub.s32 %s20, %s39
    %p75 = scmp.eq.s32.totalorder %s74, 0
    %s77 = sadd.s32 %s76, 1
    %s78 = scalar_select %p75, %s76, %s77
    %p81 = pneg %p75
    %p82 = scmp.eq.s32.totalorder %s13, 4
    %p83 = por %p81, %p82
    %p84 = scmp.ne.s32.totalorder %s76, %s79
    %p85 = scmp.eq.s32.totalorder %s13, 0
    %p86 = por %p84, %p85
    %p87 = scmp.ne.s32.totalorder %s76, %s79
    %p88 = scmp.eq.s32.totalorder %s18, 4
    %p89 = por %p87, %p88
    %p90 = scmp.ne.s32.totalorder %s79, %s80
    %p91 = scmp.eq.s32.totalorder %s18, 0
    %p92 = por %p90, %p91
    %p93 = scmp.ne.s32.totalorder %s79, %s80
    %p94 = scmp.eq.s32.totalorder %s19, 4
    %p95 = por %p93, %p94
    %p97 = scmp.ne.s32.totalorder %s80, %s96
    %p98 = scmp.eq.s32.totalorder %s19, 0
    %p99 = por %p97, %p98
    %s100 = ssub.s32 %s20, %s39
    %p101 = scmp.eq.s32.totalorder %s100, 0
    %s103 = sadd.s32 %s102, 1
    %s104 = scalar_select %p101, %s102, %s103
    %p107 = pneg %p101
    %p108 = scmp.eq.s32.totalorder %s13, 4
    %p109 = por %p107, %p108
    %p110 = scmp.ne.s32.totalorder %s102, %s105
    %p111 = scmp.eq.s32.totalorder %s13, 0
    %p112 = por %p110, %p111
    %p113 = scmp.ne.s32.totalorder %s102, %s105
    %p114 = scmp.eq.s32.totalorder %s18, 4
    %p115 = por %p113, %p114
    %p116 = scmp.ne.s32.totalorder %s105, %s106
    %p117 = scmp.eq.s32.totalorder %s18, 0
    %p118 = por %p116, %p117
    %p119 = scmp.ne.s32.totalorder %s105, %s106
    %p120 = scmp.eq.s32.totalorder %s19, 4
    %p121 = por %p119, %p120
    %p123 = scmp.ne.s32.totalorder %s106, %s122
    %p124 = scmp.eq.s32.totalorder %s19, 0
    %p125 = por %p123, %p124
    %s127 = sadd.s32 %s126, 1
    %p130 = scmp.eq.s32.totalorder %s13, 4
    %p131 = scmp.ne.s32.totalorder %s126, %s128
    %p132 = scmp.eq.s32.totalorder %s13, 0
    %p133 = por %p131, %p132
    %p134 = scmp.ne.s32.totalorder %s126, %s128
    %p135 = scmp.eq.s32.totalorder %s18, 4
    %p136 = por %p134, %p135
    %p137 = scmp.ne.s32.totalorder %s128, %s129
    %p138 = scmp.eq.s32.totalorder %s18, 0
    %p139 = por %p137, %p138
    %p140 = scmp.ne.s32.totalorder %s128, %s129
    %p141 = scmp.eq.s32.totalorder %s19, 4
    %p142 = por %p140, %p141
    %p144 = scmp.ne.s32.totalorder %s129, %s143
    %p145 = scmp.eq.s32.totalorder %s19, 0
    %p146 = por %p144, %p145
    %s148 = sadd.s32 %s147, 1
    %p151 = scmp.eq.s32.totalorder %s13, 4
    %p152 = scmp.ne.s32.totalorder %s147, %s149
    %p153 = scmp.eq.s32.totalorder %s13, 0
    %p154 = por %p152, %p153
    %p155 = scmp.ne.s32.totalorder %s147, %s149
    %p156 = scmp.eq.s32.totalorder %s18, 4
    %p157 = por %p155, %p156
    %p158 = scmp.ne.s32.totalorder %s149, %s150
    %p159 = scmp.eq.s32.totalorder %s18, 0
    %p160 = por %p158, %p159
    %p161 = scmp.ne.s32.totalorder %s149, %s150
    %p162 = scmp.eq.s32.totalorder %s19, 4
    %p163 = por %p161, %p162
    %p165 = scmp.ne.s32.totalorder %s150, %s164
    %p166 = scmp.eq.s32.totalorder %s19, 0
    %p167 = por %p165, %p166
    %s168 = ssub.s32 %s22, 1
    %p169 = scmp.gt.s32.totalorder %s168, 0
    %s170 = scalar_select %p169, %s168, 0
    %s171 = ssub.s32 %s31, 1
    %p172 = scmp.gt.s32.totalorder %s171, 0
    %s173 = scalar_select %p172, %s171, 0
    %s174 = ssub.s32 %s20, %s39
    %s175 = ssub.s32 %s170, %s173
    %s176 = sor.u32 %s174, %s175
    %s177 = ssub.s32 %s21, %s35
    %s178 = sor.u32 %s176, %s177
    %p179 = scmp.eq.s32.totalorder %s178, 0
    %s181 = sadd.s32 %s180, 1
    %s182 = scalar_select %p179, %s180, %s181
    %p185 = pneg %p179
    %p186 = scmp.eq.s32.totalorder %s13, 4
    %p187 = por %p185, %p186
    %p188 = scmp.ne.s32.totalorder %s180, %s183
    %p189 = scmp.eq.s32.totalorder %s13, 0
    %p190 = por %p188, %p189
    %p191 = scmp.ne.s32.totalorder %s180, %s183
    %p192 = scmp.eq.s32.totalorder %s18, 4
    %p193 = por %p191, %p192
    %p194 = scmp.ne.s32.totalorder %s183, %s184
    %p195 = scmp.eq.s32.totalorder %s18, 0
    %p196 = por %p194, %p195
    %p197 = scmp.ne.s32.totalorder %s183, %s184
    %p198 = scmp.eq.s32.totalorder %s19, 4
    %p199 = por %p197, %p198
    %p201 = scmp.ne.s32.totalorder %s184, %s200
    %p202 = scmp.eq.s32.totalorder %s19, 0
    %p203 = por %p201, %p202
    %s204 = ssub.s32 %s22, 1
    %p205 = scmp.gt.s32.totalorder %s204, 0
    %s206 = scalar_select %p205, %s204, 0
    %s207 = ssub.s32 %s31, 1
    %p208 = scmp.gt.s32.totalorder %s207, 0
    %s209 = scalar_select %p208, %s207, 0
    %s210 = ssub.s32 %s20, %s39
    %s211 = ssub.s32 %s206, %s209
    %s212 = sor.u32 %s210, %s211
    %s213 = ssub.s32 %s21, %s35
    %s214 = sor.u32 %s212, %s213
    %p215 = scmp.eq.s32.totalorder %s214, 0
    %s217 = sadd.s32 %s216, 1
    %s218 = scalar_select %p215, %s216, %s217
    %p221 = pneg %p215
    %p222 = scmp.eq.s32.totalorder %s13, 4
    %p223 = por %p221, %p222
    %p224 = scmp.ne.s32.totalorder %s216, %s219
    %p225 = scmp.eq.s32.totalorder %s13, 0
    %p226 = por %p224, %p225
    %p227 = scmp.ne.s32.totalorder %s216, %s219
    %p228 = scmp.eq.s32.totalorder %s18, 4
    %p229 = por %p227, %p228
    %p230 = scmp.ne.s32.totalorder %s219, %s220
    %p231 = scmp.eq.s32.totalorder %s18, 0
    %p232 = por %p230, %p231
    %p233 = scmp.ne.s32.totalorder %s219, %s220
    %p234 = scmp.eq.s32.totalorder %s19, 4
    %p235 = por %p233, %p234
    %p237 = scmp.ne.s32.totalorder %s220, %s236
    %p238 = scmp.eq.s32.totalorder %s19, 0
    %p239 = por %p237, %p238
    %p240 = scmp.le.s32.totalorder 1, %s13
    %p241 = scmp.lt.s32.totalorder %s13, 6
    %p242 = pnand %p240, %p241
    %p243 = pneg %p242
    // Predicated region
    $region9: #{up_decoder_block_3d.11} parent=5 // pred_check
      _
    $region10: #{up_decoder_block_3d.11} parent=5 // pred_check_branch
      %245 = sbr.rel (%p242) target = $region12
    $region11: #{up_decoder_block_3d.11} parent=5 // pred_region
      %s246 = ssub.s32 %s13, 1
      // Predicated region
      $region13: #{up_decoder_block_3d.11} parent=11 // pred_check
        %p247 = pneg %p92
      $region14: #{up_decoder_block_3d.11} parent=11 // pred_check_branch
        %249 = sbr.rel (%p247) target = $region16
      $region15: #{up_decoder_block_3d.11} parent=11 // pred_region
        %p250 = scmp.lt.s32.totalorder %s23, 0
        %s251 = scalar_select %p250, %s23, 0
        %s252 = scalar_lea.vmem %s1, %s251
      $region16: #{up_decoder_block_3d.11} parent=11 // pred_fallthru
        _
      // Predicated region
      $region17: #{up_decoder_block_3d.11} parent=11 // pred_check
        %p253 = pneg %p118
      $region18: #{up_decoder_block_3d.11} parent=11 // pred_check_branch
        %255 = sbr.rel (%p253) target = $region20
      $region19: #{up_decoder_block_3d.11} parent=11 // pred_region
        %p256 = scmp.lt.s32.totalorder %s23, 0
        %s257 = scalar_select %p256, %s23, 0
        %s258 = scalar_lea.vmem %s2, %s257
      $region20: #{up_decoder_block_3d.11} parent=11 // pred_fallthru
        _
      // Predicated region
      $region21: #{up_decoder_block_3d.11} parent=11 // pred_check
        %p259 = pneg %p139
      $region22: #{up_decoder_block_3d.11} parent=11 // pred_check_branch
        %261 = sbr.rel (%p259) target = $region24
      $region23: #{up_decoder_block_3d.11} parent=11 // pred_region
        _
      $region24: #{up_decoder_block_3d.11} parent=11 // pred_fallthru
        _
      // Predicated region
      $region25: #{up_decoder_block_3d.11} parent=11 // pred_check
        %p262 = pneg %p160
      $region26: #{up_decoder_block_3d.11} parent=11 // pred_check_branch
        %264 = sbr.rel (%p262) target = $region28
      $region27: #{up_decoder_block_3d.11} parent=11 // pred_region
        _
      $region28: #{up_decoder_block_3d.11} parent=11 // pred_fallthru
        _
    $region12: #{up_decoder_block_3d.11} parent=5 // pred_fallthru
      _
    %p265 = scmp.lt.s32.totalorder %s13, 5
    // Predicated region
    $region29: #{up_decoder_block_3d.11} parent=5 // pred_check
      %p266 = pneg %p265
    $region30: #{up_decoder_block_3d.11} parent=5 // pred_check_branch
      %268 = sbr.rel (%p266) target = $region32
    $region31: #{up_decoder_block_3d.11} parent=5 // pred_region
      // Predicated region
      $region33: #{up_decoder_block_3d.11} parent=31 // pred_check
        %p269 = pneg %p60
      $region34: #{up_decoder_block_3d.11} parent=31 // pred_check_branch
        %271 = sbr.rel (%p269) target = $region36
      $region35: #{up_decoder_block_3d.11} parent=31 // pred_region
        %p272 = scmp.lt.s32.totalorder %s22, 3
        %s273 = scalar_select %p272, %s22, 3
        %s274 = smul.u32 8, %s21
        %p275 = scmp.lt.s32.totalorder %s20, 0
        %s276 = scalar_select %p275, %s20, 0
        %p277 = scmp.lt.s32.totalorder %s273, 3
        %s278 = scalar_select %p277, %s273, 3
        %p279 = scmp.lt.s32.totalorder %s274, 7
        %s280 = scalar_select %p279, %s274, 7
        %s281 = smul.addr %s278, 8
        %s282 = sadd.s32 %s280, %s281
        %s283 = smul.addr %s276, 32
        %s284 = sadd.s32 %s282, %s283
        %s285 = smul.addr %s284, 4
        %s286 = scalar_lea.vmem %s0, %s285
        %p287 = scmp.lt.s32.totalorder %s22, 3
        %s288 = scalar_select %p287, %s22, 3
        %s289 = smul.u32 8, %s21
      $region36: #{up_decoder_block_3d.11} parent=31 // pred_fallthru
        _
    $region32: #{up_decoder_block_3d.11} parent=5 // pred_fallthru
      _
    %p290 = scmp.le.s32.totalorder 1, %s13
    %p291 = scmp.lt.s32.totalorder %s13, 6
    %p292 = pnand %p290, %p291
    %p293 = pneg %p292
    // Predicated region
    $region37: #{up_decoder_block_3d.11} parent=5 // pred_check
      _
    $region38: #{up_decoder_block_3d.11} parent=5 // pred_check_branch
      %295 = sbr.rel (%p292) target = $region40
    $region39: #{up_decoder_block_3d.11} parent=5 // pred_region
      %s296 = ssub.s32 %s13, 1
      %p297 = scmp.lt.s32.totalorder %s25, 3
      %s298 = scalar_select %p297, %s25, 3
      %s299 = smul.u32 8, %s24
      %p300 = scmp.lt.s32.totalorder %s23, 0
      %s301 = scalar_select %p300, %s23, 0
      %p302 = scmp.lt.s32.totalorder %s298, 3
      %s303 = scalar_select %p302, %s298, 3
      %p304 = scmp.lt.s32.totalorder %s299, 7
      %s305 = scalar_select %p304, %s299, 7
      %s306 = smul.addr %s303, 8
      %s307 = sadd.s32 %s305, %s306
      %s308 = smul.addr %s301, 32
      %s309 = sadd.s32 %s307, %s308
      %s310 = smul.addr %s309, 4
      %s311 = scalar_lea.vmem %s0, %s310
      %p312 = pneg %p66
      %p313 = pneg %p63
      %p314 = scmp.lt.s32.totalorder %s23, 0
      %s315 = scalar_select %p314, %s23, 0
      %s316 = scalar_lea.vmem %s1, %s315
      %p317 = pneg %p92
      %p318 = pneg %p89
      %p319 = scmp.lt.s32.totalorder %s23, 0
      %s320 = scalar_select %p319, %s23, 0
      %s321 = scalar_lea.vmem %s2, %s320
      %p322 = pneg %p118
      %p323 = pneg %p115
      %p324 = pneg %p139
      %p325 = pneg %p136
      %p326 = pneg %p160
      %p327 = pneg %p157
      %p328 = pneg %p196
      %p329 = pneg %p193
      %s330 = ssub.s32 %s25, 1
      %p331 = scmp.gt.s32.totalorder %s330, 0
      %s332 = scalar_select %p331, %s330, 0
      %s333 = smul.u32 8, %s24
      %p334 = scmp.lt.s32.totalorder %s23, 0
      %s335 = scalar_select %p334, %s23, 0
      %p336 = scmp.lt.s32.totalorder %s332, 3
      %s337 = scalar_select %p336, %s332, 3
      %p338 = scmp.lt.s32.totalorder %s333, 7
      %s339 = scalar_select %p338, %s333, 7
      %s340 = smul.addr %s337, 8
      %s341 = sadd.s32 %s339, %s340
      %s342 = smul.addr %s335, 32
      %s343 = sadd.s32 %s341, %s342
      %s344 = smul.addr %s343, 4
      %s345 = scalar_lea.vmem %s5, %s344
      %p346 = pneg %p232
      %p347 = pneg %p229
      %s348 = ssub.s32 %s25, 1
      %p349 = scmp.gt.s32.totalorder %s348, 0
      %s350 = scalar_select %p349, %s348, 0
      %p351 = scmp.lt.s32.totalorder %s23, 0
      %s352 = scalar_select %p351, %s23, 0
      %p353 = scmp.lt.s32.totalorder %s350, 3
      %s354 = scalar_select %p353, %s350, 3
      %p355 = scmp.lt.s32.totalorder %s24, 0
      %s356 = scalar_select %p355, %s24, 0
      %s357 = sadd.s32 %s356, %s354
      %s358 = smul.addr %s352, 4
      %s359 = sadd.s32 %s357, %s358
      %s360 = smul.addr %s359, 2
      %s361 = scalar_lea.vmem %s6, %s360
      %p362 = scmp.lt.s32.totalorder %s25, 3
      %s363 = scalar_select %p362, %s25, 3
      %s364 = smul.u32 8, %s24
      %p365 = scmp.lt.s32.totalorder %s23, 0
      %s366 = scalar_select %p365, %s23, 0
      %p367 = scmp.lt.s32.totalorder %s363, 3
      %s368 = scalar_select %p367, %s363, 3
      %p369 = scmp.lt.s32.totalorder %s364, 7
      %s370 = scalar_select %p369, %s364, 7
      %s371 = smul.addr %s368, 8
      %s372 = sadd.s32 %s370, %s371
      %s373 = smul.addr %s366, 32
      %s374 = sadd.s32 %s372, %s373
      %s375 = smul.addr %s374, 4
      %s376 = scalar_lea.vmem %s0, %s375
      %p377 = scmp.lt.s32.totalorder %s25, 3
      %s378 = scalar_select %p377, %s25, 3
      %s379 = smul.u32 8, %s24
      %p380 = scmp.lt.s32.totalorder %s23, 0
      %s381 = scalar_select %p380, %s23, 0
      %s382 = scalar_lea.vmem %s1, %s381
      %p383 = scmp.lt.s32.totalorder %s23, 0
      %s384 = scalar_select %p383, %s23, 0
      %s385 = scalar_lea.vmem %s2, %s384
      %s386 = ssub.s32 %s25, 1
      %p387 = scmp.gt.s32.totalorder %s386, 0
      %s388 = scalar_select %p387, %s386, 0
      %s389 = smul.u32 8, %s24
      %p390 = scmp.lt.s32.totalorder %s23, 0
      %s391 = scalar_select %p390, %s23, 0
      %p392 = scmp.lt.s32.totalorder %s388, 3
      %s393 = scalar_select %p392, %s388, 3
      %p394 = scmp.lt.s32.totalorder %s389, 7
      %s395 = scalar_select %p394, %s389, 7
      %s396 = smul.addr %s393, 8
      %s397 = sadd.s32 %s395, %s396
      %s398 = smul.addr %s391, 32
      %s399 = sadd.s32 %s397, %s398
      %s400 = smul.addr %s399, 4
      %s401 = scalar_lea.vmem %s5, %s400
      %s402 = ssub.s32 %s25, 1
      %p403 = scmp.gt.s32.totalorder %s402, 0
      %s404 = scalar_select %p403, %s402, 0
      %s405 = smul.u32 8, %s24
      %s406 = ssub.s32 %s25, 1
      %p407 = scmp.gt.s32.totalorder %s406, 0
      %s408 = scalar_select %p407, %s406, 0
      %p409 = scmp.lt.s32.totalorder %s23, 0
      %s410 = scalar_select %p409, %s23, 0
      %p411 = scmp.lt.s32.totalorder %s408, 3
      %s412 = scalar_select %p411, %s408, 3
      %p413 = scmp.lt.s32.totalorder %s24, 0
      %s414 = scalar_select %p413, %s24, 0
      %s415 = sadd.s32 %s414, %s412
      %s416 = smul.addr %s410, 4
      %s417 = sadd.s32 %s415, %s416
      %s418 = smul.addr %s417, 2
      %s419 = scalar_lea.vmem %s6, %s418
      %s420 = ssub.s32 %s25, 1
      %p421 = scmp.gt.s32.totalorder %s420, 0
      %s422 = scalar_select %p421, %s420, 0
      %p424 = scmp.lt.s32.totalorder %s25, 4
      // Predicated region
      $region41: #{up_decoder_block_3d.11} parent=39 // pred_check
        %p425 = pneg %p424
      $region42: #{up_decoder_block_3d.11} parent=39 // pred_check_branch
        %427 = sbr.rel (%p425) target = $region44
      $region43: #{up_decoder_block_3d.11} parent=39 // pred_region
        %v428 = vld [vmem:[%s376] sm:$0xf]
        %v429 = vld [vmem:[%s376 + $0x4] sm:$0xf]
        %v430 = vld [vmem:[%s376 + $0x8] sm:$0xf]
        %v431 = vld [vmem:[%s376 + $0xc] sm:$0xf]
        %v432 = vld [vmem:[%s376 + $0x10] sm:$0xf]
        %v433 = vld [vmem:[%s376 + $0x14] sm:$0xf]
        %v434 = vld [vmem:[%s376 + $0x18] sm:$0xf]
        %v435 = vld [vmem:[%s376 + $0x1c] sm:$0xf]
        %v436 = vunpack.c.l.bf16 %v428
        %v437 = vunpack.c.l.bf16 %v429
        %v438 = vunpack.c.l.bf16 %v430
        %v439 = vunpack.c.l.bf16 %v431
        %v440 = vunpack.c.l.bf16 %v432
        %v441 = vunpack.c.l.bf16 %v433
        %v442 = vunpack.c.l.bf16 %v434
        %v443 = vunpack.c.l.bf16 %v435
        %v444 = vld [vmem:[%s382] sm:$0x1]
        %v446 = vlaneseq
        %v447 = vshrl.u32 %v446, 7
        %v448 = vsub.s32 0, %v447
        %v449 = vrot.slane %v444, %v448
        %v451 = vmul.f32 %v436, %v449
        %v452 = vmul.f32 %v437, %v449
        %v453 = vmul.f32 %v438, %v449
        %v454 = vmul.f32 %v439, %v449
        %v455 = vmul.f32 %v440, %v449
        %v456 = vmul.f32 %v441, %v449
        %v457 = vmul.f32 %v442, %v449
        %v458 = vmul.f32 %v443, %v449
        %v459 = vld [vmem:[%s385] sm:$0x1]
        %v461 = vlaneseq
        %v462 = vshrl.u32 %v461, 7
        %v463 = vsub.s32 0, %v462
        %v464 = vrot.slane %v459, %v463
        %v466 = vadd.f32 %v451, %v464
        %v467 = vadd.f32 %v452, %v464
        %v468 = vadd.f32 %v453, %v464
        %v469 = vadd.f32 %v454, %v464
        %v470 = vadd.f32 %v455, %v464
        %v471 = vadd.f32 %v456, %v464
        %v472 = vadd.f32 %v457, %v464
        %v473 = vadd.f32 %v458, %v464
        %v474 = vxor.u32 %v466, 2147483648
        %v475 = vxor.u32 %v467, 2147483648
        %v476 = vxor.u32 %v468, 2147483648
        %v477 = vxor.u32 %v469, 2147483648
        %v478 = vxor.u32 %v470, 2147483648
        %v479 = vxor.u32 %v471, 2147483648
        %v480 = vxor.u32 %v472, 2147483648
        %v481 = vxor.u32 %v473, 2147483648
        %v482 = vmul.f32 %v474, 1.442695
        %v483 = vpow.pop %v482
        %v484 = vmul.f32 %v475, 1.442695
        %v485 = vpow.pop %v484
        %v486 = vmul.f32 %v476, 1.442695
        %v487 = vpow.pop %v486
        %v488 = vmul.f32 %v477, 1.442695
        %v489 = vpow.pop %v488
        %v490 = vmul.f32 %v478, 1.442695
        %v491 = vpow.pop %v490
        %v492 = vmul.f32 %v479, 1.442695
        %v493 = vpow.pop %v492
        %v494 = vmul.f32 %v480, 1.442695
        %v495 = vpow.pop %v494
        %v496 = vmul.f32 %v481, 1.442695
        %v497 = vpow.pop %v496
        %v498 = vadd.f32 %v483, 1.0
        %v499 = vadd.f32 %v485, 1.0
        %v500 = vadd.f32 %v487, 1.0
        %v501 = vadd.f32 %v489, 1.0
        %v502 = vadd.f32 %v491, 1.0
        %v503 = vadd.f32 %v493, 1.0
        %v504 = vadd.f32 %v495, 1.0
        %v505 = vadd.f32 %v497, 1.0
        %v506 = vrcp.pop %v498
        %v507 = vmul.f32 1.0, %v506
        %v508 = vrcp.pop %v499
        %v509 = vmul.f32 1.0, %v508
        %v510 = vrcp.pop %v500
        %v511 = vmul.f32 1.0, %v510
        %v512 = vrcp.pop %v501
        %v513 = vmul.f32 1.0, %v512
        %v514 = vrcp.pop %v502
        %v515 = vmul.f32 1.0, %v514
        %v516 = vrcp.pop %v503
        %v517 = vmul.f32 1.0, %v516
        %v518 = vrcp.pop %v504
        %v519 = vmul.f32 1.0, %v518
        %v520 = vrcp.pop %v505
        %v521 = vmul.f32 1.0, %v520
        %v522 = vmul.f32 %v466, %v507
        %v523 = vmul.f32 %v467, %v509
        %v524 = vmul.f32 %v468, %v511
        %v525 = vmul.f32 %v469, %v513
        %v526 = vmul.f32 %v470, %v515
        %v527 = vmul.f32 %v471, %v517
        %v528 = vmul.f32 %v472, %v519
        %v529 = vmul.f32 %v473, %v521
        %v530 = vpack.c.bf16 %v522, %v522
        %v531 = vpack.c.bf16 %v523, %v523
        %v532 = vpack.c.bf16 %v524, %v524
        %v533 = vpack.c.bf16 %v525, %v525
        %v534 = vpack.c.bf16 %v526, %v526
        %v535 = vpack.c.bf16 %v527, %v527
        %v536 = vpack.c.bf16 %v528, %v528
        %v537 = vpack.c.bf16 %v529, %v529
        %p538 = scmp.lt.s32.totalorder %s25, 0
        %s539 = ssub.s32 0, %s25
        %s540 = scalar_select %p538, %s539, %s25
        %s541 = sdiv.u32.pop %s540, 3
        %s542 = srem.u32.pop %s540, 3
        %s543 = ssub.s32 0, %s542
        %s544 = scalar_select %p538, %s543, %s542
        %p545 = scmp.ne.s32.totalorder %s544, 0
        %p546 = scmp.lt.s32.totalorder %s544, 0
        %p547 = pnand %p546, %p545
        %p548 = pneg %p547
        %s549 = sadd.s32 %s544, 3
        %s550 = scalar_select %p548, %s549, %s544
        %s551 = smul.u32 %s550, 8
        %s552 = smul.addr %s551, 4
        %s553 = scalar_lea.vmem [#allocation2], %s552
        %vm554 = vcmask 257024
        %555 = vst.msk [vmem:[%s553] sm:$0xf] %vm554, %v530
        %556 = vst.msk [vmem:[%s553 + $0x4] sm:$0xf] %vm554, %v531
        %557 = vst.msk [vmem:[%s553 + $0x8] sm:$0xf] %vm554, %v532
        %558 = vst.msk [vmem:[%s553 + $0xc] sm:$0xf] %vm554, %v533
        %559 = vst.msk [vmem:[%s553 + $0x10] sm:$0xf] %vm554, %v534
        %560 = vst.msk [vmem:[%s553 + $0x14] sm:$0xf] %vm554, %v535
        %561 = vst.msk [vmem:[%s553 + $0x18] sm:$0xf] %vm554, %v536
        %562 = vst.msk [vmem:[%s553 + $0x1c] sm:$0xf] %vm554, %v537
      $region44: #{up_decoder_block_3d.11} parent=39 // pred_fallthru
        _
      %p563 = scmp.gt.s32.totalorder %s25, 0
      // Predicated region
      $region45: #{up_decoder_block_3d.11} parent=39 // pred_check
        %p564 = pneg %p563
      $region46: #{up_decoder_block_3d.11} parent=39 // pred_check_branch
        %566 = sbr.rel (%p564) target = $region48
      $region47: #{up_decoder_block_3d.11} parent=39 // pred_region
        %s567 = ssub.s32 %s25, 1
        %s568 = ssub.s32 %s25, 2
        %p569 = scmp.gt.s32.totalorder %s568, 0
        %s570 = scalar_select %p569, %s568, 0
        %p571 = scmp.lt.s32.totalorder %s570, 0
        %s572 = ssub.s32 0, %s570
        %s573 = scalar_select %p571, %s572, %s570
        %s574 = sdiv.u32.pop %s573, 3
        %s575 = srem.u32.pop %s573, 3
        %s576 = ssub.s32 0, %s575
        %s577 = scalar_select %p571, %s576, %s575
        %p578 = scmp.ne.s32.totalorder %s577, 0
        %p579 = scmp.lt.s32.totalorder %s577, 0
        %p580 = pnand %p579, %p578
        %p581 = pneg %p580
        %s582 = sadd.s32 %s577, 3
        %s583 = scalar_select %p581, %s582, %s577
        %p584 = scmp.lt.s32.totalorder %s567, 0
        %s585 = ssub.s32 0, %s567
        %s586 = scalar_select %p584, %s585, %s567
        %s587 = sdiv.u32.pop %s586, 3
        %s588 = srem.u32.pop %s586, 3
        %s589 = ssub.s32 0, %s588
        %s590 = scalar_select %p584, %s589, %s588
        %p591 = scmp.ne.s32.totalorder %s590, 0
        %p592 = scmp.lt.s32.totalorder %s590, 0
        %p593 = pnand %p592, %p591
        %p594 = pneg %p593
        %s595 = sadd.s32 %s590, 3
        %s596 = scalar_select %p594, %s595, %s590
        %p597 = scmp.lt.s32.totalorder %s25, 3
        %s598 = scalar_select %p597, %s25, 3
        %p599 = scmp.lt.s32.totalorder %s598, 0
        %s600 = ssub.s32 0, %s598
        %s601 = scalar_select %p599, %s600, %s598
        %s602 = sdiv.u32.pop %s601, 3
        %s603 = srem.u32.pop %s601, 3
        %s604 = ssub.s32 0, %s603
        %s605 = scalar_select %p599, %s604, %s603
        %p606 = scmp.ne.s32.totalorder %s605, 0
        %p607 = scmp.lt.s32.totalorder %s605, 0
        %p608 = pnand %p607, %p606
        %p609 = pneg %p608
        %s610 = sadd.s32 %s605, 3
        %s611 = scalar_select %p609, %s610, %s605
        %s612 = smul.u32 %s583, 8
        %s613 = smul.addr %s612, 4
        %s614 = scalar_lea.vmem [#allocation2], %s613
        %v615 = vld [vmem:[%s614] sm:$0xf]
        %v616 = vld [vmem:[%s614 + $0x4] sm:$0xf]
        %v617 = vld [vmem:[%s614 + $0x8] sm:$0xf]
        %v618 = vld [vmem:[%s614 + $0xc] sm:$0xf]
        %v619 = vld [vmem:[%s614 + $0x10] sm:$0xf]
        %v620 = vld [vmem:[%s614 + $0x14] sm:$0xf]
        %v621 = vld [vmem:[%s614 + $0x18] sm:$0xf]
        %v622 = vld [vmem:[%s614 + $0x1c] sm:$0xf]
        %v623 = vld [vmem:[%s3] sm:$0xf]
        %v624 = vld [vmem:[%s3 + $0x4] sm:$0xf]
        %v625 = vld [vmem:[%s3 + $0x8] sm:$0xf]
        %v626 = vld [vmem:[%s3 + $0xc] sm:$0xf]
        %s627 = smul.u32 %s596, 8
        %s628 = smul.addr %s627, 4
        %s629 = scalar_lea.vmem [#allocation2], %s628
        %v630 = vld [vmem:[%s629] sm:$0xf]
        %v631 = vld [vmem:[%s629 + $0x4] sm:$0xf]
        %v632 = vld [vmem:[%s629 + $0x8] sm:$0xf]
        %v633 = vld [vmem:[%s629 + $0xc] sm:$0xf]
        %v634 = vld [vmem:[%s629 + $0x10] sm:$0xf]
        %v635 = vld [vmem:[%s629 + $0x14] sm:$0xf]
        %v636 = vld [vmem:[%s629 + $0x18] sm:$0xf]
        %v637 = vld [vmem:[%s629 + $0x1c] sm:$0xf]
        %s638 = scalar_lea.vmem %s3, 16
        %v639 = vld [vmem:[%s638] sm:$0xf]
        %v640 = vld [vmem:[%s638 + $0x4] sm:$0xf]
        %v641 = vld [vmem:[%s638 + $0x8] sm:$0xf]
        %v642 = vld [vmem:[%s638 + $0xc] sm:$0xf]
        %v651 = vunpack.c.l.b16 %v630
        %v652 = vunpack.c.l.b16 %v631
        %v653 = vunpack.c.l.b16 %v632
        %v654 = vunpack.c.l.b16 %v633
        %v655 = vunpack.c.l.b16 %v634
        %v656 = vunpack.c.l.b16 %v635
        %v657 = vunpack.c.l.b16 %v636
        %v658 = vunpack.c.l.b16 %v637
        %v659 = vpack.c.b16 %v652, %v651
        %v660 = vpack.c.b16 %v654, %v653
        %v661 = vpack.c.b16 %v656, %v655
        %v662 = vpack.c.b16 %v658, %v657
        %v667 = vunpack.c.l.b16 %v639
        %v668 = vunpack.c.l.b16 %v640
        %v669 = vunpack.c.l.b16 %v641
        %v670 = vunpack.c.l.b16 %v642
        %v671 = vpack.c.b16 %v668, %v667
        %v672 = vpack.c.b16 %v670, %v669
        %vm675 = vcmask 261120
        %v677 = vsel %vm675, %v659, 0
        %v680 = vsel %vm675, %v660, 0
        %v683 = vsel %vm675, %v661, 0
        %v686 = vsel %vm675, %v662, 0
        %688 = vmatprep.subr.bf16.mxu0 0
        %689 = vmatpush1.bf16.msra.mxu0 %v671
        %690 = vmatprep.subr.bf16.mxu0 0
        %691 = vmatpush1.bf16.msra.mxu0 %v672
        %692 = vmatprep.subr.bf16.mxu0 0
        %693 = vmatpush1.bf16.msra.mxu0 0
        %694 = vmatprep.subr.bf16.mxu0 0
        %695 = vmatpush1.bf16.msra.mxu0 0
        %696 = vmatprep.subr.bf16.mxu0 0
        %697 = vmatpush1.bf16.msra.mxu0 0
        %698 = vmatprep.subr.bf16.mxu0 0
        %699 = vmatpush1.bf16.msra.mxu0 0
        %700 = vmatprep.subr.bf16.mxu0 0
        %701 = vmatpush1.bf16.msra.mxu0 0
        %702 = vmatprep.subr.bf16.mxu0 0
        %703 = vmatpush1.bf16.msra.mxu0 0
        %704 = vmatprep.subr.bf16.mxu0 0
        %705 = vmatpush1.bf16.msra.mxu0 0
        %706 = vmatprep.subr.bf16.mxu0 0
        %707 = vmatpush1.bf16.msra.mxu0 0
        %708 = vmatprep.subr.bf16.mxu0 0
        %709 = vmatpush1.bf16.msra.mxu0 0
        %710 = vmatprep.subr.bf16.mxu0 0
        %711 = vmatpush1.bf16.msra.mxu0 0
        %712 = vmatprep.subr.bf16.mxu0 0
        %713 = vmatpush1.bf16.msra.mxu0 0
        %714 = vmatprep.subr.bf16.mxu0 0
        %715 = vmatpush1.bf16.msra.mxu0 0
        %716 = vmatprep.subr.bf16.mxu0 0
        %717 = vmatpush1.bf16.msra.mxu0 0
        %718 = vmatprep.subr.bf16.mxu0 0
        %719 = vmatpush1.bf16.msra.mxu0 0
        %720 = vmatprep.mubr.bf16.mxu0 0
        %721 = vmatmul.mubr.bf16.gmra.mrb[0].mxu0 %v677
        %v722 = vpop.f32.mrb[0].mxu0
        %v723 = vadd.f32 0.0, %v722
        %v724 = vpop.f32.mrb[0].mxu0
        %v725 = vpop.f32.mrb[0].mxu0
        %v726 = vadd.f32 0.0, %v725
        %v727 = vpop.f32.mrb[0].mxu0
        %728 = vmatprep.mubr.bf16.mxu0 0
        %729 = vmatmul.mubr.bf16.gmra.mrb[0].mxu0 %v680
        %v730 = vpop.f32.mrb[0].mxu0
        %v731 = vadd.f32 0.0, %v730
        %v732 = vpop.f32.mrb[0].mxu0
        %v733 = vpop.f32.mrb[0].mxu0
        %v734 = vadd.f32 0.0, %v733
        %v735 = vpop.f32.mrb[0].mxu0
        %736 = vmatprep.mubr.bf16.mxu0 0
        %737 = vmatmul.mubr.bf16.gmra.mrb[0].mxu0 %v683
        %v738 = vpop.f32.mrb[0].mxu0
        %v739 = vadd.f32 0.0, %v738
        %v740 = vpop.f32.mrb[0].mxu0
        %v741 = vpop.f32.mrb[0].mxu0
        %v742 = vadd.f32 0.0, %v741
        %v743 = vpop.f32.mrb[0].mxu0
        %744 = vmatprep.mubr.bf16.mxu0 0
        %745 = vmatmul.mubr.bf16.gmra.mrb[0].mxu0 %v686
        %v746 = vpop.f32.mrb[0].mxu0
        %v747 = vadd.f32 0.0, %v746
        %v748 = vpop.f32.mrb[0].mxu0
        %v749 = vpop.f32.mrb[0].mxu0
        %v750 = vadd.f32 0.0, %v749
        %v751 = vpop.f32.mrb[0].mxu0
        %752 = vdwg.mxu0
        %v761 = vunpack.c.l.b16 %v615
        %v762 = vunpack.c.l.b16 %v616
        %v763 = vunpack.c.l.b16 %v617
        %v764 = vunpack.c.l.b16 %v618
        %v765 = vunpack.c.l.b16 %v619
        %v766 = vunpack.c.l.b16 %v620
        %v767 = vunpack.c.l.b16 %v621
        %v768 = vunpack.c.l.b16 %v622
        %v769 = vpack.c.b16 %v762, %v761
        %v770 = vpack.c.b16 %v764, %v763
        %v771 = vpack.c.b16 %v766, %v765
        %v772 = vpack.c.b16 %v768, %v767
        %v777 = vunpack.c.l.b16 %v623
        %v778 = vunpack.c.l.b16 %v624
        %v779 = vunpack.c.l.b16 %v625
        %v780 = vunpack.c.l.b16 %v626
        %v781 = vpack.c.b16 %v778, %v777
        %v782 = vpack.c.b16 %v780, %v779
        %v786 = vsel %vm675, %v769, 0
        %v789 = vsel %vm675, %v770, 0
        %v792 = vsel %vm675, %v771, 0
        %v795 = vsel %vm675, %v772, 0
        %797 = vmatprep.subr.bf16.mxu0 0
        %798 = vmatpush1.bf16.msra.mxu0 %v781
        %799 = vmatprep.subr.bf16.mxu0 0
        %800 = vmatpush1.bf16.msra.mxu0 %v782
        %801 = vmatprep.subr.bf16.mxu0 0
        %802 = vmatpush1.bf16.msra.mxu0 0
        %803 = vmatprep.subr.bf16.mxu0 0
        %804 = vmatpush1.bf16.msra.mxu0 0
        %805 = vmatprep.subr.bf16.mxu0 0
        %806 = vmatpush1.bf16.msra.mxu0 0
        %807 = vmatprep.subr.bf16.mxu0 0
        %808 = vmatpush1.bf16.msra.mxu0 0
        %809 = vmatprep.subr.bf16.mxu0 0
        %810 = vmatpush1.bf16.msra.mxu0 0
        %811 = vmatprep.subr.bf16.mxu0 0
        %812 = vmatpush1.bf16.msra.mxu0 0
        %813 = vmatprep.subr.bf16.mxu0 0
        %814 = vmatpush1.bf16.msra.mxu0 0
        %815 = vmatprep.subr.bf16.mxu0 0
        %816 = vmatpush1.bf16.msra.mxu0 0
        %817 = vmatprep.subr.bf16.mxu0 0
        %818 = vmatpush1.bf16.msra.mxu0 0
        %819 = vmatprep.subr.bf16.mxu0 0
        %820 = vmatpush1.bf16.msra.mxu0 0
        %821 = vmatprep.subr.bf16.mxu0 0
        %822 = vmatpush1.bf16.msra.mxu0 0
        %823 = vmatprep.subr.bf16.mxu0 0
        %824 = vmatpush1.bf16.msra.mxu0 0
        %825 = vmatprep.subr.bf16.mxu0 0
        %826 = vmatpush1.bf16.msra.mxu0 0
        %827 = vmatprep.subr.bf16.mxu0 0
        %828 = vmatpush1.bf16.msra.mxu0 0
        %829 = vmatprep.mubr.bf16.mxu0 0
        %830 = vmatmul.mubr.bf16.gmra.mrb[0].mxu0 %v786
        %v831 = vpop.f32.mrb[0].mxu0
        %v832 = vadd.f32 %v723, %v831
        %v833 = vpop.f32.mrb[0].mxu0
        %v834 = vpop.f32.mrb[0].mxu0
        %v835 = vadd.f32 %v726, %v834
        %v836 = vpop.f32.mrb[0].mxu0
        %837 = vmatprep.mubr.bf16.mxu0 0
        %838 = vmatmul.mubr.bf16.gmra.mrb[0].mxu0 %v789
        %v839 = vpop.f32.mrb[0].mxu0
        %v840 = vadd.f32 %v731, %v839
        %v841 = vpop.f32.mrb[0].mxu0
        %v842 = vpop.f32.mrb[0].mxu0
        %v843 = vadd.f32 %v734, %v842
        %v844 = vpop.f32.mrb[0].mxu0
        %845 = vmatprep.mubr.bf16.mxu0 0
        %846 = vmatmul.mubr.bf16.gmra.mrb[0].mxu0 %v792
        %v847 = vpop.f32.mrb[0].mxu0
        %v848 = vadd.f32 %v739, %v847
        %v849 = vpop.f32.mrb[0].mxu0
        %v850 = vpop.f32.mrb[0].mxu0
        %v851 = vadd.f32 %v742, %v850
        %v852 = vpop.f32.mrb[0].mxu0
        %853 = vmatprep.mubr.bf16.mxu0 0
        %854 = vmatmul.mubr.bf16.gmra.mrb[0].mxu0 %v795
        %v855 = vpop.f32.mrb[0].mxu0
        %v856 = vadd.f32 %v747, %v855
        %v857 = vpop.f32.mrb[0].mxu0
        %v858 = vpop.f32.mrb[0].mxu0
        %v859 = vadd.f32 %v750, %v858
        %v860 = vpop.f32.mrb[0].mxu0
        %861 = vdwg.mxu0
        %s862 = smul.u32 %s611, 8
        %s863 = smul.addr %s862, 4
        %s864 = scalar_lea.vmem [#allocation2], %s863
        %v865 = vld [vmem:[%s864] sm:$0xf]
        %v866 = vld [vmem:[%s864 + $0x4] sm:$0xf]
        %v867 = vld [vmem:[%s864 + $0x8] sm:$0xf]
        %v868 = vld [vmem:[%s864 + $0xc] sm:$0xf]
        %v869 = vld [vmem:[%s864 + $0x10] sm:$0xf]
        %v870 = vld [vmem:[%s864 + $0x14] sm:$0xf]
        %v871 = vld [vmem:[%s864 + $0x18] sm:$0xf]
        %v872 = vld [vmem:[%s864 + $0x1c] sm:$0xf]
        %s873 = scalar_lea.vmem %s3, 32
        %v874 = vld [vmem:[%s873] sm:$0xf]
        %v875 = vld [vmem:[%s873 + $0x4] sm:$0xf]
        %v876 = vld [vmem:[%s873 + $0x8] sm:$0xf]
        %v877 = vld [vmem:[%s873 + $0xc] sm:$0xf]
        %v886 = vunpack.c.l.b16 %v865
        %v887 = vunpack.c.l.b16 %v866
        %v888 = vunpack.c.l.b16 %v867
        %v889 = vunpack.c.l.b16 %v868
        %v890 = vunpack.c.l.b16 %v869
        %v891 = vunpack.c.l.b16 %v870
        %v892 = vunpack.c.l.b16 %v871
        %v893 = vunpack.c.l.b16 %v872
        %v894 = vpack.c.b16 %v887, %v886
        %v895 = vpack.c.b16 %v889, %v888
        %v896 = vpack.c.b16 %v891, %v890
        %v897 = vpack.c.b16 %v893, %v892
        %v902 = vunpack.c.l.b16 %v874
        %v903 = vunpack.c.l.b16 %v875
        %v904 = vunpack.c.l.b16 %v876
        %v905 = vunpack.c.l.b16 %v877
        %v906 = vpack.c.b16 %v903, %v902
        %v907 = vpack.c.b16 %v905, %v904
        %v911 = vsel %vm675, %v894, 0
        %v914 = vsel %vm675, %v895, 0
        %v917 = vsel %vm675, %v896, 0
        %v920 = vsel %vm675, %v897, 0
        %922 = vmatprep.subr.bf16.mxu0 0
        %923 = vmatpush1.bf16.msra.mxu0 %v906
        %924 = vmatprep.subr.bf16.mxu0 0
        %925 = vmatpush1.bf16.msra.mxu0 %v907
        %926 = vmatprep.subr.bf16.mxu0 0
        %927 = vmatpush1.bf16.msra.mxu0 0
        %928 = vmatprep.subr.bf16.mxu0 0
        %929 = vmatpush1.bf16.msra.mxu0 0
        %930 = vmatprep.subr.bf16.mxu0 0
        %931 = vmatpush1.bf16.msra.mxu0 0
        %932 = vmatprep.subr.bf16.mxu0 0
        %933 = vmatpush1.bf16.msra.mxu0 0
        %934 = vmatprep.subr.bf16.mxu0 0
        %935 = vmatpush1.bf16.msra.mxu0 0
        %936 = vmatprep.subr.bf16.mxu0 0
        %937 = vmatpush1.bf16.msra.mxu0 0
        %938 = vmatprep.subr.bf16.mxu0 0
        %939 = vmatpush1.bf16.msra.mxu0 0
        %940 = vmatprep.subr.bf16.mxu0 0
        %941 = vmatpush1.bf16.msra.mxu0 0
        %942 = vmatprep.subr.bf16.mxu0 0
        %943 = vmatpush1.bf16.msra.mxu0 0
        %944 = vmatprep.subr.bf16.mxu0 0
        %945 = vmatpush1.bf16.msra.mxu0 0
        %946 = vmatprep.subr.bf16.mxu0 0
        %947 = vmatpush1.bf16.msra.mxu0 0
        %948 = vmatprep.subr.bf16.mxu0 0
        %949 = vmatpush1.bf16.msra.mxu0 0
        %950 = vmatprep.subr.bf16.mxu0 0
        %951 = vmatpush1.bf16.msra.mxu0 0
        %952 = vmatprep.subr.bf16.mxu0 0
        %953 = vmatpush1.bf16.msra.mxu0 0
        %954 = vmatprep.mubr.bf16.mxu0 0
        %955 = vmatmul.mubr.bf16.gmra.mrb[0].mxu0 %v911
        %v956 = vpop.f32.mrb[0].mxu0
        %v957 = vadd.f32 0.0, %v956
        %v958 = vpop.f32.mrb[0].mxu0
        %v959 = vpop.f32.mrb[0].mxu0
        %v960 = vadd.f32 0.0, %v959
        %v961 = vpop.f32.mrb[0].mxu0
        %962 = vmatprep.mubr.bf16.mxu0 0
        %963 = vmatmul.mubr.bf16.gmra.mrb[0].mxu0 %v914
        %v964 = vpop.f32.mrb[0].mxu0
        %v965 = vadd.f32 0.0, %v964
        %v966 = vpop.f32.mrb[0].mxu0
        %v967 = vpop.f32.mrb[0].mxu0
        %v968 = vadd.f32 0.0, %v967
        %v969 = vpop.f32.mrb[0].mxu0
        %970 = vmatprep.mubr.bf16.mxu0 0
        %971 = vmatmul.mubr.bf16.gmra.mrb[0].mxu0 %v917
        %v972 = vpop.f32.mrb[0].mxu0
        %v973 = vadd.f32 0.0, %v972
        %v974 = vpop.f32.mrb[0].mxu0
        %v975 = vpop.f32.mrb[0].mxu0
        %v976 = vadd.f32 0.0, %v975
        %v977 = vpop.f32.mrb[0].mxu0
        %978 = vmatprep.mubr.bf16.mxu0 0
        %979 = vmatmul.mubr.bf16.gmra.mrb[0].mxu0 %v920
        %v980 = vpop.f32.mrb[0].mxu0
        %v981 = vadd.f32 0.0, %v980
        %v982 = vpop.f32.mrb[0].mxu0
        %v983 = vpop.f32.mrb[0].mxu0
        %v984 = vadd.f32 0.0, %v983
        %v985 = vpop.f32.mrb[0].mxu0
        %986 = vdwg.mxu0
        %v987 = vadd.f32 %v832, %v957
        %v988 = vadd.f32 %v835, %v960
        %v989 = vadd.f32 %v840, %v965
        %v990 = vadd.f32 %v843, %v968
        %v991 = vadd.f32 %v848, %v973
        %v992 = vadd.f32 %v851, %v976
        %v993 = vadd.f32 %v856, %v981
        %v994 = vadd.f32 %v859, %v984
        %v995 = vld [vmem:[%s4] sm:$0x1]
        %v997 = vlaneseq
        %v998 = vshrl.u32 %v997, 7
        %v999 = vsub.s32 0, %v998
        %v1000 = vrot.slane %v995, %v999
        %v1002 = vadd.f32 %v987, %v1000
        %v1003 = vadd.f32 %v988, %v1000
        %v1004 = vadd.f32 %v989, %v1000
        %v1005 = vadd.f32 %v990, %v1000
        %v1006 = vadd.f32 %v991, %v1000
        %v1007 = vadd.f32 %v992, %v1000
        %v1008 = vadd.f32 %v993, %v1000
        %v1009 = vadd.f32 %v994, %v1000
        %v1010 = vpack.c.bf16 %v1002, %v1002
        %v1011 = vpack.c.bf16 %v1003, %v1003
        %v1012 = vpack.c.bf16 %v1004, %v1004
        %v1013 = vpack.c.bf16 %v1005, %v1005
        %v1014 = vpack.c.bf16 %v1006, %v1006
        %v1015 = vpack.c.bf16 %v1007, %v1007
        %v1016 = vpack.c.bf16 %v1008, %v1008
        %v1017 = vpack.c.bf16 %v1009, %v1009
        %vm1018 = vcmask 257024
        %1019 = vst.msk [vmem:[%s401] sm:$0xf] %vm1018, %v1010
        %1020 = vst.msk [vmem:[%s401 + $0x4] sm:$0xf] %vm1018, %v1011
        %1021 = vst.msk [vmem:[%s401 + $0x8] sm:$0xf] %vm1018, %v1012
        %1022 = vst.msk [vmem:[%s401 + $0xc] sm:$0xf] %vm1018, %v1013
        %1023 = vst.msk [vmem:[%s401 + $0x10] sm:$0xf] %vm1018, %v1014
        %1024 = vst.msk [vmem:[%s401 + $0x14] sm:$0xf] %vm1018, %v1015
        %1025 = vst.msk [vmem:[%s401 + $0x18] sm:$0xf] %vm1018, %v1016
        %1026 = vst.msk [vmem:[%s401 + $0x1c] sm:$0xf] %vm1018, %v1017
        %v1027 = vsel %vm675, %v1002, 0.0
        %v1028 = vsel %vm675, %v1003, 0.0
        %v1029 = vadd.f32 %v1027, %v1028
        %v1030 = vsel %vm675, %v1004, 0.0
        %v1031 = vadd.f32 %v1029, %v1030
        %v1032 = vsel %vm675, %v1005, 0.0
        %v1033 = vadd.f32 %v1031, %v1032
        %v1034 = vsel %vm675, %v1006, 0.0
        %v1035 = vadd.f32 %v1033, %v1034
        %v1036 = vsel %vm675, %v1007, 0.0
        %v1037 = vadd.f32 %v1035, %v1036
        %v1038 = vsel %vm675, %v1008, 0.0
        %v1039 = vadd.f32 %v1037, %v1038
        %v1040 = vsel %vm675, %v1009, 0.0
        %v1041 = vadd.f32 %v1039, %v1040
        %v1042 = vrot.slane %v1041, 4
        %v1043 = vadd.f32 %v1041, %v1042
        %v1044 = vrot.slane %v1043, 2
        %v1045 = vadd.f32 %v1043, %v1044
        %v1046 = vrot.slane %v1045, 1
        %v1047 = vadd.f32 %v1045, %v1046
        %v1048 = vmul.f32 %v1002, %v1002
        %v1049 = vmul.f32 %v1003, %v1003
        %v1050 = vmul.f32 %v1004, %v1004
        %v1051 = vmul.f32 %v1005, %v1005
        %v1052 = vmul.f32 %v1006, %v1006
        %v1053 = vmul.f32 %v1007, %v1007
        %v1054 = vmul.f32 %v1008, %v1008
        %v1055 = vmul.f32 %v1009, %v1009
        %v1056 = vsel %vm675, %v1048, 0.0
        %v1057 = vsel %vm675, %v1049, 0.0
        %v1058 = vadd.f32 %v1056, %v1057
        %v1059 = vsel %vm675, %v1050, 0.0
        %v1060 = vadd.f32 %v1058, %v1059
        %v1061 = vsel %vm675, %v1051, 0.0
        %v1062 = vadd.f32 %v1060, %v1061
        %v1063 = vsel %vm675, %v1052, 0.0
        %v1064 = vadd.f32 %v1062, %v1063
        %v1065 = vsel %vm675, %v1053, 0.0
        %v1066 = vadd.f32 %v1064, %v1065
        %v1067 = vsel %vm675, %v1054, 0.0
        %v1068 = vadd.f32 %v1066, %v1067
        %v1069 = vsel %vm675, %v1055, 0.0
        %v1070 = vadd.f32 %v1068, %v1069
        %v1071 = vrot.slane %v1070, 4
        %v1072 = vadd.f32 %v1070, %v1071
        %v1073 = vrot.slane %v1072, 2
        %v1074 = vadd.f32 %v1072, %v1073
        %v1075 = vrot.slane %v1074, 1
        %v1076 = vadd.f32 %v1074, %v1075
        %vm1077 = vcmask 1040384
        %v1078 = vsel %vm1077, %v1047, %v1076
        %vm1079 = vcmask 254976
        %1080 = vst.msk [vmem:[%s419] sm:$0x3] %vm1079, %v1078
      $region48: #{up_decoder_block_3d.11} parent=39 // pred_fallthru
        _
      %s1081 = ssub.s32 %s25, 1
      %p1082 = scmp.gt.s32.totalorder %s1081, 0
      %s1083 = scalar_select %p1082, %s1081, 0
      %s1084 = smul.u32 8, %s24
      %p1085 = scmp.lt.s32.totalorder %s23, 0
      %s1086 = scalar_select %p1085, %s23, 0
      %p1087 = scmp.lt.s32.totalorder %s1083, 3
      %s1088 = scalar_select %p1087, %s1083, 3
      %p1089 = scmp.lt.s32.totalorder %s1084, 7
      %s1090 = scalar_select %p1089, %s1084, 7
      %s1091 = smul.addr %s1088, 8
      %s1092 = sadd.s32 %s1090, %s1091
      %s1093 = smul.addr %s1086, 32
      %s1094 = sadd.s32 %s1092, %s1093
      %s1095 = smul.addr %s1094, 4
      %s1096 = scalar_lea.vmem %s5, %s1095
      %s1097 = ssub.s32 %s25, 1
      %p1098 = scmp.gt.s32.totalorder %s1097, 0
      %s1099 = scalar_select %p1098, %s1097, 0
      %p1100 = scmp.lt.s32.totalorder %s23, 0
      %s1101 = scalar_select %p1100, %s23, 0
      %p1102 = scmp.lt.s32.totalorder %s1099, 3
      %s1103 = scalar_select %p1102, %s1099, 3
      %p1104 = scmp.lt.s32.totalorder %s24, 0
      %s1105 = scalar_select %p1104, %s24, 0
      %s1106 = sadd.s32 %s1105, %s1103
      %s1107 = smul.addr %s1101, 4
      %s1108 = sadd.s32 %s1106, %s1107
      %s1109 = smul.addr %s1108, 2
      %s1110 = scalar_lea.vmem %s6, %s1109
      // Predicated region
      $region49: #{up_decoder_block_3d.11} parent=39 // pred_check
        %p1111 = pneg %p193
      $region50: #{up_decoder_block_3d.11} parent=39 // pred_check_branch
        %1113 = sbr.rel (%p1111) target = $region52
      $region51: #{up_decoder_block_3d.11} parent=39 // pred_region
        %s1114 = ssub.s32 %s25, 1
        %p1115 = scmp.gt.s32.totalorder %s1114, 0
        %s1116 = scalar_select %p1115, %s1114, 0
        %s1117 = smul.u32 8, %s24
      $region52: #{up_decoder_block_3d.11} parent=39 // pred_fallthru
        _
      // Predicated region
      $region53: #{up_decoder_block_3d.11} parent=39 // pred_check
        %p1118 = pneg %p229
      $region54: #{up_decoder_block_3d.11} parent=39 // pred_check_branch
        %1120 = sbr.rel (%p1118) target = $region56
      $region55: #{up_decoder_block_3d.11} parent=39 // pred_region
        %s1121 = ssub.s32 %s25, 1
        %p1122 = scmp.gt.s32.totalorder %s1121, 0
        %s1123 = scalar_select %p1122, %s1121, 0
      $region56: #{up_decoder_block_3d.11} parent=39 // pred_fallthru
        _
    $region40: #{up_decoder_block_3d.11} parent=5 // pred_fallthru
      _
    %p1124 = scmp.le.s32.totalorder 2, %s13
    // Predicated region
    $region57: #{up_decoder_block_3d.11} parent=5 // pred_check
      %p1125 = pneg %p1124
    $region58: #{up_decoder_block_3d.11} parent=5 // pred_check_branch
      %1127 = sbr.rel (%p1125) target = $region60
    $region59: #{up_decoder_block_3d.11} parent=5 // pred_region
      %s1128 = ssub.s32 %s13, 2
      // Predicated region
      $region61: #{up_decoder_block_3d.11} parent=59 // pred_check
        %p1129 = pneg %p199
      $region62: #{up_decoder_block_3d.11} parent=59 // pred_check_branch
        %1131 = sbr.rel (%p1129) target = $region64
      $region63: #{up_decoder_block_3d.11} parent=59 // pred_region
        %s1132 = ssub.s32 %s28, 1
        %p1133 = scmp.gt.s32.totalorder %s1132, 0
        %s1134 = scalar_select %p1133, %s1132, 0
        %s1135 = smul.u32 8, %s27
        %p1136 = scmp.lt.s32.totalorder %s26, 0
        %s1137 = scalar_select %p1136, %s26, 0
        %p1138 = scmp.lt.s32.totalorder %s1134, 3
        %s1139 = scalar_select %p1138, %s1134, 3
        %p1140 = scmp.lt.s32.totalorder %s1135, 7
        %s1141 = scalar_select %p1140, %s1135, 7
        %s1142 = smul.addr %s1139, 8
        %s1143 = sadd.s32 %s1141, %s1142
        %s1144 = smul.addr %s1137, 32
        %s1145 = sadd.s32 %s1143, %s1144
        %s1146 = smul.addr %s1145, 4
        %s1147 = scalar_lea.vmem %s5, %s1146
      $region64: #{up_decoder_block_3d.11} parent=59 // pred_fallthru
        _
      // Predicated region
      $region65: #{up_decoder_block_3d.11} parent=59 // pred_check
        %p1148 = pneg %p235
      $region66: #{up_decoder_block_3d.11} parent=59 // pred_check_branch
        %1150 = sbr.rel (%p1148) target = $region68
      $region67: #{up_decoder_block_3d.11} parent=59 // pred_region
        %s1151 = ssub.s32 %s28, 1
        %p1152 = scmp.gt.s32.totalorder %s1151, 0
        %s1153 = scalar_select %p1152, %s1151, 0
        %p1154 = scmp.lt.s32.totalorder %s26, 0
        %s1155 = scalar_select %p1154, %s26, 0
        %p1156 = scmp.lt.s32.totalorder %s1153, 3
        %s1157 = scalar_select %p1156, %s1153, 3
        %p1158 = scmp.lt.s32.totalorder %s27, 0
        %s1159 = scalar_select %p1158, %s27, 0
        %s1160 = sadd.s32 %s1159, %s1157
        %s1161 = smul.addr %s1155, 4
        %s1162 = sadd.s32 %s1160, %s1161
        %s1163 = smul.addr %s1162, 2
        %s1164 = scalar_lea.vmem %s6, %s1163
      $region68: #{up_decoder_block_3d.11} parent=59 // pred_fallthru
        _
    $region60: #{up_decoder_block_3d.11} parent=5 // pred_fallthru
      _
  $region6: #{up_decoder_block_3d.11} parent=0 // loop_footer
    %s17 = sadd.s32 1, %s13
  $region7: #{up_decoder_block_3d.11} parent=0 // loop_footer_branch
    %12 = sbr.rel target = $region3
  $region8: #{up_decoder_block_3d.11} parent=0 // loop_exit
    _

// kernel: up_decoder_block_3d.14
$region0: #{up_decoder_block_3d.14}
  #allocation0 [shape = 'u32[]', space=smem, size = 0x4, offset = 0x4, fixed_abs, tag = 'smem constant byte address 0x4 - core index']
  #allocation1 [shape = 'u32[144,128]{1,0:T(1,128)}', space=vmem, size = 0x12000, scoped, tag = 'internal scratch']
  #allocation2 [shape = 'bf16[3,8,8,32]{3,2,1,0:T(8,128)(2,1)}', space=vmem, size = 0xc000, scoped, tag = 'scratch operand']
  %s0 = inlined_call_operand.vmem [shape: bf16[1,4,8,8,32], index: 0, kind: input, shape index: {}]
  %s1 = inlined_call_operand.vmem [shape: f32[1,1,32], index: 1, kind: input, shape index: {}]
  %s2 = inlined_call_operand.vmem [shape: f32[1,1,32], index: 2, kind: input, shape index: {}]
  %s3 = inlined_call_operand.vmem [shape: bf16[3,32,32], index: 3, kind: input, shape index: {}]
  %s4 = inlined_call_operand.vmem [shape: f32[1,1,32], index: 4, kind: input, shape index: {}]
  %s5 = inlined_call_operand.vmem [shape: bf16[1,4,8,8,32], index: 5, kind: input, shape index: {}]
  %s6 = inlined_call_operand.vmem [shape: bf16[1,4,8,8,32], index: 6, kind: output, shape index: {}]
  %s7 = sld [smem:[#allocation0]]
  $region65: #{up_decoder_block_3d.14} parent=0
    _
  %s9 = ssub.s32 1, %s7
  %s10 = scalar_select 0, %s9, %s7
  loop: start=0, step=1, limit=7
  $region2: #{up_decoder_block_3d.14} parent=0 // loop_pre_header
    _
  $region3: #{up_decoder_block_3d.14} parent=0 // loop_header
    %s12 = sphi 0, %s16
    %p13 = scmp.ge.s32.totalorder %s12, 7
    %s19 = sphi 0, %s38
    %s20 = sphi 0, %s34
    %s21 = sphi 0, %s30
    %s22 = sphi 0, %s19
    %s23 = sphi 0, %s20
    %s24 = sphi 0, %s21
    %s25 = sphi 0, %s22
    %s26 = sphi 0, %s23
    %s27 = sphi 0, %s24
    %s49 = sphi 0, %s51
    %s52 = sphi 0, %s49
    %s53 = sphi 0, %s52
    %s69 = sphi 0, %s53
    %s75 = sphi 0, %s77
    %s78 = sphi 0, %s75
    %s79 = sphi 0, %s78
    %s95 = sphi 0, %s79
    %s101 = sphi 0, %s103
    %s104 = sphi 0, %s101
    %s105 = sphi 0, %s104
    %s121 = sphi 0, %s105
    %s125 = sphi 0, %s125
    %s127 = sphi 0, %s125
    %s128 = sphi 0, %s127
    %s142 = sphi 0, %s128
    %s146 = sphi 0, %s146
    %s148 = sphi 0, %s146
    %s149 = sphi 0, %s148
    %s163 = sphi 0, %s149
    %s179 = sphi 0, %s181
    %s182 = sphi 0, %s179
    %s183 = sphi 0, %s182
    %s199 = sphi 0, %s183
    %s215 = sphi 0, %s217
    %s218 = sphi 0, %s215
    %s219 = sphi 0, %s218
    %s235 = sphi 0, %s219
  $region4: #{up_decoder_block_3d.14} parent=0 // loop_header_branch
    %15 = sbr.rel (%p13) target = $region8
  $region5: #{up_decoder_block_3d.14} parent=0 // loop_body
    %s17 = ssub.s32 %s12, 1
    %s18 = ssub.s32 %s12, 2
    %s28 = sadd.s32 1, %s21
    %p29 = scmp.ge.s32.totalorder %s28, 5
    %s30 = scalar_select %p29, 0, %s28
    %s31 = sadd.s32 1, %s20
    %s32 = scalar_select %p29, %s31, %s20
    %p33 = scmp.ge.s32.totalorder %s32, 1
    %s34 = scalar_select %p33, 0, %s32
    %s35 = sadd.s32 1, %s19
    %s36 = scalar_select %p33, %s35, %s19
    %p37 = scmp.ge.s32.totalorder %s36, 1
    %s38 = scalar_select %p37, 0, %s36
    %p39 = scmp.lt.s32.totalorder %s21, 3
    %s40 = scalar_select %p39, %s21, 3
    %p41 = scmp.lt.s32.totalorder %s30, 3
    %s42 = scalar_select %p41, %s30, 3
    %s43 = ssub.s32 %s19, %s38
    %s44 = ssub.s32 %s40, %s42
    %s45 = sor.u32 %s43, %s44
    %s46 = ssub.s32 %s20, %s34
    %s47 = sor.u32 %s45, %s46
    %p48 = scmp.eq.s32.totalorder %s47, 0
    %s50 = sadd.s32 %s49, 1
    %s51 = scalar_select %p48, %s49, %s50
    %p54 = pneg %p48
    %p55 = scmp.eq.s32.totalorder %s12, 4
    %p56 = por %p54, %p55
    %p57 = scmp.ne.s32.totalorder %s49, %s52
    %p58 = scmp.eq.s32.totalorder %s12, 0
    %p59 = por %p57, %p58
    %p60 = scmp.ne.s32.totalorder %s49, %s52
    %p61 = scmp.eq.s32.totalorder %s17, 4
    %p62 = por %p60, %p61
    %p63 = scmp.ne.s32.totalorder %s52, %s53
    %p64 = scmp.eq.s32.totalorder %s17, 0
    %p65 = por %p63, %p64
    %p66 = scmp.ne.s32.totalorder %s52, %s53
    %p67 = scmp.eq.s32.totalorder %s18, 4
    %p68 = por %p66, %p67
    %p70 = scmp.ne.s32.totalorder %s53, %s69
    %p71 = scmp.eq.s32.totalorder %s18, 0
    %p72 = por %p70, %p71
    %s73 = ssub.s32 %s19, %s38
    %p74 = scmp.eq.s32.totalorder %s73, 0
    %s76 = sadd.s32 %s75, 1
    %s77 = scalar_select %p74, %s75, %s76
    %p80 = pneg %p74
    %p81 = scmp.eq.s32.totalorder %s12, 4
    %p82 = por %p80, %p81
    %p83 = scmp.ne.s32.totalorder %s75, %s78
    %p84 = scmp.eq.s32.totalorder %s12, 0
    %p85 = por %p83, %p84
    %p86 = scmp.ne.s32.totalorder %s75, %s78
    %p87 = scmp.eq.s32.totalorder %s17, 4
    %p88 = por %p86, %p87
    %p89 = scmp.ne.s32.totalorder %s78, %s79
    %p90 = scmp.eq.s32.totalorder %s17, 0
    %p91 = por %p89, %p90
    %p92 = scmp.ne.s32.totalorder %s78, %s79
    %p93 = scmp.eq.s32.totalorder %s18, 4
    %p94 = por %p92, %p93
    %p96 = scmp.ne.s32.totalorder %s79, %s95
    %p97 = scmp.eq.s32.totalorder %s18, 0
    %p98 = por %p96, %p97
    %s99 = ssub.s32 %s19, %s38
    %p100 = scmp.eq.s32.totalorder %s99, 0
    %s102 = sadd.s32 %s101, 1
    %s103 = scalar_select %p100, %s101, %s102
    %p106 = pneg %p100
    %p107 = scmp.eq.s32.totalorder %s12, 4
    %p108 = por %p106, %p107
    %p109 = scmp.ne.s32.totalorder %s101, %s104
    %p110 = scmp.eq.s32.totalorder %s12, 0
    %p111 = por %p109, %p110
    %p112 = scmp.ne.s32.totalorder %s101, %s104
    %p113 = scmp.eq.s32.totalorder %s17, 4
    %p114 = por %p112, %p113
    %p115 = scmp.ne.s32.totalorder %s104, %s105
    %p116 = scmp.eq.s32.totalorder %s17, 0
    %p117 = por %p115, %p116
    %p118 = scmp.ne.s32.totalorder %s104, %s105
    %p119 = scmp.eq.s32.totalorder %s18, 4
    %p120 = por %p118, %p119
    %p122 = scmp.ne.s32.totalorder %s105, %s121
    %p123 = scmp.eq.s32.totalorder %s18, 0
    %p124 = por %p122, %p123
    %s126 = sadd.s32 %s125, 1
    %p129 = scmp.eq.s32.totalorder %s12, 4
    %p130 = scmp.ne.s32.totalorder %s125, %s127
    %p131 = scmp.eq.s32.totalorder %s12, 0
    %p132 = por %p130, %p131
    %p133 = scmp.ne.s32.totalorder %s125, %s127
    %p134 = scmp.eq.s32.totalorder %s17, 4
    %p135 = por %p133, %p134
    %p136 = scmp.ne.s32.totalorder %s127, %s128
    %p137 = scmp.eq.s32.totalorder %s17, 0
    %p138 = por %p136, %p137
    %p139 = scmp.ne.s32.totalorder %s127, %s128
    %p140 = scmp.eq.s32.totalorder %s18, 4
    %p141 = por %p139, %p140
    %p143 = scmp.ne.s32.totalorder %s128, %s142
    %p144 = scmp.eq.s32.totalorder %s18, 0
    %p145 = por %p143, %p144
    %s147 = sadd.s32 %s146, 1
    %p150 = scmp.eq.s32.totalorder %s12, 4
    %p151 = scmp.ne.s32.totalorder %s146, %s148
    %p152 = scmp.eq.s32.totalorder %s12, 0
    %p153 = por %p151, %p152
    %p154 = scmp.ne.s32.totalorder %s146, %s148
    %p155 = scmp.eq.s32.totalorder %s17, 4
    %p156 = por %p154, %p155
    %p157 = scmp.ne.s32.totalorder %s148, %s149
    %p158 = scmp.eq.s32.totalorder %s17, 0
    %p159 = por %p157, %p158
    %p160 = scmp.ne.s32.totalorder %s148, %s149
    %p161 = scmp.eq.s32.totalorder %s18, 4
    %p162 = por %p160, %p161
    %p164 = scmp.ne.s32.totalorder %s149, %s163
    %p165 = scmp.eq.s32.totalorder %s18, 0
    %p166 = por %p164, %p165
    %s167 = ssub.s32 %s21, 1
    %p168 = scmp.gt.s32.totalorder %s167, 0
    %s169 = scalar_select %p168, %s167, 0
    %s170 = ssub.s32 %s30, 1
    %p171 = scmp.gt.s32.totalorder %s170, 0
    %s172 = scalar_select %p171, %s170, 0
    %s173 = ssub.s32 %s19, %s38
    %s174 = ssub.s32 %s169, %s172
    %s175 = sor.u32 %s173, %s174
    %s176 = ssub.s32 %s20, %s34
    %s177 = sor.u32 %s175, %s176
    %p178 = scmp.eq.s32.totalorder %s177, 0
    %s180 = sadd.s32 %s179, 1
    %s181 = scalar_select %p178, %s179, %s180
    %p184 = pneg %p178
    %p185 = scmp.eq.s32.totalorder %s12, 4
    %p186 = por %p184, %p185
    %p187 = scmp.ne.s32.totalorder %s179, %s182
    %p188 = scmp.eq.s32.totalorder %s12, 0
    %p189 = por %p187, %p188
    %p190 = scmp.ne.s32.totalorder %s179, %s182
    %p191 = scmp.eq.s32.totalorder %s17, 4
    %p192 = por %p190, %p191
    %p193 = scmp.ne.s32.totalorder %s182, %s183
    %p194 = scmp.eq.s32.totalorder %s17, 0
    %p195 = por %p193, %p194
    %p196 = scmp.ne.s32.totalorder %s182, %s183
    %p197 = scmp.eq.s32.totalorder %s18, 4
    %p198 = por %p196, %p197
    %p200 = scmp.ne.s32.totalorder %s183, %s199
    %p201 = scmp.eq.s32.totalorder %s18, 0
    %p202 = por %p200, %p201
    %s203 = ssub.s32 %s21, 1
    %p204 = scmp.gt.s32.totalorder %s203, 0
    %s205 = scalar_select %p204, %s203, 0
    %s206 = ssub.s32 %s30, 1
    %p207 = scmp.gt.s32.totalorder %s206, 0
    %s208 = scalar_select %p207, %s206, 0
    %s209 = ssub.s32 %s19, %s38
    %s210 = ssub.s32 %s205, %s208
    %s211 = sor.u32 %s209, %s210
    %s212 = ssub.s32 %s20, %s34
    %s213 = sor.u32 %s211, %s212
    %p214 = scmp.eq.s32.totalorder %s213, 0
    %s216 = sadd.s32 %s215, 1
    %s217 = scalar_select %p214, %s215, %s216
    %p220 = pneg %p214
    %p221 = scmp.eq.s32.totalorder %s12, 4
    %p222 = por %p220, %p221
    %p223 = scmp.ne.s32.totalorder %s215, %s218
    %p224 = scmp.eq.s32.totalorder %s12, 0
    %p225 = por %p223, %p224
    %p226 = scmp.ne.s32.totalorder %s215, %s218
    %p227 = scmp.eq.s32.totalorder %s17, 4
    %p228 = por %p226, %p227
    %p229 = scmp.ne.s32.totalorder %s218, %s219
    %p230 = scmp.eq.s32.totalorder %s17, 0
    %p231 = por %p229, %p230
    %p232 = scmp.ne.s32.totalorder %s218, %s219
    %p233 = scmp.eq.s32.totalorder %s18, 4
    %p234 = por %p232, %p233
    %p236 = scmp.ne.s32.totalorder %s219, %s235
    %p237 = scmp.eq.s32.totalorder %s18, 0
    %p238 = por %p236, %p237
    %p239 = scmp.le.s32.totalorder 1, %s12
    %p240 = scmp.lt.s32.totalorder %s12, 6
    %p241 = pnand %p239, %p240
    %p242 = pneg %p241
    // Predicated region
    $region9: #{up_decoder_block_3d.14} parent=5 // pred_check
      _
    $region10: #{up_decoder_block_3d.14} parent=5 // pred_check_branch
      %244 = sbr.rel (%p241) target = $region12
    $region11: #{up_decoder_block_3d.14} parent=5 // pred_region
      %s245 = ssub.s32 %s12, 1
      // Predicated region
      $region13: #{up_decoder_block_3d.14} parent=11 // pred_check
        %p246 = pneg %p91
      $region14: #{up_decoder_block_3d.14} parent=11 // pred_check_branch
        %248 = sbr.rel (%p246) target = $region16
      $region15: #{up_decoder_block_3d.14} parent=11 // pred_region
        %p249 = scmp.lt.s32.totalorder %s22, 0
        %s250 = scalar_select %p249, %s22, 0
        %s251 = scalar_lea.vmem %s1, %s250
      $region16: #{up_decoder_block_3d.14} parent=11 // pred_fallthru
        _
      // Predicated region
      $region17: #{up_decoder_block_3d.14} parent=11 // pred_check
        %p252 = pneg %p117
      $region18: #{up_decoder_block_3d.14} parent=11 // pred_check_branch
        %254 = sbr.rel (%p252) target = $region20
      $region19: #{up_decoder_block_3d.14} parent=11 // pred_region
        %p255 = scmp.lt.s32.totalorder %s22, 0
        %s256 = scalar_select %p255, %s22, 0
        %s257 = scalar_lea.vmem %s2, %s256
      $region20: #{up_decoder_block_3d.14} parent=11 // pred_fallthru
        _
      // Predicated region
      $region21: #{up_decoder_block_3d.14} parent=11 // pred_check
        %p258 = pneg %p138
      $region22: #{up_decoder_block_3d.14} parent=11 // pred_check_branch
        %260 = sbr.rel (%p258) target = $region24
      $region23: #{up_decoder_block_3d.14} parent=11 // pred_region
        _
      $region24: #{up_decoder_block_3d.14} parent=11 // pred_fallthru
        _
      // Predicated region
      $region25: #{up_decoder_block_3d.14} parent=11 // pred_check
        %p261 = pneg %p159
      $region26: #{up_decoder_block_3d.14} parent=11 // pred_check_branch
        %263 = sbr.rel (%p261) target = $region28
      $region27: #{up_decoder_block_3d.14} parent=11 // pred_region
        _
      $region28: #{up_decoder_block_3d.14} parent=11 // pred_fallthru
        _
    $region12: #{up_decoder_block_3d.14} parent=5 // pred_fallthru
      _
    %p264 = scmp.lt.s32.totalorder %s12, 5
    // Predicated region
    $region29: #{up_decoder_block_3d.14} parent=5 // pred_check
      %p265 = pneg %p264
    $region30: #{up_decoder_block_3d.14} parent=5 // pred_check_branch
      %267 = sbr.rel (%p265) target = $region32
    $region31: #{up_decoder_block_3d.14} parent=5 // pred_region
      // Predicated region
      $region33: #{up_decoder_block_3d.14} parent=31 // pred_check
        %p268 = pneg %p59
      $region34: #{up_decoder_block_3d.14} parent=31 // pred_check_branch
        %270 = sbr.rel (%p268) target = $region36
      $region35: #{up_decoder_block_3d.14} parent=31 // pred_region
        %p271 = scmp.lt.s32.totalorder %s21, 3
        %s272 = scalar_select %p271, %s21, 3
        %s273 = smul.u32 8, %s20
        %p274 = scmp.lt.s32.totalorder %s19, 0
        %s275 = scalar_select %p274, %s19, 0
        %p276 = scmp.lt.s32.totalorder %s272, 3
        %s277 = scalar_select %p276, %s272, 3
        %p278 = scmp.lt.s32.totalorder %s273, 7
        %s279 = scalar_select %p278, %s273, 7
        %s280 = smul.addr %s277, 8
        %s281 = sadd.s32 %s279, %s280
        %s282 = smul.addr %s275, 32
        %s283 = sadd.s32 %s281, %s282
        %s284 = smul.addr %s283, 4
        %s285 = scalar_lea.vmem %s0, %s284
        %p286 = scmp.lt.s32.totalorder %s21, 3
        %s287 = scalar_select %p286, %s21, 3
        %s288 = smul.u32 8, %s20
      $region36: #{up_decoder_block_3d.14} parent=31 // pred_fallthru
        _
      // Predicated region
      $region37: #{up_decoder_block_3d.14} parent=31 // pred_check
        %p289 = pneg %p189
      $region38: #{up_decoder_block_3d.14} parent=31 // pred_check_branch
        %291 = sbr.rel (%p289) target = $region40
      $region39: #{up_decoder_block_3d.14} parent=31 // pred_region
        %s292 = ssub.s32 %s21, 1
        %p293 = scmp.gt.s32.totalorder %s292, 0
        %s294 = scalar_select %p293, %s292, 0
        %s295 = smul.u32 8, %s20
        %p296 = scmp.lt.s32.totalorder %s19, 0
        %s297 = scalar_select %p296, %s19, 0
        %p298 = scmp.lt.s32.totalorder %s294, 3
        %s299 = scalar_select %p298, %s294, 3
        %p300 = scmp.lt.s32.totalorder %s295, 7
        %s301 = scalar_select %p300, %s295, 7
        %s302 = smul.addr %s299, 8
        %s303 = sadd.s32 %s301, %s302
        %s304 = smul.addr %s297, 32
        %s305 = sadd.s32 %s303, %s304
        %s306 = smul.addr %s305, 4
        %s307 = scalar_lea.vmem %s5, %s306
        %s308 = ssub.s32 %s21, 1
        %p309 = scmp.gt.s32.totalorder %s308, 0
        %s310 = scalar_select %p309, %s308, 0
        %s311 = smul.u32 8, %s20
      $region40: #{up_decoder_block_3d.14} parent=31 // pred_fallthru
        _
    $region32: #{up_decoder_block_3d.14} parent=5 // pred_fallthru
      _
    %p312 = scmp.le.s32.totalorder 1, %s12
    %p313 = scmp.lt.s32.totalorder %s12, 6
    %p314 = pnand %p312, %p313
    %p315 = pneg %p314
    // Predicated region
    $region41: #{up_decoder_block_3d.14} parent=5 // pred_check
      _
    $region42: #{up_decoder_block_3d.14} parent=5 // pred_check_branch
      %317 = sbr.rel (%p314) target = $region44
    $region43: #{up_decoder_block_3d.14} parent=5 // pred_region
      %s318 = ssub.s32 %s12, 1
      %p319 = scmp.lt.s32.totalorder %s24, 3
      %s320 = scalar_select %p319, %s24, 3
      %s321 = smul.u32 8, %s23
      %p322 = scmp.lt.s32.totalorder %s22, 0
      %s323 = scalar_select %p322, %s22, 0
      %p324 = scmp.lt.s32.totalorder %s320, 3
      %s325 = scalar_select %p324, %s320, 3
      %p326 = scmp.lt.s32.totalorder %s321, 7
      %s327 = scalar_select %p326, %s321, 7
      %s328 = smul.addr %s325, 8
      %s329 = sadd.s32 %s327, %s328
      %s330 = smul.addr %s323, 32
      %s331 = sadd.s32 %s329, %s330
      %s332 = smul.addr %s331, 4
      %s333 = scalar_lea.vmem %s0, %s332
      %p334 = pneg %p65
      %p335 = pneg %p62
      %p336 = scmp.lt.s32.totalorder %s22, 0
      %s337 = scalar_select %p336, %s22, 0
      %s338 = scalar_lea.vmem %s1, %s337
      %p339 = pneg %p91
      %p340 = pneg %p88
      %p341 = scmp.lt.s32.totalorder %s22, 0
      %s342 = scalar_select %p341, %s22, 0
      %s343 = scalar_lea.vmem %s2, %s342
      %p344 = pneg %p117
      %p345 = pneg %p114
      %p346 = pneg %p138
      %p347 = pneg %p135
      %p348 = pneg %p159
      %p349 = pneg %p156
      %s350 = ssub.s32 %s24, 1
      %p351 = scmp.gt.s32.totalorder %s350, 0
      %s352 = scalar_select %p351, %s350, 0
      %s353 = smul.u32 8, %s23
      %p354 = scmp.lt.s32.totalorder %s22, 0
      %s355 = scalar_select %p354, %s22, 0
      %p356 = scmp.lt.s32.totalorder %s352, 3
      %s357 = scalar_select %p356, %s352, 3
      %p358 = scmp.lt.s32.totalorder %s353, 7
      %s359 = scalar_select %p358, %s353, 7
      %s360 = smul.addr %s357, 8
      %s361 = sadd.s32 %s359, %s360
      %s362 = smul.addr %s355, 32
      %s363 = sadd.s32 %s361, %s362
      %s364 = smul.addr %s363, 4
      %s365 = scalar_lea.vmem %s5, %s364
      %p366 = pneg %p195
      %p367 = pneg %p192
      %p368 = pneg %p231
      %p369 = pneg %p228
      %s370 = ssub.s32 %s24, 1
      %p371 = scmp.gt.s32.totalorder %s370, 0
      %s372 = scalar_select %p371, %s370, 0
      %s373 = smul.u32 8, %s23
      %p374 = scmp.lt.s32.totalorder %s22, 0
      %s375 = scalar_select %p374, %s22, 0
      %p376 = scmp.lt.s32.totalorder %s372, 3
      %s377 = scalar_select %p376, %s372, 3
      %p378 = scmp.lt.s32.totalorder %s373, 7
      %s379 = scalar_select %p378, %s373, 7
      %s380 = smul.addr %s377, 8
      %s381 = sadd.s32 %s379, %s380
      %s382 = smul.addr %s375, 32
      %s383 = sadd.s32 %s381, %s382
      %s384 = smul.addr %s383, 4
      %s385 = scalar_lea.vmem %s6, %s384
      %p386 = scmp.lt.s32.totalorder %s24, 3
      %s387 = scalar_select %p386, %s24, 3
      %s388 = smul.u32 8, %s23
      %p389 = scmp.lt.s32.totalorder %s22, 0
      %s390 = scalar_select %p389, %s22, 0
      %p391 = scmp.lt.s32.totalorder %s387, 3
      %s392 = scalar_select %p391, %s387, 3
      %p393 = scmp.lt.s32.totalorder %s388, 7
      %s394 = scalar_select %p393, %s388, 7
      %s395 = smul.addr %s392, 8
      %s396 = sadd.s32 %s394, %s395
      %s397 = smul.addr %s390, 32
      %s398 = sadd.s32 %s396, %s397
      %s399 = smul.addr %s398, 4
      %s400 = scalar_lea.vmem %s0, %s399
      %p401 = scmp.lt.s32.totalorder %s24, 3
      %s402 = scalar_select %p401, %s24, 3
      %s403 = smul.u32 8, %s23
      %p404 = scmp.lt.s32.totalorder %s22, 0
      %s405 = scalar_select %p404, %s22, 0
      %s406 = scalar_lea.vmem %s1, %s405
      %p407 = scmp.lt.s32.totalorder %s22, 0
      %s408 = scalar_select %p407, %s22, 0
      %s409 = scalar_lea.vmem %s2, %s408
      %s410 = ssub.s32 %s24, 1
      %p411 = scmp.gt.s32.totalorder %s410, 0
      %s412 = scalar_select %p411, %s410, 0
      %s413 = smul.u32 8, %s23
      %p414 = scmp.lt.s32.totalorder %s22, 0
      %s415 = scalar_select %p414, %s22, 0
      %p416 = scmp.lt.s32.totalorder %s412, 3
      %s417 = scalar_select %p416, %s412, 3
      %p418 = scmp.lt.s32.totalorder %s413, 7
      %s419 = scalar_select %p418, %s413, 7
      %s420 = smul.addr %s417, 8
      %s421 = sadd.s32 %s419, %s420
      %s422 = smul.addr %s415, 32
      %s423 = sadd.s32 %s421, %s422
      %s424 = smul.addr %s423, 4
      %s425 = scalar_lea.vmem %s5, %s424
      %s426 = ssub.s32 %s24, 1
      %p427 = scmp.gt.s32.totalorder %s426, 0
      %s428 = scalar_select %p427, %s426, 0
      %s429 = smul.u32 8, %s23
      %s430 = ssub.s32 %s24, 1
      %p431 = scmp.gt.s32.totalorder %s430, 0
      %s432 = scalar_select %p431, %s430, 0
      %s433 = smul.u32 8, %s23
      %p434 = scmp.lt.s32.totalorder %s22, 0
      %s435 = scalar_select %p434, %s22, 0
      %p436 = scmp.lt.s32.totalorder %s432, 3
      %s437 = scalar_select %p436, %s432, 3
      %p438 = scmp.lt.s32.totalorder %s433, 7
      %s439 = scalar_select %p438, %s433, 7
      %s440 = smul.addr %s437, 8
      %s441 = sadd.s32 %s439, %s440
      %s442 = smul.addr %s435, 32
      %s443 = sadd.s32 %s441, %s442
      %s444 = smul.addr %s443, 4
      %s445 = scalar_lea.vmem %s6, %s444
      %s446 = ssub.s32 %s24, 1
      %p447 = scmp.gt.s32.totalorder %s446, 0
      %s448 = scalar_select %p447, %s446, 0
      %s449 = smul.u32 8, %s23
      %p451 = scmp.lt.s32.totalorder %s24, 4
      // Predicated region
      $region45: #{up_decoder_block_3d.14} parent=43 // pred_check
        %p452 = pneg %p451
      $region46: #{up_decoder_block_3d.14} parent=43 // pred_check_branch
        %454 = sbr.rel (%p452) target = $region48
      $region47: #{up_decoder_block_3d.14} parent=43 // pred_region
        %v455 = vld [vmem:[%s400] sm:$0xf]
        %v456 = vld [vmem:[%s400 + $0x4] sm:$0xf]
        %v457 = vld [vmem:[%s400 + $0x8] sm:$0xf]
        %v458 = vld [vmem:[%s400 + $0xc] sm:$0xf]
        %v459 = vld [vmem:[%s400 + $0x10] sm:$0xf]
        %v460 = vld [vmem:[%s400 + $0x14] sm:$0xf]
        %v461 = vld [vmem:[%s400 + $0x18] sm:$0xf]
        %v462 = vld [vmem:[%s400 + $0x1c] sm:$0xf]
        %v463 = vunpack.c.l.bf16 %v455
        %v464 = vunpack.c.l.bf16 %v456
        %v465 = vunpack.c.l.bf16 %v457
        %v466 = vunpack.c.l.bf16 %v458
        %v467 = vunpack.c.l.bf16 %v459
        %v468 = vunpack.c.l.bf16 %v460
        %v469 = vunpack.c.l.bf16 %v461
        %v470 = vunpack.c.l.bf16 %v462
        %v471 = vld [vmem:[%s406] sm:$0x1]
        %v473 = vlaneseq
        %v474 = vshrl.u32 %v473, 7
        %v475 = vsub.s32 0, %v474
        %v476 = vrot.slane %v471, %v475
        %v478 = vmul.f32 %v463, %v476
        %v479 = vmul.f32 %v464, %v476
        %v480 = vmul.f32 %v465, %v476
        %v481 = vmul.f32 %v466, %v476
        %v482 = vmul.f32 %v467, %v476
        %v483 = vmul.f32 %v468, %v476
        %v484 = vmul.f32 %v469, %v476
        %v485 = vmul.f32 %v470, %v476
        %v486 = vld [vmem:[%s409] sm:$0x1]
        %v488 = vlaneseq
        %v489 = vshrl.u32 %v488, 7
        %v490 = vsub.s32 0, %v489
        %v491 = vrot.slane %v486, %v490
        %v493 = vadd.f32 %v478, %v491
        %v494 = vadd.f32 %v479, %v491
        %v495 = vadd.f32 %v480, %v491
        %v496 = vadd.f32 %v481, %v491
        %v497 = vadd.f32 %v482, %v491
        %v498 = vadd.f32 %v483, %v491
        %v499 = vadd.f32 %v484, %v491
        %v500 = vadd.f32 %v485, %v491
        %v501 = vxor.u32 %v493, 2147483648
        %v502 = vxor.u32 %v494, 2147483648
        %v503 = vxor.u32 %v495, 2147483648
        %v504 = vxor.u32 %v496, 2147483648
        %v505 = vxor.u32 %v497, 2147483648
        %v506 = vxor.u32 %v498, 2147483648
        %v507 = vxor.u32 %v499, 2147483648
        %v508 = vxor.u32 %v500, 2147483648
        %v509 = vmul.f32 %v501, 1.442695
        %v510 = vpow.pop %v509
        %v511 = vmul.f32 %v502, 1.442695
        %v512 = vpow.pop %v511
        %v513 = vmul.f32 %v503, 1.442695
        %v514 = vpow.pop %v513
        %v515 = vmul.f32 %v504, 1.442695
        %v516 = vpow.pop %v515
        %v517 = vmul.f32 %v505, 1.442695
        %v518 = vpow.pop %v517
        %v519 = vmul.f32 %v506, 1.442695
        %v520 = vpow.pop %v519
        %v521 = vmul.f32 %v507, 1.442695
        %v522 = vpow.pop %v521
        %v523 = vmul.f32 %v508, 1.442695
        %v524 = vpow.pop %v523
        %v525 = vadd.f32 %v510, 1.0
        %v526 = vadd.f32 %v512, 1.0
        %v527 = vadd.f32 %v514, 1.0
        %v528 = vadd.f32 %v516, 1.0
        %v529 = vadd.f32 %v518, 1.0
        %v530 = vadd.f32 %v520, 1.0
        %v531 = vadd.f32 %v522, 1.0
        %v532 = vadd.f32 %v524, 1.0
        %v533 = vrcp.pop %v525
        %v534 = vmul.f32 1.0, %v533
        %v535 = vrcp.pop %v526
        %v536 = vmul.f32 1.0, %v535
        %v537 = vrcp.pop %v527
        %v538 = vmul.f32 1.0, %v537
        %v539 = vrcp.pop %v528
        %v540 = vmul.f32 1.0, %v539
        %v541 = vrcp.pop %v529
        %v542 = vmul.f32 1.0, %v541
        %v543 = vrcp.pop %v530
        %v544 = vmul.f32 1.0, %v543
        %v545 = vrcp.pop %v531
        %v546 = vmul.f32 1.0, %v545
        %v547 = vrcp.pop %v532
        %v548 = vmul.f32 1.0, %v547
        %v549 = vmul.f32 %v493, %v534
        %v550 = vmul.f32 %v494, %v536
        %v551 = vmul.f32 %v495, %v538
        %v552 = vmul.f32 %v496, %v540
        %v553 = vmul.f32 %v497, %v542
        %v554 = vmul.f32 %v498, %v544
        %v555 = vmul.f32 %v499, %v546
        %v556 = vmul.f32 %v500, %v548
        %v557 = vpack.c.bf16 %v549, %v549
        %v558 = vpack.c.bf16 %v550, %v550
        %v559 = vpack.c.bf16 %v551, %v551
        %v560 = vpack.c.bf16 %v552, %v552
        %v561 = vpack.c.bf16 %v553, %v553
        %v562 = vpack.c.bf16 %v554, %v554
        %v563 = vpack.c.bf16 %v555, %v555
        %v564 = vpack.c.bf16 %v556, %v556
        %p565 = scmp.lt.s32.totalorder %s24, 0
        %s566 = ssub.s32 0, %s24
        %s567 = scalar_select %p565, %s566, %s24
        %s568 = sdiv.u32.pop %s567, 3
        %s569 = srem.u32.pop %s567, 3
        %s570 = ssub.s32 0, %s569
        %s571 = scalar_select %p565, %s570, %s569
        %p572 = scmp.ne.s32.totalorder %s571, 0
        %p573 = scmp.lt.s32.totalorder %s571, 0
        %p574 = pnand %p573, %p572
        %p575 = pneg %p574
        %s576 = sadd.s32 %s571, 3
        %s577 = scalar_select %p575, %s576, %s571
        %s578 = smul.u32 %s577, 8
        %s579 = smul.addr %s578, 4
        %s580 = scalar_lea.vmem [#allocation2], %s579
        %vm581 = vcmask 257024
        %582 = vst.msk [vmem:[%s580] sm:$0xf] %vm581, %v557
        %583 = vst.msk [vmem:[%s580 + $0x4] sm:$0xf] %vm581, %v558
        %584 = vst.msk [vmem:[%s580 + $0x8] sm:$0xf] %vm581, %v559
        %585 = vst.msk [vmem:[%s580 + $0xc] sm:$0xf] %vm581, %v560
        %586 = vst.msk [vmem:[%s580 + $0x10] sm:$0xf] %vm581, %v561
        %587 = vst.msk [vmem:[%s580 + $0x14] sm:$0xf] %vm581, %v562
        %588 = vst.msk [vmem:[%s580 + $0x18] sm:$0xf] %vm581, %v563
        %589 = vst.msk [vmem:[%s580 + $0x1c] sm:$0xf] %vm581, %v564
      $region48: #{up_decoder_block_3d.14} parent=43 // pred_fallthru
        _
      %p590 = scmp.gt.s32.totalorder %s24, 0
      // Predicated region
      $region49: #{up_decoder_block_3d.14} parent=43 // pred_check
        %p591 = pneg %p590
      $region50: #{up_decoder_block_3d.14} parent=43 // pred_check_branch
        %593 = sbr.rel (%p591) target = $region52
      $region51: #{up_decoder_block_3d.14} parent=43 // pred_region
        %s594 = ssub.s32 %s24, 1
        %s595 = ssub.s32 %s24, 2
        %p596 = scmp.gt.s32.totalorder %s595, 0
        %s597 = scalar_select %p596, %s595, 0
        %p598 = scmp.lt.s32.totalorder %s597, 0
        %s599 = ssub.s32 0, %s597
        %s600 = scalar_select %p598, %s599, %s597
        %s601 = sdiv.u32.pop %s600, 3
        %s602 = srem.u32.pop %s600, 3
        %s603 = ssub.s32 0, %s602
        %s604 = scalar_select %p598, %s603, %s602
        %p605 = scmp.ne.s32.totalorder %s604, 0
        %p606 = scmp.lt.s32.totalorder %s604, 0
        %p607 = pnand %p606, %p605
        %p608 = pneg %p607
        %s609 = sadd.s32 %s604, 3
        %s610 = scalar_select %p608, %s609, %s604
        %p611 = scmp.lt.s32.totalorder %s594, 0
        %s612 = ssub.s32 0, %s594
        %s613 = scalar_select %p611, %s612, %s594
        %s614 = sdiv.u32.pop %s613, 3
        %s615 = srem.u32.pop %s613, 3
        %s616 = ssub.s32 0, %s615
        %s617 = scalar_select %p611, %s616, %s615
        %p618 = scmp.ne.s32.totalorder %s617, 0
        %p619 = scmp.lt.s32.totalorder %s617, 0
        %p620 = pnand %p619, %p618
        %p621 = pneg %p620
        %s622 = sadd.s32 %s617, 3
        %s623 = scalar_select %p621, %s622, %s617
        %p624 = scmp.lt.s32.totalorder %s24, 3
        %s625 = scalar_select %p624, %s24, 3
        %p626 = scmp.lt.s32.totalorder %s625, 0
        %s627 = ssub.s32 0, %s625
        %s628 = scalar_select %p626, %s627, %s625
        %s629 = sdiv.u32.pop %s628, 3
        %s630 = srem.u32.pop %s628, 3
        %s631 = ssub.s32 0, %s630
        %s632 = scalar_select %p626, %s631, %s630
        %p633 = scmp.ne.s32.totalorder %s632, 0
        %p634 = scmp.lt.s32.totalorder %s632, 0
        %p635 = pnand %p634, %p633
        %p636 = pneg %p635
        %s637 = sadd.s32 %s632, 3
        %s638 = scalar_select %p636, %s637, %s632
        %s639 = smul.u32 %s610, 8
        %s640 = smul.addr %s639, 4
        %s641 = scalar_lea.vmem [#allocation2], %s640
        %v642 = vld [vmem:[%s641] sm:$0xf]
        %v643 = vld [vmem:[%s641 + $0x4] sm:$0xf]
        %v644 = vld [vmem:[%s641 + $0x8] sm:$0xf]
        %v645 = vld [vmem:[%s641 + $0xc] sm:$0xf]
        %v646 = vld [vmem:[%s641 + $0x10] sm:$0xf]
        %v647 = vld [vmem:[%s641 + $0x14] sm:$0xf]
        %v648 = vld [vmem:[%s641 + $0x18] sm:$0xf]
        %v649 = vld [vmem:[%s641 + $0x1c] sm:$0xf]
        %v650 = vld [vmem:[%s3] sm:$0xf]
        %v651 = vld [vmem:[%s3 + $0x4] sm:$0xf]
        %v652 = vld [vmem:[%s3 + $0x8] sm:$0xf]
        %v653 = vld [vmem:[%s3 + $0xc] sm:$0xf]
        %s654 = smul.u32 %s623, 8
        %s655 = smul.addr %s654, 4
        %s656 = scalar_lea.vmem [#allocation2], %s655
        %v657 = vld [vmem:[%s656] sm:$0xf]
        %v658 = vld [vmem:[%s656 + $0x4] sm:$0xf]
        %v659 = vld [vmem:[%s656 + $0x8] sm:$0xf]
        %v660 = vld [vmem:[%s656 + $0xc] sm:$0xf]
        %v661 = vld [vmem:[%s656 + $0x10] sm:$0xf]
        %v662 = vld [vmem:[%s656 + $0x14] sm:$0xf]
        %v663 = vld [vmem:[%s656 + $0x18] sm:$0xf]
        %v664 = vld [vmem:[%s656 + $0x1c] sm:$0xf]
        %s665 = scalar_lea.vmem %s3, 16
        %v666 = vld [vmem:[%s665] sm:$0xf]
        %v667 = vld [vmem:[%s665 + $0x4] sm:$0xf]
        %v668 = vld [vmem:[%s665 + $0x8] sm:$0xf]
        %v669 = vld [vmem:[%s665 + $0xc] sm:$0xf]
        %v678 = vunpack.c.l.b16 %v657
        %v679 = vunpack.c.l.b16 %v658
        %v680 = vunpack.c.l.b16 %v659
        %v681 = vunpack.c.l.b16 %v660
        %v682 = vunpack.c.l.b16 %v661
        %v683 = vunpack.c.l.b16 %v662
        %v684 = vunpack.c.l.b16 %v663
        %v685 = vunpack.c.l.b16 %v664
        %v686 = vpack.c.b16 %v679, %v678
        %v687 = vpack.c.b16 %v681, %v680
        %v688 = vpack.c.b16 %v683, %v682
        %v689 = vpack.c.b16 %v685, %v684
        %v694 = vunpack.c.l.b16 %v666
        %v695 = vunpack.c.l.b16 %v667
        %v696 = vunpack.c.l.b16 %v668
        %v697 = vunpack.c.l.b16 %v669
        %v698 = vpack.c.b16 %v695, %v694
        %v699 = vpack.c.b16 %v697, %v696
        %vm702 = vcmask 261120
        %v704 = vsel %vm702, %v686, 0
        %v707 = vsel %vm702, %v687, 0
        %v710 = vsel %vm702, %v688, 0
        %v713 = vsel %vm702, %v689, 0
        %715 = vmatprep.subr.bf16.mxu0 0
        %716 = vmatpush1.bf16.msra.mxu0 %v698
        %717 = vmatprep.subr.bf16.mxu0 0
        %718 = vmatpush1.bf16.msra.mxu0 %v699
        %719 = vmatprep.subr.bf16.mxu0 0
        %720 = vmatpush1.bf16.msra.mxu0 0
        %721 = vmatprep.subr.bf16.mxu0 0
        %722 = vmatpush1.bf16.msra.mxu0 0
        %723 = vmatprep.subr.bf16.mxu0 0
        %724 = vmatpush1.bf16.msra.mxu0 0
        %725 = vmatprep.subr.bf16.mxu0 0
        %726 = vmatpush1.bf16.msra.mxu0 0
        %727 = vmatprep.subr.bf16.mxu0 0
        %728 = vmatpush1.bf16.msra.mxu0 0
        %729 = vmatprep.subr.bf16.mxu0 0
        %730 = vmatpush1.bf16.msra.mxu0 0
        %731 = vmatprep.subr.bf16.mxu0 0
        %732 = vmatpush1.bf16.msra.mxu0 0
        %733 = vmatprep.subr.bf16.mxu0 0
        %734 = vmatpush1.bf16.msra.mxu0 0
        %735 = vmatprep.subr.bf16.mxu0 0
        %736 = vmatpush1.bf16.msra.mxu0 0
        %737 = vmatprep.subr.bf16.mxu0 0
        %738 = vmatpush1.bf16.msra.mxu0 0
        %739 = vmatprep.subr.bf16.mxu0 0
        %740 = vmatpush1.bf16.msra.mxu0 0
        %741 = vmatprep.subr.bf16.mxu0 0
        %742 = vmatpush1.bf16.msra.mxu0 0
        %743 = vmatprep.subr.bf16.mxu0 0
        %744 = vmatpush1.bf16.msra.mxu0 0
        %745 = vmatprep.subr.bf16.mxu0 0
        %746 = vmatpush1.bf16.msra.mxu0 0
        %747 = vmatprep.mubr.bf16.mxu0 0
        %748 = vmatmul.mubr.bf16.gmra.mrb[0].mxu0 %v704
        %v749 = vpop.f32.mrb[0].mxu0
        %v750 = vadd.f32 0.0, %v749
        %v751 = vpop.f32.mrb[0].mxu0
        %v752 = vpop.f32.mrb[0].mxu0
        %v753 = vadd.f32 0.0, %v752
        %v754 = vpop.f32.mrb[0].mxu0
        %755 = vmatprep.mubr.bf16.mxu0 0
        %756 = vmatmul.mubr.bf16.gmra.mrb[0].mxu0 %v707
        %v757 = vpop.f32.mrb[0].mxu0
        %v758 = vadd.f32 0.0, %v757
        %v759 = vpop.f32.mrb[0].mxu0
        %v760 = vpop.f32.mrb[0].mxu0
        %v761 = vadd.f32 0.0, %v760
        %v762 = vpop.f32.mrb[0].mxu0
        %763 = vmatprep.mubr.bf16.mxu0 0
        %764 = vmatmul.mubr.bf16.gmra.mrb[0].mxu0 %v710
        %v765 = vpop.f32.mrb[0].mxu0
        %v766 = vadd.f32 0.0, %v765
        %v767 = vpop.f32.mrb[0].mxu0
        %v768 = vpop.f32.mrb[0].mxu0
        %v769 = vadd.f32 0.0, %v768
        %v770 = vpop.f32.mrb[0].mxu0
        %771 = vmatprep.mubr.bf16.mxu0 0
        %772 = vmatmul.mubr.bf16.gmra.mrb[0].mxu0 %v713
        %v773 = vpop.f32.mrb[0].mxu0
        %v774 = vadd.f32 0.0, %v773
        %v775 = vpop.f32.mrb[0].mxu0
        %v776 = vpop.f32.mrb[0].mxu0
        %v777 = vadd.f32 0.0, %v776
        %v778 = vpop.f32.mrb[0].mxu0
        %779 = vdwg.mxu0
        %v788 = vunpack.c.l.b16 %v642
        %v789 = vunpack.c.l.b16 %v643
        %v790 = vunpack.c.l.b16 %v644
        %v791 = vunpack.c.l.b16 %v645
        %v792 = vunpack.c.l.b16 %v646
        %v793 = vunpack.c.l.b16 %v647
        %v794 = vunpack.c.l.b16 %v648
        %v795 = vunpack.c.l.b16 %v649
        %v796 = vpack.c.b16 %v789, %v788
        %v797 = vpack.c.b16 %v791, %v790
        %v798 = vpack.c.b16 %v793, %v792
        %v799 = vpack.c.b16 %v795, %v794
        %v804 = vunpack.c.l.b16 %v650
        %v805 = vunpack.c.l.b16 %v651
        %v806 = vunpack.c.l.b16 %v652
        %v807 = vunpack.c.l.b16 %v653
        %v808 = vpack.c.b16 %v805, %v804
        %v809 = vpack.c.b16 %v807, %v806
        %v813 = vsel %vm702, %v796, 0
        %v816 = vsel %vm702, %v797, 0
        %v819 = vsel %vm702, %v798, 0
        %v822 = vsel %vm702, %v799, 0
        %824 = vmatprep.subr.bf16.mxu0 0
        %825 = vmatpush1.bf16.msra.mxu0 %v808
        %826 = vmatprep.subr.bf16.mxu0 0
        %827 = vmatpush1.bf16.msra.mxu0 %v809
        %828 = vmatprep.subr.bf16.mxu0 0
        %829 = vmatpush1.bf16.msra.mxu0 0
        %830 = vmatprep.subr.bf16.mxu0 0
        %831 = vmatpush1.bf16.msra.mxu0 0
        %832 = vmatprep.subr.bf16.mxu0 0
        %833 = vmatpush1.bf16.msra.mxu0 0
        %834 = vmatprep.subr.bf16.mxu0 0
        %835 = vmatpush1.bf16.msra.mxu0 0
        %836 = vmatprep.subr.bf16.mxu0 0
        %837 = vmatpush1.bf16.msra.mxu0 0
        %838 = vmatprep.subr.bf16.mxu0 0
        %839 = vmatpush1.bf16.msra.mxu0 0
        %840 = vmatprep.subr.bf16.mxu0 0
        %841 = vmatpush1.bf16.msra.mxu0 0
        %842 = vmatprep.subr.bf16.mxu0 0
        %843 = vmatpush1.bf16.msra.mxu0 0
        %844 = vmatprep.subr.bf16.mxu0 0
        %845 = vmatpush1.bf16.msra.mxu0 0
        %846 = vmatprep.subr.bf16.mxu0 0
        %847 = vmatpush1.bf16.msra.mxu0 0
        %848 = vmatprep.subr.bf16.mxu0 0
        %849 = vmatpush1.bf16.msra.mxu0 0
        %850 = vmatprep.subr.bf16.mxu0 0
        %851 = vmatpush1.bf16.msra.mxu0 0
        %852 = vmatprep.subr.bf16.mxu0 0
        %853 = vmatpush1.bf16.msra.mxu0 0
        %854 = vmatprep.subr.bf16.mxu0 0
        %855 = vmatpush1.bf16.msra.mxu0 0
        %856 = vmatprep.mubr.bf16.mxu0 0
        %857 = vmatmul.mubr.bf16.gmra.mrb[0].mxu0 %v813
        %v858 = vpop.f32.mrb[0].mxu0
        %v859 = vadd.f32 %v750, %v858
        %v860 = vpop.f32.mrb[0].mxu0
        %v861 = vpop.f32.mrb[0].mxu0
        %v862 = vadd.f32 %v753, %v861
        %v863 = vpop.f32.mrb[0].mxu0
        %864 = vmatprep.mubr.bf16.mxu0 0
        %865 = vmatmul.mubr.bf16.gmra.mrb[0].mxu0 %v816
        %v866 = vpop.f32.mrb[0].mxu0
        %v867 = vadd.f32 %v758, %v866
        %v868 = vpop.f32.mrb[0].mxu0
        %v869 = vpop.f32.mrb[0].mxu0
        %v870 = vadd.f32 %v761, %v869
        %v871 = vpop.f32.mrb[0].mxu0
        %872 = vmatprep.mubr.bf16.mxu0 0
        %873 = vmatmul.mubr.bf16.gmra.mrb[0].mxu0 %v819
        %v874 = vpop.f32.mrb[0].mxu0
        %v875 = vadd.f32 %v766, %v874
        %v876 = vpop.f32.mrb[0].mxu0
        %v877 = vpop.f32.mrb[0].mxu0
        %v878 = vadd.f32 %v769, %v877
        %v879 = vpop.f32.mrb[0].mxu0
        %880 = vmatprep.mubr.bf16.mxu0 0
        %881 = vmatmul.mubr.bf16.gmra.mrb[0].mxu0 %v822
        %v882 = vpop.f32.mrb[0].mxu0
        %v883 = vadd.f32 %v774, %v882
        %v884 = vpop.f32.mrb[0].mxu0
        %v885 = vpop.f32.mrb[0].mxu0
        %v886 = vadd.f32 %v777, %v885
        %v887 = vpop.f32.mrb[0].mxu0
        %888 = vdwg.mxu0
        %s889 = smul.u32 %s638, 8
        %s890 = smul.addr %s889, 4
        %s891 = scalar_lea.vmem [#allocation2], %s890
        %v892 = vld [vmem:[%s891] sm:$0xf]
        %v893 = vld [vmem:[%s891 + $0x4] sm:$0xf]
        %v894 = vld [vmem:[%s891 + $0x8] sm:$0xf]
        %v895 = vld [vmem:[%s891 + $0xc] sm:$0xf]
        %v896 = vld [vmem:[%s891 + $0x10] sm:$0xf]
        %v897 = vld [vmem:[%s891 + $0x14] sm:$0xf]
        %v898 = vld [vmem:[%s891 + $0x18] sm:$0xf]
        %v899 = vld [vmem:[%s891 + $0x1c] sm:$0xf]
        %s900 = scalar_lea.vmem %s3, 32
        %v901 = vld [vmem:[%s900] sm:$0xf]
        %v902 = vld [vmem:[%s900 + $0x4] sm:$0xf]
        %v903 = vld [vmem:[%s900 + $0x8] sm:$0xf]
        %v904 = vld [vmem:[%s900 + $0xc] sm:$0xf]
        %v913 = vunpack.c.l.b16 %v892
        %v914 = vunpack.c.l.b16 %v893
        %v915 = vunpack.c.l.b16 %v894
        %v916 = vunpack.c.l.b16 %v895
        %v917 = vunpack.c.l.b16 %v896
        %v918 = vunpack.c.l.b16 %v897
        %v919 = vunpack.c.l.b16 %v898
        %v920 = vunpack.c.l.b16 %v899
        %v921 = vpack.c.b16 %v914, %v913
        %v922 = vpack.c.b16 %v916, %v915
        %v923 = vpack.c.b16 %v918, %v917
        %v924 = vpack.c.b16 %v920, %v919
        %v929 = vunpack.c.l.b16 %v901
        %v930 = vunpack.c.l.b16 %v902
        %v931 = vunpack.c.l.b16 %v903
        %v932 = vunpack.c.l.b16 %v904
        %v933 = vpack.c.b16 %v930, %v929
        %v934 = vpack.c.b16 %v932, %v931
        %v938 = vsel %vm702, %v921, 0
        %v941 = vsel %vm702, %v922, 0
        %v944 = vsel %vm702, %v923, 0
        %v947 = vsel %vm702, %v924, 0
        %949 = vmatprep.subr.bf16.mxu0 0
        %950 = vmatpush1.bf16.msra.mxu0 %v933
        %951 = vmatprep.subr.bf16.mxu0 0
        %952 = vmatpush1.bf16.msra.mxu0 %v934
        %953 = vmatprep.subr.bf16.mxu0 0
        %954 = vmatpush1.bf16.msra.mxu0 0
        %955 = vmatprep.subr.bf16.mxu0 0
        %956 = vmatpush1.bf16.msra.mxu0 0
        %957 = vmatprep.subr.bf16.mxu0 0
        %958 = vmatpush1.bf16.msra.mxu0 0
        %959 = vmatprep.subr.bf16.mxu0 0
        %960 = vmatpush1.bf16.msra.mxu0 0
        %961 = vmatprep.subr.bf16.mxu0 0
        %962 = vmatpush1.bf16.msra.mxu0 0
        %963 = vmatprep.subr.bf16.mxu0 0
        %964 = vmatpush1.bf16.msra.mxu0 0
        %965 = vmatprep.subr.bf16.mxu0 0
        %966 = vmatpush1.bf16.msra.mxu0 0
        %967 = vmatprep.subr.bf16.mxu0 0
        %968 = vmatpush1.bf16.msra.mxu0 0
        %969 = vmatprep.subr.bf16.mxu0 0
        %970 = vmatpush1.bf16.msra.mxu0 0
        %971 = vmatprep.subr.bf16.mxu0 0
        %972 = vmatpush1.bf16.msra.mxu0 0
        %973 = vmatprep.subr.bf16.mxu0 0
        %974 = vmatpush1.bf16.msra.mxu0 0
        %975 = vmatprep.subr.bf16.mxu0 0
        %976 = vmatpush1.bf16.msra.mxu0 0
        %977 = vmatprep.subr.bf16.mxu0 0
        %978 = vmatpush1.bf16.msra.mxu0 0
        %979 = vmatprep.subr.bf16.mxu0 0
        %980 = vmatpush1.bf16.msra.mxu0 0
        %981 = vmatprep.mubr.bf16.mxu0 0
        %982 = vmatmul.mubr.bf16.gmra.mrb[0].mxu0 %v938
        %v983 = vpop.f32.mrb[0].mxu0
        %v984 = vadd.f32 0.0, %v983
        %v985 = vpop.f32.mrb[0].mxu0
        %v986 = vpop.f32.mrb[0].mxu0
        %v987 = vadd.f32 0.0, %v986
        %v988 = vpop.f32.mrb[0].mxu0
        %989 = vmatprep.mubr.bf16.mxu0 0
        %990 = vmatmul.mubr.bf16.gmra.mrb[0].mxu0 %v941
        %v991 = vpop.f32.mrb[0].mxu0
        %v992 = vadd.f32 0.0, %v991
        %v993 = vpop.f32.mrb[0].mxu0
        %v994 = vpop.f32.mrb[0].mxu0
        %v995 = vadd.f32 0.0, %v994
        %v996 = vpop.f32.mrb[0].mxu0
        %997 = vmatprep.mubr.bf16.mxu0 0
        %998 = vmatmul.mubr.bf16.gmra.mrb[0].mxu0 %v944
        %v999 = vpop.f32.mrb[0].mxu0
        %v1000 = vadd.f32 0.0, %v999
        %v1001 = vpop.f32.mrb[0].mxu0
        %v1002 = vpop.f32.mrb[0].mxu0
        %v1003 = vadd.f32 0.0, %v1002
        %v1004 = vpop.f32.mrb[0].mxu0
        %1005 = vmatprep.mubr.bf16.mxu0 0
        %1006 = vmatmul.mubr.bf16.gmra.mrb[0].mxu0 %v947
        %v1007 = vpop.f32.mrb[0].mxu0
        %v1008 = vadd.f32 0.0, %v1007
        %v1009 = vpop.f32.mrb[0].mxu0
        %v1010 = vpop.f32.mrb[0].mxu0
        %v1011 = vadd.f32 0.0, %v1010
        %v1012 = vpop.f32.mrb[0].mxu0
        %1013 = vdwg.mxu0
        %v1014 = vadd.f32 %v859, %v984
        %v1015 = vadd.f32 %v862, %v987
        %v1016 = vadd.f32 %v867, %v992
        %v1017 = vadd.f32 %v870, %v995
        %v1018 = vadd.f32 %v875, %v1000
        %v1019 = vadd.f32 %v878, %v1003
        %v1020 = vadd.f32 %v883, %v1008
        %v1021 = vadd.f32 %v886, %v1011
        %v1022 = vld [vmem:[%s4] sm:$0x1]
        %v1024 = vlaneseq
        %v1025 = vshrl.u32 %v1024, 7
        %v1026 = vsub.s32 0, %v1025
        %v1027 = vrot.slane %v1022, %v1026
        %v1029 = vadd.f32 %v1014, %v1027
        %v1030 = vadd.f32 %v1015, %v1027
        %v1031 = vadd.f32 %v1016, %v1027
        %v1032 = vadd.f32 %v1017, %v1027
        %v1033 = vadd.f32 %v1018, %v1027
        %v1034 = vadd.f32 %v1019, %v1027
        %v1035 = vadd.f32 %v1020, %v1027
        %v1036 = vadd.f32 %v1021, %v1027
        %v1037 = vld [vmem:[%s425] sm:$0xf]
        %v1038 = vld [vmem:[%s425 + $0x4] sm:$0xf]
        %v1039 = vld [vmem:[%s425 + $0x8] sm:$0xf]
        %v1040 = vld [vmem:[%s425 + $0xc] sm:$0xf]
        %v1041 = vld [vmem:[%s425 + $0x10] sm:$0xf]
        %v1042 = vld [vmem:[%s425 + $0x14] sm:$0xf]
        %v1043 = vld [vmem:[%s425 + $0x18] sm:$0xf]
        %v1044 = vld [vmem:[%s425 + $0x1c] sm:$0xf]
        %v1045 = vunpack.c.l.bf16 %v1037
        %v1046 = vunpack.c.l.bf16 %v1038
        %v1047 = vunpack.c.l.bf16 %v1039
        %v1048 = vunpack.c.l.bf16 %v1040
        %v1049 = vunpack.c.l.bf16 %v1041
        %v1050 = vunpack.c.l.bf16 %v1042
        %v1051 = vunpack.c.l.bf16 %v1043
        %v1052 = vunpack.c.l.bf16 %v1044
        %v1053 = vadd.f32 %v1029, %v1045
        %v1054 = vadd.f32 %v1030, %v1046
        %v1055 = vadd.f32 %v1031, %v1047
        %v1056 = vadd.f32 %v1032, %v1048
        %v1057 = vadd.f32 %v1033, %v1049
        %v1058 = vadd.f32 %v1034, %v1050
        %v1059 = vadd.f32 %v1035, %v1051
        %v1060 = vadd.f32 %v1036, %v1052
        %v1061 = vpack.c.bf16 %v1053, %v1053
        %v1062 = vpack.c.bf16 %v1054, %v1054
        %v1063 = vpack.c.bf16 %v1055, %v1055
        %v1064 = vpack.c.bf16 %v1056, %v1056
        %v1065 = vpack.c.bf16 %v1057, %v1057
        %v1066 = vpack.c.bf16 %v1058, %v1058
        %v1067 = vpack.c.bf16 %v1059, %v1059
        %v1068 = vpack.c.bf16 %v1060, %v1060
        %vm1069 = vcmask 257024
        %1070 = vst.msk [vmem:[%s445] sm:$0xf] %vm1069, %v1061
        %1071 = vst.msk [vmem:[%s445 + $0x4] sm:$0xf] %vm1069, %v1062
        %1072 = vst.msk [vmem:[%s445 + $0x8] sm:$0xf] %vm1069, %v1063
        %1073 = vst.msk [vmem:[%s445 + $0xc] sm:$0xf] %vm1069, %v1064
        %1074 = vst.msk [vmem:[%s445 + $0x10] sm:$0xf] %vm1069, %v1065
        %1075 = vst.msk [vmem:[%s445 + $0x14] sm:$0xf] %vm1069, %v1066
        %1076 = vst.msk [vmem:[%s445 + $0x18] sm:$0xf] %vm1069, %v1067
        %1077 = vst.msk [vmem:[%s445 + $0x1c] sm:$0xf] %vm1069, %v1068
      $region52: #{up_decoder_block_3d.14} parent=43 // pred_fallthru
        _
      %s1078 = ssub.s32 %s24, 1
      %p1079 = scmp.gt.s32.totalorder %s1078, 0
      %s1080 = scalar_select %p1079, %s1078, 0
      %s1081 = smul.u32 8, %s23
      %p1082 = scmp.lt.s32.totalorder %s22, 0
      %s1083 = scalar_select %p1082, %s22, 0
      %p1084 = scmp.lt.s32.totalorder %s1080, 3
      %s1085 = scalar_select %p1084, %s1080, 3
      %p1086 = scmp.lt.s32.totalorder %s1081, 7
      %s1087 = scalar_select %p1086, %s1081, 7
      %s1088 = smul.addr %s1085, 8
      %s1089 = sadd.s32 %s1087, %s1088
      %s1090 = smul.addr %s1083, 32
      %s1091 = sadd.s32 %s1089, %s1090
      %s1092 = smul.addr %s1091, 4
      %s1093 = scalar_lea.vmem %s6, %s1092
      // Predicated region
      $region53: #{up_decoder_block_3d.14} parent=43 // pred_check
        %p1094 = pneg %p228
      $region54: #{up_decoder_block_3d.14} parent=43 // pred_check_branch
        %1096 = sbr.rel (%p1094) target = $region56
      $region55: #{up_decoder_block_3d.14} parent=43 // pred_region
        %s1097 = ssub.s32 %s24, 1
        %p1098 = scmp.gt.s32.totalorder %s1097, 0
        %s1099 = scalar_select %p1098, %s1097, 0
        %s1100 = smul.u32 8, %s23
      $region56: #{up_decoder_block_3d.14} parent=43 // pred_fallthru
        _
    $region44: #{up_decoder_block_3d.14} parent=5 // pred_fallthru
      _
    %p1101 = scmp.le.s32.totalorder 2, %s12
    // Predicated region
    $region57: #{up_decoder_block_3d.14} parent=5 // pred_check
      %p1102 = pneg %p1101
    $region58: #{up_decoder_block_3d.14} parent=5 // pred_check_branch
      %1104 = sbr.rel (%p1102) target = $region60
    $region59: #{up_decoder_block_3d.14} parent=5 // pred_region
      %s1105 = ssub.s32 %s12, 2
      // Predicated region
      $region61: #{up_decoder_block_3d.14} parent=59 // pred_check
        %p1106 = pneg %p234
      $region62: #{up_decoder_block_3d.14} parent=59 // pred_check_branch
        %1108 = sbr.rel (%p1106) target = $region64
      $region63: #{up_decoder_block_3d.14} parent=59 // pred_region
        %s1109 = ssub.s32 %s27, 1
        %p1110 = scmp.gt.s32.totalorder %s1109, 0
        %s1111 = scalar_select %p1110, %s1109, 0
        %s1112 = smul.u32 8, %s26
        %p1113 = scmp.lt.s32.totalorder %s25, 0
        %s1114 = scalar_select %p1113, %s25, 0
        %p1115 = scmp.lt.s32.totalorder %s1111, 3
        %s1116 = scalar_select %p1115, %s1111, 3
        %p1117 = scmp.lt.s32.totalorder %s1112, 7
        %s1118 = scalar_select %p1117, %s1112, 7
        %s1119 = smul.addr %s1116, 8
        %s1120 = sadd.s32 %s1118, %s1119
        %s1121 = smul.addr %s1114, 32
        %s1122 = sadd.s32 %s1120, %s1121
        %s1123 = smul.addr %s1122, 4
        %s1124 = scalar_lea.vmem %s6, %s1123
      $region64: #{up_decoder_block_3d.14} parent=59 // pred_fallthru
        _
    $region60: #{up_decoder_block_3d.14} parent=5 // pred_fallthru
      _
  $region6: #{up_decoder_block_3d.14} parent=0 // loop_footer
    %s16 = sadd.s32 1, %s12
  $region7: #{up_decoder_block_3d.14} parent=0 // loop_footer_branch
    %11 = sbr.rel target = $region3
  $region8: #{up_decoder_block_3d.14} parent=0 // loop_exit
    _

// kernel: up_decoder_block_3d.15
$region0: #{up_decoder_block_3d.15}
  #allocation0 [shape = 'u32[]', space=smem, size = 0x4, offset = 0x4, fixed_abs, tag = 'smem constant byte address 0x4 - core index']
  #allocation1 [shape = 'u32[144,128]{1,0:T(1,128)}', space=vmem, size = 0x12000, scoped, tag = 'internal scratch']
  %s0 = inlined_call_operand.vmem [shape: bf16[4,8,16,32], index: 0, kind: input, shape index: {}, may-alias: {0,1,2}]
  %s1 = inlined_call_operand.vmem [shape: bf16[4,8,16,32], index: 1, kind: input, shape index: {}, may-alias: {0,1,2}]
  %s2 = inlined_call_operand.vmem [shape: bf16[4,8,16,32], index: 2, kind: input, shape index: {}, may-alias: {0,1,2}]
  %s3 = inlined_call_operand.vmem [shape: f32[4,1,32], index: 3, kind: input, shape index: {}]
  %s4 = inlined_call_operand.vmem [shape: f32[4,1,32], index: 4, kind: input, shape index: {}]
  %s5 = inlined_call_operand.vmem [shape: bf16[3,96,32], index: 5, kind: input, shape index: {}]
  %s6 = inlined_call_operand.vmem [shape: f32[1,1,32], index: 6, kind: input, shape index: {}]
  %s7 = inlined_call_operand.hbm [shape: f32[4,16,16,32], index: 7, kind: output, shape index: {}]
  %s8 = sld [smem:[#allocation0]]
  $region61: #{up_decoder_block_3d.15} parent=0
    _
  %s10 = ssub.s32 1, %s8
  %s11 = scalar_select 0, %s10, %s8
  $region1: #{up_decoder_block_3d.15} parent=0
    #allocation2 [shape = 'u8[262144]{0}', space=vmem, size = 0x40000, scoped, tag = 'output window, operand 0']
    #allocation3 [shape = 's32[2]{0}', space=sflag, size = 0x8, scoped, tag = 'scoped memory for up_decoder_block_3d.15']
    %12 = vsyncpa [#allocation3], 0
    %s13 = scalar_lea.sflag [#allocation3], 1
    %14 = vsyncpa %s13, 0
    loop: start=0, step=1, limit=6
    $region2: #{up_decoder_block_3d.15} parent=1 // loop_pre_header
      _
    $region3: #{up_decoder_block_3d.15} parent=1 // loop_header
      %s16 = sphi 0, %s20
      %p17 = scmp.ge.s32.totalorder %s16, 6
      %s23 = sphi 0, %s35
      %s24 = sphi 0, %s31
      %s25 = sphi 0, %s23
      %s26 = sphi 0, %s24
      %s27 = sphi 0, %s25
      %s28 = sphi 0, %s26
      %s40 = sphi 0, %s42
      %s43 = sphi 0, %s40
      %s44 = sphi 0, %s43
      %s60 = sphi 0, %s44
      %s76 = sphi 0, %s78
      %s79 = sphi 0, %s76
      %s80 = sphi 0, %s79
      %s96 = sphi 0, %s80
      %s112 = sphi 0, %s114
      %s115 = sphi 0, %s112
      %s116 = sphi 0, %s115
      %s132 = sphi 0, %s116
      %s138 = sphi 0, %s140
      %s141 = sphi 0, %s138
      %s142 = sphi 0, %s141
      %s158 = sphi 0, %s142
      %s164 = sphi 0, %s166
      %s167 = sphi 0, %s164
      %s168 = sphi 0, %s167
      %s184 = sphi 0, %s168
      %s188 = sphi 0, %s188
      %s190 = sphi 0, %s188
      %s191 = sphi 0, %s190
      %s205 = sphi 0, %s191
      %s209 = sphi 0, %s209
      %s211 = sphi 0, %s209
      %s212 = sphi 0, %s211
      %s226 = sphi 0, %s212
      %s234 = sphi 0, %s236
      %s237 = sphi 0, %s234
      %s238 = sphi 0, %s237
      %s254 = sphi 0, %s238
    $region4: #{up_decoder_block_3d.15} parent=1 // loop_header_branch
      %19 = sbr.rel (%p17) target = $region8
    $region5: #{up_decoder_block_3d.15} parent=1 // loop_body
      %s21 = ssub.s32 %s16, 1
      %s22 = ssub.s32 %s16, 2
      %s29 = sadd.s32 1, %s24
      %p30 = scmp.ge.s32.totalorder %s29, 1
      %s31 = scalar_select %p30, 0, %s29
      %s32 = sadd.s32 1, %s23
      %s33 = scalar_select %p30, %s32, %s23
      %p34 = scmp.ge.s32.totalorder %s33, 4
      %s35 = scalar_select %p34, 0, %s33
      %s36 = ssub.s32 %s23, %s35
      %s37 = ssub.s32 %s24, %s31
      %s38 = sor.u32 %s36, %s37
      %p39 = scmp.eq.s32.totalorder %s38, 0
      %s41 = sadd.s32 %s40, 1
      %s42 = scalar_select %p39, %s40, %s41
      %p45 = pneg %p39
      %p46 = scmp.eq.s32.totalorder %s16, 3
      %p47 = por %p45, %p46
      %p48 = scmp.ne.s32.totalorder %s40, %s43
      %p49 = scmp.eq.s32.totalorder %s16, 0
      %p50 = por %p48, %p49
      %p51 = scmp.ne.s32.totalorder %s40, %s43
      %p52 = scmp.eq.s32.totalorder %s21, 3
      %p53 = por %p51, %p52
      %p54 = scmp.ne.s32.totalorder %s43, %s44
      %p55 = scmp.eq.s32.totalorder %s21, 0
      %p56 = por %p54, %p55
      %p57 = scmp.ne.s32.totalorder %s43, %s44
      %p58 = scmp.eq.s32.totalorder %s22, 3
      %p59 = por %p57, %p58
      %p61 = scmp.ne.s32.totalorder %s44, %s60
      %p62 = scmp.eq.s32.totalorder %s22, 0
      %p63 = por %p61, %p62
      %s64 = smul.u32 %s24, 8
      %s65 = ssub.s32 %s64, 1
      %p66 = scmp.gt.s32.totalorder %s65, 0
      %s67 = scalar_select %p66, %s65, 0
      %s68 = smul.u32 %s31, 8
      %s69 = ssub.s32 %s68, 1
      %p70 = scmp.gt.s32.totalorder %s69, 0
      %s71 = scalar_select %p70, %s69, 0
      %s72 = ssub.s32 %s23, %s35
      %s73 = ssub.s32 %s67, %s71
      %s74 = sor.u32 %s72, %s73
      %p75 = scmp.eq.s32.totalorder %s74, 0
      %s77 = sadd.s32 %s76, 1
      %s78 = scalar_select %p75, %s76, %s77
      %p81 = pneg %p75
      %p82 = scmp.eq.s32.totalorder %s16, 3
      %p83 = por %p81, %p82
      %p84 = scmp.ne.s32.totalorder %s76, %s79
      %p85 = scmp.eq.s32.totalorder %s16, 0
      %p86 = por %p84, %p85
      %p87 = scmp.ne.s32.totalorder %s76, %s79
      %p88 = scmp.eq.s32.totalorder %s21, 3
      %p89 = por %p87, %p88
      %p90 = scmp.ne.s32.totalorder %s79, %s80
      %p91 = scmp.eq.s32.totalorder %s21, 0
      %p92 = por %p90, %p91
      %p93 = scmp.ne.s32.totalorder %s79, %s80
      %p94 = scmp.eq.s32.totalorder %s22, 3
      %p95 = por %p93, %p94
      %p97 = scmp.ne.s32.totalorder %s80, %s96
      %p98 = scmp.eq.s32.totalorder %s22, 0
      %p99 = por %p97, %p98
      %s100 = sadd.s32 %s24, 1
      %s101 = smul.u32 %s100, 8
      %p102 = scmp.lt.s32.totalorder %s101, 7
      %s103 = scalar_select %p102, %s101, 7
      %s104 = sadd.s32 %s31, 1
      %s105 = smul.u32 %s104, 8
      %p106 = scmp.lt.s32.totalorder %s105, 7
      %s107 = scalar_select %p106, %s105, 7
      %s108 = ssub.s32 %s23, %s35
      %s109 = ssub.s32 %s103, %s107
      %s110 = sor.u32 %s108, %s109
      %p111 = scmp.eq.s32.totalorder %s110, 0
      %s113 = sadd.s32 %s112, 1
      %s114 = scalar_select %p111, %s112, %s113
      %p117 = pneg %p111
      %p118 = scmp.eq.s32.totalorder %s16, 3
      %p119 = por %p117, %p118
      %p120 = scmp.ne.s32.totalorder %s112, %s115
      %p121 = scmp.eq.s32.totalorder %s16, 0
      %p122 = por %p120, %p121
      %p123 = scmp.ne.s32.totalorder %s112, %s115
      %p124 = scmp.eq.s32.totalorder %s21, 3
      %p125 = por %p123, %p124
      %p126 = scmp.ne.s32.totalorder %s115, %s116
      %p127 = scmp.eq.s32.totalorder %s21, 0
      %p128 = por %p126, %p127
      %p129 = scmp.ne.s32.totalorder %s115, %s116
      %p130 = scmp.eq.s32.totalorder %s22, 3
      %p131 = por %p129, %p130
      %p133 = scmp.ne.s32.totalorder %s116, %s132
      %p134 = scmp.eq.s32.totalorder %s22, 0
      %p135 = por %p133, %p134
      %s136 = ssub.s32 %s23, %s35
      %p137 = scmp.eq.s32.totalorder %s136, 0
      %s139 = sadd.s32 %s138, 1
      %s140 = scalar_select %p137, %s138, %s139
      %p143 = pneg %p137
      %p144 = scmp.eq.s32.totalorder %s16, 3
      %p145 = por %p143, %p144
      %p146 = scmp.ne.s32.totalorder %s138, %s141
      %p147 = scmp.eq.s32.totalorder %s16, 0
      %p148 = por %p146, %p147
      %p149 = scmp.ne.s32.totalorder %s138, %s141
      %p150 = scmp.eq.s32.totalorder %s21, 3
      %p151 = por %p149, %p150
      %p152 = scmp.ne.s32.totalorder %s141, %s142
      %p153 = scmp.eq.s32.totalorder %s21, 0
      %p154 = por %p152, %p153
      %p155 = scmp.ne.s32.totalorder %s141, %s142
      %p156 = scmp.eq.s32.totalorder %s22, 3
      %p157 = por %p155, %p156
      %p159 = scmp.ne.s32.totalorder %s142, %s158
      %p160 = scmp.eq.s32.totalorder %s22, 0
      %p161 = por %p159, %p160
      %s162 = ssub.s32 %s23, %s35
      %p163 = scmp.eq.s32.totalorder %s162, 0
      %s165 = sadd.s32 %s164, 1
      %s166 = scalar_select %p163, %s164, %s165
      %p169 = pneg %p163
      %p170 = scmp.eq.s32.totalorder %s16, 3
      %p171 = por %p169, %p170
      %p172 = scmp.ne.s32.totalorder %s164, %s167
      %p173 = scmp.eq.s32.totalorder %s16, 0
      %p174 = por %p172, %p173
      %p175 = scmp.ne.s32.totalorder %s164, %s167
      %p176 = scmp.eq.s32.totalorder %s21, 3
      %p177 = por %p175, %p176
      %p178 = scmp.ne.s32.totalorder %s167, %s168
      %p179 = scmp.eq.s32.totalorder %s21, 0
      %p180 = por %p178, %p179
      %p181 = scmp.ne.s32.totalorder %s167, %s168
      %p182 = scmp.eq.s32.totalorder %s22, 3
      %p183 = por %p181, %p182
      %p185 = scmp.ne.s32.totalorder %s168, %s184
      %p186 = scmp.eq.s32.totalorder %s22, 0
      %p187 = por %p185, %p186
      %s189 = sadd.s32 %s188, 1
      %p192 = scmp.eq.s32.totalorder %s16, 3
      %p193 = scmp.ne.s32.totalorder %s188, %s190
      %p194 = scmp.eq.s32.totalorder %s16, 0
      %p195 = por %p193, %p194
      %p196 = scmp.ne.s32.totalorder %s188, %s190
      %p197 = scmp.eq.s32.totalorder %s21, 3
      %p198 = por %p196, %p197
      %p199 = scmp.ne.s32.totalorder %s190, %s191
      %p200 = scmp.eq.s32.totalorder %s21, 0
      %p201 = por %p199, %p200
      %p202 = scmp.ne.s32.totalorder %s190, %s191
      %p203 = scmp.eq.s32.totalorder %s22, 3
      %p204 = por %p202, %p203
      %p206 = scmp.ne.s32.totalorder %s191, %s205
      %p207 = scmp.eq.s32.totalorder %s22, 0
      %p208 = por %p206, %p207
      %s210 = sadd.s32 %s209, 1
      %p213 = scmp.eq.s32.totalorder %s16, 3
      %p214 = scmp.ne.s32.totalorder %s209, %s211
      %p215 = scmp.eq.s32.totalorder %s16, 0
      %p216 = por %p214, %p215
      %p217 = scmp.ne.s32.totalorder %s209, %s211
      %p218 = scmp.eq.s32.totalorder %s21, 3
      %p219 = por %p217, %p218
      %p220 = scmp.ne.s32.totalorder %s211, %s212
      %p221 = scmp.eq.s32.totalorder %s21, 0
      %p222 = por %p220, %p221
      %p223 = scmp.ne.s32.totalorder %s211, %s212
      %p224 = scmp.eq.s32.totalorder %s22, 3
      %p225 = por %p223, %p224
      %p227 = scmp.ne.s32.totalorder %s212, %s226
      %p228 = scmp.eq.s32.totalorder %s22, 0
      %p229 = por %p227, %p228
      %s230 = ssub.s32 %s23, %s35
      %s231 = ssub.s32 %s24, %s31
      %s232 = sor.u32 %s230, %s231
      %p233 = scmp.eq.s32.totalorder %s232, 0
      %s235 = sadd.s32 %s234, 1
      %s236 = scalar_select %p233, %s234, %s235
      %p239 = pneg %p233
      %p240 = scmp.eq.s32.totalorder %s16, 3
      %p241 = por %p239, %p240
      %p242 = scmp.ne.s32.totalorder %s234, %s237
      %p243 = scmp.eq.s32.totalorder %s16, 0
      %p244 = por %p242, %p243
      %p245 = scmp.ne.s32.totalorder %s234, %s237
      %p246 = scmp.eq.s32.totalorder %s21, 3
      %p247 = por %p245, %p246
      %p248 = scmp.ne.s32.totalorder %s237, %s238
      %p249 = scmp.eq.s32.totalorder %s21, 0
      %p250 = por %p248, %p249
      %p251 = scmp.ne.s32.totalorder %s237, %s238
      %p252 = scmp.eq.s32.totalorder %s22, 3
      %p253 = por %p251, %p252
      %p255 = scmp.ne.s32.totalorder %s238, %s254
      %p256 = scmp.eq.s32.totalorder %s22, 0
      %p257 = por %p255, %p256
      %p258 = scmp.le.s32.totalorder 1, %s16
      %p259 = scmp.lt.s32.totalorder %s16, 5
      %p260 = pnand %p258, %p259
      %p261 = pneg %p260
      // Predicated region
      $region9: #{up_decoder_block_3d.15} parent=5 // pred_check
        _
      $region10: #{up_decoder_block_3d.15} parent=5 // pred_check_branch
        %263 = sbr.rel (%p260) target = $region12
      $region11: #{up_decoder_block_3d.15} parent=5 // pred_region
        %s264 = ssub.s32 %s16, 1
        // Predicated region
        $region13: #{up_decoder_block_3d.15} parent=11 // pred_check
          %p265 = pneg %p201
        $region14: #{up_decoder_block_3d.15} parent=11 // pred_check_branch
          %267 = sbr.rel (%p265) target = $region16
        $region15: #{up_decoder_block_3d.15} parent=11 // pred_region
          _
        $region16: #{up_decoder_block_3d.15} parent=11 // pred_fallthru
          _
        // Predicated region
        $region17: #{up_decoder_block_3d.15} parent=11 // pred_check
          %p268 = pneg %p222
        $region18: #{up_decoder_block_3d.15} parent=11 // pred_check_branch
          %270 = sbr.rel (%p268) target = $region20
        $region19: #{up_decoder_block_3d.15} parent=11 // pred_region
          _
        $region20: #{up_decoder_block_3d.15} parent=11 // pred_fallthru
          _
      $region12: #{up_decoder_block_3d.15} parent=5 // pred_fallthru
        _
      %p271 = scmp.lt.s32.totalorder %s16, 4
      // Predicated region
      $region21: #{up_decoder_block_3d.15} parent=5 // pred_check
        %p272 = pneg %p271
      $region22: #{up_decoder_block_3d.15} parent=5 // pred_check_branch
        %274 = sbr.rel (%p272) target = $region24
      $region23: #{up_decoder_block_3d.15} parent=5 // pred_region
        // Predicated region
        $region25: #{up_decoder_block_3d.15} parent=23 // pred_check
          %p275 = pneg %p50
        $region26: #{up_decoder_block_3d.15} parent=23 // pred_check_branch
          %277 = sbr.rel (%p275) target = $region28
        $region27: #{up_decoder_block_3d.15} parent=23 // pred_region
          %s278 = smul.u32 8, %s24
          %p279 = scmp.lt.s32.totalorder %s23, 3
          %s280 = scalar_select %p279, %s23, 3
          %p281 = scmp.lt.s32.totalorder %s278, 7
          %s282 = scalar_select %p281, %s278, 7
          %s283 = smul.addr %s282, 2
          %s284 = smul.addr %s280, 16
          %s285 = sadd.s32 %s283, %s284
          %s286 = smul.addr %s285, 4
          %s287 = scalar_lea.vmem %s0, %s286
          %s288 = smul.u32 8, %s24
        $region28: #{up_decoder_block_3d.15} parent=23 // pred_fallthru
          _
        // Predicated region
        $region29: #{up_decoder_block_3d.15} parent=23 // pred_check
          %p289 = pneg %p86
        $region30: #{up_decoder_block_3d.15} parent=23 // pred_check_branch
          %291 = sbr.rel (%p289) target = $region32
        $region31: #{up_decoder_block_3d.15} parent=23 // pred_region
          %s292 = smul.u32 %s24, 8
          %s293 = ssub.s32 %s292, 1
          %p294 = scmp.gt.s32.totalorder %s293, 0
          %s295 = scalar_select %p294, %s293, 0
          %p296 = scmp.lt.s32.totalorder %s23, 3
          %s297 = scalar_select %p296, %s23, 3
          %p298 = scmp.lt.s32.totalorder %s295, 7
          %s299 = scalar_select %p298, %s295, 7
          %s300 = smul.addr %s299, 2
          %s301 = smul.addr %s297, 16
          %s302 = sadd.s32 %s300, %s301
          %s303 = smul.addr %s302, 4
          %s304 = scalar_lea.vmem %s1, %s303
          %s305 = smul.u32 %s24, 8
          %s306 = ssub.s32 %s305, 1
          %p307 = scmp.gt.s32.totalorder %s306, 0
          %s308 = scalar_select %p307, %s306, 0
        $region32: #{up_decoder_block_3d.15} parent=23 // pred_fallthru
          _
        // Predicated region
        $region33: #{up_decoder_block_3d.15} parent=23 // pred_check
          %p309 = pneg %p122
        $region34: #{up_decoder_block_3d.15} parent=23 // pred_check_branch
          %311 = sbr.rel (%p309) target = $region36
        $region35: #{up_decoder_block_3d.15} parent=23 // pred_region
          %s312 = sadd.s32 %s24, 1
          %s313 = smul.u32 %s312, 8
          %p314 = scmp.lt.s32.totalorder %s313, 7
          %s315 = scalar_select %p314, %s313, 7
          %p316 = scmp.lt.s32.totalorder %s23, 3
          %s317 = scalar_select %p316, %s23, 3
          %p318 = scmp.lt.s32.totalorder %s315, 7
          %s319 = scalar_select %p318, %s315, 7
          %s320 = smul.addr %s319, 2
          %s321 = smul.addr %s317, 16
          %s322 = sadd.s32 %s320, %s321
          %s323 = smul.addr %s322, 4
          %s324 = scalar_lea.vmem %s2, %s323
          %s325 = sadd.s32 %s24, 1
          %s326 = smul.u32 %s325, 8
          %p327 = scmp.lt.s32.totalorder %s326, 7
          %s328 = scalar_select %p327, %s326, 7
        $region36: #{up_decoder_block_3d.15} parent=23 // pred_fallthru
          _
        // Predicated region
        $region37: #{up_decoder_block_3d.15} parent=23 // pred_check
          %p329 = pneg %p148
        $region38: #{up_decoder_block_3d.15} parent=23 // pred_check_branch
          %331 = sbr.rel (%p329) target = $region40
        $region39: #{up_decoder_block_3d.15} parent=23 // pred_region
          %p332 = scmp.lt.s32.totalorder %s23, 3
          %s333 = scalar_select %p332, %s23, 3
          %s334 = scalar_lea.vmem %s3, %s333
        $region40: #{up_decoder_block_3d.15} parent=23 // pred_fallthru
          _
        // Predicated region
        $region41: #{up_decoder_block_3d.15} parent=23 // pred_check
          %p335 = pneg %p174
        $region42: #{up_decoder_block_3d.15} parent=23 // pred_check_branch
          %337 = sbr.rel (%p335) target = $region44
        $region43: #{up_decoder_block_3d.15} parent=23 // pred_region
          %p338 = scmp.lt.s32.totalorder %s23, 3
          %s339 = scalar_select %p338, %s23, 3
          %s340 = scalar_lea.vmem %s4, %s339
        $region44: #{up_decoder_block_3d.15} parent=23 // pred_fallthru
          _
      $region24: #{up_decoder_block_3d.15} parent=5 // pred_fallthru
        _
      %p341 = scmp.le.s32.totalorder 1, %s16
      %p342 = scmp.lt.s32.totalorder %s16, 5
      %p343 = pnand %p341, %p342
      %p344 = pneg %p343
      // Predicated region
      $region45: #{up_decoder_block_3d.15} parent=5 // pred_check
        _
      $region46: #{up_decoder_block_3d.15} parent=5 // pred_check_branch
        %346 = sbr.rel (%p343) target = $region48
      $region47: #{up_decoder_block_3d.15} parent=5 // pred_region
        %s347 = ssub.s32 %s16, 1
        %s348 = smul.u32 8, %s26
        %p349 = scmp.lt.s32.totalorder %s25, 3
        %s350 = scalar_select %p349, %s25, 3
        %p351 = scmp.lt.s32.totalorder %s348, 7
        %s352 = scalar_select %p351, %s348, 7
        %s353 = smul.addr %s352, 2
        %s354 = smul.addr %s350, 16
        %s355 = sadd.s32 %s353, %s354
        %s356 = smul.addr %s355, 4
        %s357 = scalar_lea.vmem %s0, %s356
        %p358 = pneg %p56
        %p359 = pneg %p53
        %s360 = smul.u32 %s26, 8
        %s361 = ssub.s32 %s360, 1
        %p362 = scmp.gt.s32.totalorder %s361, 0
        %s363 = scalar_select %p362, %s361, 0
        %p364 = scmp.lt.s32.totalorder %s25, 3
        %s365 = scalar_select %p364, %s25, 3
        %p366 = scmp.lt.s32.totalorder %s363, 7
        %s367 = scalar_select %p366, %s363, 7
        %s368 = smul.addr %s367, 2
        %s369 = smul.addr %s365, 16
        %s370 = sadd.s32 %s368, %s369
        %s371 = smul.addr %s370, 4
        %s372 = scalar_lea.vmem %s1, %s371
        %p373 = pneg %p92
        %p374 = pneg %p89
        %s375 = sadd.s32 %s26, 1
        %s376 = smul.u32 %s375, 8
        %p377 = scmp.lt.s32.totalorder %s376, 7
        %s378 = scalar_select %p377, %s376, 7
        %p379 = scmp.lt.s32.totalorder %s25, 3
        %s380 = scalar_select %p379, %s25, 3
        %p381 = scmp.lt.s32.totalorder %s378, 7
        %s382 = scalar_select %p381, %s378, 7
        %s383 = smul.addr %s382, 2
        %s384 = smul.addr %s380, 16
        %s385 = sadd.s32 %s383, %s384
        %s386 = smul.addr %s385, 4
        %s387 = scalar_lea.vmem %s2, %s386
        %p388 = pneg %p128
        %p389 = pneg %p125
        %p390 = scmp.lt.s32.totalorder %s25, 3
        %s391 = scalar_select %p390, %s25, 3
        %s392 = scalar_lea.vmem %s3, %s391
        %p393 = pneg %p154
        %p394 = pneg %p151
        %p395 = scmp.lt.s32.totalorder %s25, 3
        %s396 = scalar_select %p395, %s25, 3
        %s397 = scalar_lea.vmem %s4, %s396
        %p398 = pneg %p180
        %p399 = pneg %p177
        %p400 = pneg %p201
        %p401 = pneg %p198
        %p402 = pneg %p222
        %p403 = pneg %p219
        %p404 = pneg %p250
        %p405 = pneg %p247
        %s406 = sand.u32 %s237, 1
        %s407 = scalar_lea.sflag [#allocation3], %s406
        %s408 = sand.u32 %s237, 1
        %s409 = smul.addr %s408, 256
        %s410 = scalar_lea.vmem [#allocation2], %s409
        %s411 = smul.u32 8, %s26
        %p412 = scmp.lt.s32.totalorder %s25, 3
        %s413 = scalar_select %p412, %s25, 3
        %p414 = scmp.lt.s32.totalorder %s411, 7
        %s415 = scalar_select %p414, %s411, 7
        %s416 = smul.addr %s415, 2
        %s417 = smul.addr %s413, 16
        %s418 = sadd.s32 %s416, %s417
        %s419 = smul.addr %s418, 4
        %s420 = scalar_lea.vmem %s0, %s419
        %s421 = smul.u32 8, %s26
        %s422 = smul.u32 %s26, 8
        %s423 = ssub.s32 %s422, 1
        %p424 = scmp.gt.s32.totalorder %s423, 0
        %s425 = scalar_select %p424, %s423, 0
        %p426 = scmp.lt.s32.totalorder %s25, 3
        %s427 = scalar_select %p426, %s25, 3
        %p428 = scmp.lt.s32.totalorder %s425, 7
        %s429 = scalar_select %p428, %s425, 7
        %s430 = smul.addr %s429, 2
        %s431 = smul.addr %s427, 16
        %s432 = sadd.s32 %s430, %s431
        %s433 = smul.addr %s432, 4
        %s434 = scalar_lea.vmem %s1, %s433
        %s435 = smul.u32 %s26, 8
        %s436 = ssub.s32 %s435, 1
        %p437 = scmp.gt.s32.totalorder %s436, 0
        %s438 = scalar_select %p437, %s436, 0
        %s439 = sadd.s32 %s26, 1
        %s440 = smul.u32 %s439, 8
        %p441 = scmp.lt.s32.totalorder %s440, 7
        %s442 = scalar_select %p441, %s440, 7
        %p443 = scmp.lt.s32.totalorder %s25, 3
        %s444 = scalar_select %p443, %s25, 3
        %p445 = scmp.lt.s32.totalorder %s442, 7
        %s446 = scalar_select %p445, %s442, 7
        %s447 = smul.addr %s446, 2
        %s448 = smul.addr %s444, 16
        %s449 = sadd.s32 %s447, %s448
        %s450 = smul.addr %s449, 4
        %s451 = scalar_lea.vmem %s2, %s450
        %s452 = sadd.s32 %s26, 1
        %s453 = smul.u32 %s452, 8
        %p454 = scmp.lt.s32.totalorder %s453, 7
        %s455 = scalar_select %p454, %s453, 7
        %p456 = scmp.lt.s32.totalorder %s25, 3
        %s457 = scalar_select %p456, %s25, 3
        %s458 = scalar_lea.vmem %s3, %s457
        %p459 = scmp.lt.s32.totalorder %s25, 3
        %s460 = scalar_select %p459, %s25, 3
        %s461 = scalar_lea.vmem %s4, %s460
        %s462 = smul.u32 16, %s26
        %v464 = vld [vmem:[%s420] sm:$0xf]
        %v465 = vld [vmem:[%s420 + $0x4] sm:$0xf]
        %v466 = vld [vmem:[%s420 + $0x8] sm:$0xf]
        %v467 = vld [vmem:[%s420 + $0xc] sm:$0xf]
        %v468 = vld [vmem:[%s420 + $0x10] sm:$0xf]
        %v469 = vld [vmem:[%s420 + $0x14] sm:$0xf]
        %v470 = vld [vmem:[%s420 + $0x18] sm:$0xf]
        %v471 = vld [vmem:[%s420 + $0x1c] sm:$0xf]
        %v472 = vld [vmem:[%s420 + $0x20] sm:$0xf]
        %v473 = vld [vmem:[%s420 + $0x24] sm:$0xf]
        %v474 = vld [vmem:[%s420 + $0x28] sm:$0xf]
        %v475 = vld [vmem:[%s420 + $0x2c] sm:$0xf]
        %v476 = vld [vmem:[%s420 + $0x30] sm:$0xf]
        %v477 = vld [vmem:[%s420 + $0x34] sm:$0xf]
        %v478 = vld [vmem:[%s420 + $0x38] sm:$0xf]
        %v479 = vld [vmem:[%s420 + $0x3c] sm:$0xf]
        %v480 = vld [vmem:[%s434] sm:$0xf]
        %v481 = vld [vmem:[%s434 + $0x4] sm:$0xf]
        %v482 = vld [vmem:[%s451] sm:$0xf]
        %v483 = vld [vmem:[%s451 + $0x4] sm:$0xf]
        %v484 = vunpack.c.l.bf16 %v480
        %v485 = vunpack.c.l.bf16 %v481
        %v486 = vunpack.c.l.bf16 %v464
        %v487 = vunpack.c.l.bf16 %v465
        %v488 = vunpack.c.l.bf16 %v466
        %v489 = vunpack.c.l.bf16 %v467
        %v490 = vunpack.c.l.bf16 %v468
        %v491 = vunpack.c.l.bf16 %v469
        %v492 = vunpack.c.l.bf16 %v470
        %v493 = vunpack.c.l.bf16 %v471
        %v494 = vunpack.c.l.bf16 %v472
        %v495 = vunpack.c.l.bf16 %v473
        %v496 = vunpack.c.l.bf16 %v474
        %v497 = vunpack.c.l.bf16 %v475
        %v498 = vunpack.c.l.bf16 %v476
        %v499 = vunpack.c.l.bf16 %v477
        %v500 = vunpack.c.l.bf16 %v478
        %v501 = vunpack.c.l.bf16 %v479
        %v502 = vunpack.c.l.bf16 %v482
        %v503 = vunpack.c.l.bf16 %v483
        %p504 = scmp.eq.s32.totalorder %s26, 0
        %s505 = scalar_select %p504, 1, 0
        %s506 = scalar_select %p504, 16, 17
        %v507 = vstv %s505
        %vm508 = vcmp.le.s32.totalorder %v507, 0
        %vm509 = vcmp.le.s32.totalorder %v507, 1
        %vm510 = vcmp.le.s32.totalorder %v507, 2
        %vm511 = vcmp.le.s32.totalorder %v507, 3
        %vm512 = vcmp.le.s32.totalorder %v507, 4
        %vm513 = vcmp.le.s32.totalorder %v507, 5
        %vm514 = vcmp.le.s32.totalorder %v507, 6
        %vm515 = vcmp.le.s32.totalorder %v507, 7
        %vm516 = vcmp.le.s32.totalorder %v507, 8
        %vm517 = vcmp.le.s32.totalorder %v507, 9
        %vm518 = vcmp.le.s32.totalorder %v507, 10
        %vm519 = vcmp.le.s32.totalorder %v507, 11
        %vm520 = vcmp.le.s32.totalorder %v507, 12
        %vm521 = vcmp.le.s32.totalorder %v507, 13
        %vm522 = vcmp.le.s32.totalorder %v507, 14
        %vm523 = vcmp.le.s32.totalorder %v507, 15
        %vm524 = vcmp.le.s32.totalorder %v507, 16
        %vm525 = vcmp.le.s32.totalorder %v507, 17
        %v526 = vstv %s506
        %vm527 = vcmp.ge.s32.totalorder %v526, 0
        %vm528 = vcmp.ge.s32.totalorder %v526, 1
        %vm529 = vcmp.ge.s32.totalorder %v526, 2
        %vm530 = vcmp.ge.s32.totalorder %v526, 3
        %vm531 = vcmp.ge.s32.totalorder %v526, 4
        %vm532 = vcmp.ge.s32.totalorder %v526, 5
        %vm533 = vcmp.ge.s32.totalorder %v526, 6
        %vm534 = vcmp.ge.s32.totalorder %v526, 7
        %vm535 = vcmp.ge.s32.totalorder %v526, 8
        %vm536 = vcmp.ge.s32.totalorder %v526, 9
        %vm537 = vcmp.ge.s32.totalorder %v526, 10
        %vm538 = vcmp.ge.s32.totalorder %v526, 11
        %vm539 = vcmp.ge.s32.totalorder %v526, 12
        %vm540 = vcmp.ge.s32.totalorder %v526, 13
        %vm541 = vcmp.ge.s32.totalorder %v526, 14
        %vm542 = vcmp.ge.s32.totalorder %v526, 15
        %vm543 = vcmp.ge.s32.totalorder %v526, 16
        %vm544 = vcmp.ge.s32.totalorder %v526, 17
        %vm545 = vmand %vm508, %vm527
        %vm546 = vmand %vm509, %vm528
        %vm547 = vmand %vm510, %vm529
        %vm548 = vmand %vm511, %vm530
        %vm549 = vmand %vm512, %vm531
        %vm550 = vmand %vm513, %vm532
        %vm551 = vmand %vm514, %vm533
        %vm552 = vmand %vm515, %vm534
        %vm553 = vmand %vm516, %vm535
        %vm554 = vmand %vm517, %vm536
        %vm555 = vmand %vm518, %vm537
        %vm556 = vmand %vm519, %vm538
        %vm557 = vmand %vm520, %vm539
        %vm558 = vmand %vm521, %vm540
        %vm559 = vmand %vm522, %vm541
        %vm560 = vmand %vm523, %vm542
        %vm561 = vmand %vm524, %vm543
        %vm562 = vmand %vm525, %vm544
        %v563 = vsel %vm545, 1, 0
        %v564 = vsel %vm546, 1, 0
        %v565 = vsel %vm547, 1, 0
        %v566 = vsel %vm548, 1, 0
        %v567 = vsel %vm549, 1, 0
        %v568 = vsel %vm550, 1, 0
        %v569 = vsel %vm551, 1, 0
        %v570 = vsel %vm552, 1, 0
        %v571 = vsel %vm553, 1, 0
        %v572 = vsel %vm554, 1, 0
        %v573 = vsel %vm555, 1, 0
        %v574 = vsel %vm556, 1, 0
        %v575 = vsel %vm557, 1, 0
        %v576 = vsel %vm558, 1, 0
        %v577 = vsel %vm559, 1, 0
        %v578 = vsel %vm560, 1, 0
        %v579 = vsel %vm561, 1, 0
        %v580 = vsel %vm562, 1, 0
        %vm581 = vcmp.eq.s32.totalorder %v563, 1
        %vm582 = vcmp.eq.s32.totalorder %v564, 1
        %vm583 = vcmp.eq.s32.totalorder %v565, 1
        %vm584 = vcmp.eq.s32.totalorder %v566, 1
        %vm585 = vcmp.eq.s32.totalorder %v567, 1
        %vm586 = vcmp.eq.s32.totalorder %v568, 1
        %vm587 = vcmp.eq.s32.totalorder %v569, 1
        %vm588 = vcmp.eq.s32.totalorder %v570, 1
        %vm589 = vcmp.eq.s32.totalorder %v571, 1
        %vm590 = vcmp.eq.s32.totalorder %v572, 1
        %vm591 = vcmp.eq.s32.totalorder %v573, 1
        %vm592 = vcmp.eq.s32.totalorder %v574, 1
        %vm593 = vcmp.eq.s32.totalorder %v575, 1
        %vm594 = vcmp.eq.s32.totalorder %v576, 1
        %vm595 = vcmp.eq.s32.totalorder %v577, 1
        %vm596 = vcmp.eq.s32.totalorder %v578, 1
        %vm597 = vcmp.eq.s32.totalorder %v579, 1
        %vm598 = vcmp.eq.s32.totalorder %v580, 1
        %v599 = vsel %vm581, %v484, 0.0
        %v600 = vsel %vm581, %v485, 0.0
        %v601 = vsel %vm582, %v486, 0.0
        %v602 = vsel %vm582, %v487, 0.0
        %v603 = vsel %vm583, %v486, 0.0
        %v604 = vsel %vm583, %v487, 0.0
        %v605 = vsel %vm584, %v488, 0.0
        %v606 = vsel %vm584, %v489, 0.0
        %v607 = vsel %vm585, %v488, 0.0
        %v608 = vsel %vm585, %v489, 0.0
        %v609 = vsel %vm586, %v490, 0.0
        %v610 = vsel %vm586, %v491, 0.0
        %v611 = vsel %vm587, %v490, 0.0
        %v612 = vsel %vm587, %v491, 0.0
        %v613 = vsel %vm588, %v492, 0.0
        %v614 = vsel %vm588, %v493, 0.0
        %v615 = vsel %vm589, %v492, 0.0
        %v616 = vsel %vm589, %v493, 0.0
        %v617 = vsel %vm590, %v494, 0.0
        %v618 = vsel %vm590, %v495, 0.0
        %v619 = vsel %vm591, %v494, 0.0
        %v620 = vsel %vm591, %v495, 0.0
        %v621 = vsel %vm592, %v496, 0.0
        %v622 = vsel %vm592, %v497, 0.0
        %v623 = vsel %vm593, %v496, 0.0
        %v624 = vsel %vm593, %v497, 0.0
        %v625 = vsel %vm594, %v498, 0.0
        %v626 = vsel %vm594, %v499, 0.0
        %v627 = vsel %vm595, %v498, 0.0
        %v628 = vsel %vm595, %v499, 0.0
        %v629 = vsel %vm596, %v500, 0.0
        %v630 = vsel %vm596, %v501, 0.0
        %v631 = vsel %vm597, %v500, 0.0
        %v632 = vsel %vm597, %v501, 0.0
        %v633 = vsel %vm598, %v502, 0.0
        %v634 = vsel %vm598, %v503, 0.0
        %v635 = vpack.c.bf16 %v600, %v599
        %v636 = vpack.c.bf16 %v602, %v601
        %v637 = vpack.c.bf16 %v604, %v603
        %v638 = vpack.c.bf16 %v606, %v605
        %v639 = vpack.c.bf16 %v608, %v607
        %v640 = vpack.c.bf16 %v610, %v609
        %v641 = vpack.c.bf16 %v612, %v611
        %v642 = vpack.c.bf16 %v614, %v613
        %v643 = vpack.c.bf16 %v616, %v615
        %v644 = vpack.c.bf16 %v618, %v617
        %v645 = vpack.c.bf16 %v620, %v619
        %v646 = vpack.c.bf16 %v622, %v621
        %v647 = vpack.c.bf16 %v624, %v623
        %v648 = vpack.c.bf16 %v626, %v625
        %v649 = vpack.c.bf16 %v628, %v627
        %v650 = vpack.c.bf16 %v630, %v629
        %v651 = vpack.c.bf16 %v632, %v631
        %v652 = vpack.c.bf16 %v634, %v633
        %v654 = vshrl.u32 %v635, 16
        %v656 = vrot.slane %v654, 7
        %v657 = vshll.u32 %v635, 16
        %v659 = vor.u32 %v656, %v657
        %v661 = vshrl.u32 %v636, 16
        %v663 = vrot.slane %v661, 7
        %v664 = vshll.u32 %v636, 16
        %v666 = vor.u32 %v663, %v664
        %v668 = vshrl.u32 %v637, 16
        %v670 = vrot.slane %v668, 7
        %v671 = vshll.u32 %v637, 16
        %v673 = vor.u32 %v670, %v671
        %v675 = vshrl.u32 %v638, 16
        %v677 = vrot.slane %v675, 7
        %v678 = vshll.u32 %v638, 16
        %v680 = vor.u32 %v677, %v678
        %v682 = vshrl.u32 %v639, 16
        %v684 = vrot.slane %v682, 7
        %v685 = vshll.u32 %v639, 16
        %v687 = vor.u32 %v684, %v685
        %v689 = vshrl.u32 %v640, 16
        %v691 = vrot.slane %v689, 7
        %v692 = vshll.u32 %v640, 16
        %v694 = vor.u32 %v691, %v692
        %v696 = vshrl.u32 %v641, 16
        %v698 = vrot.slane %v696, 7
        %v699 = vshll.u32 %v641, 16
        %v701 = vor.u32 %v698, %v699
        %v703 = vshrl.u32 %v642, 16
        %v705 = vrot.slane %v703, 7
        %v706 = vshll.u32 %v642, 16
        %v708 = vor.u32 %v705, %v706
        %v710 = vshrl.u32 %v643, 16
        %v712 = vrot.slane %v710, 7
        %v713 = vshll.u32 %v643, 16
        %v715 = vor.u32 %v712, %v713
        %v717 = vshrl.u32 %v644, 16
        %v719 = vrot.slane %v717, 7
        %v720 = vshll.u32 %v644, 16
        %v722 = vor.u32 %v719, %v720
        %v724 = vshrl.u32 %v645, 16
        %v726 = vrot.slane %v724, 7
        %v727 = vshll.u32 %v645, 16
        %v729 = vor.u32 %v726, %v727
        %v731 = vshrl.u32 %v646, 16
        %v733 = vrot.slane %v731, 7
        %v734 = vshll.u32 %v646, 16
        %v736 = vor.u32 %v733, %v734
        %v738 = vshrl.u32 %v647, 16
        %v740 = vrot.slane %v738, 7
        %v741 = vshll.u32 %v647, 16
        %v743 = vor.u32 %v740, %v741
        %v745 = vshrl.u32 %v648, 16
        %v747 = vrot.slane %v745, 7
        %v748 = vshll.u32 %v648, 16
        %v750 = vor.u32 %v747, %v748
        %v752 = vshrl.u32 %v649, 16
        %v754 = vrot.slane %v752, 7
        %v755 = vshll.u32 %v649, 16
        %v757 = vor.u32 %v754, %v755
        %v759 = vshrl.u32 %v650, 16
        %v761 = vrot.slane %v759, 7
        %v762 = vshll.u32 %v650, 16
        %v764 = vor.u32 %v761, %v762
        %v766 = vshrl.u32 %v651, 16
        %v768 = vrot.slane %v766, 7
        %v769 = vshll.u32 %v651, 16
        %v771 = vor.u32 %v768, %v769
        %v773 = vshrl.u32 %v652, 16
        %v775 = vrot.slane %v773, 7
        %v776 = vshll.u32 %v652, 16
        %v778 = vor.u32 %v775, %v776
        %vm815 = vcmask 1040384
        %vm816 = vsmask.f32 256
        %vm817 = vmand %vm815, %vm816
        %v818 = vsel %vm817, 0, %v659
        %v819 = vsel %vm817, 0, %v666
        %v820 = vsel %vm817, 0, %v673
        %v821 = vsel %vm817, 0, %v680
        %v822 = vsel %vm817, 0, %v687
        %v823 = vsel %vm817, 0, %v694
        %v824 = vsel %vm817, 0, %v701
        %v825 = vsel %vm817, 0, %v708
        %v826 = vsel %vm817, 0, %v715
        %v827 = vsel %vm817, 0, %v722
        %v828 = vsel %vm817, 0, %v729
        %v829 = vsel %vm817, 0, %v736
        %v830 = vsel %vm817, 0, %v743
        %v831 = vsel %vm817, 0, %v750
        %v832 = vsel %vm817, 0, %v757
        %v833 = vsel %vm817, 0, %v764
        %v834 = vsel %vm817, 0, %v771
        %v835 = vsel %vm817, 0, %v778
        %v836 = vsel %vm817, %v656, 0
        %v837 = vsel %vm817, %v663, 0
        %v838 = vsel %vm817, %v670, 0
        %v839 = vsel %vm817, %v677, 0
        %v840 = vsel %vm817, %v684, 0
        %v841 = vsel %vm817, %v691, 0
        %v842 = vsel %vm817, %v698, 0
        %v843 = vsel %vm817, %v705, 0
        %v844 = vsel %vm817, %v712, 0
        %v845 = vsel %vm817, %v719, 0
        %v846 = vsel %vm817, %v726, 0
        %v847 = vsel %vm817, %v733, 0
        %v848 = vsel %vm817, %v740, 0
        %v849 = vsel %vm817, %v747, 0
        %v850 = vsel %vm817, %v754, 0
        %v851 = vsel %vm817, %v761, 0
        %v852 = vsel %vm817, %v768, 0
        %v853 = vsel %vm817, %v775, 0
        %vm854 = vsmask.f32 7424
        %v856 = vshrl.u32 %v818, 16
        %v858 = vshll.u32 %v818, 16
        %v860 = vrot.slane %v858, 1
        %v861 = vor.u32 %v856, %v860
        %v863 = vshll.u32 %v836, 16
        %v865 = vrot.slane %v863, 1
        %v866 = vsel %vm854, %v861, %v865
        %v868 = vshrl.u32 %v819, 16
        %v870 = vshll.u32 %v819, 16
        %v872 = vrot.slane %v870, 1
        %v873 = vor.u32 %v868, %v872
        %v875 = vshll.u32 %v837, 16
        %v877 = vrot.slane %v875, 1
        %v878 = vsel %vm854, %v873, %v877
        %v880 = vshrl.u32 %v820, 16
        %v882 = vshll.u32 %v820, 16
        %v884 = vrot.slane %v882, 1
        %v885 = vor.u32 %v880, %v884
        %v887 = vshll.u32 %v838, 16
        %v889 = vrot.slane %v887, 1
        %v890 = vsel %vm854, %v885, %v889
        %v892 = vshrl.u32 %v821, 16
        %v894 = vshll.u32 %v821, 16
        %v896 = vrot.slane %v894, 1
        %v897 = vor.u32 %v892, %v896
        %v899 = vshll.u32 %v839, 16
        %v901 = vrot.slane %v899, 1
        %v902 = vsel %vm854, %v897, %v901
        %v904 = vshrl.u32 %v822, 16
        %v906 = vshll.u32 %v822, 16
        %v908 = vrot.slane %v906, 1
        %v909 = vor.u32 %v904, %v908
        %v911 = vshll.u32 %v840, 16
        %v913 = vrot.slane %v911, 1
        %v914 = vsel %vm854, %v909, %v913
        %v916 = vshrl.u32 %v823, 16
        %v918 = vshll.u32 %v823, 16
        %v920 = vrot.slane %v918, 1
        %v921 = vor.u32 %v916, %v920
        %v923 = vshll.u32 %v841, 16
        %v925 = vrot.slane %v923, 1
        %v926 = vsel %vm854, %v921, %v925
        %v928 = vshrl.u32 %v824, 16
        %v930 = vshll.u32 %v824, 16
        %v932 = vrot.slane %v930, 1
        %v933 = vor.u32 %v928, %v932
        %v935 = vshll.u32 %v842, 16
        %v937 = vrot.slane %v935, 1
        %v938 = vsel %vm854, %v933, %v937
        %v940 = vshrl.u32 %v825, 16
        %v942 = vshll.u32 %v825, 16
        %v944 = vrot.slane %v942, 1
        %v945 = vor.u32 %v940, %v944
        %v947 = vshll.u32 %v843, 16
        %v949 = vrot.slane %v947, 1
        %v950 = vsel %vm854, %v945, %v949
        %v952 = vshrl.u32 %v826, 16
        %v954 = vshll.u32 %v826, 16
        %v956 = vrot.slane %v954, 1
        %v957 = vor.u32 %v952, %v956
        %v959 = vshll.u32 %v844, 16
        %v961 = vrot.slane %v959, 1
        %v962 = vsel %vm854, %v957, %v961
        %v964 = vshrl.u32 %v827, 16
        %v966 = vshll.u32 %v827, 16
        %v968 = vrot.slane %v966, 1
        %v969 = vor.u32 %v964, %v968
        %v971 = vshll.u32 %v845, 16
        %v973 = vrot.slane %v971, 1
        %v974 = vsel %vm854, %v969, %v973
        %v976 = vshrl.u32 %v828, 16
        %v978 = vshll.u32 %v828, 16
        %v980 = vrot.slane %v978, 1
        %v981 = vor.u32 %v976, %v980
        %v983 = vshll.u32 %v846, 16
        %v985 = vrot.slane %v983, 1
        %v986 = vsel %vm854, %v981, %v985
        %v988 = vshrl.u32 %v829, 16
        %v990 = vshll.u32 %v829, 16
        %v992 = vrot.slane %v990, 1
        %v993 = vor.u32 %v988, %v992
        %v995 = vshll.u32 %v847, 16
        %v997 = vrot.slane %v995, 1
        %v998 = vsel %vm854, %v993, %v997
        %v1000 = vshrl.u32 %v830, 16
        %v1002 = vshll.u32 %v830, 16
        %v1004 = vrot.slane %v1002, 1
        %v1005 = vor.u32 %v1000, %v1004
        %v1007 = vshll.u32 %v848, 16
        %v1009 = vrot.slane %v1007, 1
        %v1010 = vsel %vm854, %v1005, %v1009
        %v1012 = vshrl.u32 %v831, 16
        %v1014 = vshll.u32 %v831, 16
        %v1016 = vrot.slane %v1014, 1
        %v1017 = vor.u32 %v1012, %v1016
        %v1019 = vshll.u32 %v849, 16
        %v1021 = vrot.slane %v1019, 1
        %v1022 = vsel %vm854, %v1017, %v1021
        %v1024 = vshrl.u32 %v832, 16
        %v1026 = vshll.u32 %v832, 16
        %v1028 = vrot.slane %v1026, 1
        %v1029 = vor.u32 %v1024, %v1028
        %v1031 = vshll.u32 %v850, 16
        %v1033 = vrot.slane %v1031, 1
        %v1034 = vsel %vm854, %v1029, %v1033
        %v1036 = vshrl.u32 %v833, 16
        %v1038 = vshll.u32 %v833, 16
        %v1040 = vrot.slane %v1038, 1
        %v1041 = vor.u32 %v1036, %v1040
        %v1043 = vshll.u32 %v851, 16
        %v1045 = vrot.slane %v1043, 1
        %v1046 = vsel %vm854, %v1041, %v1045
        %v1048 = vshrl.u32 %v834, 16
        %v1050 = vshll.u32 %v834, 16
        %v1052 = vrot.slane %v1050, 1
        %v1053 = vor.u32 %v1048, %v1052
        %v1055 = vshll.u32 %v852, 16
        %v1057 = vrot.slane %v1055, 1
        %v1058 = vsel %vm854, %v1053, %v1057
        %v1060 = vshrl.u32 %v835, 16
        %v1062 = vshll.u32 %v835, 16
        %v1064 = vrot.slane %v1062, 1
        %v1065 = vor.u32 %v1060, %v1064
        %v1067 = vshll.u32 %v853, 16
        %v1069 = vrot.slane %v1067, 1
        %v1070 = vsel %vm854, %v1065, %v1069
        %1071 = vrot.lane.b32.xlu0 %v866, 32
        %v1072 = vpop.permute.xlu0 %1071
        %1073 = vrot.lane.b32.xlu0 %v878, 32
        %v1074 = vpop.permute.xlu0 %1073
        %1075 = vrot.lane.b32.xlu0 %v890, 32
        %v1076 = vpop.permute.xlu0 %1075
        %1077 = vrot.lane.b32.xlu0 %v902, 32
        %v1078 = vpop.permute.xlu0 %1077
        %1079 = vrot.lane.b32.xlu0 %v914, 32
        %v1080 = vpop.permute.xlu0 %1079
        %1081 = vrot.lane.b32.xlu0 %v926, 32
        %v1082 = vpop.permute.xlu0 %1081
        %1083 = vrot.lane.b32.xlu0 %v938, 32
        %v1084 = vpop.permute.xlu0 %1083
        %1085 = vrot.lane.b32.xlu0 %v950, 32
        %v1086 = vpop.permute.xlu0 %1085
        %1087 = vrot.lane.b32.xlu0 %v962, 32
        %v1088 = vpop.permute.xlu0 %1087
        %1089 = vrot.lane.b32.xlu0 %v974, 32
        %v1090 = vpop.permute.xlu0 %1089
        %1091 = vrot.lane.b32.xlu0 %v986, 32
        %v1092 = vpop.permute.xlu0 %1091
        %1093 = vrot.lane.b32.xlu0 %v998, 32
        %v1094 = vpop.permute.xlu0 %1093
        %1095 = vrot.lane.b32.xlu0 %v1010, 32
        %v1096 = vpop.permute.xlu0 %1095
        %1097 = vrot.lane.b32.xlu0 %v1022, 32
        %v1098 = vpop.permute.xlu0 %1097
        %1099 = vrot.lane.b32.xlu0 %v1034, 32
        %v1100 = vpop.permute.xlu0 %1099
        %1101 = vrot.lane.b32.xlu0 %v1046, 32
        %v1102 = vpop.permute.xlu0 %1101
        %1103 = vrot.lane.b32.xlu0 %v1058, 32
        %v1104 = vpop.permute.xlu0 %1103
        %1105 = vrot.lane.b32.xlu0 %v1070, 32
        %v1106 = vpop.permute.xlu0 %1105
        %vm1143 = vcmask 1046528
        %v1144 = vrot.slane %v818, 1
        %v1145 = vrot.slane %v836, 1
        %v1146 = vsel %vm1143, %v1144, %v1145
        %v1147 = vrot.slane %v819, 1
        %v1148 = vrot.slane %v837, 1
        %v1149 = vsel %vm1143, %v1147, %v1148
        %v1150 = vrot.slane %v820, 1
        %v1151 = vrot.slane %v838, 1
        %v1152 = vsel %vm1143, %v1150, %v1151
        %v1153 = vrot.slane %v821, 1
        %v1154 = vrot.slane %v839, 1
        %v1155 = vsel %vm1143, %v1153, %v1154
        %v1156 = vrot.slane %v822, 1
        %v1157 = vrot.slane %v840, 1
        %v1158 = vsel %vm1143, %v1156, %v1157
        %v1159 = vrot.slane %v823, 1
        %v1160 = vrot.slane %v841, 1
        %v1161 = vsel %vm1143, %v1159, %v1160
        %v1162 = vrot.slane %v824, 1
        %v1163 = vrot.slane %v842, 1
        %v1164 = vsel %vm1143, %v1162, %v1163
        %v1165 = vrot.slane %v825, 1
        %v1166 = vrot.slane %v843, 1
        %v1167 = vsel %vm1143, %v1165, %v1166
        %v1168 = vrot.slane %v826, 1
        %v1169 = vrot.slane %v844, 1
        %v1170 = vsel %vm1143, %v1168, %v1169
        %v1171 = vrot.slane %v827, 1
        %v1172 = vrot.slane %v845, 1
        %v1173 = vsel %vm1143, %v1171, %v1172
        %v1174 = vrot.slane %v828, 1
        %v1175 = vrot.slane %v846, 1
        %v1176 = vsel %vm1143, %v1174, %v1175
        %v1177 = vrot.slane %v829, 1
        %v1178 = vrot.slane %v847, 1
        %v1179 = vsel %vm1143, %v1177, %v1178
        %v1180 = vrot.slane %v830, 1
        %v1181 = vrot.slane %v848, 1
        %v1182 = vsel %vm1143, %v1180, %v1181
        %v1183 = vrot.slane %v831, 1
        %v1184 = vrot.slane %v849, 1
        %v1185 = vsel %vm1143, %v1183, %v1184
        %v1186 = vrot.slane %v832, 1
        %v1187 = vrot.slane %v850, 1
        %v1188 = vsel %vm1143, %v1186, %v1187
        %v1189 = vrot.slane %v833, 1
        %v1190 = vrot.slane %v851, 1
        %v1191 = vsel %vm1143, %v1189, %v1190
        %v1192 = vrot.slane %v834, 1
        %v1193 = vrot.slane %v852, 1
        %v1194 = vsel %vm1143, %v1192, %v1193
        %v1195 = vrot.slane %v835, 1
        %v1196 = vrot.slane %v853, 1
        %v1197 = vsel %vm1143, %v1195, %v1196
        %1198 = vrot.lane.b32.xlu0 %v1146, 64
        %v1199 = vpop.permute.xlu0 %1198
        %1200 = vrot.lane.b32.xlu0 %v1149, 64
        %v1201 = vpop.permute.xlu0 %1200
        %1202 = vrot.lane.b32.xlu0 %v1152, 64
        %v1203 = vpop.permute.xlu0 %1202
        %1204 = vrot.lane.b32.xlu0 %v1155, 64
        %v1205 = vpop.permute.xlu0 %1204
        %1206 = vrot.lane.b32.xlu0 %v1158, 64
        %v1207 = vpop.permute.xlu0 %1206
        %1208 = vrot.lane.b32.xlu0 %v1161, 64
        %v1209 = vpop.permute.xlu0 %1208
        %1210 = vrot.lane.b32.xlu0 %v1164, 64
        %v1211 = vpop.permute.xlu0 %1210
        %1212 = vrot.lane.b32.xlu0 %v1167, 64
        %v1213 = vpop.permute.xlu0 %1212
        %1214 = vrot.lane.b32.xlu0 %v1170, 64
        %v1215 = vpop.permute.xlu0 %1214
        %1216 = vrot.lane.b32.xlu0 %v1173, 64
        %v1217 = vpop.permute.xlu0 %1216
        %1218 = vrot.lane.b32.xlu0 %v1176, 64
        %v1219 = vpop.permute.xlu0 %1218
        %1220 = vrot.lane.b32.xlu0 %v1179, 64
        %v1221 = vpop.permute.xlu0 %1220
        %1222 = vrot.lane.b32.xlu0 %v1182, 64
        %v1223 = vpop.permute.xlu0 %1222
        %1224 = vrot.lane.b32.xlu0 %v1185, 64
        %v1225 = vpop.permute.xlu0 %1224
        %1226 = vrot.lane.b32.xlu0 %v1188, 64
        %v1227 = vpop.permute.xlu0 %1226
        %1228 = vrot.lane.b32.xlu0 %v1191, 64
        %v1229 = vpop.permute.xlu0 %1228
        %1230 = vrot.lane.b32.xlu0 %v1194, 64
        %v1231 = vpop.permute.xlu0 %1230
        %1232 = vrot.lane.b32.xlu0 %v1197, 64
        %v1233 = vpop.permute.xlu0 %1232
        %vm1234 = vcmask 261120
        %v1236 = vsel %vm1234, %v818, %v1072
        %v1238 = vsel %vm1234, %v819, %v1074
        %v1240 = vsel %vm1234, %v820, %v1076
        %v1242 = vsel %vm1234, %v821, %v1078
        %v1244 = vsel %vm1234, %v822, %v1080
        %v1246 = vsel %vm1234, %v823, %v1082
        %v1248 = vsel %vm1234, %v824, %v1084
        %v1250 = vsel %vm1234, %v825, %v1086
        %v1252 = vsel %vm1234, %v826, %v1088
        %v1254 = vsel %vm1234, %v827, %v1090
        %v1256 = vsel %vm1234, %v828, %v1092
        %v1258 = vsel %vm1234, %v829, %v1094
        %v1260 = vsel %vm1234, %v830, %v1096
        %v1262 = vsel %vm1234, %v831, %v1098
        %v1264 = vsel %vm1234, %v832, %v1100
        %v1266 = vsel %vm1234, %v833, %v1102
        %v1268 = vsel %vm1234, %v834, %v1104
        %v1270 = vsel %vm1234, %v835, %v1106
        %vm1271 = vcmask 523264
        %v1273 = vsel %vm1271, %v1236, %v1199
        %v1275 = vsel %vm1271, %v1238, %v1201
        %v1277 = vsel %vm1271, %v1240, %v1203
        %v1279 = vsel %vm1271, %v1242, %v1205
        %v1281 = vsel %vm1271, %v1244, %v1207
        %v1283 = vsel %vm1271, %v1246, %v1209
        %v1285 = vsel %vm1271, %v1248, %v1211
        %v1287 = vsel %vm1271, %v1250, %v1213
        %v1289 = vsel %vm1271, %v1252, %v1215
        %v1291 = vsel %vm1271, %v1254, %v1217
        %v1293 = vsel %vm1271, %v1256, %v1219
        %v1295 = vsel %vm1271, %v1258, %v1221
        %v1297 = vsel %vm1271, %v1260, %v1223
        %v1299 = vsel %vm1271, %v1262, %v1225
        %v1301 = vsel %vm1271, %v1264, %v1227
        %v1303 = vsel %vm1271, %v1266, %v1229
        %v1305 = vsel %vm1271, %v1268, %v1231
        %v1307 = vsel %vm1271, %v1270, %v1233
        %v1308 = vld [vmem:[%s5] sm:$0xf]
        %v1309 = vld [vmem:[%s5 + $0x4] sm:$0xf]
        %v1310 = vld [vmem:[%s5 + $0x8] sm:$0xf]
        %v1311 = vld [vmem:[%s5 + $0xc] sm:$0xf]
        %v1312 = vld [vmem:[%s5 + $0x10] sm:$0xf]
        %v1313 = vld [vmem:[%s5 + $0x14] sm:$0xf]
        %v1314 = vld [vmem:[%s5 + $0x18] sm:$0xf]
        %v1315 = vld [vmem:[%s5 + $0x1c] sm:$0xf]
        %v1316 = vld [vmem:[%s5 + $0x20] sm:$0xf]
        %v1317 = vld [vmem:[%s5 + $0x24] sm:$0xf]
        %v1318 = vld [vmem:[%s5 + $0x28] sm:$0xf]
        %v1319 = vld [vmem:[%s5 + $0x2c] sm:$0xf]
        %s1320 = scalar_lea.vmem %s5, 48
        %v1321 = vld [vmem:[%s1320] sm:$0xf]
        %v1322 = vld [vmem:[%s1320 + $0x4] sm:$0xf]
        %v1323 = vld [vmem:[%s1320 + $0x8] sm:$0xf]
        %v1324 = vld [vmem:[%s1320 + $0xc] sm:$0xf]
        %v1325 = vld [vmem:[%s1320 + $0x10] sm:$0xf]
        %v1326 = vld [vmem:[%s1320 + $0x14] sm:$0xf]
        %v1327 = vld [vmem:[%s1320 + $0x18] sm:$0xf]
        %v1328 = vld [vmem:[%s1320 + $0x1c] sm:$0xf]
        %v1329 = vld [vmem:[%s1320 + $0x20] sm:$0xf]
        %v1330 = vld [vmem:[%s1320 + $0x24] sm:$0xf]
        %v1331 = vld [vmem:[%s1320 + $0x28] sm:$0xf]
        %v1332 = vld [vmem:[%s1320 + $0x2c] sm:$0xf]
        %v1345 = vunpack.c.l.b16 %v1321
        %v1346 = vunpack.c.l.b16 %v1322
        %v1347 = vunpack.c.l.b16 %v1323
        %v1348 = vunpack.c.l.b16 %v1324
        %v1349 = vunpack.c.l.b16 %v1325
        %v1350 = vunpack.c.l.b16 %v1326
        %v1351 = vunpack.c.l.b16 %v1327
        %v1352 = vunpack.c.l.b16 %v1328
        %v1353 = vunpack.c.l.b16 %v1329
        %v1354 = vunpack.c.l.b16 %v1330
        %v1355 = vunpack.c.l.b16 %v1331
        %v1356 = vunpack.c.l.b16 %v1332
        %v1357 = vpack.c.b16 %v1346, %v1345
        %v1358 = vpack.c.b16 %v1348, %v1347
        %v1359 = vpack.c.b16 %v1350, %v1349
        %v1360 = vpack.c.b16 %v1352, %v1351
        %v1361 = vpack.c.b16 %v1354, %v1353
        %v1362 = vpack.c.b16 %v1356, %v1355
        %vm1369 = vcmask 785408
        %v1370 = vsel %vm1369, %v1275, 0
        %v1372 = vsel %vm1369, %v1277, 0
        %v1374 = vsel %vm1369, %v1279, 0
        %v1376 = vsel %vm1369, %v1281, 0
        %v1378 = vsel %vm1369, %v1283, 0
        %v1380 = vsel %vm1369, %v1285, 0
        %v1382 = vsel %vm1369, %v1287, 0
        %v1384 = vsel %vm1369, %v1289, 0
        %v1386 = vsel %vm1369, %v1291, 0
        %v1388 = vsel %vm1369, %v1293, 0
        %v1390 = vsel %vm1369, %v1295, 0
        %v1392 = vsel %vm1369, %v1297, 0
        %v1394 = vsel %vm1369, %v1299, 0
        %v1396 = vsel %vm1369, %v1301, 0
        %v1398 = vsel %vm1369, %v1303, 0
        %v1400 = vsel %vm1369, %v1305, 0
        %1402 = vmatprep.subr.bf16.mxu0 0
        %1403 = vmatpush1.bf16.msra.mxu0 %v1357
        %1404 = vmatprep.subr.bf16.mxu0 0
        %1405 = vmatpush1.bf16.msra.mxu0 %v1358
        %1406 = vmatprep.subr.bf16.mxu0 0
        %1407 = vmatpush1.bf16.msra.mxu0 %v1359
        %1408 = vmatprep.subr.bf16.mxu0 0
        %1409 = vmatpush1.bf16.msra.mxu0 %v1360
        %1410 = vmatprep.subr.bf16.mxu0 0
        %1411 = vmatpush1.bf16.msra.mxu0 %v1361
        %1412 = vmatprep.subr.bf16.mxu0 0
        %1413 = vmatpush1.bf16.msra.mxu0 %v1362
        %1414 = vmatprep.subr.bf16.mxu0 0
        %1415 = vmatpush1.bf16.msra.mxu0 0
        %1416 = vmatprep.subr.bf16.mxu0 0
        %1417 = vmatpush1.bf16.msra.mxu0 0
        %1418 = vmatprep.subr.bf16.mxu0 0
        %1419 = vmatpush1.bf16.msra.mxu0 0
        %1420 = vmatprep.subr.bf16.mxu0 0
        %1421 = vmatpush1.bf16.msra.mxu0 0
        %1422 = vmatprep.subr.bf16.mxu0 0
        %1423 = vmatpush1.bf16.msra.mxu0 0
        %1424 = vmatprep.subr.bf16.mxu0 0
        %1425 = vmatpush1.bf16.msra.mxu0 0
        %1426 = vmatprep.subr.bf16.mxu0 0
        %1427 = vmatpush1.bf16.msra.mxu0 0
        %1428 = vmatprep.subr.bf16.mxu0 0
        %1429 = vmatpush1.bf16.msra.mxu0 0
        %1430 = vmatprep.subr.bf16.mxu0 0
        %1431 = vmatpush1.bf16.msra.mxu0 0
        %1432 = vmatprep.subr.bf16.mxu0 0
        %1433 = vmatpush1.bf16.msra.mxu0 0
        %1434 = vmatprep.mubr.bf16.mxu0 0
        %1435 = vmatmul.mubr.bf16.gmra.mrb[0].mxu0 %v1370
        %v1436 = vpop.f32.mrb[0].mxu0
        %v1437 = vadd.f32 0.0, %v1436
        %v1438 = vpop.f32.mrb[0].mxu0
        %v1439 = vpop.f32.mrb[0].mxu0
        %v1440 = vadd.f32 0.0, %v1439
        %v1441 = vpop.f32.mrb[0].mxu0
        %1442 = vmatprep.mubr.bf16.mxu0 0
        %1443 = vmatmul.mubr.bf16.gmra.mrb[0].mxu0 %v1372
        %v1444 = vpop.f32.mrb[0].mxu0
        %v1445 = vadd.f32 0.0, %v1444
        %v1446 = vpop.f32.mrb[0].mxu0
        %v1447 = vpop.f32.mrb[0].mxu0
        %v1448 = vadd.f32 0.0, %v1447
        %v1449 = vpop.f32.mrb[0].mxu0
        %1450 = vmatprep.mubr.bf16.mxu0 0
        %1451 = vmatmul.mubr.bf16.gmra.mrb[0].mxu0 %v1374
        %v1452 = vpop.f32.mrb[0].mxu0
        %v1453 = vadd.f32 0.0, %v1452
        %v1454 = vpop.f32.mrb[0].mxu0
        %v1455 = vpop.f32.mrb[0].mxu0
        %v1456 = vadd.f32 0.0, %v1455
        %v1457 = vpop.f32.mrb[0].mxu0
        %1458 = vmatprep.mubr.bf16.mxu0 0
        %1459 = vmatmul.mubr.bf16.gmra.mrb[0].mxu0 %v1376
        %v1460 = vpop.f32.mrb[0].mxu0
        %v1461 = vadd.f32 0.0, %v1460
        %v1462 = vpop.f32.mrb[0].mxu0
        %v1463 = vpop.f32.mrb[0].mxu0
        %v1464 = vadd.f32 0.0, %v1463
        %v1465 = vpop.f32.mrb[0].mxu0
        %1466 = vmatprep.mubr.bf16.mxu0 0
        %1467 = vmatmul.mubr.bf16.gmra.mrb[0].mxu0 %v1378
        %v1468 = vpop.f32.mrb[0].mxu0
        %v1469 = vadd.f32 0.0, %v1468
        %v1470 = vpop.f32.mrb[0].mxu0
        %v1471 = vpop.f32.mrb[0].mxu0
        %v1472 = vadd.f32 0.0, %v1471
        %v1473 = vpop.f32.mrb[0].mxu0
        %1474 = vmatprep.mubr.bf16.mxu0 0
        %1475 = vmatmul.mubr.bf16.gmra.mrb[0].mxu0 %v1380
        %v1476 = vpop.f32.mrb[0].mxu0
        %v1477 = vadd.f32 0.0, %v1476
        %v1478 = vpop.f32.mrb[0].mxu0
        %v1479 = vpop.f32.mrb[0].mxu0
        %v1480 = vadd.f32 0.0, %v1479
        %v1481 = vpop.f32.mrb[0].mxu0
        %1482 = vmatprep.mubr.bf16.mxu0 0
        %1483 = vmatmul.mubr.bf16.gmra.mrb[0].mxu0 %v1382
        %v1484 = vpop.f32.mrb[0].mxu0
        %v1485 = vadd.f32 0.0, %v1484
        %v1486 = vpop.f32.mrb[0].mxu0
        %v1487 = vpop.f32.mrb[0].mxu0
        %v1488 = vadd.f32 0.0, %v1487
        %v1489 = vpop.f32.mrb[0].mxu0
        %1490 = vmatprep.mubr.bf16.mxu0 0
        %1491 = vmatmul.mubr.bf16.gmra.mrb[0].mxu0 %v1384
        %v1492 = vpop.f32.mrb[0].mxu0
        %v1493 = vadd.f32 0.0, %v1492
        %v1494 = vpop.f32.mrb[0].mxu0
        %v1495 = vpop.f32.mrb[0].mxu0
        %v1496 = vadd.f32 0.0, %v1495
        %v1497 = vpop.f32.mrb[0].mxu0
        %1498 = vmatprep.mubr.bf16.mxu0 0
        %1499 = vmatmul.mubr.bf16.gmra.mrb[0].mxu0 %v1386
        %v1500 = vpop.f32.mrb[0].mxu0
        %v1501 = vadd.f32 0.0, %v1500
        %v1502 = vpop.f32.mrb[0].mxu0
        %v1503 = vpop.f32.mrb[0].mxu0
        %v1504 = vadd.f32 0.0, %v1503
        %v1505 = vpop.f32.mrb[0].mxu0
        %1506 = vmatprep.mubr.bf16.mxu0 0
        %1507 = vmatmul.mubr.bf16.gmra.mrb[0].mxu0 %v1388
        %v1508 = vpop.f32.mrb[0].mxu0
        %v1509 = vadd.f32 0.0, %v1508
        %v1510 = vpop.f32.mrb[0].mxu0
        %v1511 = vpop.f32.mrb[0].mxu0
        %v1512 = vadd.f32 0.0, %v1511
        %v1513 = vpop.f32.mrb[0].mxu0
        %1514 = vmatprep.mubr.bf16.mxu0 0
        %1515 = vmatmul.mubr.bf16.gmra.mrb[0].mxu0 %v1390
        %v1516 = vpop.f32.mrb[0].mxu0
        %v1517 = vadd.f32 0.0, %v1516
        %v1518 = vpop.f32.mrb[0].mxu0
        %v1519 = vpop.f32.mrb[0].mxu0
        %v1520 = vadd.f32 0.0, %v1519
        %v1521 = vpop.f32.mrb[0].mxu0
        %1522 = vmatprep.mubr.bf16.mxu0 0
        %1523 = vmatmul.mubr.bf16.gmra.mrb[0].mxu0 %v1392
        %v1524 = vpop.f32.mrb[0].mxu0
        %v1525 = vadd.f32 0.0, %v1524
        %v1526 = vpop.f32.mrb[0].mxu0
        %v1527 = vpop.f32.mrb[0].mxu0
        %v1528 = vadd.f32 0.0, %v1527
        %v1529 = vpop.f32.mrb[0].mxu0
        %1530 = vmatprep.mubr.bf16.mxu0 0
        %1531 = vmatmul.mubr.bf16.gmra.mrb[0].mxu0 %v1394
        %v1532 = vpop.f32.mrb[0].mxu0
        %v1533 = vadd.f32 0.0, %v1532
        %v1534 = vpop.f32.mrb[0].mxu0
        %v1535 = vpop.f32.mrb[0].mxu0
        %v1536 = vadd.f32 0.0, %v1535
        %v1537 = vpop.f32.mrb[0].mxu0
        %1538 = vmatprep.mubr.bf16.mxu0 0
        %1539 = vmatmul.mubr.bf16.gmra.mrb[0].mxu0 %v1396
        %v1540 = vpop.f32.mrb[0].mxu0
        %v1541 = vadd.f32 0.0, %v1540
        %v1542 = vpop.f32.mrb[0].mxu0
        %v1543 = vpop.f32.mrb[0].mxu0
        %v1544 = vadd.f32 0.0, %v1543
        %v1545 = vpop.f32.mrb[0].mxu0
        %1546 = vmatprep.mubr.bf16.mxu0 0
        %1547 = vmatmul.mubr.bf16.gmra.mrb[0].mxu0 %v1398
        %v1548 = vpop.f32.mrb[0].mxu0
        %v1549 = vadd.f32 0.0, %v1548
        %v1550 = vpop.f32.mrb[0].mxu0
        %v1551 = vpop.f32.mrb[0].mxu0
        %v1552 = vadd.f32 0.0, %v1551
        %v1553 = vpop.f32.mrb[0].mxu0
        %1554 = vmatprep.mubr.bf16.mxu0 0
        %1555 = vmatmul.mubr.bf16.gmra.mrb[0].mxu0 %v1400
        %v1556 = vpop.f32.mrb[0].mxu0
        %v1557 = vadd.f32 0.0, %v1556
        %v1558 = vpop.f32.mrb[0].mxu0
        %v1559 = vpop.f32.mrb[0].mxu0
        %v1560 = vadd.f32 0.0, %v1559
        %v1561 = vpop.f32.mrb[0].mxu0
        %1562 = vdwg.mxu0
        %v1575 = vunpack.c.l.b16 %v1308
        %v1576 = vunpack.c.l.b16 %v1309
        %v1577 = vunpack.c.l.b16 %v1310
        %v1578 = vunpack.c.l.b16 %v1311
        %v1579 = vunpack.c.l.b16 %v1312
        %v1580 = vunpack.c.l.b16 %v1313
        %v1581 = vunpack.c.l.b16 %v1314
        %v1582 = vunpack.c.l.b16 %v1315
        %v1583 = vunpack.c.l.b16 %v1316
        %v1584 = vunpack.c.l.b16 %v1317
        %v1585 = vunpack.c.l.b16 %v1318
        %v1586 = vunpack.c.l.b16 %v1319
        %v1587 = vpack.c.b16 %v1576, %v1575
        %v1588 = vpack.c.b16 %v1578, %v1577
        %v1589 = vpack.c.b16 %v1580, %v1579
        %v1590 = vpack.c.b16 %v1582, %v1581
        %v1591 = vpack.c.b16 %v1584, %v1583
        %v1592 = vpack.c.b16 %v1586, %v1585
        %v1599 = vsel %vm1369, %v1273, 0
        %1601 = vmatprep.subr.bf16.mxu0 0
        %1602 = vmatpush1.bf16.msra.mxu0 %v1587
        %1603 = vmatprep.subr.bf16.mxu0 0
        %1604 = vmatpush1.bf16.msra.mxu0 %v1588
        %1605 = vmatprep.subr.bf16.mxu0 0
        %1606 = vmatpush1.bf16.msra.mxu0 %v1589
        %1607 = vmatprep.subr.bf16.mxu0 0
        %1608 = vmatpush1.bf16.msra.mxu0 %v1590
        %1609 = vmatprep.subr.bf16.mxu0 0
        %1610 = vmatpush1.bf16.msra.mxu0 %v1591
        %1611 = vmatprep.subr.bf16.mxu0 0
        %1612 = vmatpush1.bf16.msra.mxu0 %v1592
        %1613 = vmatprep.subr.bf16.mxu0 0
        %1614 = vmatpush1.bf16.msra.mxu0 0
        %1615 = vmatprep.subr.bf16.mxu0 0
        %1616 = vmatpush1.bf16.msra.mxu0 0
        %1617 = vmatprep.subr.bf16.mxu0 0
        %1618 = vmatpush1.bf16.msra.mxu0 0
        %1619 = vmatprep.subr.bf16.mxu0 0
        %1620 = vmatpush1.bf16.msra.mxu0 0
        %1621 = vmatprep.subr.bf16.mxu0 0
        %1622 = vmatpush1.bf16.msra.mxu0 0
        %1623 = vmatprep.subr.bf16.mxu0 0
        %1624 = vmatpush1.bf16.msra.mxu0 0
        %1625 = vmatprep.subr.bf16.mxu0 0
        %1626 = vmatpush1.bf16.msra.mxu0 0
        %1627 = vmatprep.subr.bf16.mxu0 0
        %1628 = vmatpush1.bf16.msra.mxu0 0
        %1629 = vmatprep.subr.bf16.mxu0 0
        %1630 = vmatpush1.bf16.msra.mxu0 0
        %1631 = vmatprep.subr.bf16.mxu0 0
        %1632 = vmatpush1.bf16.msra.mxu0 0
        %1633 = vmatprep.mubr.bf16.mxu0 0
        %1634 = vmatmul.mubr.bf16.gmra.mrb[0].mxu0 %v1599
        %v1635 = vpop.f32.mrb[0].mxu0
        %v1636 = vadd.f32 %v1437, %v1635
        %v1637 = vpop.f32.mrb[0].mxu0
        %v1638 = vpop.f32.mrb[0].mxu0
        %v1639 = vadd.f32 %v1440, %v1638
        %v1640 = vpop.f32.mrb[0].mxu0
        %1641 = vmatprep.mubr.bf16.mxu0 0
        %1642 = vmatmul.mubr.bf16.gmra.mrb[0].mxu0 %v1370
        %v1643 = vpop.f32.mrb[0].mxu0
        %v1644 = vadd.f32 %v1445, %v1643
        %v1645 = vpop.f32.mrb[0].mxu0
        %v1646 = vpop.f32.mrb[0].mxu0
        %v1647 = vadd.f32 %v1448, %v1646
        %v1648 = vpop.f32.mrb[0].mxu0
        %1649 = vmatprep.mubr.bf16.mxu0 0
        %1650 = vmatmul.mubr.bf16.gmra.mrb[0].mxu0 %v1372
        %v1651 = vpop.f32.mrb[0].mxu0
        %v1652 = vadd.f32 %v1453, %v1651
        %v1653 = vpop.f32.mrb[0].mxu0
        %v1654 = vpop.f32.mrb[0].mxu0
        %v1655 = vadd.f32 %v1456, %v1654
        %v1656 = vpop.f32.mrb[0].mxu0
        %1657 = vmatprep.mubr.bf16.mxu0 0
        %1658 = vmatmul.mubr.bf16.gmra.mrb[0].mxu0 %v1374
        %v1659 = vpop.f32.mrb[0].mxu0
        %v1660 = vadd.f32 %v1461, %v1659
        %v1661 = vpop.f32.mrb[0].mxu0
        %v1662 = vpop.f32.mrb[0].mxu0
        %v1663 = vadd.f32 %v1464, %v1662
        %v1664 = vpop.f32.mrb[0].mxu0
        %1665 = vmatprep.mubr.bf16.mxu0 0
        %1666 = vmatmul.mubr.bf16.gmra.mrb[0].mxu0 %v1376
        %v1667 = vpop.f32.mrb[0].mxu0
        %v1668 = vadd.f32 %v1469, %v1667
        %v1669 = vpop.f32.mrb[0].mxu0
        %v1670 = vpop.f32.mrb[0].mxu0
        %v1671 = vadd.f32 %v1472, %v1670
        %v1672 = vpop.f32.mrb[0].mxu0
        %1673 = vmatprep.mubr.bf16.mxu0 0
        %1674 = vmatmul.mubr.bf16.gmra.mrb[0].mxu0 %v1378
        %v1675 = vpop.f32.mrb[0].mxu0
        %v1676 = vadd.f32 %v1477, %v1675
        %v1677 = vpop.f32.mrb[0].mxu0
        %v1678 = vpop.f32.mrb[0].mxu0
        %v1679 = vadd.f32 %v1480, %v1678
        %v1680 = vpop.f32.mrb[0].mxu0
        %1681 = vmatprep.mubr.bf16.mxu0 0
        %1682 = vmatmul.mubr.bf16.gmra.mrb[0].mxu0 %v1380
        %v1683 = vpop.f32.mrb[0].mxu0
        %v1684 = vadd.f32 %v1485, %v1683
        %v1685 = vpop.f32.mrb[0].mxu0
        %v1686 = vpop.f32.mrb[0].mxu0
        %v1687 = vadd.f32 %v1488, %v1686
        %v1688 = vpop.f32.mrb[0].mxu0
        %1689 = vmatprep.mubr.bf16.mxu0 0
        %1690 = vmatmul.mubr.bf16.gmra.mrb[0].mxu0 %v1382
        %v1691 = vpop.f32.mrb[0].mxu0
        %v1692 = vadd.f32 %v1493, %v1691
        %v1693 = vpop.f32.mrb[0].mxu0
        %v1694 = vpop.f32.mrb[0].mxu0
        %v1695 = vadd.f32 %v1496, %v1694
        %v1696 = vpop.f32.mrb[0].mxu0
        %1697 = vmatprep.mubr.bf16.mxu0 0
        %1698 = vmatmul.mubr.bf16.gmra.mrb[0].mxu0 %v1384
        %v1699 = vpop.f32.mrb[0].mxu0
        %v1700 = vadd.f32 %v1501, %v1699
        %v1701 = vpop.f32.mrb[0].mxu0
        %v1702 = vpop.f32.mrb[0].mxu0
        %v1703 = vadd.f32 %v1504, %v1702
        %v1704 = vpop.f32.mrb[0].mxu0
        %1705 = vmatprep.mubr.bf16.mxu0 0
        %1706 = vmatmul.mubr.bf16.gmra.mrb[0].mxu0 %v1386
        %v1707 = vpop.f32.mrb[0].mxu0
        %v1708 = vadd.f32 %v1509, %v1707
        %v1709 = vpop.f32.mrb[0].mxu0
        %v1710 = vpop.f32.mrb[0].mxu0
        %v1711 = vadd.f32 %v1512, %v1710
        %v1712 = vpop.f32.mrb[0].mxu0
        %1713 = vmatprep.mubr.bf16.mxu0 0
        %1714 = vmatmul.mubr.bf16.gmra.mrb[0].mxu0 %v1388
        %v1715 = vpop.f32.mrb[0].mxu0
        %v1716 = vadd.f32 %v1517, %v1715
        %v1717 = vpop.f32.mrb[0].mxu0
        %v1718 = vpop.f32.mrb[0].mxu0
        %v1719 = vadd.f32 %v1520, %v1718
        %v1720 = vpop.f32.mrb[0].mxu0
        %1721 = vmatprep.mubr.bf16.mxu0 0
        %1722 = vmatmul.mubr.bf16.gmra.mrb[0].mxu0 %v1390
        %v1723 = vpop.f32.mrb[0].mxu0
        %v1724 = vadd.f32 %v1525, %v1723
        %v1725 = vpop.f32.mrb[0].mxu0
        %v1726 = vpop.f32.mrb[0].mxu0
        %v1727 = vadd.f32 %v1528, %v1726
        %v1728 = vpop.f32.mrb[0].mxu0
        %1729 = vmatprep.mubr.bf16.mxu0 0
        %1730 = vmatmul.mubr.bf16.gmra.mrb[0].mxu0 %v1392
        %v1731 = vpop.f32.mrb[0].mxu0
        %v1732 = vadd.f32 %v1533, %v1731
        %v1733 = vpop.f32.mrb[0].mxu0
        %v1734 = vpop.f32.mrb[0].mxu0
        %v1735 = vadd.f32 %v1536, %v1734
        %v1736 = vpop.f32.mrb[0].mxu0
        %1737 = vmatprep.mubr.bf16.mxu0 0
        %1738 = vmatmul.mubr.bf16.gmra.mrb[0].mxu0 %v1394
        %v1739 = vpop.f32.mrb[0].mxu0
        %v1740 = vadd.f32 %v1541, %v1739
        %v1741 = vpop.f32.mrb[0].mxu0
        %v1742 = vpop.f32.mrb[0].mxu0
        %v1743 = vadd.f32 %v1544, %v1742
        %v1744 = vpop.f32.mrb[0].mxu0
        %1745 = vmatprep.mubr.bf16.mxu0 0
        %1746 = vmatmul.mubr.bf16.gmra.mrb[0].mxu0 %v1396
        %v1747 = vpop.f32.mrb[0].mxu0
        %v1748 = vadd.f32 %v1549, %v1747
        %v1749 = vpop.f32.mrb[0].mxu0
        %v1750 = vpop.f32.mrb[0].mxu0
        %v1751 = vadd.f32 %v1552, %v1750
        %v1752 = vpop.f32.mrb[0].mxu0
        %1753 = vmatprep.mubr.bf16.mxu0 0
        %1754 = vmatmul.mubr.bf16.gmra.mrb[0].mxu0 %v1398
        %v1755 = vpop.f32.mrb[0].mxu0
        %v1756 = vadd.f32 %v1557, %v1755
        %v1757 = vpop.f32.mrb[0].mxu0
        %v1758 = vpop.f32.mrb[0].mxu0
        %v1759 = vadd.f32 %v1560, %v1758
        %v1760 = vpop.f32.mrb[0].mxu0
        %1761 = vdwg.mxu0
        %s1762 = scalar_lea.vmem %s5, 96
        %v1763 = vld [vmem:[%s1762] sm:$0xf]
        %v1764 = vld [vmem:[%s1762 + $0x4] sm:$0xf]
        %v1765 = vld [vmem:[%s1762 + $0x8] sm:$0xf]
        %v1766 = vld [vmem:[%s1762 + $0xc] sm:$0xf]
        %v1767 = vld [vmem:[%s1762 + $0x10] sm:$0xf]
        %v1768 = vld [vmem:[%s1762 + $0x14] sm:$0xf]
        %v1769 = vld [vmem:[%s1762 + $0x18] sm:$0xf]
        %v1770 = vld [vmem:[%s1762 + $0x1c] sm:$0xf]
        %v1771 = vld [vmem:[%s1762 + $0x20] sm:$0xf]
        %v1772 = vld [vmem:[%s1762 + $0x24] sm:$0xf]
        %v1773 = vld [vmem:[%s1762 + $0x28] sm:$0xf]
        %v1774 = vld [vmem:[%s1762 + $0x2c] sm:$0xf]
        %v1787 = vunpack.c.l.b16 %v1763
        %v1788 = vunpack.c.l.b16 %v1764
        %v1789 = vunpack.c.l.b16 %v1765
        %v1790 = vunpack.c.l.b16 %v1766
        %v1791 = vunpack.c.l.b16 %v1767
        %v1792 = vunpack.c.l.b16 %v1768
        %v1793 = vunpack.c.l.b16 %v1769
        %v1794 = vunpack.c.l.b16 %v1770
        %v1795 = vunpack.c.l.b16 %v1771
        %v1796 = vunpack.c.l.b16 %v1772
        %v1797 = vunpack.c.l.b16 %v1773
        %v1798 = vunpack.c.l.b16 %v1774
        %v1799 = vpack.c.b16 %v1788, %v1787
        %v1800 = vpack.c.b16 %v1790, %v1789
        %v1801 = vpack.c.b16 %v1792, %v1791
        %v1802 = vpack.c.b16 %v1794, %v1793
        %v1803 = vpack.c.b16 %v1796, %v1795
        %v1804 = vpack.c.b16 %v1798, %v1797
        %v1811 = vsel %vm1369, %v1307, 0
        %1813 = vmatprep.subr.bf16.mxu0 0
        %1814 = vmatpush1.bf16.msra.mxu0 %v1799
        %1815 = vmatprep.subr.bf16.mxu0 0
        %1816 = vmatpush1.bf16.msra.mxu0 %v1800
        %1817 = vmatprep.subr.bf16.mxu0 0
        %1818 = vmatpush1.bf16.msra.mxu0 %v1801
        %1819 = vmatprep.subr.bf16.mxu0 0
        %1820 = vmatpush1.bf16.msra.mxu0 %v1802
        %1821 = vmatprep.subr.bf16.mxu0 0
        %1822 = vmatpush1.bf16.msra.mxu0 %v1803
        %1823 = vmatprep.subr.bf16.mxu0 0
        %1824 = vmatpush1.bf16.msra.mxu0 %v1804
        %1825 = vmatprep.subr.bf16.mxu0 0
        %1826 = vmatpush1.bf16.msra.mxu0 0
        %1827 = vmatprep.subr.bf16.mxu0 0
        %1828 = vmatpush1.bf16.msra.mxu0 0
        %1829 = vmatprep.subr.bf16.mxu0 0
        %1830 = vmatpush1.bf16.msra.mxu0 0
        %1831 = vmatprep.subr.bf16.mxu0 0
        %1832 = vmatpush1.bf16.msra.mxu0 0
        %1833 = vmatprep.subr.bf16.mxu0 0
        %1834 = vmatpush1.bf16.msra.mxu0 0
        %1835 = vmatprep.subr.bf16.mxu0 0
        %1836 = vmatpush1.bf16.msra.mxu0 0
        %1837 = vmatprep.subr.bf16.mxu0 0
        %1838 = vmatpush1.bf16.msra.mxu0 0
        %1839 = vmatprep.subr.bf16.mxu0 0
        %1840 = vmatpush1.bf16.msra.mxu0 0
        %1841 = vmatprep.subr.bf16.mxu0 0
        %1842 = vmatpush1.bf16.msra.mxu0 0
        %1843 = vmatprep.subr.bf16.mxu0 0
        %1844 = vmatpush1.bf16.msra.mxu0 0
        %1845 = vmatprep.mubr.bf16.mxu0 0
        %1846 = vmatmul.mubr.bf16.gmra.mrb[0].mxu0 %v1372
        %v1847 = vpop.f32.mrb[0].mxu0
        %v1848 = vadd.f32 0.0, %v1847
        %v1849 = vpop.f32.mrb[0].mxu0
        %v1850 = vpop.f32.mrb[0].mxu0
        %v1851 = vadd.f32 0.0, %v1850
        %v1852 = vpop.f32.mrb[0].mxu0
        %1853 = vmatprep.mubr.bf16.mxu0 0
        %1854 = vmatmul.mubr.bf16.gmra.mrb[0].mxu0 %v1374
        %v1855 = vpop.f32.mrb[0].mxu0
        %v1856 = vadd.f32 0.0, %v1855
        %v1857 = vpop.f32.mrb[0].mxu0
        %v1858 = vpop.f32.mrb[0].mxu0
        %v1859 = vadd.f32 0.0, %v1858
        %v1860 = vpop.f32.mrb[0].mxu0
        %1861 = vmatprep.mubr.bf16.mxu0 0
        %1862 = vmatmul.mubr.bf16.gmra.mrb[0].mxu0 %v1376
        %v1863 = vpop.f32.mrb[0].mxu0
        %v1864 = vadd.f32 0.0, %v1863
        %v1865 = vpop.f32.mrb[0].mxu0
        %v1866 = vpop.f32.mrb[0].mxu0
        %v1867 = vadd.f32 0.0, %v1866
        %v1868 = vpop.f32.mrb[0].mxu0
        %1869 = vmatprep.mubr.bf16.mxu0 0
        %1870 = vmatmul.mubr.bf16.gmra.mrb[0].mxu0 %v1378
        %v1871 = vpop.f32.mrb[0].mxu0
        %v1872 = vadd.f32 0.0, %v1871
        %v1873 = vpop.f32.mrb[0].mxu0
        %v1874 = vpop.f32.mrb[0].mxu0
        %v1875 = vadd.f32 0.0, %v1874
        %v1876 = vpop.f32.mrb[0].mxu0
        %1877 = vmatprep.mubr.bf16.mxu0 0
        %1878 = vmatmul.mubr.bf16.gmra.mrb[0].mxu0 %v1380
        %v1879 = vpop.f32.mrb[0].mxu0
        %v1880 = vadd.f32 0.0, %v1879
        %v1881 = vpop.f32.mrb[0].mxu0
        %v1882 = vpop.f32.mrb[0].mxu0
        %v1883 = vadd.f32 0.0, %v1882
        %v1884 = vpop.f32.mrb[0].mxu0
        %1885 = vmatprep.mubr.bf16.mxu0 0
        %1886 = vmatmul.mubr.bf16.gmra.mrb[0].mxu0 %v1382
        %v1887 = vpop.f32.mrb[0].mxu0
        %v1888 = vadd.f32 0.0, %v1887
        %v1889 = vpop.f32.mrb[0].mxu0
        %v1890 = vpop.f32.mrb[0].mxu0
        %v1891 = vadd.f32 0.0, %v1890
        %v1892 = vpop.f32.mrb[0].mxu0
        %1893 = vmatprep.mubr.bf16.mxu0 0
        %1894 = vmatmul.mubr.bf16.gmra.mrb[0].mxu0 %v1384
        %v1895 = vpop.f32.mrb[0].mxu0
        %v1896 = vadd.f32 0.0, %v1895
        %v1897 = vpop.f32.mrb[0].mxu0
        %v1898 = vpop.f32.mrb[0].mxu0
        %v1899 = vadd.f32 0.0, %v1898
        %v1900 = vpop.f32.mrb[0].mxu0
        %1901 = vmatprep.mubr.bf16.mxu0 0
        %1902 = vmatmul.mubr.bf16.gmra.mrb[0].mxu0 %v1386
        %v1903 = vpop.f32.mrb[0].mxu0
        %v1904 = vadd.f32 0.0, %v1903
        %v1905 = vpop.f32.mrb[0].mxu0
        %v1906 = vpop.f32.mrb[0].mxu0
        %v1907 = vadd.f32 0.0, %v1906
        %v1908 = vpop.f32.mrb[0].mxu0
        %1909 = vmatprep.mubr.bf16.mxu0 0
        %1910 = vmatmul.mubr.bf16.gmra.mrb[0].mxu0 %v1388
        %v1911 = vpop.f32.mrb[0].mxu0
        %v1912 = vadd.f32 0.0, %v1911
        %v1913 = vpop.f32.mrb[0].mxu0
        %v1914 = vpop.f32.mrb[0].mxu0
        %v1915 = vadd.f32 0.0, %v1914
        %v1916 = vpop.f32.mrb[0].mxu0
        %1917 = vmatprep.mubr.bf16.mxu0 0
        %1918 = vmatmul.mubr.bf16.gmra.mrb[0].mxu0 %v1390
        %v1919 = vpop.f32.mrb[0].mxu0
        %v1920 = vadd.f32 0.0, %v1919
        %v1921 = vpop.f32.mrb[0].mxu0
        %v1922 = vpop.f32.mrb[0].mxu0
        %v1923 = vadd.f32 0.0, %v1922
        %v1924 = vpop.f32.mrb[0].mxu0
        %1925 = vmatprep.mubr.bf16.mxu0 0
        %1926 = vmatmul.mubr.bf16.gmra.mrb[0].mxu0 %v1392
        %v1927 = vpop.f32.mrb[0].mxu0
        %v1928 = vadd.f32 0.0, %v1927
        %v1929 = vpop.f32.mrb[0].mxu0
        %v1930 = vpop.f32.mrb[0].mxu0
        %v1931 = vadd.f32 0.0, %v1930
        %v1932 = vpop.f32.mrb[0].mxu0
        %1933 = vmatprep.mubr.bf16.mxu0 0
        %1934 = vmatmul.mubr.bf16.gmra.mrb[0].mxu0 %v1394
        %v1935 = vpop.f32.mrb[0].mxu0
        %v1936 = vadd.f32 0.0, %v1935
        %v1937 = vpop.f32.mrb[0].mxu0
        %v1938 = vpop.f32.mrb[0].mxu0
        %v1939 = vadd.f32 0.0, %v1938
        %v1940 = vpop.f32.mrb[0].mxu0
        %1941 = vmatprep.mubr.bf16.mxu0 0
        %1942 = vmatmul.mubr.bf16.gmra.mrb[0].mxu0 %v1396
        %v1943 = vpop.f32.mrb[0].mxu0
        %v1944 = vadd.f32 0.0, %v1943
        %v1945 = vpop.f32.mrb[0].mxu0
        %v1946 = vpop.f32.mrb[0].mxu0
        %v1947 = vadd.f32 0.0, %v1946
        %v1948 = vpop.f32.mrb[0].mxu0
        %1949 = vmatprep.mubr.bf16.mxu0 0
        %1950 = vmatmul.mubr.bf16.gmra.mrb[0].mxu0 %v1398
        %v1951 = vpop.f32.mrb[0].mxu0
        %v1952 = vadd.f32 0.0, %v1951
        %v1953 = vpop.f32.mrb[0].mxu0
        %v1954 = vpop.f32.mrb[0].mxu0
        %v1955 = vadd.f32 0.0, %v1954
        %v1956 = vpop.f32.mrb[0].mxu0
        %1957 = vmatprep.mubr.bf16.mxu0 0
        %1958 = vmatmul.mubr.bf16.gmra.mrb[0].mxu0 %v1400
        %v1959 = vpop.f32.mrb[0].mxu0
        %v1960 = vadd.f32 0.0, %v1959
        %v1961 = vpop.f32.mrb[0].mxu0
        %v1962 = vpop.f32.mrb[0].mxu0
        %v1963 = vadd.f32 0.0, %v1962
        %v1964 = vpop.f32.mrb[0].mxu0
        %1965 = vmatprep.mubr.bf16.mxu0 0
        %1966 = vmatmul.mubr.bf16.gmra.mrb[0].mxu0 %v1811
        %v1967 = vpop.f32.mrb[0].mxu0
        %v1968 = vadd.f32 0.0, %v1967
        %v1969 = vpop.f32.mrb[0].mxu0
        %v1970 = vpop.f32.mrb[0].mxu0
        %v1971 = vadd.f32 0.0, %v1970
        %v1972 = vpop.f32.mrb[0].mxu0
        %1973 = vdwg.mxu0
        %v1974 = vadd.f32 %v1636, %v1848
        %v1975 = vadd.f32 %v1639, %v1851
        %v1976 = vadd.f32 %v1644, %v1856
        %v1977 = vadd.f32 %v1647, %v1859
        %v1978 = vadd.f32 %v1652, %v1864
        %v1979 = vadd.f32 %v1655, %v1867
        %v1980 = vadd.f32 %v1660, %v1872
        %v1981 = vadd.f32 %v1663, %v1875
        %v1982 = vadd.f32 %v1668, %v1880
        %v1983 = vadd.f32 %v1671, %v1883
        %v1984 = vadd.f32 %v1676, %v1888
        %v1985 = vadd.f32 %v1679, %v1891
        %v1986 = vadd.f32 %v1684, %v1896
        %v1987 = vadd.f32 %v1687, %v1899
        %v1988 = vadd.f32 %v1692, %v1904
        %v1989 = vadd.f32 %v1695, %v1907
        %v1990 = vadd.f32 %v1700, %v1912
        %v1991 = vadd.f32 %v1703, %v1915
        %v1992 = vadd.f32 %v1708, %v1920
        %v1993 = vadd.f32 %v1711, %v1923
        %v1994 = vadd.f32 %v1716, %v1928
        %v1995 = vadd.f32 %v1719, %v1931
        %v1996 = vadd.f32 %v1724, %v1936
        %v1997 = vadd.f32 %v1727, %v1939
        %v1998 = vadd.f32 %v1732, %v1944
        %v1999 = vadd.f32 %v1735, %v1947
        %v2000 = vadd.f32 %v1740, %v1952
        %v2001 = vadd.f32 %v1743, %v1955
        %v2002 = vadd.f32 %v1748, %v1960
        %v2003 = vadd.f32 %v1751, %v1963
        %v2004 = vadd.f32 %v1756, %v1968
        %v2005 = vadd.f32 %v1759, %v1971
        %v2006 = vld [vmem:[%s6] sm:$0x1]
        %v2008 = vlaneseq
        %v2009 = vshrl.u32 %v2008, 7
        %v2010 = vsub.s32 0, %v2009
        %v2011 = vrot.slane %v2006, %v2010
        %v2013 = vadd.f32 %v1974, %v2011
        %v2014 = vadd.f32 %v1975, %v2011
        %v2015 = vadd.f32 %v1976, %v2011
        %v2016 = vadd.f32 %v1977, %v2011
        %v2017 = vadd.f32 %v1978, %v2011
        %v2018 = vadd.f32 %v1979, %v2011
        %v2019 = vadd.f32 %v1980, %v2011
        %v2020 = vadd.f32 %v1981, %v2011
        %v2021 = vadd.f32 %v1982, %v2011
        %v2022 = vadd.f32 %v1983, %v2011
        %v2023 = vadd.f32 %v1984, %v2011
        %v2024 = vadd.f32 %v1985, %v2011
        %v2025 = vadd.f32 %v1986, %v2011
        %v2026 = vadd.f32 %v1987, %v2011
        %v2027 = vadd.f32 %v1988, %v2011
        %v2028 = vadd.f32 %v1989, %v2011
        %v2029 = vadd.f32 %v1990, %v2011
        %v2030 = vadd.f32 %v1991, %v2011
        %v2031 = vadd.f32 %v1992, %v2011
        %v2032 = vadd.f32 %v1993, %v2011
        %v2033 = vadd.f32 %v1994, %v2011
        %v2034 = vadd.f32 %v1995, %v2011
        %v2035 = vadd.f32 %v1996, %v2011
        %v2036 = vadd.f32 %v1997, %v2011
        %v2037 = vadd.f32 %v1998, %v2011
        %v2038 = vadd.f32 %v1999, %v2011
        %v2039 = vadd.f32 %v2000, %v2011
        %v2040 = vadd.f32 %v2001, %v2011
        %v2041 = vadd.f32 %v2002, %v2011
        %v2042 = vadd.f32 %v2003, %v2011
        %v2043 = vadd.f32 %v2004, %v2011
        %v2044 = vadd.f32 %v2005, %v2011
        %2045 = vst.msk [vmem:[%s410] sm:$0xff] %vm1234, %v2013
        %2046 = vst.msk [vmem:[%s410 + $0x8] sm:$0xff] %vm1234, %v2014
        %2047 = vst.msk [vmem:[%s410 + $0x10] sm:$0xff] %vm1234, %v2015
        %2048 = vst.msk [vmem:[%s410 + $0x18] sm:$0xff] %vm1234, %v2016
        %2049 = vst.msk [vmem:[%s410 + $0x20] sm:$0xff] %vm1234, %v2017
        %2050 = vst.msk [vmem:[%s410 + $0x28] sm:$0xff] %vm1234, %v2018
        %2051 = vst.msk [vmem:[%s410 + $0x30] sm:$0xff] %vm1234, %v2019
        %2052 = vst.msk [vmem:[%s410 + $0x38] sm:$0xff] %vm1234, %v2020
        %2053 = vst.msk [vmem:[%s410 + $0x40] sm:$0xff] %vm1234, %v2021
        %2054 = vst.msk [vmem:[%s410 + $0x48] sm:$0xff] %vm1234, %v2022
        %2055 = vst.msk [vmem:[%s410 + $0x50] sm:$0xff] %vm1234, %v2023
        %2056 = vst.msk [vmem:[%s410 + $0x58] sm:$0xff] %vm1234, %v2024
        %2057 = vst.msk [vmem:[%s410 + $0x60] sm:$0xff] %vm1234, %v2025
        %2058 = vst.msk [vmem:[%s410 + $0x68] sm:$0xff] %vm1234, %v2026
        %2059 = vst.msk [vmem:[%s410 + $0x70] sm:$0xff] %vm1234, %v2027
        %2060 = vst.msk [vmem:[%s410 + $0x78] sm:$0xff] %vm1234, %v2028
        %2061 = vst.msk [vmem:[%s410 + $0x80] sm:$0xff] %vm1234, %v2029
        %2062 = vst.msk [vmem:[%s410 + $0x88] sm:$0xff] %vm1234, %v2030
        %2063 = vst.msk [vmem:[%s410 + $0x90] sm:$0xff] %vm1234, %v2031
        %2064 = vst.msk [vmem:[%s410 + $0x98] sm:$0xff] %vm1234, %v2032
        %2065 = vst.msk [vmem:[%s410 + $0xa0] sm:$0xff] %vm1234, %v2033
        %2066 = vst.msk [vmem:[%s410 + $0xa8] sm:$0xff] %vm1234, %v2034
        %2067 = vst.msk [vmem:[%s410 + $0xb0] sm:$0xff] %vm1234, %v2035
        %2068 = vst.msk [vmem:[%s410 + $0xb8] sm:$0xff] %vm1234, %v2036
        %2069 = vst.msk [vmem:[%s410 + $0xc0] sm:$0xff] %vm1234, %v2037
        %2070 = vst.msk [vmem:[%s410 + $0xc8] sm:$0xff] %vm1234, %v2038
        %2071 = vst.msk [vmem:[%s410 + $0xd0] sm:$0xff] %vm1234, %v2039
        %2072 = vst.msk [vmem:[%s410 + $0xd8] sm:$0xff] %vm1234, %v2040
        %2073 = vst.msk [vmem:[%s410 + $0xe0] sm:$0xff] %vm1234, %v2041
        %2074 = vst.msk [vmem:[%s410 + $0xe8] sm:$0xff] %vm1234, %v2042
        %2075 = vst.msk [vmem:[%s410 + $0xf0] sm:$0xff] %vm1234, %v2043
        %2076 = vst.msk [vmem:[%s410 + $0xf8] sm:$0xff] %vm1234, %v2044
        %s2077 = sand.u32 %s237, 1
        %s2078 = scalar_lea.sflag [#allocation3], %s2077
        %s2079 = sand.u32 %s237, 1
        %s2080 = smul.addr %s2079, 256
        %s2081 = scalar_lea.vmem [#allocation2], %s2080
        // Predicated region
        $region49: #{up_decoder_block_3d.15} parent=47 // pred_check
          %p2082 = pneg %p247
        $region50: #{up_decoder_block_3d.15} parent=47 // pred_check_branch
          %2084 = sbr.rel (%p2082) target = $region52
        $region51: #{up_decoder_block_3d.15} parent=47 // pred_region
          %s2085 = smul.u32 16, %s26
          %s2087 = ssub.s32 4096, 4096
          %2088 = vsyncadd %s2078, %s2087
          %s2089 = smul.addr %s2085, 2
          %s2090 = smul.addr %s25, 32
          %s2091 = sadd.s32 %s2089, %s2090
          %s2092 = smul.addr %s2091, 128
          %s2093 = scalar_lea.hbm %s7, %s2092
          %s2094 = sshll.u32 %s2081, 4
          %s2095 = int_to_ptr.vmem [resolvable:$true] %s2094
          %2100 = dma.vmem_to_hbm [thread:$0]  %s2095, 4096, %s2093, %s2078, 128, 128, 8
        $region52: #{up_decoder_block_3d.15} parent=47 // pred_fallthru
          _
      $region48: #{up_decoder_block_3d.15} parent=5 // pred_fallthru
        _
      %p2101 = scmp.le.s32.totalorder 2, %s16
      // Predicated region
      $region53: #{up_decoder_block_3d.15} parent=5 // pred_check
        %p2102 = pneg %p2101
      $region54: #{up_decoder_block_3d.15} parent=5 // pred_check_branch
        %2104 = sbr.rel (%p2102) target = $region56
      $region55: #{up_decoder_block_3d.15} parent=5 // pred_region
        %s2105 = ssub.s32 %s16, 2
        // Predicated region
        $region57: #{up_decoder_block_3d.15} parent=55 // pred_check
          %p2106 = pneg %p253
        $region58: #{up_decoder_block_3d.15} parent=55 // pred_check_branch
          %2108 = sbr.rel (%p2106) target = $region60
        $region59: #{up_decoder_block_3d.15} parent=55 // pred_region
          %s2109 = sand.u32 %s238, 1
          %s2110 = scalar_lea.sflag [#allocation3], %s2109
          %s2111 = sand.u32 %s238, 1
          %s2112 = smul.addr %s2111, 256
          %s2113 = scalar_lea.vmem [#allocation2], %s2112
          %2114 = dma.done %s2110, 4096
        $region60: #{up_decoder_block_3d.15} parent=55 // pred_fallthru
          _
      $region56: #{up_decoder_block_3d.15} parent=5 // pred_fallthru
        _
    $region6: #{up_decoder_block_3d.15} parent=1 // loop_footer
      %s20 = sadd.s32 1, %s16
    $region7: #{up_decoder_block_3d.15} parent=1 // loop_footer_branch
      %15 = sbr.rel target = $region3
    $region8: #{up_decoder_block_3d.15} parent=1 // loop_exit
      _
    %2115 = vsyncpa [#allocation3], 1
    %s2116 = scalar_lea.sflag [#allocation3], 1
    %2117 = vsyncpa %s2116, 1

</llo_original>
